<compile_context>
chip_gen: v7x
topology: tpu7x:2x2x1
jax: 0.10.0
libtpu: 0.0.40
codegen_flags: <defaults>
</compile_context>

<pallas_src>
import jax
import jax.numpy as jnp
from jax import lax
from jax.experimental import pallas as pl
from jax.experimental.pallas import tpu as pltpu

MAX_STEPS = 100      # the PyTorch forward hard-codes 100 decode steps
START_TOKEN = 3      # the PyTorch forward seeds predictions with token id 3


def _make_decoder_kernel(num_layers, B, L, HP, H2, V, T, fast):
    """B: sublane-padded batch, L: lane-padded encoder length (multiple of 128),
    HP: lane-padded hidden size (multiple of 128), H2: 2*hidden (states dim)."""

    f32 = jnp.float32
    bf16 = jnp.bfloat16

    def kernel(*refs):
        it = iter(refs)
        states_ref = next(it)          # (B, L, H2) f32
        len_ref = next(it)             # (B, 1) int32
        init_h_ref = next(it)          # (num_layers, B, HP) f32
        init_y_ref = next(it)          # (B, HP) f32
        ex_ref = next(it)              # (V, 3HP) f32: embed @ Wx (embedding folded)
        gru = [(next(it), next(it), next(it), next(it)) for _ in range(num_layers)]
        #   per layer: w_in (HP,3HP) bf16, w_h (HP,3HP) bf16,
        #              b_gi (1,3HP) f32 [r:ih+hh | z:ih+hh | n:ih], b_hn (1,HP) f32
        w_pre = next(it)               # (H2, 2HP) bf16  [attn_W.T | fc_wa.T]
        pre_b = next(it)               # (1, 2HP)  f32   [b_W + b_U | 0]
        w_ufc = next(it)               # (HP, 2HP) bf16  [attn_U.T | fc_wh.T]
        attn_v = next(it)              # (1, HP)   f32   (attn_v bias cancels in softmax)
        fc_b = next(it)                # (1, HP)   f32
        cls_w = next(it)               # (HP, V)   bf16
        cls_b = next(it)               # (1, V)    f32
        pred_ref = next(it)            # out: (T+1, B) int32, VMEM
        attn_out_ref = next(it)        # out: (T, B, L) f32 (HBM if fast, VMEM else)
        h_scr = next(it)               # (num_layers, B, HP) f32
        y_scr = next(it)               # (B, HP) f32
        samp_scr = next(it)            # (B, 1) int32: previous sampled token
        pre_scr = next(it)             # (B, L, 2HP) bf16: [attn_W(states)+b | S_fc]
        x_scr = next(it)               # (B, 3HP) f32: gathered EX rows
        if fast:
            attn_buf = next(it)        # (2, B, L) f32: writeback double buffer
            dma_sem = next(it)         # DMA sems (2,)

        # ---- init ----
        h_scr[...] = init_h_ref[...]
        y_scr[...] = init_y_ref[...]
        pred_ref[0, :] = jnp.full((B,), START_TOKEN, jnp.int32)
        samp_scr[...] = jnp.full((B, 1), START_TOKEN, jnp.int32)

        # loop-invariant encoder-state precompute (one fused matmul):
        #   [attn_W @ states + (b_W + b_U)  |  states @ fc_wa]  -> bf16 scratch
        s16 = states_ref[...].reshape(B * L, H2).astype(bf16)
        pre = jnp.dot(s16, w_pre[...], preferred_element_type=f32) + pre_b[...]
        pre_scr[...] = pre.astype(bf16).reshape(B, L, 2 * HP)

        @pl.loop(0, T)
        def _(t):
            # ---- layer-0 input-gate contribution of the previous token ----
            # (embedding folded into the fused gate weights: pure row gather)
            if fast:
                for b in range(B):
                    idx = samp_scr[b, 0]
                    x_scr[pl.ds(b, 1), :] = ex_ref[pl.ds(idx, 1), :]
                gx = x_scr[...]                                     # (B, 3HP) f32
            else:
                voc = lax.broadcasted_iota(jnp.int32, (B, V), 1)
                onehot = (voc == samp_scr[...]).astype(f32)
                gx = jnp.dot(onehot, ex_ref[...], preferred_element_type=f32)

            y16 = y_scr[...].astype(bf16)

            # ---- stacked GRU cells, fused r|z|n gates (eval: dropout = id) ----
            inp16 = None
            for layer in range(num_layers):
                w_in, w_h, b_gi, b_hn = gru[layer]
                h_prev = h_scr[layer]                               # (B, HP) f32
                h16 = h_prev.astype(bf16)
                if layer == 0:
                    gi = (gx + jnp.dot(y16, w_in[...], preferred_element_type=f32)
                          + b_gi[...])
                else:
                    gi = (jnp.dot(inp16, w_in[...], preferred_element_type=f32)
                          + b_gi[...])
                gh = jnp.dot(h16, w_h[...], preferred_element_type=f32)
                # PyTorch nn.GRUCell gate order: r, z, n (lane-aligned slices)
                r = jax.nn.sigmoid(gi[:, :HP] + gh[:, :HP])
                z = jax.nn.sigmoid(gi[:, HP:2 * HP] + gh[:, HP:2 * HP])
                n = jnp.tanh(gi[:, 2 * HP:] + r * (gh[:, 2 * HP:] + b_hn[...]))
                h_new = (1.0 - z) * n + z * h_prev
                h_scr[layer] = h_new
                inp16 = h_new.astype(bf16)
            h_top16 = inp16                                         # (B, HP) bf16

            # ---- Luong additive attention (attn_U and fc_wh fused on h_top) ----
            ufc = jnp.dot(h_top16, w_ufc[...], preferred_element_type=f32)  # (B,2HP)
            u = ufc[:, :HP]
            fc_h = ufc[:, HP:]

            pre_bl = pre_scr[...]
            epre = pre_bl[:, :, :HP].astype(f32)                    # (B, L, HP)
            act = jax.nn.relu(epre + u[:, None, :])
            scores = jnp.sum(act * attn_v[...].reshape(1, 1, HP), axis=-1)  # (B,L)
            pos = lax.broadcasted_iota(jnp.int32, (B, L), 1)
            scores = jnp.where(pos >= len_ref[...], -jnp.inf, scores)
            m = jnp.max(scores, axis=-1, keepdims=True)
            p = jnp.exp(scores - m)
            inv = pl.reciprocal(jnp.sum(p, axis=-1, keepdims=True), approx=False)
            w = p * inv                                             # (B, L) f32

            # ---- attention-weight writeback ----
            if fast:
                # stream to HBM through a 2-deep buffer; DMA hides under the
                # next step's GRU matmuls.
                slot = t & 1

                @pl.when(t >= 2)
                def _():
                    pltpu.make_async_copy(attn_buf.at[slot],
                                          attn_out_ref.at[t - 2],
                                          dma_sem.at[slot]).wait()

                attn_buf[slot] = w
                pltpu.make_async_copy(attn_buf.at[slot], attn_out_ref.at[t],
                                      dma_sem.at[slot]).start()
            else:
                attn_out_ref[t, :, :] = w      # dense (sublane, 128-lane) store

            # ---- y = relu(fc([attns ; h_top])): fc_wa folded into S_fc ----
            sfc = pre_bl[:, :, HP:]                                 # (B, L, HP) bf16
            if fast:
                c_fc = jnp.einsum("bql,blh->bqh", w.astype(bf16)[:, None, :], sfc,
                                  preferred_element_type=f32)[:, 0, :]      # (B,HP)
            else:
                c_fc = jnp.sum(sfc.astype(f32) * w[:, :, None], axis=1)
            y_new = jax.nn.relu(c_fc + fc_h + fc_b[...])
            y_scr[...] = y_new

            # ---- classifier + greedy argmax (first max, like torch.argmax) ----
            logits = (jnp.dot(y_new.astype(bf16), cls_w[...],
                              preferred_element_type=f32) + cls_b[...])     # (B,V)
            voc2 = lax.broadcasted_iota(jnp.int32, (B, V), 1)
            is_max = logits == jnp.max(logits, axis=-1, keepdims=True)
            sample = jnp.min(jnp.where(is_max, voc2, V), axis=-1)
            sample = jnp.minimum(sample, V - 1).astype(jnp.int32)  # gather OOB guard
            pred_ref[t + 1, :] = sample
            samp_scr[...] = sample[:, None]
            # TODO(synk): keep the sampled token in SMEM (scalar path) and batch
            #             the pred writeback to shorten the step-boundary chain.

        if fast:
            # drain the last (up to two) outstanding attention-weight DMAs
            for s in range(min(T, 2)):
                slot = (T - 1 - s) & 1
                pltpu.make_async_copy(attn_buf.at[slot], attn_out_ref.at[0],
                                      dma_sem.at[slot]).wait()

    return kernel


def decoder_greedy_forward(params, states, lengths, num_layers, T=MAX_STEPS,
                           fast=True):
    """Greedy decode (ground_truths=None, beam_width=1)."""
    B, L, two_h = states.shape
    H = two_h // 2
    V = params["embed"].shape[0]
    BP = -(-B // 8) * 8                  # pad batch to f32 sublane width
    LP = -(-L // 128) * 128              # pad encoder length to lane width
    HP = -(-H // 128) * 128              # pad hidden so gate slices are lane aligned

    f32, bf16, i32 = jnp.float32, jnp.bfloat16, jnp.int32

    def pad2(x, r, c):
        x = x.astype(f32)
        return jnp.zeros((r, c), f32).at[:x.shape[0], :x.shape[1]].set(x)

    def pad_row(v, width):
        v = v.reshape(-1).astype(f32)
        return jnp.zeros((1, width), f32).at[0, :v.shape[0]].set(v)

    def fuse_gates(wmat, in_pad):
        # (3H, in) PyTorch layout, gate order (r, z, n) -> (in_pad, 3*HP)
        blocks = [pad2(wmat[g * H:(g + 1) * H, :].T, in_pad, HP) for g in range(3)]
        return jnp.concatenate(blocks, axis=1)

    states_p = jnp.zeros((BP, LP, two_h), f32).at[:B, :L, :].set(states.astype(f32))
    # pad rows get length 1 so their (unused) softmax rows stay finite; real rows
    # are assumed >=1 (same NaN behaviour as PyTorch for zero-length inputs).
    lengths_p = jnp.ones((BP,), i32).at[:B].set(lengths.astype(i32)).reshape(BP, 1)

    init_h = jnp.zeros((num_layers, BP, HP), f32).at[:, :, :H].set(
        jnp.tile(params["init_h"].astype(f32), (1, BP, 1)))
    init_y = jnp.zeros((BP, HP), f32).at[:, :H].set(
        jnp.tile(params["init_y"].astype(f32), (BP, 1)))

    gru_inputs = []
    ex = None
    for l in range(num_layers):
        w_ih, w_hh, b_ih, b_hh = params["gru"][l]
        if l == 0:
            # layer-0 input is cat([y, x]) in that order; fold the embedding
            # table into the x-half of the fused gate weights.
            w_in = fuse_gates(w_ih[:, :H], HP)                     # acts on y
            wx = fuse_gates(w_ih[:, H:], H)                        # acts on x
            ex = jnp.dot(params["embed"].astype(f32), wx)          # (V, 3HP)
        else:
            w_in = fuse_gates(w_ih, HP)
        w_h = fuse_gates(w_hh, HP)
        b_gi = jnp.concatenate(
            [pad_row(b_ih[0:H] + b_hh[0:H], HP),                   # r (folded)
             pad_row(b_ih[H:2 * H] + b_hh[H:2 * H], HP),           # z (folded)
             pad_row(b_ih[2 * H:3 * H], HP)], axis=1)              # n (input bias)
        b_hn = pad_row(b_hh[2 * H:3 * H], HP)                      # n (hidden bias)
        gru_inputs += [w_in.astype(bf16), w_h.astype(bf16), b_gi, b_hn]

    attn_w_w, attn_w_b = params["attn_W"]        # (H, 2H), (H,)
    attn_u_w, attn_u_b = params["attn_U"]        # (H, H),  (H,)
    attn_v_w, _attn_v_b = params["attn_v"]       # (1, H),  (1,) bias cancels in softmax
    fc_w, fc_b = params["fc"]                    # (H, 3H), (H,)
    cls_w, cls_b = params["classifier"]          # (V, H),  (V,)

    # loop-invariant weights on encoder states: [attn_W.T | fc_wa.T]
    w_pre = jnp.concatenate([pad2(attn_w_w.T, two_h, HP),
                             pad2(fc_w[:, :two_h].T, two_h, HP)], axis=1)  # (2H,2HP)
    pre_b = jnp.concatenate([pad_row(attn_w_b + attn_u_b, HP),
                             jnp.zeros((1, HP), f32)], axis=1)             # (1, 2HP)
    # fused weights on h_top: [attn_U.T | fc_wh.T]
    w_ufc = jnp.concatenate([pad2(attn_u_w.T, HP, HP),
                             pad2(fc_w[:, two_h:].T, HP, HP)], axis=1)     # (HP,2HP)

    inputs = [states_p, lengths_p, init_h, init_y, ex.astype(f32),
              *gru_inputs,
              w_pre.astype(bf16), pre_b,
              w_ufc.astype(bf16),
              pad_row(attn_v_w.reshape(-1), HP),
              pad_row(fc_b, HP),
              pad2(cls_w.T, HP, V).astype(bf16),
              cls_b.reshape(1, V).astype(f32)]

    scratch = [
        pltpu.VMEM((num_layers, BP, HP), f32),        # h
        pltpu.VMEM((BP, HP), f32),                    # y
        pltpu.VMEM((BP, 1), i32),                     # previous sampled token
        pltpu.VMEM((BP, LP, 2 * HP), bf16),           # [attn_W(states)+b | S_fc]
        pltpu.VMEM((BP, 3 * HP), f32),                # gathered EX rows
    ]
    if fast:
        scratch += [pltpu.VMEM((2, BP, LP), f32),     # attention writeback buffer
                    pltpu.SemaphoreType.DMA((2,))]

    kernel = _make_decoder_kernel(num_layers, BP, LP, HP, two_h, V, T, fast)

    # generation-aware scoped-VMEM limit: actual resident footprint, capped to
    # the physical per-core VMEM of the chip we are compiling for.
    resident = sum(int(x.size) * x.dtype.itemsize for x in inputs)
    resident += (T + 1) * BP * 4                                   # pred output
    resident += (num_layers * BP * HP + BP * HP + BP) * 4          # h, y, samp
    resident += BP * LP * 2 * HP * 2                               # bf16 precompute
    resident += BP * 3 * HP * 4                                    # EX gather rows
    if fast:
        resident += 2 * BP * LP * 4                                # 2-deep attn buf
    else:
        resident += T * BP * LP * 4                                # VMEM attn output
    try:
        cap = int(pltpu.get_tpu_info().vmem_capacity_bytes)
    except Exception:
        cap = 64 * 1024 * 1024                                     # v7x per-TC floor
    vmem_limit = int(min(max(int(1.25 * resident) + (4 << 20), 16 << 20),
                         int(0.9 * cap)))

    vmem = pltpu.MemorySpace.VMEM
    preds_tm, attn_tm = pl.pallas_call(
        kernel,
        out_shape=(
            jax.ShapeDtypeStruct((T + 1, BP), i32),
            jax.ShapeDtypeStruct((T, BP, LP), jnp.float32),
        ),
        in_specs=[pl.BlockSpec(memory_space=vmem) for _ in inputs],
        out_specs=(
            pl.BlockSpec(memory_space=vmem),
            pl.BlockSpec(memory_space=pl.ANY if fast else vmem),
        ),
        scratch_shapes=scratch,
        compiler_params=pltpu.CompilerParams(vmem_limit_bytes=vmem_limit),
    )(*inputs)

    predictions = preds_tm[:, :B].T                                  # (B, T+1)
    all_attn_weights = jnp.transpose(attn_tm[:, :B, :L], (1, 0, 2))  # (B, T, L)
    return predictions, all_attn_weights


def init_params(key, n_words, hidden_size, num_layers):
    H = hidden_size
    keys = iter(jax.random.split(key, 64))

    def nrm(shape, scale=0.2):
        return (scale * jax.random.normal(next(keys), shape)).astype(jnp.float32)

    params = {
        "embed": nrm((n_words, H)),
        "init_h": nrm((num_layers, 1, H), 1.0),
        "init_y": nrm((1, H), 1.0),
        "attn_W": (nrm((H, 2 * H)), nrm((H,))),
        "attn_U": (nrm((H, H)), nrm((H,))),
        "attn_v": (nrm((1, H)), nrm((1,))),
        "fc": (nrm((H, 3 * H)), nrm((H,))),
        "classifier": (nrm((n_words, H)), nrm((n_words,))),
    }
    gru = []
    for i in range(num_layers):
        in_dim = 2 * H if i == 0 else H
        gru.append((nrm((3 * H, in_dim)), nrm((3 * H, H)),
                    nrm((3 * H,)), nrm((3 * H,))))
    params["gru"] = gru
    return params


if __name__ == "__main__":
    B, L, H, V, NUM_LAYERS = 2, 8, 32, 16, 2
    key = jax.random.PRNGKey(0)
    k_p, k_s = jax.random.split(key)

    params = init_params(k_p, n_words=V, hidden_size=H, num_layers=NUM_LAYERS)
    # padded encoder output states (B, L, 2H) and their true lengths
    states = jax.random.normal(k_s, (B, L, 2 * H), dtype=jnp.float32)
    lengths = jnp.array([L, 5], dtype=jnp.int32)

    try:
        out = decoder_greedy_forward(params, states, lengths, NUM_LAYERS, fast=True)
        preds, attn_weights = jax.block_until_ready(out)
    except Exception:
        # Fallback with identical semantics: one-hot embedding matmul, VPU
        # context sum, VMEM-resident attention output (previously validated
        # structure), in case the dynamic gather / HBM-streaming path does not
        # lower on this toolchain.
        out = decoder_greedy_forward(params, states, lengths, NUM_LAYERS, fast=False)
        preds, attn_weights = jax.block_until_ready(out)

    assert preds.shape == (B, MAX_STEPS + 1)
    assert attn_weights.shape == (B, MAX_STEPS, L)
    assert preds.dtype == jnp.int32
    assert bool(jnp.all(jnp.isfinite(attn_weights)))
    # attention rows are a valid softmax over un-padded positions
    assert bool(jnp.allclose(jnp.sum(attn_weights, axis=-1), 1.0, atol=1e-3))
    assert bool(jnp.all(attn_weights[1, :, 5:] == 0.0))   # padded positions masked
    assert bool(jnp.all(preds[:, 0] == START_TOKEN))

    print("KERNEL_OK")
</pallas_src>

<mosaic_0001>
module attributes {stable_mosaic.version = 11 : i64} {
  func.func @kernel(%arg0: memref<8x128x64xf32, #tpu.memory_space<vmem>>, %arg1: memref<8x1xi32, #tpu.memory_space<vmem>>, %arg2: memref<2x8x128xf32, #tpu.memory_space<vmem>>, %arg3: memref<8x128xf32, #tpu.memory_space<vmem>>, %arg4: memref<16x384xf32, #tpu.memory_space<vmem>>, %arg5: memref<128x384xbf16, #tpu.memory_space<vmem>>, %arg6: memref<128x384xbf16, #tpu.memory_space<vmem>>, %arg7: memref<1x384xf32, #tpu.memory_space<vmem>>, %arg8: memref<1x128xf32, #tpu.memory_space<vmem>>, %arg9: memref<128x384xbf16, #tpu.memory_space<vmem>>, %arg10: memref<128x384xbf16, #tpu.memory_space<vmem>>, %arg11: memref<1x384xf32, #tpu.memory_space<vmem>>, %arg12: memref<1x128xf32, #tpu.memory_space<vmem>>, %arg13: memref<64x256xbf16, #tpu.memory_space<vmem>>, %arg14: memref<1x256xf32, #tpu.memory_space<vmem>>, %arg15: memref<128x256xbf16, #tpu.memory_space<vmem>>, %arg16: memref<1x128xf32, #tpu.memory_space<vmem>>, %arg17: memref<1x128xf32, #tpu.memory_space<vmem>>, %arg18: memref<128x16xbf16, #tpu.memory_space<vmem>>, %arg19: memref<1x16xf32, #tpu.memory_space<vmem>>, %arg20: memref<101x8xi32, #tpu.memory_space<vmem>>, %arg21: memref<100x8x128xf32, #tpu.memory_space<any>>, %arg22: memref<2x8x128xf32, #tpu.memory_space<vmem>>, %arg23: memref<8x128xf32, #tpu.memory_space<vmem>>, %arg24: memref<8x1xi32, #tpu.memory_space<vmem>>, %arg25: memref<8x128x256xbf16, #tpu.memory_space<vmem>>, %arg26: memref<8x384xf32, #tpu.memory_space<vmem>>, %arg27: memref<2x8x128xf32, #tpu.memory_space<vmem>>, %arg28: memref<2x!tpu.dma_semaphore, #tpu.memory_space<semaphore_mem>>) attributes {dimension_semantics = [], scalar_prefetch = 0 : i64, scratch_operands = 7 : i64, tpu.core_type = #tpu.core_type<tc>} {
    %c0 = arith.constant 0 : index
    %c0_0 = arith.constant 0 : index
    %c0_1 = arith.constant 0 : index
    %0 = vector.load %arg2[%c0, %c0_0, %c0_1] : memref<2x8x128xf32, #tpu.memory_space<vmem>>, vector<2x8x128xf32>
    %c0_2 = arith.constant 0 : index
    %c0_3 = arith.constant 0 : index
    %c0_4 = arith.constant 0 : index
    %1 = vector.load %arg22[%c0_2, %c0_3, %c0_4] : memref<2x8x128xf32, #tpu.memory_space<vmem>>, vector<2x8x128xf32>
    tpu.vector_store %arg22[%c0_2, %c0_3, %c0_4], %0 {strides = array<i32>} : memref<2x8x128xf32, #tpu.memory_space<vmem>>, vector<2x8x128xf32>,
    %c0_5 = arith.constant 0 : index
    %c0_6 = arith.constant 0 : index
    %2 = vector.load %arg3[%c0_5, %c0_6] : memref<8x128xf32, #tpu.memory_space<vmem>>, vector<8x128xf32>
    %c0_7 = arith.constant 0 : index
    %c0_8 = arith.constant 0 : index
    %3 = vector.load %arg23[%c0_7, %c0_8] : memref<8x128xf32, #tpu.memory_space<vmem>>, vector<8x128xf32>
    tpu.vector_store %arg23[%c0_7, %c0_8], %2 {strides = array<i32>} : memref<8x128xf32, #tpu.memory_space<vmem>>, vector<8x128xf32>,
    %c3_i32 = arith.constant 3 : i32
    %4 = vector.broadcast %c3_i32 : i32 to vector<8xi32>
    %c0_9 = arith.constant 0 : index
    %c0_10 = arith.constant 0 : index
    %5 = vector.load %arg20[%c0_9, %c0_10] : memref<101x8xi32, #tpu.memory_space<vmem>>, vector<1x8xi32>
    %6 = vector.shape_cast %5 : vector<1x8xi32> to vector<8xi32>
    %7 = vector.shape_cast %4 : vector<8xi32> to vector<1x8xi32>
    tpu.vector_store %arg20[%c0_9, %c0_10], %7 {strides = array<i32>} : memref<101x8xi32, #tpu.memory_space<vmem>>, vector<1x8xi32>,
    %c3_i32_11 = arith.constant 3 : i32
    %8 = vector.broadcast %c3_i32_11 : i32 to vector<8x1xi32>
    %c0_12 = arith.constant 0 : index
    %c0_13 = arith.constant 0 : index
    %9 = vector.load %arg24[%c0_12, %c0_13] : memref<8x1xi32, #tpu.memory_space<vmem>>, vector<8x1xi32>
    tpu.vector_store %arg24[%c0_12, %c0_13], %8 {strides = array<i32>} : memref<8x1xi32, #tpu.memory_space<vmem>>, vector<8x1xi32>,
    %c0_14 = arith.constant 0 : index
    %c0_15 = arith.constant 0 : index
    %c0_16 = arith.constant 0 : index
    %10 = vector.load %arg0[%c0_14, %c0_15, %c0_16] : memref<8x128x64xf32, #tpu.memory_space<vmem>>, vector<8x128x64xf32>
    %11 = vector.shape_cast %10 : vector<8x128x64xf32> to vector<1024x64xf32>
    %12 = arith.truncf %11 : vector<1024x64xf32> to vector<1024x64xbf16>
    %c0_17 = arith.constant 0 : index
    %c0_18 = arith.constant 0 : index
    %13 = vector.load %arg13[%c0_17, %c0_18] : memref<64x256xbf16, #tpu.memory_space<vmem>>, vector<64x256xbf16>
    %cst = arith.constant dense<0.000000e+00> : vector<1024x256xf32>
    %14 = tpu.matmul %12, %13, %cst {dimension_numbers = #tpu.dot_dimension_numbers<[1], [0], [0], [1], [0, 0, 1, 1], [], []>} : vector<1024x64xbf16>, vector<64x256xbf16>, vector<1024x256xf32> -> vector<1024x256xf32>
    %c0_19 = arith.constant 0 : index
    %c0_20 = arith.constant 0 : index
    %15 = vector.load %arg14[%c0_19, %c0_20] : memref<1x256xf32, #tpu.memory_space<vmem>>, vector<1x256xf32>
    %16 = vector.broadcast %15 : vector<1x256xf32> to vector<1024x256xf32>
    %17 = arith.addf %14, %16 : vector<1024x256xf32>
    %18 = arith.truncf %17 : vector<1024x256xf32> to vector<1024x256xbf16>
    %19 = vector.shape_cast %18 : vector<1024x256xbf16> to vector<8x128x256xbf16>
    %c0_21 = arith.constant 0 : index
    %c0_22 = arith.constant 0 : index
    %c0_23 = arith.constant 0 : index
    %20 = vector.load %arg25[%c0_21, %c0_22, %c0_23] : memref<8x128x256xbf16, #tpu.memory_space<vmem>>, vector<8x128x256xbf16>
    tpu.vector_store %arg25[%c0_21, %c0_22, %c0_23], %19 {strides = array<i32>} : memref<8x128x256xbf16, #tpu.memory_space<vmem>>, vector<8x128x256xbf16>,
    %c0_i32 = arith.constant 0 : i32
    %c100_i32 = arith.constant 100 : i32
    %21 = arith.addi %c0_i32, %c100_i32 : i32
    %c1_i32 = arith.constant 1 : i32
    scf.for %arg29 = %c0_i32 to %21 step %c1_i32  : i32 {
      %c1_i32_39 = arith.constant 1 : i32
      %34 = arith.muli %arg29, %c1_i32_39 : i32
      %c0_i32_40 = arith.constant 0 : i32
      %35 = arith.addi %c0_i32_40, %34 : i32
      %c0_41 = arith.constant 0 : index
      %c0_42 = arith.constant 0 : index
      %36 = vector.load %arg24[%c0_41, %c0_42] : memref<8x1xi32, #tpu.memory_space<vmem>>, vector<1x1xi32>
      %37 = vector.extract %36[0, 0] : i32 from vector<1x1xi32>
      %38 = arith.index_cast %37 : i32 to index
      %c0_43 = arith.constant 0 : index
      %39 = vector.load %arg4[%38, %c0_43] : memref<16x384xf32, #tpu.memory_space<vmem>>, vector<1x384xf32>
      %c0_44 = arith.constant 0 : index
      %c0_45 = arith.constant 0 : index
      %40 = vector.load %arg26[%c0_44, %c0_45] : memref<8x384xf32, #tpu.memory_space<vmem>>, vector<1x384xf32>
      tpu.vector_store %arg26[%c0_44, %c0_45], %39 {strides = array<i32>} : memref<8x384xf32, #tpu.memory_space<vmem>>, vector<1x384xf32>,
      %c1 = arith.constant 1 : index
      %c0_46 = arith.constant 0 : index
      %41 = vector.load %arg24[%c1, %c0_46] : memref<8x1xi32, #tpu.memory_space<vmem>>, vector<1x1xi32>
      %42 = vector.extract %41[0, 0] : i32 from vector<1x1xi32>
      %43 = arith.index_cast %42 : i32 to index
      %c0_47 = arith.constant 0 : index
      %44 = vector.load %arg4[%43, %c0_47] : memref<16x384xf32, #tpu.memory_space<vmem>>, vector<1x384xf32>
      %c1_48 = arith.constant 1 : index
      %c0_49 = arith.constant 0 : index
      %45 = vector.load %arg26[%c1_48, %c0_49] : memref<8x384xf32, #tpu.memory_space<vmem>>, vector<1x384xf32>
      tpu.vector_store %arg26[%c1_48, %c0_49], %44 {strides = array<i32>} : memref<8x384xf32, #tpu.memory_space<vmem>>, vector<1x384xf32>,
      %c2 = arith.constant 2 : index
      %c0_50 = arith.constant 0 : index
      %46 = vector.load %arg24[%c2, %c0_50] : memref<8x1xi32, #tpu.memory_space<vmem>>, vector<1x1xi32>
      %47 = vector.extract %46[0, 0] : i32 from vector<1x1xi32>
      %48 = arith.index_cast %47 : i32 to index
      %c0_51 = arith.constant 0 : index
      %49 = vector.load %arg4[%48, %c0_51] : memref<16x384xf32, #tpu.memory_space<vmem>>, vector<1x384xf32>
      %c2_52 = arith.constant 2 : index
      %c0_53 = arith.constant 0 : index
      %50 = vector.load %arg26[%c2_52, %c0_53] : memref<8x384xf32, #tpu.memory_space<vmem>>, vector<1x384xf32>
      tpu.vector_store %arg26[%c2_52, %c0_53], %49 {strides = array<i32>} : memref<8x384xf32, #tpu.memory_space<vmem>>, vector<1x384xf32>,
      %c3 = arith.constant 3 : index
      %c0_54 = arith.constant 0 : index
      %51 = vector.load %arg24[%c3, %c0_54] : memref<8x1xi32, #tpu.memory_space<vmem>>, vector<1x1xi32>
      %52 = vector.extract %51[0, 0] : i32 from vector<1x1xi32>
      %53 = arith.index_cast %52 : i32 to index
      %c0_55 = arith.constant 0 : index
      %54 = vector.load %arg4[%53, %c0_55] : memref<16x384xf32, #tpu.memory_space<vmem>>, vector<1x384xf32>
      %c3_56 = arith.constant 3 : index
      %c0_57 = arith.constant 0 : index
      %55 = vector.load %arg26[%c3_56, %c0_57] : memref<8x384xf32, #tpu.memory_space<vmem>>, vector<1x384xf32>
      tpu.vector_store %arg26[%c3_56, %c0_57], %54 {strides = array<i32>} : memref<8x384xf32, #tpu.memory_space<vmem>>, vector<1x384xf32>,
      %c4 = arith.constant 4 : index
      %c0_58 = arith.constant 0 : index
      %56 = vector.load %arg24[%c4, %c0_58] : memref<8x1xi32, #tpu.memory_space<vmem>>, vector<1x1xi32>
      %57 = vector.extract %56[0, 0] : i32 from vector<1x1xi32>
      %58 = arith.index_cast %57 : i32 to index
      %c0_59 = arith.constant 0 : index
      %59 = vector.load %arg4[%58, %c0_59] : memref<16x384xf32, #tpu.memory_space<vmem>>, vector<1x384xf32>
      %c4_60 = arith.constant 4 : index
      %c0_61 = arith.constant 0 : index
      %60 = vector.load %arg26[%c4_60, %c0_61] : memref<8x384xf32, #tpu.memory_space<vmem>>, vector<1x384xf32>
      tpu.vector_store %arg26[%c4_60, %c0_61], %59 {strides = array<i32>} : memref<8x384xf32, #tpu.memory_space<vmem>>, vector<1x384xf32>,
      %c5 = arith.constant 5 : index
      %c0_62 = arith.constant 0 : index
      %61 = vector.load %arg24[%c5, %c0_62] : memref<8x1xi32, #tpu.memory_space<vmem>>, vector<1x1xi32>
      %62 = vector.extract %61[0, 0] : i32 from vector<1x1xi32>
      %63 = arith.index_cast %62 : i32 to index
      %c0_63 = arith.constant 0 : index
      %64 = vector.load %arg4[%63, %c0_63] : memref<16x384xf32, #tpu.memory_space<vmem>>, vector<1x384xf32>
      %c5_64 = arith.constant 5 : index
      %c0_65 = arith.constant 0 : index
      %65 = vector.load %arg26[%c5_64, %c0_65] : memref<8x384xf32, #tpu.memory_space<vmem>>, vector<1x384xf32>
      tpu.vector_store %arg26[%c5_64, %c0_65], %64 {strides = array<i32>} : memref<8x384xf32, #tpu.memory_space<vmem>>, vector<1x384xf32>,
      %c6 = arith.constant 6 : index
      %c0_66 = arith.constant 0 : index
      %66 = vector.load %arg24[%c6, %c0_66] : memref<8x1xi32, #tpu.memory_space<vmem>>, vector<1x1xi32>
      %67 = vector.extract %66[0, 0] : i32 from vector<1x1xi32>
      %68 = arith.index_cast %67 : i32 to index
      %c0_67 = arith.constant 0 : index
      %69 = vector.load %arg4[%68, %c0_67] : memref<16x384xf32, #tpu.memory_space<vmem>>, vector<1x384xf32>
      %c6_68 = arith.constant 6 : index
      %c0_69 = arith.constant 0 : index
      %70 = vector.load %arg26[%c6_68, %c0_69] : memref<8x384xf32, #tpu.memory_space<vmem>>, vector<1x384xf32>
      tpu.vector_store %arg26[%c6_68, %c0_69], %69 {strides = array<i32>} : memref<8x384xf32, #tpu.memory_space<vmem>>, vector<1x384xf32>,
      %c7 = arith.constant 7 : index
      %c0_70 = arith.constant 0 : index
      %71 = vector.load %arg24[%c7, %c0_70] : memref<8x1xi32, #tpu.memory_space<vmem>>, vector<1x1xi32>
      %72 = vector.extract %71[0, 0] : i32 from vector<1x1xi32>
      %73 = arith.index_cast %72 : i32 to index
      %c0_71 = arith.constant 0 : index
      %74 = vector.load %arg4[%73, %c0_71] : memref<16x384xf32, #tpu.memory_space<vmem>>, vector<1x384xf32>
      %c7_72 = arith.constant 7 : index
      %c0_73 = arith.constant 0 : index
      %75 = vector.load %arg26[%c7_72, %c0_73] : memref<8x384xf32, #tpu.memory_space<vmem>>, vector<1x384xf32>
      tpu.vector_store %arg26[%c7_72, %c0_73], %74 {strides = array<i32>} : memref<8x384xf32, #tpu.memory_space<vmem>>, vector<1x384xf32>,
      %c0_74 = arith.constant 0 : index
      %c0_75 = arith.constant 0 : index
      %76 = vector.load %arg26[%c0_74, %c0_75] : memref<8x384xf32, #tpu.memory_space<vmem>>, vector<8x384xf32>
      %c0_76 = arith.constant 0 : index
      %c0_77 = arith.constant 0 : index
      %77 = vector.load %arg23[%c0_76, %c0_77] : memref<8x128xf32, #tpu.memory_space<vmem>>, vector<8x128xf32>
      %78 = arith.truncf %77 : vector<8x128xf32> to vector<8x128xbf16>
      %c0_78 = arith.constant 0 : index
      %c0_79 = arith.constant 0 : index
      %c0_80 = arith.constant 0 : index
      %79 = vector.load %arg22[%c0_78, %c0_79, %c0_80] : memref<2x8x128xf32, #tpu.memory_space<vmem>>, vector<1x8x128xf32>
      %80 = vector.shape_cast %79 : vector<1x8x128xf32> to vector<8x128xf32>
      %81 = arith.truncf %80 : vector<8x128xf32> to vector<8x128xbf16>
      %c0_81 = arith.constant 0 : index
      %c0_82 = arith.constant 0 : index
      %82 = vector.load %arg5[%c0_81, %c0_82] : memref<128x384xbf16, #tpu.memory_space<vmem>>, vector<128x384xbf16>
      %cst_83 = arith.constant dense<0.000000e+00> : vector<8x384xf32>
      %83 = tpu.matmul %78, %82, %cst_83 {dimension_numbers = #tpu.dot_dimension_numbers<[1], [0], [0], [1], [0, 0, 1, 1], [], []>} : vector<8x128xbf16>, vector<128x384xbf16>, vector<8x384xf32> -> vector<8x384xf32>
      %84 = arith.addf %76, %83 : vector<8x384xf32>
      %c0_84 = arith.constant 0 : index
      %c0_85 = arith.constant 0 : index
      %85 = vector.load %arg7[%c0_84, %c0_85] : memref<1x384xf32, #tpu.memory_space<vmem>>, vector<1x384xf32>
      %86 = vector.broadcast %85 : vector<1x384xf32> to vector<8x384xf32>
      %87 = arith.addf %84, %86 : vector<8x384xf32>
      %c0_86 = arith.constant 0 : index
      %c0_87 = arith.constant 0 : index
      %88 = vector.load %arg6[%c0_86, %c0_87] : memref<128x384xbf16, #tpu.memory_space<vmem>>, vector<128x384xbf16>
      %cst_88 = arith.constant dense<0.000000e+00> : vector<8x384xf32>
      %89 = tpu.matmul %81, %88, %cst_88 {dimension_numbers = #tpu.dot_dimension_numbers<[1], [0], [0], [1], [0, 0, 1, 1], [], []>} : vector<8x128xbf16>, vector<128x384xbf16>, vector<8x384xf32> -> vector<8x384xf32>
      %90 = vector.extract_strided_slice %87 {offsets = [0, 0], sizes = [8, 128], strides = [1, 1]} : vector<8x384xf32> to vector<8x128xf32>
      %91 = vector.extract_strided_slice %89 {offsets = [0, 0], sizes = [8, 128], strides = [1, 1]} : vector<8x384xf32> to vector<8x128xf32>
      %92 = arith.addf %90, %91 : vector<8x128xf32>
      %93 = arith.negf %92 : vector<8x128xf32>
      %94 = math.exp %93 : vector<8x128xf32>
      %cst_89 = arith.constant 1.000000e+00 : f32
      %95 = vector.broadcast %cst_89 : f32 to vector<8x128xf32>
      %96 = arith.addf %95, %94 : vector<8x128xf32>
      %97 = arith.divf %95, %96 : vector<8x128xf32>
      %98 = vector.extract_strided_slice %87 {offsets = [0, 128], sizes = [8, 128], strides = [1, 1]} : vector<8x384xf32> to vector<8x128xf32>
      %99 = vector.extract_strided_slice %89 {offsets = [0, 128], sizes = [8, 128], strides = [1, 1]} : vector<8x384xf32> to vector<8x128xf32>
      %100 = arith.addf %98, %99 : vector<8x128xf32>
      %101 = arith.negf %100 : vector<8x128xf32>
      %102 = math.exp %101 : vector<8x128xf32>
      %cst_90 = arith.constant 1.000000e+00 : f32
      %103 = vector.broadcast %cst_90 : f32 to vector<8x128xf32>
      %104 = arith.addf %103, %102 : vector<8x128xf32>
      %105 = arith.divf %103, %104 : vector<8x128xf32>
      %106 = vector.extract_strided_slice %87 {offsets = [0, 256], sizes = [8, 128], strides = [1, 1]} : vector<8x384xf32> to vector<8x128xf32>
      %107 = vector.extract_strided_slice %89 {offsets = [0, 256], sizes = [8, 128], strides = [1, 1]} : vector<8x384xf32> to vector<8x128xf32>
      %c0_91 = arith.constant 0 : index
      %c0_92 = arith.constant 0 : index
      %108 = vector.load %arg8[%c0_91, %c0_92] : memref<1x128xf32, #tpu.memory_space<vmem>>, vector<1x128xf32>
      %109 = vector.broadcast %108 : vector<1x128xf32> to vector<8x128xf32>
      %110 = arith.addf %107, %109 : vector<8x128xf32>
      %111 = arith.mulf %97, %110 : vector<8x128xf32>
      %112 = arith.addf %106, %111 : vector<8x128xf32>
      %113 = math.tanh %112 : vector<8x128xf32>
      %cst_93 = arith.constant 1.000000e+00 : f32
      %114 = vector.broadcast %cst_93 : f32 to vector<8x128xf32>
      %115 = arith.subf %114, %105 : vector<8x128xf32>
      %116 = arith.mulf %115, %113 : vector<8x128xf32>
      %117 = arith.mulf %105, %80 : vector<8x128xf32>
      %118 = arith.addf %116, %117 : vector<8x128xf32>
      %c0_94 = arith.constant 0 : index
      %c0_95 = arith.constant 0 : index
      %c0_96 = arith.constant 0 : index
      %119 = vector.load %arg22[%c0_94, %c0_95, %c0_96] : memref<2x8x128xf32, #tpu.memory_space<vmem>>, vector<1x8x128xf32>
      %120 = vector.shape_cast %119 : vector<1x8x128xf32> to vector<8x128xf32>
      %121 = vector.shape_cast %118 : vector<8x128xf32> to vector<1x8x128xf32>
      tpu.vector_store %arg22[%c0_94, %c0_95, %c0_96], %121 {strides = array<i32>} : memref<2x8x128xf32, #tpu.memory_space<vmem>>, vector<1x8x128xf32>,
      %122 = arith.truncf %118 : vector<8x128xf32> to vector<8x128xbf16>
      %c1_97 = arith.constant 1 : index
      %c0_98 = arith.constant 0 : index
      %c0_99 = arith.constant 0 : index
      %123 = vector.load %arg22[%c1_97, %c0_98, %c0_99] : memref<2x8x128xf32, #tpu.memory_space<vmem>>, vector<1x8x128xf32>
      %124 = vector.shape_cast %123 : vector<1x8x128xf32> to vector<8x128xf32>
      %125 = arith.truncf %124 : vector<8x128xf32> to vector<8x128xbf16>
      %c0_100 = arith.constant 0 : index
      %c0_101 = arith.constant 0 : index
      %126 = vector.load %arg9[%c0_100, %c0_101] : memref<128x384xbf16, #tpu.memory_space<vmem>>, vector<128x384xbf16>
      %cst_102 = arith.constant dense<0.000000e+00> : vector<8x384xf32>
      %127 = tpu.matmul %122, %126, %cst_102 {dimension_numbers = #tpu.dot_dimension_numbers<[1], [0], [0], [1], [0, 0, 1, 1], [], []>} : vector<8x128xbf16>, vector<128x384xbf16>, vector<8x384xf32> -> vector<8x384xf32>
      %c0_103 = arith.constant 0 : index
      %c0_104 = arith.constant 0 : index
      %128 = vector.load %arg11[%c0_103, %c0_104] : memref<1x384xf32, #tpu.memory_space<vmem>>, vector<1x384xf32>
      %129 = vector.broadcast %128 : vector<1x384xf32> to vector<8x384xf32>
      %130 = arith.addf %127, %129 : vector<8x384xf32>
      %c0_105 = arith.constant 0 : index
      %c0_106 = arith.constant 0 : index
      %131 = vector.load %arg10[%c0_105, %c0_106] : memref<128x384xbf16, #tpu.memory_space<vmem>>, vector<128x384xbf16>
      %cst_107 = arith.constant dense<0.000000e+00> : vector<8x384xf32>
      %132 = tpu.matmul %125, %131, %cst_107 {dimension_numbers = #tpu.dot_dimension_numbers<[1], [0], [0], [1], [0, 0, 1, 1], [], []>} : vector<8x128xbf16>, vector<128x384xbf16>, vector<8x384xf32> -> vector<8x384xf32>
      %133 = vector.extract_strided_slice %130 {offsets = [0, 0], sizes = [8, 128], strides = [1, 1]} : vector<8x384xf32> to vector<8x128xf32>
      %134 = vector.extract_strided_slice %132 {offsets = [0, 0], sizes = [8, 128], strides = [1, 1]} : vector<8x384xf32> to vector<8x128xf32>
      %135 = arith.addf %133, %134 : vector<8x128xf32>
      %136 = arith.negf %135 : vector<8x128xf32>
      %137 = math.exp %136 : vector<8x128xf32>
      %cst_108 = arith.constant 1.000000e+00 : f32
      %138 = vector.broadcast %cst_108 : f32 to vector<8x128xf32>
      %139 = arith.addf %138, %137 : vector<8x128xf32>
      %140 = arith.divf %138, %139 : vector<8x128xf32>
      %141 = vector.extract_strided_slice %130 {offsets = [0, 128], sizes = [8, 128], strides = [1, 1]} : vector<8x384xf32> to vector<8x128xf32>
      %142 = vector.extract_strided_slice %132 {offsets = [0, 128], sizes = [8, 128], strides = [1, 1]} : vector<8x384xf32> to vector<8x128xf32>
      %143 = arith.addf %141, %142 : vector<8x128xf32>
      %144 = arith.negf %143 : vector<8x128xf32>
      %145 = math.exp %144 : vector<8x128xf32>
      %cst_109 = arith.constant 1.000000e+00 : f32
      %146 = vector.broadcast %cst_109 : f32 to vector<8x128xf32>
      %147 = arith.addf %146, %145 : vector<8x128xf32>
      %148 = arith.divf %146, %147 : vector<8x128xf32>
      %149 = vector.extract_strided_slice %130 {offsets = [0, 256], sizes = [8, 128], strides = [1, 1]} : vector<8x384xf32> to vector<8x128xf32>
      %150 = vector.extract_strided_slice %132 {offsets = [0, 256], sizes = [8, 128], strides = [1, 1]} : vector<8x384xf32> to vector<8x128xf32>
      %c0_110 = arith.constant 0 : index
      %c0_111 = arith.constant 0 : index
      %151 = vector.load %arg12[%c0_110, %c0_111] : memref<1x128xf32, #tpu.memory_space<vmem>>, vector<1x128xf32>
      %152 = vector.broadcast %151 : vector<1x128xf32> to vector<8x128xf32>
      %153 = arith.addf %150, %152 : vector<8x128xf32>
      %154 = arith.mulf %140, %153 : vector<8x128xf32>
      %155 = arith.addf %149, %154 : vector<8x128xf32>
      %156 = math.tanh %155 : vector<8x128xf32>
      %cst_112 = arith.constant 1.000000e+00 : f32
      %157 = vector.broadcast %cst_112 : f32 to vector<8x128xf32>
      %158 = arith.subf %157, %148 : vector<8x128xf32>
      %159 = arith.mulf %158, %156 : vector<8x128xf32>
      %160 = arith.mulf %148, %124 : vector<8x128xf32>
      %161 = arith.addf %159, %160 : vector<8x128xf32>
      %c1_113 = arith.constant 1 : index
      %c0_114 = arith.constant 0 : index
      %c0_115 = arith.constant 0 : index
      %162 = vector.load %arg22[%c1_113, %c0_114, %c0_115] : memref<2x8x128xf32, #tpu.memory_space<vmem>>, vector<1x8x128xf32>
      %163 = vector.shape_cast %162 : vector<1x8x128xf32> to vector<8x128xf32>
      %164 = vector.shape_cast %161 : vector<8x128xf32> to vector<1x8x128xf32>
      tpu.vector_store %arg22[%c1_113, %c0_114, %c0_115], %164 {strides = array<i32>} : memref<2x8x128xf32, #tpu.memory_space<vmem>>, vector<1x8x128xf32>,
      %165 = arith.truncf %161 : vector<8x128xf32> to vector<8x128xbf16>
      %c0_116 = arith.constant 0 : index
      %c0_117 = arith.constant 0 : index
      %166 = vector.load %arg15[%c0_116, %c0_117] : memref<128x256xbf16, #tpu.memory_space<vmem>>, vector<128x256xbf16>
      %cst_118 = arith.constant dense<0.000000e+00> : vector<8x256xf32>
      %167 = tpu.matmul %165, %166, %cst_118 {dimension_numbers = #tpu.dot_dimension_numbers<[1], [0], [0], [1], [0, 0, 1, 1], [], []>} : vector<8x128xbf16>, vector<128x256xbf16>, vector<8x256xf32> -> vector<8x256xf32>
      %168 = vector.extract_strided_slice %167 {offsets = [0, 0], sizes = [8, 128], strides = [1, 1]} : vector<8x256xf32> to vector<8x128xf32>
      %169 = vector.extract_strided_slice %167 {offsets = [0, 128], sizes = [8, 128], strides = [1, 1]} : vector<8x256xf32> to vector<8x128xf32>
      %c0_119 = arith.constant 0 : index
      %c0_120 = arith.constant 0 : index
      %c0_121 = arith.constant 0 : index
      %170 = vector.load %arg25[%c0_119, %c0_120, %c0_121] : memref<8x128x256xbf16, #tpu.memory_space<vmem>>, vector<8x128x256xbf16>
      %171 = vector.extract_strided_slice %170 {offsets = [0, 0, 0], sizes = [8, 128, 128], strides = [1, 1, 1]} : vector<8x128x256xbf16> to vector<8x128x128xbf16>
      %172 = arith.extf %171 : vector<8x128x128xbf16> to vector<8x128x128xf32>
      %173 = vector.shape_cast %168 : vector<8x128xf32> to vector<8x1x128xf32>
      %174 = vector.broadcast %173 : vector<8x1x128xf32> to vector<8x128x128xf32>
      %175 = arith.addf %172, %174 : vector<8x128x128xf32>
      %cst_122 = arith.constant 0.000000e+00 : f32
      %176 = vector.broadcast %cst_122 : f32 to vector<8x128x128xf32>
      %177 = arith.maximumf %175, %176 : vector<8x128x128xf32>
      %c0_123 = arith.constant 0 : index
      %c0_124 = arith.constant 0 : index
      %178 = vector.load %arg16[%c0_123, %c0_124] : memref<1x128xf32, #tpu.memory_space<vmem>>, vector<1x128xf32>
      %179 = vector.shape_cast %178 : vector<1x128xf32> to vector<1x1x128xf32>
      %180 = vector.broadcast %179 : vector<1x1x128xf32> to vector<8x128x128xf32>
      %181 = arith.mulf %177, %180 : vector<8x128x128xf32>
      %cst_125 = arith.constant dense<0.000000e+00> : vector<8x128xf32>
      %182 = vector.multi_reduction <add>, %181, %cst_125 [2] : vector<8x128x128xf32> to vector<8x128xf32>
      %183 = tpu.iota {dimensions = array<i32: 1>} : vector<8x128xi32>
      %c0_126 = arith.constant 0 : index
      %c0_127 = arith.constant 0 : index
      %184 = vector.load %arg1[%c0_126, %c0_127] : memref<8x1xi32, #tpu.memory_space<vmem>>, vector<8x1xi32>
      %185 = vector.broadcast %184 : vector<8x1xi32> to vector<8x128xi32>
      %186 = arith.cmpi sge, %183, %185 : vector<8x128xi32>
      %cst_128 = arith.constant 0xFF800000 : f32
      %187 = vector.broadcast %cst_128 : f32 to vector<8x128xf32>
      %188 = arith.select %186, %187, %182 : vector<8x128xi1>, vector<8x128xf32>
      %cst_129 = arith.constant dense<0xFF800000> : vector<8xf32>
      %189 = vector.multi_reduction <maximumf>, %188, %cst_129 [1] : vector<8x128xf32> to vector<8xf32>
      %190 = vector.shape_cast %189 : vector<8xf32> to vector<8x1xf32>
      %191 = vector.broadcast %190 : vector<8x1xf32> to vector<8x128xf32>
      %192 = arith.subf %188, %191 : vector<8x128xf32>
      %193 = math.exp %192 : vector<8x128xf32>
      %cst_130 = arith.constant dense<0.000000e+00> : vector<8xf32>
      %194 = vector.multi_reduction <add>, %193, %cst_130 [1] : vector<8x128xf32> to vector<8xf32>
      %195 = vector.shape_cast %194 : vector<8xf32> to vector<8x1xf32>
      %196 = tpu.reciprocal %195 : vector<8x1xf32> -> vector<8x1xf32>
      %197 = vector.broadcast %196 : vector<8x1xf32> to vector<8x128xf32>
      %198 = arith.mulf %193, %197 : vector<8x128xf32>
      %c1_i32_131 = arith.constant 1 : i32
      %199 = arith.andi %35, %c1_i32_131 : i32
      %c2_i32 = arith.constant 2 : i32
      %200 = arith.cmpi sge, %35, %c2_i32 : i32
      %201 = arith.extui %200 : i1 to i32
      %c0_i32_132 = arith.constant 0 : i32
      %202 = arith.cmpi ne, %201, %c0_i32_132 : i32
      scf.if %202 {
        %c2_i32_156 = arith.constant 2 : i32
        %248 = arith.subi %35, %c2_i32_156 : i32
        %c0_i32_157 = arith.constant 0 : i32
        %c0_i32_158 = arith.constant 0 : i32
        %249 = tpu.memref_slice %arg27[%199, %c0_i32_157, %c0_i32_158] : memref<2x8x128xf32, #tpu.memory_space<vmem>> -> memref<1x8x128xf32, #tpu.memory_space<vmem>>
        %250 = tpu.memref_squeeze %249 : memref<1x8x128xf32, #tpu.memory_space<vmem>> -> memref<8x128xf32, #tpu.memory_space<vmem>>
        %c0_i32_159 = arith.constant 0 : i32
        %c0_i32_160 = arith.constant 0 : i32
        %251 = tpu.memref_slice %arg21[%248, %c0_i32_159, %c0_i32_160] : memref<100x8x128xf32, #tpu.memory_space<any>> -> memref<1x8x128xf32, #tpu.memory_space<any>>
        %252 = tpu.memref_squeeze %251 : memref<1x8x128xf32, #tpu.memory_space<any>> -> memref<8x128xf32, #tpu.memory_space<any>>
        %253 = tpu.memref_slice %arg28[%199] : memref<2x!tpu.dma_semaphore, #tpu.memory_space<semaphore_mem>> -> memref<1x!tpu.dma_semaphore, #tpu.memory_space<semaphore_mem>>
        %254 = tpu.memref_squeeze %253 : memref<1x!tpu.dma_semaphore, #tpu.memory_space<semaphore_mem>> -> memref<!tpu.dma_semaphore, #tpu.memory_space<semaphore_mem>>
        tpu.wait_dma2 semaphore(%254 : memref<!tpu.dma_semaphore, #tpu.memory_space<semaphore_mem>>) src(%250 : memref<8x128xf32, #tpu.memory_space<vmem>>) dst(%252 : memref<8x128xf32, #tpu.memory_space<any>>)
      } else {
      }
      %203 = arith.index_cast %199 : i32 to index
      %c0_133 = arith.constant 0 : index
      %c0_134 = arith.constant 0 : index
      %204 = vector.load %arg27[%203, %c0_133, %c0_134] : memref<2x8x128xf32, #tpu.memory_space<vmem>>, vector<1x8x128xf32>
      %205 = vector.shape_cast %204 : vector<1x8x128xf32> to vector<8x128xf32>
      %206 = vector.shape_cast %198 : vector<8x128xf32> to vector<1x8x128xf32>
      tpu.vector_store %arg27[%203, %c0_133, %c0_134], %206 {strides = array<i32>} : memref<2x8x128xf32, #tpu.memory_space<vmem>>, vector<1x8x128xf32>,
      %c0_i32_135 = arith.constant 0 : i32
      %c0_i32_136 = arith.constant 0 : i32
      %207 = tpu.memref_slice %arg27[%199, %c0_i32_135, %c0_i32_136] : memref<2x8x128xf32, #tpu.memory_space<vmem>> -> memref<1x8x128xf32, #tpu.memory_space<vmem>>
      %208 = tpu.memref_squeeze %207 : memref<1x8x128xf32, #tpu.memory_space<vmem>> -> memref<8x128xf32, #tpu.memory_space<vmem>>
      %c0_i32_137 = arith.constant 0 : i32
      %c0_i32_138 = arith.constant 0 : i32
      %209 = tpu.memref_slice %arg21[%35, %c0_i32_137, %c0_i32_138] : memref<100x8x128xf32, #tpu.memory_space<any>> -> memref<1x8x128xf32, #tpu.memory_space<any>>
      %210 = tpu.memref_squeeze %209 : memref<1x8x128xf32, #tpu.memory_space<any>> -> memref<8x128xf32, #tpu.memory_space<any>>
      %211 = tpu.memref_slice %arg28[%199] : memref<2x!tpu.dma_semaphore, #tpu.memory_space<semaphore_mem>> -> memref<1x!tpu.dma_semaphore, #tpu.memory_space<semaphore_mem>>
      %212 = tpu.memref_squeeze %211 : memref<1x!tpu.dma_semaphore, #tpu.memory_space<semaphore_mem>> -> memref<!tpu.dma_semaphore, #tpu.memory_space<semaphore_mem>>
      tpu.enqueue_dma source(%208 : memref<8x128xf32, #tpu.memory_space<vmem>>) target(%210 : memref<8x128xf32, #tpu.memory_space<any>>) target_semaphore(%212 : memref<!tpu.dma_semaphore, #tpu.memory_space<semaphore_mem>>)
      %213 = vector.extract_strided_slice %170 {offsets = [0, 0, 128], sizes = [8, 128, 128], strides = [1, 1, 1]} : vector<8x128x256xbf16> to vector<8x128x128xbf16>
      %214 = arith.truncf %198 : vector<8x128xf32> to vector<8x128xbf16>
      %215 = vector.shape_cast %214 : vector<8x128xbf16> to vector<8x1x128xbf16>
      "tpu.trace_start"() <{level = 10 : i32, message = "bql,blh->bqh"}> : () -> ()
      %cst_139 = arith.constant dense<0.000000e+00> : vector<8x1x128xf32>
      %216 = tpu.matmul %215, %213, %cst_139 {dimension_numbers = #tpu.dot_dimension_numbers<[2], [1], [1], [2], [0, 0, 0, 1, 1, 2], [0], [0]>} : vector<8x1x128xbf16>, vector<8x128x128xbf16>, vector<8x1x128xf32> -> vector<8x1x128xf32>
      "tpu.trace_stop"() : () -> ()
      %217 = vector.shape_cast %216 : vector<8x1x128xf32> to vector<8x128xf32>
      %218 = arith.addf %217, %169 : vector<8x128xf32>
      %c0_140 = arith.constant 0 : index
      %c0_141 = arith.constant 0 : index
      %219 = vector.load %arg17[%c0_140, %c0_141] : memref<1x128xf32, #tpu.memory_space<vmem>>, vector<1x128xf32>
      %220 = vector.broadcast %219 : vector<1x128xf32> to vector<8x128xf32>
      %221 = arith.addf %218, %220 : vector<8x128xf32>
      %cst_142 = arith.constant 0.000000e+00 : f32
      %222 = vector.broadcast %cst_142 : f32 to vector<8x128xf32>
      %223 = arith.maximumf %221, %222 : vector<8x128xf32>
      %c0_143 = arith.constant 0 : index
      %c0_144 = arith.constant 0 : index
      %224 = vector.load %arg23[%c0_143, %c0_144] : memref<8x128xf32, #tpu.memory_space<vmem>>, vector<8x128xf32>
      tpu.vector_store %arg23[%c0_143, %c0_144], %223 {strides = array<i32>} : memref<8x128xf32, #tpu.memory_space<vmem>>, vector<8x128xf32>,
      %225 = arith.truncf %223 : vector<8x128xf32> to vector<8x128xbf16>
      %c0_145 = arith.constant 0 : index
      %c0_146 = arith.constant 0 : index
      %226 = vector.load %arg18[%c0_145, %c0_146] : memref<128x16xbf16, #tpu.memory_space<vmem>>, vector<128x16xbf16>
      %cst_147 = arith.constant dense<0.000000e+00> : vector<8x16xf32>
      %227 = tpu.matmul %225, %226, %cst_147 {dimension_numbers = #tpu.dot_dimension_numbers<[1], [0], [0], [1], [0, 0, 1, 1], [], []>} : vector<8x128xbf16>, vector<128x16xbf16>, vector<8x16xf32> -> vector<8x16xf32>
      %c0_148 = arith.constant 0 : index
      %c0_149 = arith.constant 0 : index
      %228 = vector.load %arg19[%c0_148, %c0_149] : memref<1x16xf32, #tpu.memory_space<vmem>>, vector<1x16xf32>
      %229 = vector.broadcast %228 : vector<1x16xf32> to vector<8x16xf32>
      %230 = arith.addf %227, %229 : vector<8x16xf32>
      %231 = tpu.iota {dimensions = array<i32: 1>} : vector<8x16xi32>
      %cst_150 = arith.constant dense<0xFF800000> : vector<8xf32>
      %232 = vector.multi_reduction <maximumf>, %230, %cst_150 [1] : vector<8x16xf32> to vector<8xf32>
      %233 = vector.shape_cast %232 : vector<8xf32> to vector<8x1xf32>
      %234 = vector.broadcast %233 : vector<8x1xf32> to vector<8x16xf32>
      %235 = arith.cmpf oeq, %230, %234 : vector<8x16xf32>
      %c16_i32 = arith.constant 16 : i32
      %236 = vector.broadcast %c16_i32 : i32 to vector<8x16xi32>
      %237 = arith.select %235, %231, %236 : vector<8x16xi1>, vector<8x16xi32>
      %cst_151 = arith.constant dense<2147483647> : vector<8xi32>
      %238 = vector.multi_reduction <minsi>, %237, %cst_151 [1] : vector<8x16xi32> to vector<8xi32>
      %c15_i32 = arith.constant 15 : i32
      %239 = vector.broadcast %c15_i32 : i32 to vector<8xi32>
      %240 = arith.minsi %238, %239 : vector<8xi32>
      %c1_i32_152 = arith.constant 1 : i32
      %241 = arith.addi %35, %c1_i32_152 : i32
      %242 = arith.index_cast %241 : i32 to index
      %c0_153 = arith.constant 0 : index
      %243 = vector.load %arg20[%242, %c0_153] : memref<101x8xi32, #tpu.memory_space<vmem>>, vector<1x8xi32>
      %244 = vector.shape_cast %243 : vector<1x8xi32> to vector<8xi32>
      %245 = vector.shape_cast %240 : vector<8xi32> to vector<1x8xi32>
      tpu.vector_store %arg20[%242, %c0_153], %245 {strides = array<i32>} : memref<101x8xi32, #tpu.memory_space<vmem>>, vector<1x8xi32>,
      %246 = vector.shape_cast %240 : vector<8xi32> to vector<8x1xi32>
      %c0_154 = arith.constant 0 : index
      %c0_155 = arith.constant 0 : index
      %247 = vector.load %arg24[%c0_154, %c0_155] : memref<8x1xi32, #tpu.memory_space<vmem>>, vector<8x1xi32>
      tpu.vector_store %arg24[%c0_154, %c0_155], %246 {strides = array<i32>} : memref<8x1xi32, #tpu.memory_space<vmem>>, vector<8x1xi32>,
    }
    %c100_i32_24 = arith.constant 100 : i32
    %c1_i32_25 = arith.constant 1 : i32
    %c0_i32_26 = arith.constant 0 : i32
    %c1_i32_27 = arith.constant 1 : i32
    %c0_i32_28 = arith.constant 0 : i32
    %c0_i32_29 = arith.constant 0 : i32
    %22 = tpu.memref_slice %arg27[%c1_i32_25, %c0_i32_28, %c0_i32_29] : memref<2x8x128xf32, #tpu.memory_space<vmem>> -> memref<1x8x128xf32, #tpu.memory_space<vmem>>
    %23 = tpu.memref_squeeze %22 : memref<1x8x128xf32, #tpu.memory_space<vmem>> -> memref<8x128xf32, #tpu.memory_space<vmem>>
    %c0_i32_30 = arith.constant 0 : i32
    %c0_i32_31 = arith.constant 0 : i32
    %24 = tpu.memref_slice %arg21[%c0_i32_26, %c0_i32_30, %c0_i32_31] : memref<100x8x128xf32, #tpu.memory_space<any>> -> memref<1x8x128xf32, #tpu.memory_space<any>>
    %25 = tpu.memref_squeeze %24 : memref<1x8x128xf32, #tpu.memory_space<any>> -> memref<8x128xf32, #tpu.memory_space<any>>
    %26 = tpu.memref_slice %arg28[%c1_i32_27] : memref<2x!tpu.dma_semaphore, #tpu.memory_space<semaphore_mem>> -> memref<1x!tpu.dma_semaphore, #tpu.memory_space<semaphore_mem>>
    %27 = tpu.memref_squeeze %26 : memref<1x!tpu.dma_semaphore, #tpu.memory_space<semaphore_mem>> -> memref<!tpu.dma_semaphore, #tpu.memory_space<semaphore_mem>>
    tpu.wait_dma2 semaphore(%27 : memref<!tpu.dma_semaphore, #tpu.memory_space<semaphore_mem>>) src(%23 : memref<8x128xf32, #tpu.memory_space<vmem>>) dst(%25 : memref<8x128xf32, #tpu.memory_space<any>>)
    %c0_i32_32 = arith.constant 0 : i32
    %c0_i32_33 = arith.constant 0 : i32
    %c0_i32_34 = arith.constant 0 : i32
    %c0_i32_35 = arith.constant 0 : i32
    %c0_i32_36 = arith.constant 0 : i32
    %28 = tpu.memref_slice %arg27[%c0_i32_32, %c0_i32_35, %c0_i32_36] : memref<2x8x128xf32, #tpu.memory_space<vmem>> -> memref<1x8x128xf32, #tpu.memory_space<vmem>>
    %29 = tpu.memref_squeeze %28 : memref<1x8x128xf32, #tpu.memory_space<vmem>> -> memref<8x128xf32, #tpu.memory_space<vmem>>
    %c0_i32_37 = arith.constant 0 : i32
    %c0_i32_38 = arith.constant 0 : i32
    %30 = tpu.memref_slice %arg21[%c0_i32_33, %c0_i32_37, %c0_i32_38] : memref<100x8x128xf32, #tpu.memory_space<any>> -> memref<1x8x128xf32, #tpu.memory_space<any>>
    %31 = tpu.memref_squeeze %30 : memref<1x8x128xf32, #tpu.memory_space<any>> -> memref<8x128xf32, #tpu.memory_space<any>>
    %32 = tpu.memref_slice %arg28[%c0_i32_34] : memref<2x!tpu.dma_semaphore, #tpu.memory_space<semaphore_mem>> -> memref<1x!tpu.dma_semaphore, #tpu.memory_space<semaphore_mem>>
    %33 = tpu.memref_squeeze %32 : memref<1x!tpu.dma_semaphore, #tpu.memory_space<semaphore_mem>> -> memref<!tpu.dma_semaphore, #tpu.memory_space<semaphore_mem>>
    tpu.wait_dma2 semaphore(%33 : memref<!tpu.dma_semaphore, #tpu.memory_space<semaphore_mem>>) src(%29 : memref<8x128xf32, #tpu.memory_space<vmem>>) dst(%31 : memref<8x128xf32, #tpu.memory_space<any>>)
    return
  }
}

module attributes {stable_mosaic.version = 11 : i64} {
  func.func @kernel(%arg0: memref<8x128x64xf32, #tpu.memory_space<vmem>>, %arg1: memref<8x1xi32, #tpu.memory_space<vmem>>, %arg2: memref<2x8x128xf32, #tpu.memory_space<vmem>>, %arg3: memref<8x128xf32, #tpu.memory_space<vmem>>, %arg4: memref<16x384xf32, #tpu.memory_space<vmem>>, %arg5: memref<128x384xbf16, #tpu.memory_space<vmem>>, %arg6: memref<128x384xbf16, #tpu.memory_space<vmem>>, %arg7: memref<1x384xf32, #tpu.memory_space<vmem>>, %arg8: memref<1x128xf32, #tpu.memory_space<vmem>>, %arg9: memref<128x384xbf16, #tpu.memory_space<vmem>>, %arg10: memref<128x384xbf16, #tpu.memory_space<vmem>>, %arg11: memref<1x384xf32, #tpu.memory_space<vmem>>, %arg12: memref<1x128xf32, #tpu.memory_space<vmem>>, %arg13: memref<64x256xbf16, #tpu.memory_space<vmem>>, %arg14: memref<1x256xf32, #tpu.memory_space<vmem>>, %arg15: memref<128x256xbf16, #tpu.memory_space<vmem>>, %arg16: memref<1x128xf32, #tpu.memory_space<vmem>>, %arg17: memref<1x128xf32, #tpu.memory_space<vmem>>, %arg18: memref<128x16xbf16, #tpu.memory_space<vmem>>, %arg19: memref<1x16xf32, #tpu.memory_space<vmem>>, %arg20: memref<101x8xi32, #tpu.memory_space<vmem>>, %arg21: memref<100x8x128xf32, #tpu.memory_space<vmem>>, %arg22: memref<2x8x128xf32, #tpu.memory_space<vmem>>, %arg23: memref<8x128xf32, #tpu.memory_space<vmem>>, %arg24: memref<8x1xi32, #tpu.memory_space<vmem>>, %arg25: memref<8x128x256xbf16, #tpu.memory_space<vmem>>, %arg26: memref<8x384xf32, #tpu.memory_space<vmem>>) attributes {dimension_semantics = [], scalar_prefetch = 0 : i64, scratch_operands = 5 : i64, tpu.core_type = #tpu.core_type<tc>} {
    %c0 = arith.constant 0 : index
    %c0_0 = arith.constant 0 : index
    %c0_1 = arith.constant 0 : index
    %0 = vector.load %arg2[%c0, %c0_0, %c0_1] : memref<2x8x128xf32, #tpu.memory_space<vmem>>, vector<2x8x128xf32>
    %c0_2 = arith.constant 0 : index
    %c0_3 = arith.constant 0 : index
    %c0_4 = arith.constant 0 : index
    %1 = vector.load %arg22[%c0_2, %c0_3, %c0_4] : memref<2x8x128xf32, #tpu.memory_space<vmem>>, vector<2x8x128xf32>
    tpu.vector_store %arg22[%c0_2, %c0_3, %c0_4], %0 {strides = array<i32>} : memref<2x8x128xf32, #tpu.memory_space<vmem>>, vector<2x8x128xf32>,
    %c0_5 = arith.constant 0 : index
    %c0_6 = arith.constant 0 : index
    %2 = vector.load %arg3[%c0_5, %c0_6] : memref<8x128xf32, #tpu.memory_space<vmem>>, vector<8x128xf32>
    %c0_7 = arith.constant 0 : index
    %c0_8 = arith.constant 0 : index
    %3 = vector.load %arg23[%c0_7, %c0_8] : memref<8x128xf32, #tpu.memory_space<vmem>>, vector<8x128xf32>
    tpu.vector_store %arg23[%c0_7, %c0_8], %2 {strides = array<i32>} : memref<8x128xf32, #tpu.memory_space<vmem>>, vector<8x128xf32>,
    %c3_i32 = arith.constant 3 : i32
    %4 = vector.broadcast %c3_i32 : i32 to vector<8xi32>
    %c0_9 = arith.constant 0 : index
    %c0_10 = arith.constant 0 : index
    %5 = vector.load %arg20[%c0_9, %c0_10] : memref<101x8xi32, #tpu.memory_space<vmem>>, vector<1x8xi32>
    %6 = vector.shape_cast %5 : vector<1x8xi32> to vector<8xi32>
    %7 = vector.shape_cast %4 : vector<8xi32> to vector<1x8xi32>
    tpu.vector_store %arg20[%c0_9, %c0_10], %7 {strides = array<i32>} : memref<101x8xi32, #tpu.memory_space<vmem>>, vector<1x8xi32>,
    %c3_i32_11 = arith.constant 3 : i32
    %8 = vector.broadcast %c3_i32_11 : i32 to vector<8x1xi32>
    %c0_12 = arith.constant 0 : index
    %c0_13 = arith.constant 0 : index
    %9 = vector.load %arg24[%c0_12, %c0_13] : memref<8x1xi32, #tpu.memory_space<vmem>>, vector<8x1xi32>
    tpu.vector_store %arg24[%c0_12, %c0_13], %8 {strides = array<i32>} : memref<8x1xi32, #tpu.memory_space<vmem>>, vector<8x1xi32>,
    %c0_14 = arith.constant 0 : index
    %c0_15 = arith.constant 0 : index
    %c0_16 = arith.constant 0 : index
    %10 = vector.load %arg0[%c0_14, %c0_15, %c0_16] : memref<8x128x64xf32, #tpu.memory_space<vmem>>, vector<8x128x64xf32>
    %11 = vector.shape_cast %10 : vector<8x128x64xf32> to vector<1024x64xf32>
    %12 = arith.truncf %11 : vector<1024x64xf32> to vector<1024x64xbf16>
    %c0_17 = arith.constant 0 : index
    %c0_18 = arith.constant 0 : index
    %13 = vector.load %arg13[%c0_17, %c0_18] : memref<64x256xbf16, #tpu.memory_space<vmem>>, vector<64x256xbf16>
    %cst = arith.constant dense<0.000000e+00> : vector<1024x256xf32>
    %14 = tpu.matmul %12, %13, %cst {dimension_numbers = #tpu.dot_dimension_numbers<[1], [0], [0], [1], [0, 0, 1, 1], [], []>} : vector<1024x64xbf16>, vector<64x256xbf16>, vector<1024x256xf32> -> vector<1024x256xf32>
    %c0_19 = arith.constant 0 : index
    %c0_20 = arith.constant 0 : index
    %15 = vector.load %arg14[%c0_19, %c0_20] : memref<1x256xf32, #tpu.memory_space<vmem>>, vector<1x256xf32>
    %16 = vector.broadcast %15 : vector<1x256xf32> to vector<1024x256xf32>
    %17 = arith.addf %14, %16 : vector<1024x256xf32>
    %18 = arith.truncf %17 : vector<1024x256xf32> to vector<1024x256xbf16>
    %19 = vector.shape_cast %18 : vector<1024x256xbf16> to vector<8x128x256xbf16>
    %c0_21 = arith.constant 0 : index
    %c0_22 = arith.constant 0 : index
    %c0_23 = arith.constant 0 : index
    %20 = vector.load %arg25[%c0_21, %c0_22, %c0_23] : memref<8x128x256xbf16, #tpu.memory_space<vmem>>, vector<8x128x256xbf16>
    tpu.vector_store %arg25[%c0_21, %c0_22, %c0_23], %19 {strides = array<i32>} : memref<8x128x256xbf16, #tpu.memory_space<vmem>>, vector<8x128x256xbf16>,
    %c0_i32 = arith.constant 0 : i32
    %c100_i32 = arith.constant 100 : i32
    %21 = arith.addi %c0_i32, %c100_i32 : i32
    %c1_i32 = arith.constant 1 : i32
    scf.for %arg27 = %c0_i32 to %21 step %c1_i32  : i32 {
      %c1_i32_25 = arith.constant 1 : i32
      %22 = arith.muli %arg27, %c1_i32_25 : i32
      %c0_i32_26 = arith.constant 0 : i32
      %23 = arith.addi %c0_i32_26, %22 : i32
      %24 = tpu.iota {dimensions = array<i32: 1>} : vector<8x16xi32>
      %c0_27 = arith.constant 0 : index
      %c0_28 = arith.constant 0 : index
      %25 = vector.load %arg24[%c0_27, %c0_28] : memref<8x1xi32, #tpu.memory_space<vmem>>, vector<8x1xi32>
      %26 = vector.broadcast %25 : vector<8x1xi32> to vector<8x16xi32>
      %27 = arith.cmpi eq, %24, %26 : vector<8x16xi32>
      %28 = arith.extui %27 : vector<8x16xi1> to vector<8x16xi32>
      %29 = arith.sitofp %28 : vector<8x16xi32> to vector<8x16xf32>
      %c0_29 = arith.constant 0 : index
      %c0_30 = arith.constant 0 : index
      %30 = vector.load %arg4[%c0_29, %c0_30] : memref<16x384xf32, #tpu.memory_space<vmem>>, vector<16x384xf32>
      %cst_31 = arith.constant dense<0.000000e+00> : vector<8x384xf32>
      %31 = tpu.matmul %29, %30, %cst_31 {dimension_numbers = #tpu.dot_dimension_numbers<[1], [0], [0], [1], [0, 0, 1, 1], [], []>} : vector<8x16xf32>, vector<16x384xf32>, vector<8x384xf32> -> vector<8x384xf32>
      %c0_32 = arith.constant 0 : index
      %c0_33 = arith.constant 0 : index
      %32 = vector.load %arg23[%c0_32, %c0_33] : memref<8x128xf32, #tpu.memory_space<vmem>>, vector<8x128xf32>
      %33 = arith.truncf %32 : vector<8x128xf32> to vector<8x128xbf16>
      %c0_34 = arith.constant 0 : index
      %c0_35 = arith.constant 0 : index
      %c0_36 = arith.constant 0 : index
      %34 = vector.load %arg22[%c0_34, %c0_35, %c0_36] : memref<2x8x128xf32, #tpu.memory_space<vmem>>, vector<1x8x128xf32>
      %35 = vector.shape_cast %34 : vector<1x8x128xf32> to vector<8x128xf32>
      %36 = arith.truncf %35 : vector<8x128xf32> to vector<8x128xbf16>
      %c0_37 = arith.constant 0 : index
      %c0_38 = arith.constant 0 : index
      %37 = vector.load %arg5[%c0_37, %c0_38] : memref<128x384xbf16, #tpu.memory_space<vmem>>, vector<128x384xbf16>
      %cst_39 = arith.constant dense<0.000000e+00> : vector<8x384xf32>
      %38 = tpu.matmul %33, %37, %cst_39 {dimension_numbers = #tpu.dot_dimension_numbers<[1], [0], [0], [1], [0, 0, 1, 1], [], []>} : vector<8x128xbf16>, vector<128x384xbf16>, vector<8x384xf32> -> vector<8x384xf32>
      %39 = arith.addf %31, %38 : vector<8x384xf32>
      %c0_40 = arith.constant 0 : index
      %c0_41 = arith.constant 0 : index
      %40 = vector.load %arg7[%c0_40, %c0_41] : memref<1x384xf32, #tpu.memory_space<vmem>>, vector<1x384xf32>
      %41 = vector.broadcast %40 : vector<1x384xf32> to vector<8x384xf32>
      %42 = arith.addf %39, %41 : vector<8x384xf32>
      %c0_42 = arith.constant 0 : index
      %c0_43 = arith.constant 0 : index
      %43 = vector.load %arg6[%c0_42, %c0_43] : memref<128x384xbf16, #tpu.memory_space<vmem>>, vector<128x384xbf16>
      %cst_44 = arith.constant dense<0.000000e+00> : vector<8x384xf32>
      %44 = tpu.matmul %36, %43, %cst_44 {dimension_numbers = #tpu.dot_dimension_numbers<[1], [0], [0], [1], [0, 0, 1, 1], [], []>} : vector<8x128xbf16>, vector<128x384xbf16>, vector<8x384xf32> -> vector<8x384xf32>
      %45 = vector.extract_strided_slice %42 {offsets = [0, 0], sizes = [8, 128], strides = [1, 1]} : vector<8x384xf32> to vector<8x128xf32>
      %46 = vector.extract_strided_slice %44 {offsets = [0, 0], sizes = [8, 128], strides = [1, 1]} : vector<8x384xf32> to vector<8x128xf32>
      %47 = arith.addf %45, %46 : vector<8x128xf32>
      %48 = arith.negf %47 : vector<8x128xf32>
      %49 = math.exp %48 : vector<8x128xf32>
      %cst_45 = arith.constant 1.000000e+00 : f32
      %50 = vector.broadcast %cst_45 : f32 to vector<8x128xf32>
      %51 = arith.addf %50, %49 : vector<8x128xf32>
      %52 = arith.divf %50, %51 : vector<8x128xf32>
      %53 = vector.extract_strided_slice %42 {offsets = [0, 128], sizes = [8, 128], strides = [1, 1]} : vector<8x384xf32> to vector<8x128xf32>
      %54 = vector.extract_strided_slice %44 {offsets = [0, 128], sizes = [8, 128], strides = [1, 1]} : vector<8x384xf32> to vector<8x128xf32>
      %55 = arith.addf %53, %54 : vector<8x128xf32>
      %56 = arith.negf %55 : vector<8x128xf32>
      %57 = math.exp %56 : vector<8x128xf32>
      %cst_46 = arith.constant 1.000000e+00 : f32
      %58 = vector.broadcast %cst_46 : f32 to vector<8x128xf32>
      %59 = arith.addf %58, %57 : vector<8x128xf32>
      %60 = arith.divf %58, %59 : vector<8x128xf32>
      %61 = vector.extract_strided_slice %42 {offsets = [0, 256], sizes = [8, 128], strides = [1, 1]} : vector<8x384xf32> to vector<8x128xf32>
      %62 = vector.extract_strided_slice %44 {offsets = [0, 256], sizes = [8, 128], strides = [1, 1]} : vector<8x384xf32> to vector<8x128xf32>
      %c0_47 = arith.constant 0 : index
      %c0_48 = arith.constant 0 : index
      %63 = vector.load %arg8[%c0_47, %c0_48] : memref<1x128xf32, #tpu.memory_space<vmem>>, vector<1x128xf32>
      %64 = vector.broadcast %63 : vector<1x128xf32> to vector<8x128xf32>
      %65 = arith.addf %62, %64 : vector<8x128xf32>
      %66 = arith.mulf %52, %65 : vector<8x128xf32>
      %67 = arith.addf %61, %66 : vector<8x128xf32>
      %68 = math.tanh %67 : vector<8x128xf32>
      %cst_49 = arith.constant 1.000000e+00 : f32
      %69 = vector.broadcast %cst_49 : f32 to vector<8x128xf32>
      %70 = arith.subf %69, %60 : vector<8x128xf32>
      %71 = arith.mulf %70, %68 : vector<8x128xf32>
      %72 = arith.mulf %60, %35 : vector<8x128xf32>
      %73 = arith.addf %71, %72 : vector<8x128xf32>
      %c0_50 = arith.constant 0 : index
      %c0_51 = arith.constant 0 : index
      %c0_52 = arith.constant 0 : index
      %74 = vector.load %arg22[%c0_50, %c0_51, %c0_52] : memref<2x8x128xf32, #tpu.memory_space<vmem>>, vector<1x8x128xf32>
      %75 = vector.shape_cast %74 : vector<1x8x128xf32> to vector<8x128xf32>
      %76 = vector.shape_cast %73 : vector<8x128xf32> to vector<1x8x128xf32>
      tpu.vector_store %arg22[%c0_50, %c0_51, %c0_52], %76 {strides = array<i32>} : memref<2x8x128xf32, #tpu.memory_space<vmem>>, vector<1x8x128xf32>,
      %77 = arith.truncf %73 : vector<8x128xf32> to vector<8x128xbf16>
      %c1 = arith.constant 1 : index
      %c0_53 = arith.constant 0 : index
      %c0_54 = arith.constant 0 : index
      %78 = vector.load %arg22[%c1, %c0_53, %c0_54] : memref<2x8x128xf32, #tpu.memory_space<vmem>>, vector<1x8x128xf32>
      %79 = vector.shape_cast %78 : vector<1x8x128xf32> to vector<8x128xf32>
      %80 = arith.truncf %79 : vector<8x128xf32> to vector<8x128xbf16>
      %c0_55 = arith.constant 0 : index
      %c0_56 = arith.constant 0 : index
      %81 = vector.load %arg9[%c0_55, %c0_56] : memref<128x384xbf16, #tpu.memory_space<vmem>>, vector<128x384xbf16>
      %cst_57 = arith.constant dense<0.000000e+00> : vector<8x384xf32>
      %82 = tpu.matmul %77, %81, %cst_57 {dimension_numbers = #tpu.dot_dimension_numbers<[1], [0], [0], [1], [0, 0, 1, 1], [], []>} : vector<8x128xbf16>, vector<128x384xbf16>, vector<8x384xf32> -> vector<8x384xf32>
      %c0_58 = arith.constant 0 : index
      %c0_59 = arith.constant 0 : index
      %83 = vector.load %arg11[%c0_58, %c0_59] : memref<1x384xf32, #tpu.memory_space<vmem>>, vector<1x384xf32>
      %84 = vector.broadcast %83 : vector<1x384xf32> to vector<8x384xf32>
      %85 = arith.addf %82, %84 : vector<8x384xf32>
      %c0_60 = arith.constant 0 : index
      %c0_61 = arith.constant 0 : index
      %86 = vector.load %arg10[%c0_60, %c0_61] : memref<128x384xbf16, #tpu.memory_space<vmem>>, vector<128x384xbf16>
      %cst_62 = arith.constant dense<0.000000e+00> : vector<8x384xf32>
      %87 = tpu.matmul %80, %86, %cst_62 {dimension_numbers = #tpu.dot_dimension_numbers<[1], [0], [0], [1], [0, 0, 1, 1], [], []>} : vector<8x128xbf16>, vector<128x384xbf16>, vector<8x384xf32> -> vector<8x384xf32>
      %88 = vector.extract_strided_slice %85 {offsets = [0, 0], sizes = [8, 128], strides = [1, 1]} : vector<8x384xf32> to vector<8x128xf32>
      %89 = vector.extract_strided_slice %87 {offsets = [0, 0], sizes = [8, 128], strides = [1, 1]} : vector<8x384xf32> to vector<8x128xf32>
      %90 = arith.addf %88, %89 : vector<8x128xf32>
      %91 = arith.negf %90 : vector<8x128xf32>
      %92 = math.exp %91 : vector<8x128xf32>
      %cst_63 = arith.constant 1.000000e+00 : f32
      %93 = vector.broadcast %cst_63 : f32 to vector<8x128xf32>
      %94 = arith.addf %93, %92 : vector<8x128xf32>
      %95 = arith.divf %93, %94 : vector<8x128xf32>
      %96 = vector.extract_strided_slice %85 {offsets = [0, 128], sizes = [8, 128], strides = [1, 1]} : vector<8x384xf32> to vector<8x128xf32>
      %97 = vector.extract_strided_slice %87 {offsets = [0, 128], sizes = [8, 128], strides = [1, 1]} : vector<8x384xf32> to vector<8x128xf32>
      %98 = arith.addf %96, %97 : vector<8x128xf32>
      %99 = arith.negf %98 : vector<8x128xf32>
      %100 = math.exp %99 : vector<8x128xf32>
      %cst_64 = arith.constant 1.000000e+00 : f32
      %101 = vector.broadcast %cst_64 : f32 to vector<8x128xf32>
      %102 = arith.addf %101, %100 : vector<8x128xf32>
      %103 = arith.divf %101, %102 : vector<8x128xf32>
      %104 = vector.extract_strided_slice %85 {offsets = [0, 256], sizes = [8, 128], strides = [1, 1]} : vector<8x384xf32> to vector<8x128xf32>
      %105 = vector.extract_strided_slice %87 {offsets = [0, 256], sizes = [8, 128], strides = [1, 1]} : vector<8x384xf32> to vector<8x128xf32>
      %c0_65 = arith.constant 0 : index
      %c0_66 = arith.constant 0 : index
      %106 = vector.load %arg12[%c0_65, %c0_66] : memref<1x128xf32, #tpu.memory_space<vmem>>, vector<1x128xf32>
      %107 = vector.broadcast %106 : vector<1x128xf32> to vector<8x128xf32>
      %108 = arith.addf %105, %107 : vector<8x128xf32>
      %109 = arith.mulf %95, %108 : vector<8x128xf32>
      %110 = arith.addf %104, %109 : vector<8x128xf32>
      %111 = math.tanh %110 : vector<8x128xf32>
      %cst_67 = arith.constant 1.000000e+00 : f32
      %112 = vector.broadcast %cst_67 : f32 to vector<8x128xf32>
      %113 = arith.subf %112, %103 : vector<8x128xf32>
      %114 = arith.mulf %113, %111 : vector<8x128xf32>
      %115 = arith.mulf %103, %79 : vector<8x128xf32>
      %116 = arith.addf %114, %115 : vector<8x128xf32>
      %c1_68 = arith.constant 1 : index
      %c0_69 = arith.constant 0 : index
      %c0_70 = arith.constant 0 : index
      %117 = vector.load %arg22[%c1_68, %c0_69, %c0_70] : memref<2x8x128xf32, #tpu.memory_space<vmem>>, vector<1x8x128xf32>
      %118 = vector.shape_cast %117 : vector<1x8x128xf32> to vector<8x128xf32>
      %119 = vector.shape_cast %116 : vector<8x128xf32> to vector<1x8x128xf32>
      tpu.vector_store %arg22[%c1_68, %c0_69, %c0_70], %119 {strides = array<i32>} : memref<2x8x128xf32, #tpu.memory_space<vmem>>, vector<1x8x128xf32>,
      %120 = arith.truncf %116 : vector<8x128xf32> to vector<8x128xbf16>
      %c0_71 = arith.constant 0 : index
      %c0_72 = arith.constant 0 : index
      %121 = vector.load %arg15[%c0_71, %c0_72] : memref<128x256xbf16, #tpu.memory_space<vmem>>, vector<128x256xbf16>
      %cst_73 = arith.constant dense<0.000000e+00> : vector<8x256xf32>
      %122 = tpu.matmul %120, %121, %cst_73 {dimension_numbers = #tpu.dot_dimension_numbers<[1], [0], [0], [1], [0, 0, 1, 1], [], []>} : vector<8x128xbf16>, vector<128x256xbf16>, vector<8x256xf32> -> vector<8x256xf32>
      %123 = vector.extract_strided_slice %122 {offsets = [0, 0], sizes = [8, 128], strides = [1, 1]} : vector<8x256xf32> to vector<8x128xf32>
      %124 = vector.extract_strided_slice %122 {offsets = [0, 128], sizes = [8, 128], strides = [1, 1]} : vector<8x256xf32> to vector<8x128xf32>
      %c0_74 = arith.constant 0 : index
      %c0_75 = arith.constant 0 : index
      %c0_76 = arith.constant 0 : index
      %125 = vector.load %arg25[%c0_74, %c0_75, %c0_76] : memref<8x128x256xbf16, #tpu.memory_space<vmem>>, vector<8x128x256xbf16>
      %126 = vector.extract_strided_slice %125 {offsets = [0, 0, 0], sizes = [8, 128, 128], strides = [1, 1, 1]} : vector<8x128x256xbf16> to vector<8x128x128xbf16>
      %127 = arith.extf %126 : vector<8x128x128xbf16> to vector<8x128x128xf32>
      %128 = vector.shape_cast %123 : vector<8x128xf32> to vector<8x1x128xf32>
      %129 = vector.broadcast %128 : vector<8x1x128xf32> to vector<8x128x128xf32>
      %130 = arith.addf %127, %129 : vector<8x128x128xf32>
      %cst_77 = arith.constant 0.000000e+00 : f32
      %131 = vector.broadcast %cst_77 : f32 to vector<8x128x128xf32>
      %132 = arith.maximumf %130, %131 : vector<8x128x128xf32>
      %c0_78 = arith.constant 0 : index
      %c0_79 = arith.constant 0 : index
      %133 = vector.load %arg16[%c0_78, %c0_79] : memref<1x128xf32, #tpu.memory_space<vmem>>, vector<1x128xf32>
      %134 = vector.shape_cast %133 : vector<1x128xf32> to vector<1x1x128xf32>
      %135 = vector.broadcast %134 : vector<1x1x128xf32> to vector<8x128x128xf32>
      %136 = arith.mulf %132, %135 : vector<8x128x128xf32>
      %cst_80 = arith.constant dense<0.000000e+00> : vector<8x128xf32>
      %137 = vector.multi_reduction <add>, %136, %cst_80 [2] : vector<8x128x128xf32> to vector<8x128xf32>
      %138 = tpu.iota {dimensions = array<i32: 1>} : vector<8x128xi32>
      %c0_81 = arith.constant 0 : index
      %c0_82 = arith.constant 0 : index
      %139 = vector.load %arg1[%c0_81, %c0_82] : memref<8x1xi32, #tpu.memory_space<vmem>>, vector<8x1xi32>
      %140 = vector.broadcast %139 : vector<8x1xi32> to vector<8x128xi32>
      %141 = arith.cmpi sge, %138, %140 : vector<8x128xi32>
      %cst_83 = arith.constant 0xFF800000 : f32
      %142 = vector.broadcast %cst_83 : f32 to vector<8x128xf32>
      %143 = arith.select %141, %142, %137 : vector<8x128xi1>, vector<8x128xf32>
      %cst_84 = arith.constant dense<0xFF800000> : vector<8xf32>
      %144 = vector.multi_reduction <maximumf>, %143, %cst_84 [1] : vector<8x128xf32> to vector<8xf32>
      %145 = vector.shape_cast %144 : vector<8xf32> to vector<8x1xf32>
      %146 = vector.broadcast %145 : vector<8x1xf32> to vector<8x128xf32>
      %147 = arith.subf %143, %146 : vector<8x128xf32>
      %148 = math.exp %147 : vector<8x128xf32>
      %cst_85 = arith.constant dense<0.000000e+00> : vector<8xf32>
      %149 = vector.multi_reduction <add>, %148, %cst_85 [1] : vector<8x128xf32> to vector<8xf32>
      %150 = vector.shape_cast %149 : vector<8xf32> to vector<8x1xf32>
      %151 = tpu.reciprocal %150 : vector<8x1xf32> -> vector<8x1xf32>
      %152 = vector.broadcast %151 : vector<8x1xf32> to vector<8x128xf32>
      %153 = arith.mulf %148, %152 : vector<8x128xf32>
      %154 = arith.index_cast %23 : i32 to index
      %c0_86 = arith.constant 0 : index
      %c0_87 = arith.constant 0 : index
      %155 = vector.load %arg21[%154, %c0_86, %c0_87] : memref<100x8x128xf32, #tpu.memory_space<vmem>>, vector<1x8x128xf32>
      %156 = vector.shape_cast %155 : vector<1x8x128xf32> to vector<8x128xf32>
      %157 = vector.shape_cast %153 : vector<8x128xf32> to vector<1x8x128xf32>
      tpu.vector_store %arg21[%154, %c0_86, %c0_87], %157 {strides = array<i32>} : memref<100x8x128xf32, #tpu.memory_space<vmem>>, vector<1x8x128xf32>,
      %158 = vector.extract_strided_slice %125 {offsets = [0, 0, 128], sizes = [8, 128, 128], strides = [1, 1, 1]} : vector<8x128x256xbf16> to vector<8x128x128xbf16>
      %159 = arith.extf %158 : vector<8x128x128xbf16> to vector<8x128x128xf32>
      %160 = vector.shape_cast %153 : vector<8x128xf32> to vector<8x128x1xf32>
      %161 = vector.broadcast %160 : vector<8x128x1xf32> to vector<8x128x128xf32>
      %162 = arith.mulf %159, %161 : vector<8x128x128xf32>
      %cst_88 = arith.constant dense<0.000000e+00> : vector<8x128xf32>
      %163 = vector.multi_reduction <add>, %162, %cst_88 [1] : vector<8x128x128xf32> to vector<8x128xf32>
      %164 = arith.addf %163, %124 : vector<8x128xf32>
      %c0_89 = arith.constant 0 : index
      %c0_90 = arith.constant 0 : index
      %165 = vector.load %arg17[%c0_89, %c0_90] : memref<1x128xf32, #tpu.memory_space<vmem>>, vector<1x128xf32>
      %166 = vector.broadcast %165 : vector<1x128xf32> to vector<8x128xf32>
      %167 = arith.addf %164, %166 : vector<8x128xf32>
      %cst_91 = arith.constant 0.000000e+00 : f32
      %168 = vector.broadcast %cst_91 : f32 to vector<8x128xf32>
      %169 = arith.maximumf %167, %168 : vector<8x128xf32>
      %c0_92 = arith.constant 0 : index
      %c0_93 = arith.constant 0 : index
      %170 = vector.load %arg23[%c0_92, %c0_93] : memref<8x128xf32, #tpu.memory_space<vmem>>, vector<8x128xf32>
      tpu.vector_store %arg23[%c0_92, %c0_93], %169 {strides = array<i32>} : memref<8x128xf32, #tpu.memory_space<vmem>>, vector<8x128xf32>,
      %171 = arith.truncf %169 : vector<8x128xf32> to vector<8x128xbf16>
      %c0_94 = arith.constant 0 : index
      %c0_95 = arith.constant 0 : index
      %172 = vector.load %arg18[%c0_94, %c0_95] : memref<128x16xbf16, #tpu.memory_space<vmem>>, vector<128x16xbf16>
      %cst_96 = arith.constant dense<0.000000e+00> : vector<8x16xf32>
      %173 = tpu.matmul %171, %172, %cst_96 {dimension_numbers = #tpu.dot_dimension_numbers<[1], [0], [0], [1], [0, 0, 1, 1], [], []>} : vector<8x128xbf16>, vector<128x16xbf16>, vector<8x16xf32> -> vector<8x16xf32>
      %c0_97 = arith.constant 0 : index
      %c0_98 = arith.constant 0 : index
      %174 = vector.load %arg19[%c0_97, %c0_98] : memref<1x16xf32, #tpu.memory_space<vmem>>, vector<1x16xf32>
      %175 = vector.broadcast %174 : vector<1x16xf32> to vector<8x16xf32>
      %176 = arith.addf %173, %175 : vector<8x16xf32>
      %177 = tpu.iota {dimensions = array<i32: 1>} : vector<8x16xi32>
      %cst_99 = arith.constant dense<0xFF800000> : vector<8xf32>
      %178 = vector.multi_reduction <maximumf>, %176, %cst_99 [1] : vector<8x16xf32> to vector<8xf32>
      %179 = vector.shape_cast %178 : vector<8xf32> to vector<8x1xf32>
      %180 = vector.broadcast %179 : vector<8x1xf32> to vector<8x16xf32>
      %181 = arith.cmpf oeq, %176, %180 : vector<8x16xf32>
      %c16_i32 = arith.constant 16 : i32
      %182 = vector.broadcast %c16_i32 : i32 to vector<8x16xi32>
      %183 = arith.select %181, %177, %182 : vector<8x16xi1>, vector<8x16xi32>
      %cst_100 = arith.constant dense<2147483647> : vector<8xi32>
      %184 = vector.multi_reduction <minsi>, %183, %cst_100 [1] : vector<8x16xi32> to vector<8xi32>
      %c15_i32 = arith.constant 15 : i32
      %185 = vector.broadcast %c15_i32 : i32 to vector<8xi32>
      %186 = arith.minsi %184, %185 : vector<8xi32>
      %c1_i32_101 = arith.constant 1 : i32
      %187 = arith.addi %23, %c1_i32_101 : i32
      %188 = arith.index_cast %187 : i32 to index
      %c0_102 = arith.constant 0 : index
      %189 = vector.load %arg20[%188, %c0_102] : memref<101x8xi32, #tpu.memory_space<vmem>>, vector<1x8xi32>
      %190 = vector.shape_cast %189 : vector<1x8xi32> to vector<8xi32>
      %191 = vector.shape_cast %186 : vector<8xi32> to vector<1x8xi32>
      tpu.vector_store %arg20[%188, %c0_102], %191 {strides = array<i32>} : memref<101x8xi32, #tpu.memory_space<vmem>>, vector<1x8xi32>,
      %192 = vector.shape_cast %186 : vector<8xi32> to vector<8x1xi32>
      %c0_103 = arith.constant 0 : index
      %c0_104 = arith.constant 0 : index
      %193 = vector.load %arg24[%c0_103, %c0_104] : memref<8x1xi32, #tpu.memory_space<vmem>>, vector<8x1xi32>
      tpu.vector_store %arg24[%c0_103, %c0_104], %192 {strides = array<i32>} : memref<8x1xi32, #tpu.memory_space<vmem>>, vector<8x1xi32>,
    }
    %c100_i32_24 = arith.constant 100 : i32
    return
  }
}

</mosaic_0001>

<llo_original>
// kernel: tpu_custom_call.1
$region0: #{tpu_custom_call.1}
  #allocation0 [shape = 'u32[]', space=smem, size = 0x4, offset = 0x4, fixed_abs, tag = 'smem constant byte address 0x4 - core index']
  #allocation1 [shape = 'u32[144,128]{1,0:T(1,128)}', space=vmem, size = 0x12000, scoped, tag = 'internal scratch']
  #allocation2 [shape = 'f32[2,8,128]{2,1,0:T(8,128)}', space=vmem, size = 0x2000, scoped, tag = 'scratch operand']
  #allocation3 [shape = 'f32[8,128]{1,0:T(8,128)}', space=vmem, size = 0x1000, scoped, tag = 'scratch operand']
  #allocation4 [shape = 's32[8,1]{1,0:T(8,128)}', space=vmem, size = 0x1000, scoped, tag = 'scratch operand']
  #allocation5 [shape = 'bf16[8,128,256]{2,1,0:T(16,128)(2,1)}', space=vmem, size = 0x80000, scoped, tag = 'scratch operand']
  #allocation6 [shape = 'f32[8,384]{1,0:T(8,128)}', space=vmem, size = 0x3000, scoped, tag = 'scratch operand']
  #allocation7 [shape = 'f32[2,8,128]{2,1,0:T(8,128)}', space=vmem, size = 0x2000, scoped, tag = 'scratch operand']
  #allocation8 [shape = 's32[2]{0}', space=sflag, size = 0x8, scoped, tag = 'scratch operand']
  #allocation9 [shape = 's32[]', space=sflag, size = 0x4, offset = 0, fixed_abs, tag = 'sflag constant byte address 0x0 - dummy sync flag']
  #allocation10 [shape = 's32[]', space=sflag, size = 0x4, offset = 0, fixed_abs, tag = 'sflag constant byte address 0x0 - dummy sync flag']
  #allocation11 [shape = 'u32[]', space=smem, size = 0x4, offset = 0x44, fixed_abs, tag = 'smem constant byte address 0x44 - assertion arg 0']
  #allocation12 [shape = 'u32[]', space=smem, size = 0x4, offset = 0x48, fixed_abs, tag = 'smem constant byte address 0x48 - assertion arg 1']
  %s0 = inlined_call_operand.vmem [shape: f32[8,128,64], index: 0, kind: input, shape index: {}]
  %s1 = inlined_call_operand.vmem [shape: s32[8,1], index: 1, kind: input, shape index: {}]
  %s2 = inlined_call_operand.vmem [shape: f32[2,8,128], index: 2, kind: input, shape index: {}]
  %s3 = inlined_call_operand.vmem [shape: f32[8,128], index: 3, kind: input, shape index: {}]
  %s4 = inlined_call_operand.vmem [shape: f32[16,384], index: 4, kind: input, shape index: {}]
  %s5 = inlined_call_operand.vmem [shape: bf16[128,384], index: 5, kind: input, shape index: {}]
  %s6 = inlined_call_operand.vmem [shape: bf16[128,384], index: 6, kind: input, shape index: {}]
  %s7 = inlined_call_operand.vmem [shape: f32[1,384], index: 7, kind: input, shape index: {}]
  %s8 = inlined_call_operand.vmem [shape: f32[1,128], index: 8, kind: input, shape index: {}]
  %s9 = inlined_call_operand.vmem [shape: bf16[128,384], index: 9, kind: input, shape index: {}]
  %s10 = inlined_call_operand.vmem [shape: bf16[128,384], index: 10, kind: input, shape index: {}]
  %s11 = inlined_call_operand.vmem [shape: f32[1,384], index: 11, kind: input, shape index: {}]
  %s12 = inlined_call_operand.vmem [shape: f32[1,128], index: 12, kind: input, shape index: {}]
  %s13 = inlined_call_operand.vmem [shape: bf16[64,256], index: 13, kind: input, shape index: {}]
  %s14 = inlined_call_operand.vmem [shape: f32[1,256], index: 14, kind: input, shape index: {}]
  %s15 = inlined_call_operand.vmem [shape: bf16[128,256], index: 15, kind: input, shape index: {}]
  %s16 = inlined_call_operand.vmem [shape: f32[1,128], index: 16, kind: input, shape index: {}]
  %s17 = inlined_call_operand.vmem [shape: f32[1,128], index: 17, kind: input, shape index: {}]
  %s18 = inlined_call_operand.vmem [shape: bf16[128,16], index: 18, kind: input, shape index: {}]
  %s19 = inlined_call_operand.vmem [shape: f32[1,16], index: 19, kind: input, shape index: {}]
  %s20 = inlined_call_operand.vmem [shape: s32[101,8], index: 20, kind: output, shape index: {0}]
  %s21 = inlined_call_operand.hbm [shape: f32[100,8,128], index: 21, kind: output, shape index: {1}]
  %22 = xla_tuple %s20, %s21
  %s23 = sld [smem:[#allocation0]]
  $region105: #{tpu_custom_call.1} parent=0
    _
  %s25 = ssub.s32 1, %s23
  %s26 = scalar_select 0, %s25, %s23
  // Predicated region
  $region2: #{tpu_custom_call.1} parent=0 // pred_check
    _
  $region3: #{tpu_custom_call.1} parent=0 // pred_check_branch
    %28 = sbr.rel (0) target = $region5
  $region4: #{tpu_custom_call.1} parent=0 // pred_region
    _
  $region5: #{tpu_custom_call.1} parent=0 // pred_fallthru
    _
  // Predicated region
  $region6: #{tpu_custom_call.1} parent=0 // pred_check
    _
  $region7: #{tpu_custom_call.1} parent=0 // pred_check_branch
    %30 = sbr.rel (0) target = $region9
  $region8: #{tpu_custom_call.1} parent=0 // pred_region
    _
  $region9: #{tpu_custom_call.1} parent=0 // pred_fallthru
    _
  // Predicated region
  $region10: #{tpu_custom_call.1} parent=0 // pred_check
    _
  $region11: #{tpu_custom_call.1} parent=0 // pred_check_branch
    %32 = sbr.rel (0) target = $region13
  $region12: #{tpu_custom_call.1} parent=0 // pred_region
    _
  $region13: #{tpu_custom_call.1} parent=0 // pred_fallthru
    _
  // Predicated region
  $region14: #{tpu_custom_call.1} parent=0 // pred_check
    _
  $region15: #{tpu_custom_call.1} parent=0 // pred_check_branch
    %34 = sbr.rel (0) target = $region17
  $region16: #{tpu_custom_call.1} parent=0 // pred_region
    _
  $region17: #{tpu_custom_call.1} parent=0 // pred_fallthru
    _
  // Predicated region
  $region18: #{tpu_custom_call.1} parent=0 // pred_check
    _
  $region19: #{tpu_custom_call.1} parent=0 // pred_check_branch
    %36 = sbr.rel (0) target = $region21
  $region20: #{tpu_custom_call.1} parent=0 // pred_region
    _
  $region21: #{tpu_custom_call.1} parent=0 // pred_fallthru
    _
  // Predicated region
  $region22: #{tpu_custom_call.1} parent=0 // pred_check
    _
  $region23: #{tpu_custom_call.1} parent=0 // pred_check_branch
    %38 = sbr.rel (0) target = $region25
  $region24: #{tpu_custom_call.1} parent=0 // pred_region
    _
  $region25: #{tpu_custom_call.1} parent=0 // pred_fallthru
    _
  // Predicated region
  $region26: #{tpu_custom_call.1} parent=0 // pred_check
    _
  $region27: #{tpu_custom_call.1} parent=0 // pred_check_branch
    %40 = sbr.rel (0) target = $region29
  $region28: #{tpu_custom_call.1} parent=0 // pred_region
    _
  $region29: #{tpu_custom_call.1} parent=0 // pred_fallthru
    _
  // Predicated region
  $region30: #{tpu_custom_call.1} parent=0 // pred_check
    _
  $region31: #{tpu_custom_call.1} parent=0 // pred_check_branch
    %42 = sbr.rel (0) target = $region33
  $region32: #{tpu_custom_call.1} parent=0 // pred_region
    _
  $region33: #{tpu_custom_call.1} parent=0 // pred_fallthru
    _
  // Predicated region
  $region34: #{tpu_custom_call.1} parent=0 // pred_check
    _
  $region35: #{tpu_custom_call.1} parent=0 // pred_check_branch
    %44 = sbr.rel (0) target = $region37
  $region36: #{tpu_custom_call.1} parent=0 // pred_region
    _
  $region37: #{tpu_custom_call.1} parent=0 // pred_fallthru
    _
  // Predicated region
  $region38: #{tpu_custom_call.1} parent=0 // pred_check
    _
  $region39: #{tpu_custom_call.1} parent=0 // pred_check_branch
    %46 = sbr.rel (0) target = $region41
  $region40: #{tpu_custom_call.1} parent=0 // pred_region
    _
  $region41: #{tpu_custom_call.1} parent=0 // pred_fallthru
    _
  // Predicated region
  $region42: #{tpu_custom_call.1} parent=0 // pred_check
    _
  $region43: #{tpu_custom_call.1} parent=0 // pred_check_branch
    %48 = sbr.rel (0) target = $region45
  $region44: #{tpu_custom_call.1} parent=0 // pred_region
    _
  $region45: #{tpu_custom_call.1} parent=0 // pred_fallthru
    _
  // Predicated region
  $region46: #{tpu_custom_call.1} parent=0 // pred_check
    _
  $region47: #{tpu_custom_call.1} parent=0 // pred_check_branch
    %50 = sbr.rel (0) target = $region49
  $region48: #{tpu_custom_call.1} parent=0 // pred_region
    _
  $region49: #{tpu_custom_call.1} parent=0 // pred_fallthru
    _
  // Predicated region
  $region50: #{tpu_custom_call.1} parent=0 // pred_check
    _
  $region51: #{tpu_custom_call.1} parent=0 // pred_check_branch
    %52 = sbr.rel (0) target = $region53
  $region52: #{tpu_custom_call.1} parent=0 // pred_region
    _
  $region53: #{tpu_custom_call.1} parent=0 // pred_fallthru
    _
  // Predicated region
  $region54: #{tpu_custom_call.1} parent=0 // pred_check
    _
  $region55: #{tpu_custom_call.1} parent=0 // pred_check_branch
    %54 = sbr.rel (0) target = $region57
  $region56: #{tpu_custom_call.1} parent=0 // pred_region
    _
  $region57: #{tpu_custom_call.1} parent=0 // pred_fallthru
    _
  // Predicated region
  $region58: #{tpu_custom_call.1} parent=0 // pred_check
    _
  $region59: #{tpu_custom_call.1} parent=0 // pred_check_branch
    %56 = sbr.rel (0) target = $region61
  $region60: #{tpu_custom_call.1} parent=0 // pred_region
    _
  $region61: #{tpu_custom_call.1} parent=0 // pred_fallthru
    _
  // Predicated region
  $region62: #{tpu_custom_call.1} parent=0 // pred_check
    _
  $region63: #{tpu_custom_call.1} parent=0 // pred_check_branch
    %58 = sbr.rel (0) target = $region65
  $region64: #{tpu_custom_call.1} parent=0 // pred_region
    _
  $region65: #{tpu_custom_call.1} parent=0 // pred_fallthru
    _
  // Predicated region
  $region66: #{tpu_custom_call.1} parent=0 // pred_check
    _
  $region67: #{tpu_custom_call.1} parent=0 // pred_check_branch
    %60 = sbr.rel (0) target = $region69
  $region68: #{tpu_custom_call.1} parent=0 // pred_region
    _
  $region69: #{tpu_custom_call.1} parent=0 // pred_fallthru
    _
  // Predicated region
  $region70: #{tpu_custom_call.1} parent=0 // pred_check
    _
  $region71: #{tpu_custom_call.1} parent=0 // pred_check_branch
    %62 = sbr.rel (0) target = $region73
  $region72: #{tpu_custom_call.1} parent=0 // pred_region
    _
  $region73: #{tpu_custom_call.1} parent=0 // pred_fallthru
    _
  // Predicated region
  $region74: #{tpu_custom_call.1} parent=0 // pred_check
    _
  $region75: #{tpu_custom_call.1} parent=0 // pred_check_branch
    %64 = sbr.rel (0) target = $region77
  $region76: #{tpu_custom_call.1} parent=0 // pred_region
    _
  $region77: #{tpu_custom_call.1} parent=0 // pred_fallthru
    _
  // Predicated region
  $region78: #{tpu_custom_call.1} parent=0 // pred_check
    _
  $region79: #{tpu_custom_call.1} parent=0 // pred_check_branch
    %66 = sbr.rel (0) target = $region81
  $region80: #{tpu_custom_call.1} parent=0 // pred_region
    _
  $region81: #{tpu_custom_call.1} parent=0 // pred_fallthru
    _
  %v68 = vld [vmem:[%s2] sm:$0xff]
  %v69 = vld [vmem:[%s2 + $0x8] sm:$0xff]
  %70 = vst [vmem:[#allocation2] sm:$0xff] %v68
  %71 = vst [vmem:[#allocation2 + $0x8] sm:$0xff] %v69
  %v72 = vld [vmem:[%s3] sm:$0xff]
  %73 = vst [vmem:[#allocation3] sm:$0xff] %v72
  %vm74 = vcmask 57344
  %75 = vst.msk [vmem:[%s20] sm:$0x1] %vm74, 3
  %vm76 = vcmask 7168
  %77 = vst.msk [vmem:[#allocation4] sm:$0xff] %vm76, 3
  %v78 = vld [vmem:[%s0] sm:$0xff]
  %v79 = vld [vmem:[%s0 + $0x8] sm:$0xff]
  %v80 = vld [vmem:[%s0 + $0x10] sm:$0xff]
  %v81 = vld [vmem:[%s0 + $0x18] sm:$0xff]
  %v82 = vld [vmem:[%s0 + $0x20] sm:$0xff]
  %v83 = vld [vmem:[%s0 + $0x28] sm:$0xff]
  %v84 = vld [vmem:[%s0 + $0x30] sm:$0xff]
  %v85 = vld [vmem:[%s0 + $0x38] sm:$0xff]
  %v86 = vld [vmem:[%s0 + $0x40] sm:$0xff]
  %v87 = vld [vmem:[%s0 + $0x48] sm:$0xff]
  %v88 = vld [vmem:[%s0 + $0x50] sm:$0xff]
  %v89 = vld [vmem:[%s0 + $0x58] sm:$0xff]
  %v90 = vld [vmem:[%s0 + $0x60] sm:$0xff]
  %v91 = vld [vmem:[%s0 + $0x68] sm:$0xff]
  %v92 = vld [vmem:[%s0 + $0x70] sm:$0xff]
  %v93 = vld [vmem:[%s0 + $0x78] sm:$0xff]
  %v94 = vld [vmem:[%s0 + $0x80] sm:$0xff]
  %v95 = vld [vmem:[%s0 + $0x88] sm:$0xff]
  %v96 = vld [vmem:[%s0 + $0x90] sm:$0xff]
  %v97 = vld [vmem:[%s0 + $0x98] sm:$0xff]
  %v98 = vld [vmem:[%s0 + $0xa0] sm:$0xff]
  %v99 = vld [vmem:[%s0 + $0xa8] sm:$0xff]
  %v100 = vld [vmem:[%s0 + $0xb0] sm:$0xff]
  %v101 = vld [vmem:[%s0 + $0xb8] sm:$0xff]
  %v102 = vld [vmem:[%s0 + $0xc0] sm:$0xff]
  %v103 = vld [vmem:[%s0 + $0xc8] sm:$0xff]
  %v104 = vld [vmem:[%s0 + $0xd0] sm:$0xff]
  %v105 = vld [vmem:[%s0 + $0xd8] sm:$0xff]
  %v106 = vld [vmem:[%s0 + $0xe0] sm:$0xff]
  %v107 = vld [vmem:[%s0 + $0xe8] sm:$0xff]
  %v108 = vld [vmem:[%s0 + $0xf0] sm:$0xff]
  %v109 = vld [vmem:[%s0 + $0xf8] sm:$0xff]
  %v110 = vld [vmem:[%s0 + $0x100] sm:$0xff]
  %v111 = vld [vmem:[%s0 + $0x108] sm:$0xff]
  %v112 = vld [vmem:[%s0 + $0x110] sm:$0xff]
  %v113 = vld [vmem:[%s0 + $0x118] sm:$0xff]
  %v114 = vld [vmem:[%s0 + $0x120] sm:$0xff]
  %v115 = vld [vmem:[%s0 + $0x128] sm:$0xff]
  %v116 = vld [vmem:[%s0 + $0x130] sm:$0xff]
  %v117 = vld [vmem:[%s0 + $0x138] sm:$0xff]
  %v118 = vld [vmem:[%s0 + $0x140] sm:$0xff]
  %v119 = vld [vmem:[%s0 + $0x148] sm:$0xff]
  %v120 = vld [vmem:[%s0 + $0x150] sm:$0xff]
  %v121 = vld [vmem:[%s0 + $0x158] sm:$0xff]
  %v122 = vld [vmem:[%s0 + $0x160] sm:$0xff]
  %v123 = vld [vmem:[%s0 + $0x168] sm:$0xff]
  %v124 = vld [vmem:[%s0 + $0x170] sm:$0xff]
  %v125 = vld [vmem:[%s0 + $0x178] sm:$0xff]
  %v126 = vld [vmem:[%s0 + $0x180] sm:$0xff]
  %v127 = vld [vmem:[%s0 + $0x188] sm:$0xff]
  %v128 = vld [vmem:[%s0 + $0x190] sm:$0xff]
  %v129 = vld [vmem:[%s0 + $0x198] sm:$0xff]
  %v130 = vld [vmem:[%s0 + $0x1a0] sm:$0xff]
  %v131 = vld [vmem:[%s0 + $0x1a8] sm:$0xff]
  %v132 = vld [vmem:[%s0 + $0x1b0] sm:$0xff]
  %v133 = vld [vmem:[%s0 + $0x1b8] sm:$0xff]
  %v134 = vld [vmem:[%s0 + $0x1c0] sm:$0xff]
  %v135 = vld [vmem:[%s0 + $0x1c8] sm:$0xff]
  %v136 = vld [vmem:[%s0 + $0x1d0] sm:$0xff]
  %v137 = vld [vmem:[%s0 + $0x1d8] sm:$0xff]
  %v138 = vld [vmem:[%s0 + $0x1e0] sm:$0xff]
  %v139 = vld [vmem:[%s0 + $0x1e8] sm:$0xff]
  %v140 = vld [vmem:[%s0 + $0x1f0] sm:$0xff]
  %v141 = vld [vmem:[%s0 + $0x1f8] sm:$0xff]
  %v142 = vld [vmem:[%s0 + $0x200] sm:$0xff]
  %v143 = vld [vmem:[%s0 + $0x208] sm:$0xff]
  %v144 = vld [vmem:[%s0 + $0x210] sm:$0xff]
  %v145 = vld [vmem:[%s0 + $0x218] sm:$0xff]
  %v146 = vld [vmem:[%s0 + $0x220] sm:$0xff]
  %v147 = vld [vmem:[%s0 + $0x228] sm:$0xff]
  %v148 = vld [vmem:[%s0 + $0x230] sm:$0xff]
  %v149 = vld [vmem:[%s0 + $0x238] sm:$0xff]
  %v150 = vld [vmem:[%s0 + $0x240] sm:$0xff]
  %v151 = vld [vmem:[%s0 + $0x248] sm:$0xff]
  %v152 = vld [vmem:[%s0 + $0x250] sm:$0xff]
  %v153 = vld [vmem:[%s0 + $0x258] sm:$0xff]
  %v154 = vld [vmem:[%s0 + $0x260] sm:$0xff]
  %v155 = vld [vmem:[%s0 + $0x268] sm:$0xff]
  %v156 = vld [vmem:[%s0 + $0x270] sm:$0xff]
  %v157 = vld [vmem:[%s0 + $0x278] sm:$0xff]
  %v158 = vld [vmem:[%s0 + $0x280] sm:$0xff]
  %v159 = vld [vmem:[%s0 + $0x288] sm:$0xff]
  %v160 = vld [vmem:[%s0 + $0x290] sm:$0xff]
  %v161 = vld [vmem:[%s0 + $0x298] sm:$0xff]
  %v162 = vld [vmem:[%s0 + $0x2a0] sm:$0xff]
  %v163 = vld [vmem:[%s0 + $0x2a8] sm:$0xff]
  %v164 = vld [vmem:[%s0 + $0x2b0] sm:$0xff]
  %v165 = vld [vmem:[%s0 + $0x2b8] sm:$0xff]
  %v166 = vld [vmem:[%s0 + $0x2c0] sm:$0xff]
  %v167 = vld [vmem:[%s0 + $0x2c8] sm:$0xff]
  %v168 = vld [vmem:[%s0 + $0x2d0] sm:$0xff]
  %v169 = vld [vmem:[%s0 + $0x2d8] sm:$0xff]
  %v170 = vld [vmem:[%s0 + $0x2e0] sm:$0xff]
  %v171 = vld [vmem:[%s0 + $0x2e8] sm:$0xff]
  %v172 = vld [vmem:[%s0 + $0x2f0] sm:$0xff]
  %v173 = vld [vmem:[%s0 + $0x2f8] sm:$0xff]
  %v174 = vld [vmem:[%s0 + $0x300] sm:$0xff]
  %v175 = vld [vmem:[%s0 + $0x308] sm:$0xff]
  %v176 = vld [vmem:[%s0 + $0x310] sm:$0xff]
  %v177 = vld [vmem:[%s0 + $0x318] sm:$0xff]
  %v178 = vld [vmem:[%s0 + $0x320] sm:$0xff]
  %v179 = vld [vmem:[%s0 + $0x328] sm:$0xff]
  %v180 = vld [vmem:[%s0 + $0x330] sm:$0xff]
  %v181 = vld [vmem:[%s0 + $0x338] sm:$0xff]
  %v182 = vld [vmem:[%s0 + $0x340] sm:$0xff]
  %v183 = vld [vmem:[%s0 + $0x348] sm:$0xff]
  %v184 = vld [vmem:[%s0 + $0x350] sm:$0xff]
  %v185 = vld [vmem:[%s0 + $0x358] sm:$0xff]
  %v186 = vld [vmem:[%s0 + $0x360] sm:$0xff]
  %v187 = vld [vmem:[%s0 + $0x368] sm:$0xff]
  %v188 = vld [vmem:[%s0 + $0x370] sm:$0xff]
  %v189 = vld [vmem:[%s0 + $0x378] sm:$0xff]
  %v190 = vld [vmem:[%s0 + $0x380] sm:$0xff]
  %v191 = vld [vmem:[%s0 + $0x388] sm:$0xff]
  %v192 = vld [vmem:[%s0 + $0x390] sm:$0xff]
  %v193 = vld [vmem:[%s0 + $0x398] sm:$0xff]
  %v194 = vld [vmem:[%s0 + $0x3a0] sm:$0xff]
  %v195 = vld [vmem:[%s0 + $0x3a8] sm:$0xff]
  %v196 = vld [vmem:[%s0 + $0x3b0] sm:$0xff]
  %v197 = vld [vmem:[%s0 + $0x3b8] sm:$0xff]
  %v198 = vld [vmem:[%s0 + $0x3c0] sm:$0xff]
  %v199 = vld [vmem:[%s0 + $0x3c8] sm:$0xff]
  %v200 = vld [vmem:[%s0 + $0x3d0] sm:$0xff]
  %v201 = vld [vmem:[%s0 + $0x3d8] sm:$0xff]
  %v202 = vld [vmem:[%s0 + $0x3e0] sm:$0xff]
  %v203 = vld [vmem:[%s0 + $0x3e8] sm:$0xff]
  %v204 = vld [vmem:[%s0 + $0x3f0] sm:$0xff]
  %v205 = vld [vmem:[%s0 + $0x3f8] sm:$0xff]
  %v206 = vpack.c.bf16 %v79, %v78
  %v207 = vpack.c.bf16 %v81, %v80
  %v208 = vpack.c.bf16 %v83, %v82
  %v209 = vpack.c.bf16 %v85, %v84
  %v210 = vpack.c.bf16 %v87, %v86
  %v211 = vpack.c.bf16 %v89, %v88
  %v212 = vpack.c.bf16 %v91, %v90
  %v213 = vpack.c.bf16 %v93, %v92
  %v214 = vpack.c.bf16 %v95, %v94
  %v215 = vpack.c.bf16 %v97, %v96
  %v216 = vpack.c.bf16 %v99, %v98
  %v217 = vpack.c.bf16 %v101, %v100
  %v218 = vpack.c.bf16 %v103, %v102
  %v219 = vpack.c.bf16 %v105, %v104
  %v220 = vpack.c.bf16 %v107, %v106
  %v221 = vpack.c.bf16 %v109, %v108
  %v222 = vpack.c.bf16 %v111, %v110
  %v223 = vpack.c.bf16 %v113, %v112
  %v224 = vpack.c.bf16 %v115, %v114
  %v225 = vpack.c.bf16 %v117, %v116
  %v226 = vpack.c.bf16 %v119, %v118
  %v227 = vpack.c.bf16 %v121, %v120
  %v228 = vpack.c.bf16 %v123, %v122
  %v229 = vpack.c.bf16 %v125, %v124
  %v230 = vpack.c.bf16 %v127, %v126
  %v231 = vpack.c.bf16 %v129, %v128
  %v232 = vpack.c.bf16 %v131, %v130
  %v233 = vpack.c.bf16 %v133, %v132
  %v234 = vpack.c.bf16 %v135, %v134
  %v235 = vpack.c.bf16 %v137, %v136
  %v236 = vpack.c.bf16 %v139, %v138
  %v237 = vpack.c.bf16 %v141, %v140
  %v238 = vpack.c.bf16 %v143, %v142
  %v239 = vpack.c.bf16 %v145, %v144
  %v240 = vpack.c.bf16 %v147, %v146
  %v241 = vpack.c.bf16 %v149, %v148
  %v242 = vpack.c.bf16 %v151, %v150
  %v243 = vpack.c.bf16 %v153, %v152
  %v244 = vpack.c.bf16 %v155, %v154
  %v245 = vpack.c.bf16 %v157, %v156
  %v246 = vpack.c.bf16 %v159, %v158
  %v247 = vpack.c.bf16 %v161, %v160
  %v248 = vpack.c.bf16 %v163, %v162
  %v249 = vpack.c.bf16 %v165, %v164
  %v250 = vpack.c.bf16 %v167, %v166
  %v251 = vpack.c.bf16 %v169, %v168
  %v252 = vpack.c.bf16 %v171, %v170
  %v253 = vpack.c.bf16 %v173, %v172
  %v254 = vpack.c.bf16 %v175, %v174
  %v255 = vpack.c.bf16 %v177, %v176
  %v256 = vpack.c.bf16 %v179, %v178
  %v257 = vpack.c.bf16 %v181, %v180
  %v258 = vpack.c.bf16 %v183, %v182
  %v259 = vpack.c.bf16 %v185, %v184
  %v260 = vpack.c.bf16 %v187, %v186
  %v261 = vpack.c.bf16 %v189, %v188
  %v262 = vpack.c.bf16 %v191, %v190
  %v263 = vpack.c.bf16 %v193, %v192
  %v264 = vpack.c.bf16 %v195, %v194
  %v265 = vpack.c.bf16 %v197, %v196
  %v266 = vpack.c.bf16 %v199, %v198
  %v267 = vpack.c.bf16 %v201, %v200
  %v268 = vpack.c.bf16 %v203, %v202
  %v269 = vpack.c.bf16 %v205, %v204
  %v270 = vld [vmem:[%s13] sm:$0xff]
  %v271 = vld [vmem:[%s13 + $0x8] sm:$0xff]
  %v272 = vld [vmem:[%s13 + $0x10] sm:$0xff]
  %v273 = vld [vmem:[%s13 + $0x18] sm:$0xff]
  %v274 = vld [vmem:[%s13 + $0x20] sm:$0xff]
  %v275 = vld [vmem:[%s13 + $0x28] sm:$0xff]
  %v276 = vld [vmem:[%s13 + $0x30] sm:$0xff]
  %v277 = vld [vmem:[%s13 + $0x38] sm:$0xff]
  %v278 = vld [vmem:[%s14] sm:$0x3]
  %v280 = vlaneseq
  %v281 = vshrl.u32 %v280, 7
  %v282 = vsub.s32 0, %v281
  %v283 = vrot.slane %v278, %v282
  %v284 = vlaneseq
  %v285 = vshrl.u32 %v284, 7
  %v286 = vsub.s32 1, %v285
  %v287 = vrot.slane %v278, %v286
  %v298 = vunpack.c.l.b16 %v270
  %v299 = vunpack.c.h.b16 %v270
  %v300 = vunpack.c.l.b16 %v271
  %v301 = vunpack.c.h.b16 %v271
  %v302 = vunpack.c.l.b16 %v272
  %v303 = vunpack.c.h.b16 %v272
  %v304 = vunpack.c.l.b16 %v273
  %v305 = vunpack.c.h.b16 %v273
  %v306 = vunpack.c.l.b16 %v274
  %v307 = vunpack.c.h.b16 %v274
  %v308 = vunpack.c.l.b16 %v275
  %v309 = vunpack.c.h.b16 %v275
  %v310 = vunpack.c.l.b16 %v276
  %v311 = vunpack.c.h.b16 %v276
  %v312 = vunpack.c.l.b16 %v277
  %v313 = vunpack.c.h.b16 %v277
  %v314 = vpack.c.b16 %v300, %v298
  %v315 = vpack.c.b16 %v301, %v299
  %v316 = vpack.c.b16 %v304, %v302
  %v317 = vpack.c.b16 %v305, %v303
  %v318 = vpack.c.b16 %v308, %v306
  %v319 = vpack.c.b16 %v309, %v307
  %v320 = vpack.c.b16 %v312, %v310
  %v321 = vpack.c.b16 %v313, %v311
  %vm330 = vcmask 523264
  %v332 = vsel %vm330, %v206, 0
  %v335 = vsel %vm330, %v207, 0
  %v338 = vsel %vm330, %v208, 0
  %v341 = vsel %vm330, %v209, 0
  %v344 = vsel %vm330, %v210, 0
  %v347 = vsel %vm330, %v211, 0
  %v350 = vsel %vm330, %v212, 0
  %v353 = vsel %vm330, %v213, 0
  %v356 = vsel %vm330, %v214, 0
  %v359 = vsel %vm330, %v215, 0
  %v362 = vsel %vm330, %v216, 0
  %v365 = vsel %vm330, %v217, 0
  %v368 = vsel %vm330, %v218, 0
  %v371 = vsel %vm330, %v219, 0
  %v374 = vsel %vm330, %v220, 0
  %v377 = vsel %vm330, %v221, 0
  %v380 = vsel %vm330, %v222, 0
  %v383 = vsel %vm330, %v223, 0
  %v386 = vsel %vm330, %v224, 0
  %v389 = vsel %vm330, %v225, 0
  %v392 = vsel %vm330, %v226, 0
  %v395 = vsel %vm330, %v227, 0
  %v398 = vsel %vm330, %v228, 0
  %v401 = vsel %vm330, %v229, 0
  %v404 = vsel %vm330, %v230, 0
  %v407 = vsel %vm330, %v231, 0
  %v410 = vsel %vm330, %v232, 0
  %v413 = vsel %vm330, %v233, 0
  %v416 = vsel %vm330, %v234, 0
  %v419 = vsel %vm330, %v235, 0
  %v422 = vsel %vm330, %v236, 0
  %v425 = vsel %vm330, %v237, 0
  %v428 = vsel %vm330, %v238, 0
  %v431 = vsel %vm330, %v239, 0
  %v434 = vsel %vm330, %v240, 0
  %v437 = vsel %vm330, %v241, 0
  %v440 = vsel %vm330, %v242, 0
  %v443 = vsel %vm330, %v243, 0
  %v446 = vsel %vm330, %v244, 0
  %v449 = vsel %vm330, %v245, 0
  %v452 = vsel %vm330, %v246, 0
  %v455 = vsel %vm330, %v247, 0
  %v458 = vsel %vm330, %v248, 0
  %v461 = vsel %vm330, %v249, 0
  %v464 = vsel %vm330, %v250, 0
  %v467 = vsel %vm330, %v251, 0
  %v470 = vsel %vm330, %v252, 0
  %v473 = vsel %vm330, %v253, 0
  %v476 = vsel %vm330, %v254, 0
  %v479 = vsel %vm330, %v255, 0
  %v482 = vsel %vm330, %v256, 0
  %v485 = vsel %vm330, %v257, 0
  %v488 = vsel %vm330, %v258, 0
  %v491 = vsel %vm330, %v259, 0
  %v494 = vsel %vm330, %v260, 0
  %v497 = vsel %vm330, %v261, 0
  %v500 = vsel %vm330, %v262, 0
  %v503 = vsel %vm330, %v263, 0
  %v506 = vsel %vm330, %v264, 0
  %v509 = vsel %vm330, %v265, 0
  %v512 = vsel %vm330, %v266, 0
  %v515 = vsel %vm330, %v267, 0
  %v518 = vsel %vm330, %v268, 0
  %v521 = vsel %vm330, %v269, 0
  %523 = vmatprep.subr.bf16.mxu0 %v315
  %524 = vmatpush1.bf16.msra.mxu0 %v314
  %525 = vmatprep.subr.bf16.mxu0 %v317
  %526 = vmatpush1.bf16.msra.mxu0 %v316
  %527 = vmatprep.subr.bf16.mxu0 %v319
  %528 = vmatpush1.bf16.msra.mxu0 %v318
  %529 = vmatprep.subr.bf16.mxu0 %v321
  %530 = vmatpush1.bf16.msra.mxu0 %v320
  %531 = vmatprep.subr.bf16.mxu0 0
  %532 = vmatpush1.bf16.msra.mxu0 0
  %533 = vmatprep.subr.bf16.mxu0 0
  %534 = vmatpush1.bf16.msra.mxu0 0
  %535 = vmatprep.subr.bf16.mxu0 0
  %536 = vmatpush1.bf16.msra.mxu0 0
  %537 = vmatprep.subr.bf16.mxu0 0
  %538 = vmatpush1.bf16.msra.mxu0 0
  %539 = vmatprep.subr.bf16.mxu0 0
  %540 = vmatpush1.bf16.msra.mxu0 0
  %541 = vmatprep.subr.bf16.mxu0 0
  %542 = vmatpush1.bf16.msra.mxu0 0
  %543 = vmatprep.subr.bf16.mxu0 0
  %544 = vmatpush1.bf16.msra.mxu0 0
  %545 = vmatprep.subr.bf16.mxu0 0
  %546 = vmatpush1.bf16.msra.mxu0 0
  %547 = vmatprep.subr.bf16.mxu0 0
  %548 = vmatpush1.bf16.msra.mxu0 0
  %549 = vmatprep.subr.bf16.mxu0 0
  %550 = vmatpush1.bf16.msra.mxu0 0
  %551 = vmatprep.subr.bf16.mxu0 0
  %552 = vmatpush1.bf16.msra.mxu0 0
  %553 = vmatprep.subr.bf16.mxu0 0
  %554 = vmatpush1.bf16.msra.mxu0 0
  %555 = vmatprep.mubr.bf16.mxu0 0
  %556 = vmatmul.mubr.bf16.gmra.mrb[0].mxu0 %v332
  %v557 = vpop.f32.mrb[0].mxu0
  %v558 = vadd.f32 %v283, %v557
  %v559 = vpop.f32.mrb[0].mxu0
  %v560 = vadd.f32 %v287, %v559
  %v561 = vpop.f32.mrb[0].mxu0
  %v562 = vadd.f32 %v283, %v561
  %v563 = vpop.f32.mrb[0].mxu0
  %v564 = vadd.f32 %v287, %v563
  %565 = vmatprep.mubr.bf16.mxu0 0
  %566 = vmatmul.mubr.bf16.gmra.mrb[0].mxu0 %v335
  %v567 = vpop.f32.mrb[0].mxu0
  %v568 = vadd.f32 %v283, %v567
  %v569 = vpop.f32.mrb[0].mxu0
  %v570 = vadd.f32 %v287, %v569
  %v571 = vpop.f32.mrb[0].mxu0
  %v572 = vadd.f32 %v283, %v571
  %v573 = vpop.f32.mrb[0].mxu0
  %v574 = vadd.f32 %v287, %v573
  %575 = vmatprep.mubr.bf16.mxu0 0
  %576 = vmatmul.mubr.bf16.gmra.mrb[0].mxu0 %v338
  %v577 = vpop.f32.mrb[0].mxu0
  %v578 = vadd.f32 %v283, %v577
  %v579 = vpop.f32.mrb[0].mxu0
  %v580 = vadd.f32 %v287, %v579
  %v581 = vpop.f32.mrb[0].mxu0
  %v582 = vadd.f32 %v283, %v581
  %v583 = vpop.f32.mrb[0].mxu0
  %v584 = vadd.f32 %v287, %v583
  %585 = vmatprep.mubr.bf16.mxu0 0
  %586 = vmatmul.mubr.bf16.gmra.mrb[0].mxu0 %v341
  %v587 = vpop.f32.mrb[0].mxu0
  %v588 = vadd.f32 %v283, %v587
  %v589 = vpop.f32.mrb[0].mxu0
  %v590 = vadd.f32 %v287, %v589
  %v591 = vpop.f32.mrb[0].mxu0
  %v592 = vadd.f32 %v283, %v591
  %v593 = vpop.f32.mrb[0].mxu0
  %v594 = vadd.f32 %v287, %v593
  %595 = vmatprep.mubr.bf16.mxu0 0
  %596 = vmatmul.mubr.bf16.gmra.mrb[0].mxu0 %v344
  %v597 = vpop.f32.mrb[0].mxu0
  %v598 = vadd.f32 %v283, %v597
  %v599 = vpop.f32.mrb[0].mxu0
  %v600 = vadd.f32 %v287, %v599
  %v601 = vpop.f32.mrb[0].mxu0
  %v602 = vadd.f32 %v283, %v601
  %v603 = vpop.f32.mrb[0].mxu0
  %v604 = vadd.f32 %v287, %v603
  %605 = vmatprep.mubr.bf16.mxu0 0
  %606 = vmatmul.mubr.bf16.gmra.mrb[0].mxu0 %v347
  %v607 = vpop.f32.mrb[0].mxu0
  %v608 = vadd.f32 %v283, %v607
  %v609 = vpop.f32.mrb[0].mxu0
  %v610 = vadd.f32 %v287, %v609
  %v611 = vpop.f32.mrb[0].mxu0
  %v612 = vadd.f32 %v283, %v611
  %v613 = vpop.f32.mrb[0].mxu0
  %v614 = vadd.f32 %v287, %v613
  %615 = vmatprep.mubr.bf16.mxu0 0
  %616 = vmatmul.mubr.bf16.gmra.mrb[0].mxu0 %v350
  %v617 = vpop.f32.mrb[0].mxu0
  %v618 = vadd.f32 %v283, %v617
  %v619 = vpop.f32.mrb[0].mxu0
  %v620 = vadd.f32 %v287, %v619
  %v621 = vpop.f32.mrb[0].mxu0
  %v622 = vadd.f32 %v283, %v621
  %v623 = vpop.f32.mrb[0].mxu0
  %v624 = vadd.f32 %v287, %v623
  %625 = vmatprep.mubr.bf16.mxu0 0
  %626 = vmatmul.mubr.bf16.gmra.mrb[0].mxu0 %v353
  %v627 = vpop.f32.mrb[0].mxu0
  %v628 = vadd.f32 %v283, %v627
  %v629 = vpop.f32.mrb[0].mxu0
  %v630 = vadd.f32 %v287, %v629
  %v631 = vpop.f32.mrb[0].mxu0
  %v632 = vadd.f32 %v283, %v631
  %v633 = vpop.f32.mrb[0].mxu0
  %v634 = vadd.f32 %v287, %v633
  %635 = vmatprep.mubr.bf16.mxu0 0
  %636 = vmatmul.mubr.bf16.gmra.mrb[0].mxu0 %v356
  %v637 = vpop.f32.mrb[0].mxu0
  %v638 = vadd.f32 %v283, %v637
  %v639 = vpop.f32.mrb[0].mxu0
  %v640 = vadd.f32 %v287, %v639
  %v641 = vpop.f32.mrb[0].mxu0
  %v642 = vadd.f32 %v283, %v641
  %v643 = vpop.f32.mrb[0].mxu0
  %v644 = vadd.f32 %v287, %v643
  %645 = vmatprep.mubr.bf16.mxu0 0
  %646 = vmatmul.mubr.bf16.gmra.mrb[0].mxu0 %v359
  %v647 = vpop.f32.mrb[0].mxu0
  %v648 = vadd.f32 %v283, %v647
  %v649 = vpop.f32.mrb[0].mxu0
  %v650 = vadd.f32 %v287, %v649
  %v651 = vpop.f32.mrb[0].mxu0
  %v652 = vadd.f32 %v283, %v651
  %v653 = vpop.f32.mrb[0].mxu0
  %v654 = vadd.f32 %v287, %v653
  %655 = vmatprep.mubr.bf16.mxu0 0
  %656 = vmatmul.mubr.bf16.gmra.mrb[0].mxu0 %v362
  %v657 = vpop.f32.mrb[0].mxu0
  %v658 = vadd.f32 %v283, %v657
  %v659 = vpop.f32.mrb[0].mxu0
  %v660 = vadd.f32 %v287, %v659
  %v661 = vpop.f32.mrb[0].mxu0
  %v662 = vadd.f32 %v283, %v661
  %v663 = vpop.f32.mrb[0].mxu0
  %v664 = vadd.f32 %v287, %v663
  %665 = vmatprep.mubr.bf16.mxu0 0
  %666 = vmatmul.mubr.bf16.gmra.mrb[0].mxu0 %v365
  %v667 = vpop.f32.mrb[0].mxu0
  %v668 = vadd.f32 %v283, %v667
  %v669 = vpop.f32.mrb[0].mxu0
  %v670 = vadd.f32 %v287, %v669
  %v671 = vpop.f32.mrb[0].mxu0
  %v672 = vadd.f32 %v283, %v671
  %v673 = vpop.f32.mrb[0].mxu0
  %v674 = vadd.f32 %v287, %v673
  %675 = vmatprep.mubr.bf16.mxu0 0
  %676 = vmatmul.mubr.bf16.gmra.mrb[0].mxu0 %v368
  %v677 = vpop.f32.mrb[0].mxu0
  %v678 = vadd.f32 %v283, %v677
  %v679 = vpop.f32.mrb[0].mxu0
  %v680 = vadd.f32 %v287, %v679
  %v681 = vpop.f32.mrb[0].mxu0
  %v682 = vadd.f32 %v283, %v681
  %v683 = vpop.f32.mrb[0].mxu0
  %v684 = vadd.f32 %v287, %v683
  %685 = vmatprep.mubr.bf16.mxu0 0
  %686 = vmatmul.mubr.bf16.gmra.mrb[0].mxu0 %v371
  %v687 = vpop.f32.mrb[0].mxu0
  %v688 = vadd.f32 %v283, %v687
  %v689 = vpop.f32.mrb[0].mxu0
  %v690 = vadd.f32 %v287, %v689
  %v691 = vpop.f32.mrb[0].mxu0
  %v692 = vadd.f32 %v283, %v691
  %v693 = vpop.f32.mrb[0].mxu0
  %v694 = vadd.f32 %v287, %v693
  %695 = vmatprep.mubr.bf16.mxu0 0
  %696 = vmatmul.mubr.bf16.gmra.mrb[0].mxu0 %v374
  %v697 = vpop.f32.mrb[0].mxu0
  %v698 = vadd.f32 %v283, %v697
  %v699 = vpop.f32.mrb[0].mxu0
  %v700 = vadd.f32 %v287, %v699
  %v701 = vpop.f32.mrb[0].mxu0
  %v702 = vadd.f32 %v283, %v701
  %v703 = vpop.f32.mrb[0].mxu0
  %v704 = vadd.f32 %v287, %v703
  %705 = vmatprep.mubr.bf16.mxu0 0
  %706 = vmatmul.mubr.bf16.gmra.mrb[0].mxu0 %v377
  %v707 = vpop.f32.mrb[0].mxu0
  %v708 = vadd.f32 %v283, %v707
  %v709 = vpop.f32.mrb[0].mxu0
  %v710 = vadd.f32 %v287, %v709
  %v711 = vpop.f32.mrb[0].mxu0
  %v712 = vadd.f32 %v283, %v711
  %v713 = vpop.f32.mrb[0].mxu0
  %v714 = vadd.f32 %v287, %v713
  %715 = vmatprep.mubr.bf16.mxu0 0
  %716 = vmatmul.mubr.bf16.gmra.mrb[0].mxu0 %v380
  %v717 = vpop.f32.mrb[0].mxu0
  %v718 = vadd.f32 %v283, %v717
  %v719 = vpop.f32.mrb[0].mxu0
  %v720 = vadd.f32 %v287, %v719
  %v721 = vpop.f32.mrb[0].mxu0
  %v722 = vadd.f32 %v283, %v721
  %v723 = vpop.f32.mrb[0].mxu0
  %v724 = vadd.f32 %v287, %v723
  %725 = vmatprep.mubr.bf16.mxu0 0
  %726 = vmatmul.mubr.bf16.gmra.mrb[0].mxu0 %v383
  %v727 = vpop.f32.mrb[0].mxu0
  %v728 = vadd.f32 %v283, %v727
  %v729 = vpop.f32.mrb[0].mxu0
  %v730 = vadd.f32 %v287, %v729
  %v731 = vpop.f32.mrb[0].mxu0
  %v732 = vadd.f32 %v283, %v731
  %v733 = vpop.f32.mrb[0].mxu0
  %v734 = vadd.f32 %v287, %v733
  %735 = vmatprep.mubr.bf16.mxu0 0
  %736 = vmatmul.mubr.bf16.gmra.mrb[0].mxu0 %v386
  %v737 = vpop.f32.mrb[0].mxu0
  %v738 = vadd.f32 %v283, %v737
  %v739 = vpop.f32.mrb[0].mxu0
  %v740 = vadd.f32 %v287, %v739
  %v741 = vpop.f32.mrb[0].mxu0
  %v742 = vadd.f32 %v283, %v741
  %v743 = vpop.f32.mrb[0].mxu0
  %v744 = vadd.f32 %v287, %v743
  %745 = vmatprep.mubr.bf16.mxu0 0
  %746 = vmatmul.mubr.bf16.gmra.mrb[0].mxu0 %v389
  %v747 = vpop.f32.mrb[0].mxu0
  %v748 = vadd.f32 %v283, %v747
  %v749 = vpop.f32.mrb[0].mxu0
  %v750 = vadd.f32 %v287, %v749
  %v751 = vpop.f32.mrb[0].mxu0
  %v752 = vadd.f32 %v283, %v751
  %v753 = vpop.f32.mrb[0].mxu0
  %v754 = vadd.f32 %v287, %v753
  %755 = vmatprep.mubr.bf16.mxu0 0
  %756 = vmatmul.mubr.bf16.gmra.mrb[0].mxu0 %v392
  %v757 = vpop.f32.mrb[0].mxu0
  %v758 = vadd.f32 %v283, %v757
  %v759 = vpop.f32.mrb[0].mxu0
  %v760 = vadd.f32 %v287, %v759
  %v761 = vpop.f32.mrb[0].mxu0
  %v762 = vadd.f32 %v283, %v761
  %v763 = vpop.f32.mrb[0].mxu0
  %v764 = vadd.f32 %v287, %v763
  %765 = vmatprep.mubr.bf16.mxu0 0
  %766 = vmatmul.mubr.bf16.gmra.mrb[0].mxu0 %v395
  %v767 = vpop.f32.mrb[0].mxu0
  %v768 = vadd.f32 %v283, %v767
  %v769 = vpop.f32.mrb[0].mxu0
  %v770 = vadd.f32 %v287, %v769
  %v771 = vpop.f32.mrb[0].mxu0
  %v772 = vadd.f32 %v283, %v771
  %v773 = vpop.f32.mrb[0].mxu0
  %v774 = vadd.f32 %v287, %v773
  %775 = vmatprep.mubr.bf16.mxu0 0
  %776 = vmatmul.mubr.bf16.gmra.mrb[0].mxu0 %v398
  %v777 = vpop.f32.mrb[0].mxu0
  %v778 = vadd.f32 %v283, %v777
  %v779 = vpop.f32.mrb[0].mxu0
  %v780 = vadd.f32 %v287, %v779
  %v781 = vpop.f32.mrb[0].mxu0
  %v782 = vadd.f32 %v283, %v781
  %v783 = vpop.f32.mrb[0].mxu0
  %v784 = vadd.f32 %v287, %v783
  %785 = vmatprep.mubr.bf16.mxu0 0
  %786 = vmatmul.mubr.bf16.gmra.mrb[0].mxu0 %v401
  %v787 = vpop.f32.mrb[0].mxu0
  %v788 = vadd.f32 %v283, %v787
  %v789 = vpop.f32.mrb[0].mxu0
  %v790 = vadd.f32 %v287, %v789
  %v791 = vpop.f32.mrb[0].mxu0
  %v792 = vadd.f32 %v283, %v791
  %v793 = vpop.f32.mrb[0].mxu0
  %v794 = vadd.f32 %v287, %v793
  %795 = vmatprep.mubr.bf16.mxu0 0
  %796 = vmatmul.mubr.bf16.gmra.mrb[0].mxu0 %v404
  %v797 = vpop.f32.mrb[0].mxu0
  %v798 = vadd.f32 %v283, %v797
  %v799 = vpop.f32.mrb[0].mxu0
  %v800 = vadd.f32 %v287, %v799
  %v801 = vpop.f32.mrb[0].mxu0
  %v802 = vadd.f32 %v283, %v801
  %v803 = vpop.f32.mrb[0].mxu0
  %v804 = vadd.f32 %v287, %v803
  %805 = vmatprep.mubr.bf16.mxu0 0
  %806 = vmatmul.mubr.bf16.gmra.mrb[0].mxu0 %v407
  %v807 = vpop.f32.mrb[0].mxu0
  %v808 = vadd.f32 %v283, %v807
  %v809 = vpop.f32.mrb[0].mxu0
  %v810 = vadd.f32 %v287, %v809
  %v811 = vpop.f32.mrb[0].mxu0
  %v812 = vadd.f32 %v283, %v811
  %v813 = vpop.f32.mrb[0].mxu0
  %v814 = vadd.f32 %v287, %v813
  %815 = vmatprep.mubr.bf16.mxu0 0
  %816 = vmatmul.mubr.bf16.gmra.mrb[0].mxu0 %v410
  %v817 = vpop.f32.mrb[0].mxu0
  %v818 = vadd.f32 %v283, %v817
  %v819 = vpop.f32.mrb[0].mxu0
  %v820 = vadd.f32 %v287, %v819
  %v821 = vpop.f32.mrb[0].mxu0
  %v822 = vadd.f32 %v283, %v821
  %v823 = vpop.f32.mrb[0].mxu0
  %v824 = vadd.f32 %v287, %v823
  %825 = vmatprep.mubr.bf16.mxu0 0
  %826 = vmatmul.mubr.bf16.gmra.mrb[0].mxu0 %v413
  %v827 = vpop.f32.mrb[0].mxu0
  %v828 = vadd.f32 %v283, %v827
  %v829 = vpop.f32.mrb[0].mxu0
  %v830 = vadd.f32 %v287, %v829
  %v831 = vpop.f32.mrb[0].mxu0
  %v832 = vadd.f32 %v283, %v831
  %v833 = vpop.f32.mrb[0].mxu0
  %v834 = vadd.f32 %v287, %v833
  %835 = vmatprep.mubr.bf16.mxu0 0
  %836 = vmatmul.mubr.bf16.gmra.mrb[0].mxu0 %v416
  %v837 = vpop.f32.mrb[0].mxu0
  %v838 = vadd.f32 %v283, %v837
  %v839 = vpop.f32.mrb[0].mxu0
  %v840 = vadd.f32 %v287, %v839
  %v841 = vpop.f32.mrb[0].mxu0
  %v842 = vadd.f32 %v283, %v841
  %v843 = vpop.f32.mrb[0].mxu0
  %v844 = vadd.f32 %v287, %v843
  %845 = vmatprep.mubr.bf16.mxu0 0
  %846 = vmatmul.mubr.bf16.gmra.mrb[0].mxu0 %v419
  %v847 = vpop.f32.mrb[0].mxu0
  %v848 = vadd.f32 %v283, %v847
  %v849 = vpop.f32.mrb[0].mxu0
  %v850 = vadd.f32 %v287, %v849
  %v851 = vpop.f32.mrb[0].mxu0
  %v852 = vadd.f32 %v283, %v851
  %v853 = vpop.f32.mrb[0].mxu0
  %v854 = vadd.f32 %v287, %v853
  %855 = vmatprep.mubr.bf16.mxu0 0
  %856 = vmatmul.mubr.bf16.gmra.mrb[0].mxu0 %v422
  %v857 = vpop.f32.mrb[0].mxu0
  %v858 = vadd.f32 %v283, %v857
  %v859 = vpop.f32.mrb[0].mxu0
  %v860 = vadd.f32 %v287, %v859
  %v861 = vpop.f32.mrb[0].mxu0
  %v862 = vadd.f32 %v283, %v861
  %v863 = vpop.f32.mrb[0].mxu0
  %v864 = vadd.f32 %v287, %v863
  %865 = vmatprep.mubr.bf16.mxu0 0
  %866 = vmatmul.mubr.bf16.gmra.mrb[0].mxu0 %v425
  %v867 = vpop.f32.mrb[0].mxu0
  %v868 = vadd.f32 %v283, %v867
  %v869 = vpop.f32.mrb[0].mxu0
  %v870 = vadd.f32 %v287, %v869
  %v871 = vpop.f32.mrb[0].mxu0
  %v872 = vadd.f32 %v283, %v871
  %v873 = vpop.f32.mrb[0].mxu0
  %v874 = vadd.f32 %v287, %v873
  %875 = vmatprep.mubr.bf16.mxu0 0
  %876 = vmatmul.mubr.bf16.gmra.mrb[0].mxu0 %v428
  %v877 = vpop.f32.mrb[0].mxu0
  %v878 = vadd.f32 %v283, %v877
  %v879 = vpop.f32.mrb[0].mxu0
  %v880 = vadd.f32 %v287, %v879
  %v881 = vpop.f32.mrb[0].mxu0
  %v882 = vadd.f32 %v283, %v881
  %v883 = vpop.f32.mrb[0].mxu0
  %v884 = vadd.f32 %v287, %v883
  %885 = vmatprep.mubr.bf16.mxu0 0
  %886 = vmatmul.mubr.bf16.gmra.mrb[0].mxu0 %v431
  %v887 = vpop.f32.mrb[0].mxu0
  %v888 = vadd.f32 %v283, %v887
  %v889 = vpop.f32.mrb[0].mxu0
  %v890 = vadd.f32 %v287, %v889
  %v891 = vpop.f32.mrb[0].mxu0
  %v892 = vadd.f32 %v283, %v891
  %v893 = vpop.f32.mrb[0].mxu0
  %v894 = vadd.f32 %v287, %v893
  %895 = vmatprep.mubr.bf16.mxu0 0
  %896 = vmatmul.mubr.bf16.gmra.mrb[0].mxu0 %v434
  %v897 = vpop.f32.mrb[0].mxu0
  %v898 = vadd.f32 %v283, %v897
  %v899 = vpop.f32.mrb[0].mxu0
  %v900 = vadd.f32 %v287, %v899
  %v901 = vpop.f32.mrb[0].mxu0
  %v902 = vadd.f32 %v283, %v901
  %v903 = vpop.f32.mrb[0].mxu0
  %v904 = vadd.f32 %v287, %v903
  %905 = vmatprep.mubr.bf16.mxu0 0
  %906 = vmatmul.mubr.bf16.gmra.mrb[0].mxu0 %v437
  %v907 = vpop.f32.mrb[0].mxu0
  %v908 = vadd.f32 %v283, %v907
  %v909 = vpop.f32.mrb[0].mxu0
  %v910 = vadd.f32 %v287, %v909
  %v911 = vpop.f32.mrb[0].mxu0
  %v912 = vadd.f32 %v283, %v911
  %v913 = vpop.f32.mrb[0].mxu0
  %v914 = vadd.f32 %v287, %v913
  %915 = vmatprep.mubr.bf16.mxu0 0
  %916 = vmatmul.mubr.bf16.gmra.mrb[0].mxu0 %v440
  %v917 = vpop.f32.mrb[0].mxu0
  %v918 = vadd.f32 %v283, %v917
  %v919 = vpop.f32.mrb[0].mxu0
  %v920 = vadd.f32 %v287, %v919
  %v921 = vpop.f32.mrb[0].mxu0
  %v922 = vadd.f32 %v283, %v921
  %v923 = vpop.f32.mrb[0].mxu0
  %v924 = vadd.f32 %v287, %v923
  %925 = vmatprep.mubr.bf16.mxu0 0
  %926 = vmatmul.mubr.bf16.gmra.mrb[0].mxu0 %v443
  %v927 = vpop.f32.mrb[0].mxu0
  %v928 = vadd.f32 %v283, %v927
  %v929 = vpop.f32.mrb[0].mxu0
  %v930 = vadd.f32 %v287, %v929
  %v931 = vpop.f32.mrb[0].mxu0
  %v932 = vadd.f32 %v283, %v931
  %v933 = vpop.f32.mrb[0].mxu0
  %v934 = vadd.f32 %v287, %v933
  %935 = vmatprep.mubr.bf16.mxu0 0
  %936 = vmatmul.mubr.bf16.gmra.mrb[0].mxu0 %v446
  %v937 = vpop.f32.mrb[0].mxu0
  %v938 = vadd.f32 %v283, %v937
  %v939 = vpop.f32.mrb[0].mxu0
  %v940 = vadd.f32 %v287, %v939
  %v941 = vpop.f32.mrb[0].mxu0
  %v942 = vadd.f32 %v283, %v941
  %v943 = vpop.f32.mrb[0].mxu0
  %v944 = vadd.f32 %v287, %v943
  %945 = vmatprep.mubr.bf16.mxu0 0
  %946 = vmatmul.mubr.bf16.gmra.mrb[0].mxu0 %v449
  %v947 = vpop.f32.mrb[0].mxu0
  %v948 = vadd.f32 %v283, %v947
  %v949 = vpop.f32.mrb[0].mxu0
  %v950 = vadd.f32 %v287, %v949
  %v951 = vpop.f32.mrb[0].mxu0
  %v952 = vadd.f32 %v283, %v951
  %v953 = vpop.f32.mrb[0].mxu0
  %v954 = vadd.f32 %v287, %v953
  %955 = vmatprep.mubr.bf16.mxu0 0
  %956 = vmatmul.mubr.bf16.gmra.mrb[0].mxu0 %v452
  %v957 = vpop.f32.mrb[0].mxu0
  %v958 = vadd.f32 %v283, %v957
  %v959 = vpop.f32.mrb[0].mxu0
  %v960 = vadd.f32 %v287, %v959
  %v961 = vpop.f32.mrb[0].mxu0
  %v962 = vadd.f32 %v283, %v961
  %v963 = vpop.f32.mrb[0].mxu0
  %v964 = vadd.f32 %v287, %v963
  %965 = vmatprep.mubr.bf16.mxu0 0
  %966 = vmatmul.mubr.bf16.gmra.mrb[0].mxu0 %v455
  %v967 = vpop.f32.mrb[0].mxu0
  %v968 = vadd.f32 %v283, %v967
  %v969 = vpop.f32.mrb[0].mxu0
  %v970 = vadd.f32 %v287, %v969
  %v971 = vpop.f32.mrb[0].mxu0
  %v972 = vadd.f32 %v283, %v971
  %v973 = vpop.f32.mrb[0].mxu0
  %v974 = vadd.f32 %v287, %v973
  %975 = vmatprep.mubr.bf16.mxu0 0
  %976 = vmatmul.mubr.bf16.gmra.mrb[0].mxu0 %v458
  %v977 = vpop.f32.mrb[0].mxu0
  %v978 = vadd.f32 %v283, %v977
  %v979 = vpop.f32.mrb[0].mxu0
  %v980 = vadd.f32 %v287, %v979
  %v981 = vpop.f32.mrb[0].mxu0
  %v982 = vadd.f32 %v283, %v981
  %v983 = vpop.f32.mrb[0].mxu0
  %v984 = vadd.f32 %v287, %v983
  %985 = vmatprep.mubr.bf16.mxu0 0
  %986 = vmatmul.mubr.bf16.gmra.mrb[0].mxu0 %v461
  %v987 = vpop.f32.mrb[0].mxu0
  %v988 = vadd.f32 %v283, %v987
  %v989 = vpop.f32.mrb[0].mxu0
  %v990 = vadd.f32 %v287, %v989
  %v991 = vpop.f32.mrb[0].mxu0
  %v992 = vadd.f32 %v283, %v991
  %v993 = vpop.f32.mrb[0].mxu0
  %v994 = vadd.f32 %v287, %v993
  %995 = vmatprep.mubr.bf16.mxu0 0
  %996 = vmatmul.mubr.bf16.gmra.mrb[0].mxu0 %v464
  %v997 = vpop.f32.mrb[0].mxu0
  %v998 = vadd.f32 %v283, %v997
  %v999 = vpop.f32.mrb[0].mxu0
  %v1000 = vadd.f32 %v287, %v999
  %v1001 = vpop.f32.mrb[0].mxu0
  %v1002 = vadd.f32 %v283, %v1001
  %v1003 = vpop.f32.mrb[0].mxu0
  %v1004 = vadd.f32 %v287, %v1003
  %1005 = vmatprep.mubr.bf16.mxu0 0
  %1006 = vmatmul.mubr.bf16.gmra.mrb[0].mxu0 %v467
  %v1007 = vpop.f32.mrb[0].mxu0
  %v1008 = vadd.f32 %v283, %v1007
  %v1009 = vpop.f32.mrb[0].mxu0
  %v1010 = vadd.f32 %v287, %v1009
  %v1011 = vpop.f32.mrb[0].mxu0
  %v1012 = vadd.f32 %v283, %v1011
  %v1013 = vpop.f32.mrb[0].mxu0
  %v1014 = vadd.f32 %v287, %v1013
  %1015 = vmatprep.mubr.bf16.mxu0 0
  %1016 = vmatmul.mubr.bf16.gmra.mrb[0].mxu0 %v470
  %v1017 = vpop.f32.mrb[0].mxu0
  %v1018 = vadd.f32 %v283, %v1017
  %v1019 = vpop.f32.mrb[0].mxu0
  %v1020 = vadd.f32 %v287, %v1019
  %v1021 = vpop.f32.mrb[0].mxu0
  %v1022 = vadd.f32 %v283, %v1021
  %v1023 = vpop.f32.mrb[0].mxu0
  %v1024 = vadd.f32 %v287, %v1023
  %1025 = vmatprep.mubr.bf16.mxu0 0
  %1026 = vmatmul.mubr.bf16.gmra.mrb[0].mxu0 %v473
  %v1027 = vpop.f32.mrb[0].mxu0
  %v1028 = vadd.f32 %v283, %v1027
  %v1029 = vpop.f32.mrb[0].mxu0
  %v1030 = vadd.f32 %v287, %v1029
  %v1031 = vpop.f32.mrb[0].mxu0
  %v1032 = vadd.f32 %v283, %v1031
  %v1033 = vpop.f32.mrb[0].mxu0
  %v1034 = vadd.f32 %v287, %v1033
  %1035 = vmatprep.mubr.bf16.mxu0 0
  %1036 = vmatmul.mubr.bf16.gmra.mrb[0].mxu0 %v476
  %v1037 = vpop.f32.mrb[0].mxu0
  %v1038 = vadd.f32 %v283, %v1037
  %v1039 = vpop.f32.mrb[0].mxu0
  %v1040 = vadd.f32 %v287, %v1039
  %v1041 = vpop.f32.mrb[0].mxu0
  %v1042 = vadd.f32 %v283, %v1041
  %v1043 = vpop.f32.mrb[0].mxu0
  %v1044 = vadd.f32 %v287, %v1043
  %1045 = vmatprep.mubr.bf16.mxu0 0
  %1046 = vmatmul.mubr.bf16.gmra.mrb[0].mxu0 %v479
  %v1047 = vpop.f32.mrb[0].mxu0
  %v1048 = vadd.f32 %v283, %v1047
  %v1049 = vpop.f32.mrb[0].mxu0
  %v1050 = vadd.f32 %v287, %v1049
  %v1051 = vpop.f32.mrb[0].mxu0
  %v1052 = vadd.f32 %v283, %v1051
  %v1053 = vpop.f32.mrb[0].mxu0
  %v1054 = vadd.f32 %v287, %v1053
  %1055 = vmatprep.mubr.bf16.mxu0 0
  %1056 = vmatmul.mubr.bf16.gmra.mrb[0].mxu0 %v482
  %v1057 = vpop.f32.mrb[0].mxu0
  %v1058 = vadd.f32 %v283, %v1057
  %v1059 = vpop.f32.mrb[0].mxu0
  %v1060 = vadd.f32 %v287, %v1059
  %v1061 = vpop.f32.mrb[0].mxu0
  %v1062 = vadd.f32 %v283, %v1061
  %v1063 = vpop.f32.mrb[0].mxu0
  %v1064 = vadd.f32 %v287, %v1063
  %1065 = vmatprep.mubr.bf16.mxu0 0
  %1066 = vmatmul.mubr.bf16.gmra.mrb[0].mxu0 %v485
  %v1067 = vpop.f32.mrb[0].mxu0
  %v1068 = vadd.f32 %v283, %v1067
  %v1069 = vpop.f32.mrb[0].mxu0
  %v1070 = vadd.f32 %v287, %v1069
  %v1071 = vpop.f32.mrb[0].mxu0
  %v1072 = vadd.f32 %v283, %v1071
  %v1073 = vpop.f32.mrb[0].mxu0
  %v1074 = vadd.f32 %v287, %v1073
  %1075 = vmatprep.mubr.bf16.mxu0 0
  %1076 = vmatmul.mubr.bf16.gmra.mrb[0].mxu0 %v488
  %v1077 = vpop.f32.mrb[0].mxu0
  %v1078 = vadd.f32 %v283, %v1077
  %v1079 = vpop.f32.mrb[0].mxu0
  %v1080 = vadd.f32 %v287, %v1079
  %v1081 = vpop.f32.mrb[0].mxu0
  %v1082 = vadd.f32 %v283, %v1081
  %v1083 = vpop.f32.mrb[0].mxu0
  %v1084 = vadd.f32 %v287, %v1083
  %1085 = vmatprep.mubr.bf16.mxu0 0
  %1086 = vmatmul.mubr.bf16.gmra.mrb[0].mxu0 %v491
  %v1087 = vpop.f32.mrb[0].mxu0
  %v1088 = vadd.f32 %v283, %v1087
  %v1089 = vpop.f32.mrb[0].mxu0
  %v1090 = vadd.f32 %v287, %v1089
  %v1091 = vpop.f32.mrb[0].mxu0
  %v1092 = vadd.f32 %v283, %v1091
  %v1093 = vpop.f32.mrb[0].mxu0
  %v1094 = vadd.f32 %v287, %v1093
  %1095 = vmatprep.mubr.bf16.mxu0 0
  %1096 = vmatmul.mubr.bf16.gmra.mrb[0].mxu0 %v494
  %v1097 = vpop.f32.mrb[0].mxu0
  %v1098 = vadd.f32 %v283, %v1097
  %v1099 = vpop.f32.mrb[0].mxu0
  %v1100 = vadd.f32 %v287, %v1099
  %v1101 = vpop.f32.mrb[0].mxu0
  %v1102 = vadd.f32 %v283, %v1101
  %v1103 = vpop.f32.mrb[0].mxu0
  %v1104 = vadd.f32 %v287, %v1103
  %1105 = vmatprep.mubr.bf16.mxu0 0
  %1106 = vmatmul.mubr.bf16.gmra.mrb[0].mxu0 %v497
  %v1107 = vpop.f32.mrb[0].mxu0
  %v1108 = vadd.f32 %v283, %v1107
  %v1109 = vpop.f32.mrb[0].mxu0
  %v1110 = vadd.f32 %v287, %v1109
  %v1111 = vpop.f32.mrb[0].mxu0
  %v1112 = vadd.f32 %v283, %v1111
  %v1113 = vpop.f32.mrb[0].mxu0
  %v1114 = vadd.f32 %v287, %v1113
  %1115 = vmatprep.mubr.bf16.mxu0 0
  %1116 = vmatmul.mubr.bf16.gmra.mrb[0].mxu0 %v500
  %v1117 = vpop.f32.mrb[0].mxu0
  %v1118 = vadd.f32 %v283, %v1117
  %v1119 = vpop.f32.mrb[0].mxu0
  %v1120 = vadd.f32 %v287, %v1119
  %v1121 = vpop.f32.mrb[0].mxu0
  %v1122 = vadd.f32 %v283, %v1121
  %v1123 = vpop.f32.mrb[0].mxu0
  %v1124 = vadd.f32 %v287, %v1123
  %1125 = vmatprep.mubr.bf16.mxu0 0
  %1126 = vmatmul.mubr.bf16.gmra.mrb[0].mxu0 %v503
  %v1127 = vpop.f32.mrb[0].mxu0
  %v1128 = vadd.f32 %v283, %v1127
  %v1129 = vpop.f32.mrb[0].mxu0
  %v1130 = vadd.f32 %v287, %v1129
  %v1131 = vpop.f32.mrb[0].mxu0
  %v1132 = vadd.f32 %v283, %v1131
  %v1133 = vpop.f32.mrb[0].mxu0
  %v1134 = vadd.f32 %v287, %v1133
  %1135 = vmatprep.mubr.bf16.mxu0 0
  %1136 = vmatmul.mubr.bf16.gmra.mrb[0].mxu0 %v506
  %v1137 = vpop.f32.mrb[0].mxu0
  %v1138 = vadd.f32 %v283, %v1137
  %v1139 = vpop.f32.mrb[0].mxu0
  %v1140 = vadd.f32 %v287, %v1139
  %v1141 = vpop.f32.mrb[0].mxu0
  %v1142 = vadd.f32 %v283, %v1141
  %v1143 = vpop.f32.mrb[0].mxu0
  %v1144 = vadd.f32 %v287, %v1143
  %1145 = vmatprep.mubr.bf16.mxu0 0
  %1146 = vmatmul.mubr.bf16.gmra.mrb[0].mxu0 %v509
  %v1147 = vpop.f32.mrb[0].mxu0
  %v1148 = vadd.f32 %v283, %v1147
  %v1149 = vpop.f32.mrb[0].mxu0
  %v1150 = vadd.f32 %v287, %v1149
  %v1151 = vpop.f32.mrb[0].mxu0
  %v1152 = vadd.f32 %v283, %v1151
  %v1153 = vpop.f32.mrb[0].mxu0
  %v1154 = vadd.f32 %v287, %v1153
  %1155 = vmatprep.mubr.bf16.mxu0 0
  %1156 = vmatmul.mubr.bf16.gmra.mrb[0].mxu0 %v512
  %v1157 = vpop.f32.mrb[0].mxu0
  %v1158 = vadd.f32 %v283, %v1157
  %v1159 = vpop.f32.mrb[0].mxu0
  %v1160 = vadd.f32 %v287, %v1159
  %v1161 = vpop.f32.mrb[0].mxu0
  %v1162 = vadd.f32 %v283, %v1161
  %v1163 = vpop.f32.mrb[0].mxu0
  %v1164 = vadd.f32 %v287, %v1163
  %1165 = vmatprep.mubr.bf16.mxu0 0
  %1166 = vmatmul.mubr.bf16.gmra.mrb[0].mxu0 %v515
  %v1167 = vpop.f32.mrb[0].mxu0
  %v1168 = vadd.f32 %v283, %v1167
  %v1169 = vpop.f32.mrb[0].mxu0
  %v1170 = vadd.f32 %v287, %v1169
  %v1171 = vpop.f32.mrb[0].mxu0
  %v1172 = vadd.f32 %v283, %v1171
  %v1173 = vpop.f32.mrb[0].mxu0
  %v1174 = vadd.f32 %v287, %v1173
  %1175 = vmatprep.mubr.bf16.mxu0 0
  %1176 = vmatmul.mubr.bf16.gmra.mrb[0].mxu0 %v518
  %v1177 = vpop.f32.mrb[0].mxu0
  %v1178 = vadd.f32 %v283, %v1177
  %v1179 = vpop.f32.mrb[0].mxu0
  %v1180 = vadd.f32 %v287, %v1179
  %v1181 = vpop.f32.mrb[0].mxu0
  %v1182 = vadd.f32 %v283, %v1181
  %v1183 = vpop.f32.mrb[0].mxu0
  %v1184 = vadd.f32 %v287, %v1183
  %1185 = vmatprep.mubr.bf16.mxu0 0
  %1186 = vmatmul.mubr.bf16.gmra.mrb[0].mxu0 %v521
  %v1187 = vpop.f32.mrb[0].mxu0
  %v1188 = vadd.f32 %v283, %v1187
  %v1189 = vpop.f32.mrb[0].mxu0
  %v1190 = vadd.f32 %v287, %v1189
  %v1191 = vpop.f32.mrb[0].mxu0
  %v1192 = vadd.f32 %v283, %v1191
  %v1193 = vpop.f32.mrb[0].mxu0
  %v1194 = vadd.f32 %v287, %v1193
  %1195 = vdwg.mxu0
  %v1196 = vpack.c.bf16 %v562, %v558
  %v1197 = vpack.c.bf16 %v564, %v560
  %v1198 = vpack.c.bf16 %v572, %v568
  %v1199 = vpack.c.bf16 %v574, %v570
  %v1200 = vpack.c.bf16 %v582, %v578
  %v1201 = vpack.c.bf16 %v584, %v580
  %v1202 = vpack.c.bf16 %v592, %v588
  %v1203 = vpack.c.bf16 %v594, %v590
  %v1204 = vpack.c.bf16 %v602, %v598
  %v1205 = vpack.c.bf16 %v604, %v600
  %v1206 = vpack.c.bf16 %v612, %v608
  %v1207 = vpack.c.bf16 %v614, %v610
  %v1208 = vpack.c.bf16 %v622, %v618
  %v1209 = vpack.c.bf16 %v624, %v620
  %v1210 = vpack.c.bf16 %v632, %v628
  %v1211 = vpack.c.bf16 %v634, %v630
  %v1212 = vpack.c.bf16 %v642, %v638
  %v1213 = vpack.c.bf16 %v644, %v640
  %v1214 = vpack.c.bf16 %v652, %v648
  %v1215 = vpack.c.bf16 %v654, %v650
  %v1216 = vpack.c.bf16 %v662, %v658
  %v1217 = vpack.c.bf16 %v664, %v660
  %v1218 = vpack.c.bf16 %v672, %v668
  %v1219 = vpack.c.bf16 %v674, %v670
  %v1220 = vpack.c.bf16 %v682, %v678
  %v1221 = vpack.c.bf16 %v684, %v680
  %v1222 = vpack.c.bf16 %v692, %v688
  %v1223 = vpack.c.bf16 %v694, %v690
  %v1224 = vpack.c.bf16 %v702, %v698
  %v1225 = vpack.c.bf16 %v704, %v700
  %v1226 = vpack.c.bf16 %v712, %v708
  %v1227 = vpack.c.bf16 %v714, %v710
  %v1228 = vpack.c.bf16 %v722, %v718
  %v1229 = vpack.c.bf16 %v724, %v720
  %v1230 = vpack.c.bf16 %v732, %v728
  %v1231 = vpack.c.bf16 %v734, %v730
  %v1232 = vpack.c.bf16 %v742, %v738
  %v1233 = vpack.c.bf16 %v744, %v740
  %v1234 = vpack.c.bf16 %v752, %v748
  %v1235 = vpack.c.bf16 %v754, %v750
  %v1236 = vpack.c.bf16 %v762, %v758
  %v1237 = vpack.c.bf16 %v764, %v760
  %v1238 = vpack.c.bf16 %v772, %v768
  %v1239 = vpack.c.bf16 %v774, %v770
  %v1240 = vpack.c.bf16 %v782, %v778
  %v1241 = vpack.c.bf16 %v784, %v780
  %v1242 = vpack.c.bf16 %v792, %v788
  %v1243 = vpack.c.bf16 %v794, %v790
  %v1244 = vpack.c.bf16 %v802, %v798
  %v1245 = vpack.c.bf16 %v804, %v800
  %v1246 = vpack.c.bf16 %v812, %v808
  %v1247 = vpack.c.bf16 %v814, %v810
  %v1248 = vpack.c.bf16 %v822, %v818
  %v1249 = vpack.c.bf16 %v824, %v820
  %v1250 = vpack.c.bf16 %v832, %v828
  %v1251 = vpack.c.bf16 %v834, %v830
  %v1252 = vpack.c.bf16 %v842, %v838
  %v1253 = vpack.c.bf16 %v844, %v840
  %v1254 = vpack.c.bf16 %v852, %v848
  %v1255 = vpack.c.bf16 %v854, %v850
  %v1256 = vpack.c.bf16 %v862, %v858
  %v1257 = vpack.c.bf16 %v864, %v860
  %v1258 = vpack.c.bf16 %v872, %v868
  %v1259 = vpack.c.bf16 %v874, %v870
  %v1260 = vpack.c.bf16 %v882, %v878
  %v1261 = vpack.c.bf16 %v884, %v880
  %v1262 = vpack.c.bf16 %v892, %v888
  %v1263 = vpack.c.bf16 %v894, %v890
  %v1264 = vpack.c.bf16 %v902, %v898
  %v1265 = vpack.c.bf16 %v904, %v900
  %v1266 = vpack.c.bf16 %v912, %v908
  %v1267 = vpack.c.bf16 %v914, %v910
  %v1268 = vpack.c.bf16 %v922, %v918
  %v1269 = vpack.c.bf16 %v924, %v920
  %v1270 = vpack.c.bf16 %v932, %v928
  %v1271 = vpack.c.bf16 %v934, %v930
  %v1272 = vpack.c.bf16 %v942, %v938
  %v1273 = vpack.c.bf16 %v944, %v940
  %v1274 = vpack.c.bf16 %v952, %v948
  %v1275 = vpack.c.bf16 %v954, %v950
  %v1276 = vpack.c.bf16 %v962, %v958
  %v1277 = vpack.c.bf16 %v964, %v960
  %v1278 = vpack.c.bf16 %v972, %v968
  %v1279 = vpack.c.bf16 %v974, %v970
  %v1280 = vpack.c.bf16 %v982, %v978
  %v1281 = vpack.c.bf16 %v984, %v980
  %v1282 = vpack.c.bf16 %v992, %v988
  %v1283 = vpack.c.bf16 %v994, %v990
  %v1284 = vpack.c.bf16 %v1002, %v998
  %v1285 = vpack.c.bf16 %v1004, %v1000
  %v1286 = vpack.c.bf16 %v1012, %v1008
  %v1287 = vpack.c.bf16 %v1014, %v1010
  %v1288 = vpack.c.bf16 %v1022, %v1018
  %v1289 = vpack.c.bf16 %v1024, %v1020
  %v1290 = vpack.c.bf16 %v1032, %v1028
  %v1291 = vpack.c.bf16 %v1034, %v1030
  %v1292 = vpack.c.bf16 %v1042, %v1038
  %v1293 = vpack.c.bf16 %v1044, %v1040
  %v1294 = vpack.c.bf16 %v1052, %v1048
  %v1295 = vpack.c.bf16 %v1054, %v1050
  %v1296 = vpack.c.bf16 %v1062, %v1058
  %v1297 = vpack.c.bf16 %v1064, %v1060
  %v1298 = vpack.c.bf16 %v1072, %v1068
  %v1299 = vpack.c.bf16 %v1074, %v1070
  %v1300 = vpack.c.bf16 %v1082, %v1078
  %v1301 = vpack.c.bf16 %v1084, %v1080
  %v1302 = vpack.c.bf16 %v1092, %v1088
  %v1303 = vpack.c.bf16 %v1094, %v1090
  %v1304 = vpack.c.bf16 %v1102, %v1098
  %v1305 = vpack.c.bf16 %v1104, %v1100
  %v1306 = vpack.c.bf16 %v1112, %v1108
  %v1307 = vpack.c.bf16 %v1114, %v1110
  %v1308 = vpack.c.bf16 %v1122, %v1118
  %v1309 = vpack.c.bf16 %v1124, %v1120
  %v1310 = vpack.c.bf16 %v1132, %v1128
  %v1311 = vpack.c.bf16 %v1134, %v1130
  %v1312 = vpack.c.bf16 %v1142, %v1138
  %v1313 = vpack.c.bf16 %v1144, %v1140
  %v1314 = vpack.c.bf16 %v1152, %v1148
  %v1315 = vpack.c.bf16 %v1154, %v1150
  %v1316 = vpack.c.bf16 %v1162, %v1158
  %v1317 = vpack.c.bf16 %v1164, %v1160
  %v1318 = vpack.c.bf16 %v1172, %v1168
  %v1319 = vpack.c.bf16 %v1174, %v1170
  %v1320 = vpack.c.bf16 %v1182, %v1178
  %v1321 = vpack.c.bf16 %v1184, %v1180
  %v1322 = vpack.c.bf16 %v1192, %v1188
  %v1323 = vpack.c.bf16 %v1194, %v1190
  %1324 = vst [vmem:[#allocation5] sm:$0xff] %v1196
  %1325 = vst [vmem:[#allocation5 + $0x8] sm:$0xff] %v1197
  %1326 = vst [vmem:[#allocation5 + $0x10] sm:$0xff] %v1198
  %1327 = vst [vmem:[#allocation5 + $0x18] sm:$0xff] %v1199
  %1328 = vst [vmem:[#allocation5 + $0x20] sm:$0xff] %v1200
  %1329 = vst [vmem:[#allocation5 + $0x28] sm:$0xff] %v1201
  %1330 = vst [vmem:[#allocation5 + $0x30] sm:$0xff] %v1202
  %1331 = vst [vmem:[#allocation5 + $0x38] sm:$0xff] %v1203
  %1332 = vst [vmem:[#allocation5 + $0x40] sm:$0xff] %v1204
  %1333 = vst [vmem:[#allocation5 + $0x48] sm:$0xff] %v1205
  %1334 = vst [vmem:[#allocation5 + $0x50] sm:$0xff] %v1206
  %1335 = vst [vmem:[#allocation5 + $0x58] sm:$0xff] %v1207
  %1336 = vst [vmem:[#allocation5 + $0x60] sm:$0xff] %v1208
  %1337 = vst [vmem:[#allocation5 + $0x68] sm:$0xff] %v1209
  %1338 = vst [vmem:[#allocation5 + $0x70] sm:$0xff] %v1210
  %1339 = vst [vmem:[#allocation5 + $0x78] sm:$0xff] %v1211
  %1340 = vst [vmem:[#allocation5 + $0x80] sm:$0xff] %v1212
  %1341 = vst [vmem:[#allocation5 + $0x88] sm:$0xff] %v1213
  %1342 = vst [vmem:[#allocation5 + $0x90] sm:$0xff] %v1214
  %1343 = vst [vmem:[#allocation5 + $0x98] sm:$0xff] %v1215
  %1344 = vst [vmem:[#allocation5 + $0xa0] sm:$0xff] %v1216
  %1345 = vst [vmem:[#allocation5 + $0xa8] sm:$0xff] %v1217
  %1346 = vst [vmem:[#allocation5 + $0xb0] sm:$0xff] %v1218
  %1347 = vst [vmem:[#allocation5 + $0xb8] sm:$0xff] %v1219
  %1348 = vst [vmem:[#allocation5 + $0xc0] sm:$0xff] %v1220
  %1349 = vst [vmem:[#allocation5 + $0xc8] sm:$0xff] %v1221
  %1350 = vst [vmem:[#allocation5 + $0xd0] sm:$0xff] %v1222
  %1351 = vst [vmem:[#allocation5 + $0xd8] sm:$0xff] %v1223
  %1352 = vst [vmem:[#allocation5 + $0xe0] sm:$0xff] %v1224
  %1353 = vst [vmem:[#allocation5 + $0xe8] sm:$0xff] %v1225
  %1354 = vst [vmem:[#allocation5 + $0xf0] sm:$0xff] %v1226
  %1355 = vst [vmem:[#allocation5 + $0xf8] sm:$0xff] %v1227
  %1356 = vst [vmem:[#allocation5 + $0x100] sm:$0xff] %v1228
  %1357 = vst [vmem:[#allocation5 + $0x108] sm:$0xff] %v1229
  %1358 = vst [vmem:[#allocation5 + $0x110] sm:$0xff] %v1230
  %1359 = vst [vmem:[#allocation5 + $0x118] sm:$0xff] %v1231
  %1360 = vst [vmem:[#allocation5 + $0x120] sm:$0xff] %v1232
  %1361 = vst [vmem:[#allocation5 + $0x128] sm:$0xff] %v1233
  %1362 = vst [vmem:[#allocation5 + $0x130] sm:$0xff] %v1234
  %1363 = vst [vmem:[#allocation5 + $0x138] sm:$0xff] %v1235
  %1364 = vst [vmem:[#allocation5 + $0x140] sm:$0xff] %v1236
  %1365 = vst [vmem:[#allocation5 + $0x148] sm:$0xff] %v1237
  %1366 = vst [vmem:[#allocation5 + $0x150] sm:$0xff] %v1238
  %1367 = vst [vmem:[#allocation5 + $0x158] sm:$0xff] %v1239
  %1368 = vst [vmem:[#allocation5 + $0x160] sm:$0xff] %v1240
  %1369 = vst [vmem:[#allocation5 + $0x168] sm:$0xff] %v1241
  %1370 = vst [vmem:[#allocation5 + $0x170] sm:$0xff] %v1242
  %1371 = vst [vmem:[#allocation5 + $0x178] sm:$0xff] %v1243
  %1372 = vst [vmem:[#allocation5 + $0x180] sm:$0xff] %v1244
  %1373 = vst [vmem:[#allocation5 + $0x188] sm:$0xff] %v1245
  %1374 = vst [vmem:[#allocation5 + $0x190] sm:$0xff] %v1246
  %1375 = vst [vmem:[#allocation5 + $0x198] sm:$0xff] %v1247
  %1376 = vst [vmem:[#allocation5 + $0x1a0] sm:$0xff] %v1248
  %1377 = vst [vmem:[#allocation5 + $0x1a8] sm:$0xff] %v1249
  %1378 = vst [vmem:[#allocation5 + $0x1b0] sm:$0xff] %v1250
  %1379 = vst [vmem:[#allocation5 + $0x1b8] sm:$0xff] %v1251
  %1380 = vst [vmem:[#allocation5 + $0x1c0] sm:$0xff] %v1252
  %1381 = vst [vmem:[#allocation5 + $0x1c8] sm:$0xff] %v1253
  %1382 = vst [vmem:[#allocation5 + $0x1d0] sm:$0xff] %v1254
  %1383 = vst [vmem:[#allocation5 + $0x1d8] sm:$0xff] %v1255
  %1384 = vst [vmem:[#allocation5 + $0x1e0] sm:$0xff] %v1256
  %1385 = vst [vmem:[#allocation5 + $0x1e8] sm:$0xff] %v1257
  %1386 = vst [vmem:[#allocation5 + $0x1f0] sm:$0xff] %v1258
  %1387 = vst [vmem:[#allocation5 + $0x1f8] sm:$0xff] %v1259
  %1388 = vst [vmem:[#allocation5 + $0x200] sm:$0xff] %v1260
  %1389 = vst [vmem:[#allocation5 + $0x208] sm:$0xff] %v1261
  %1390 = vst [vmem:[#allocation5 + $0x210] sm:$0xff] %v1262
  %1391 = vst [vmem:[#allocation5 + $0x218] sm:$0xff] %v1263
  %1392 = vst [vmem:[#allocation5 + $0x220] sm:$0xff] %v1264
  %1393 = vst [vmem:[#allocation5 + $0x228] sm:$0xff] %v1265
  %1394 = vst [vmem:[#allocation5 + $0x230] sm:$0xff] %v1266
  %1395 = vst [vmem:[#allocation5 + $0x238] sm:$0xff] %v1267
  %1396 = vst [vmem:[#allocation5 + $0x240] sm:$0xff] %v1268
  %1397 = vst [vmem:[#allocation5 + $0x248] sm:$0xff] %v1269
  %1398 = vst [vmem:[#allocation5 + $0x250] sm:$0xff] %v1270
  %1399 = vst [vmem:[#allocation5 + $0x258] sm:$0xff] %v1271
  %1400 = vst [vmem:[#allocation5 + $0x260] sm:$0xff] %v1272
  %1401 = vst [vmem:[#allocation5 + $0x268] sm:$0xff] %v1273
  %1402 = vst [vmem:[#allocation5 + $0x270] sm:$0xff] %v1274
  %1403 = vst [vmem:[#allocation5 + $0x278] sm:$0xff] %v1275
  %1404 = vst [vmem:[#allocation5 + $0x280] sm:$0xff] %v1276
  %1405 = vst [vmem:[#allocation5 + $0x288] sm:$0xff] %v1277
  %1406 = vst [vmem:[#allocation5 + $0x290] sm:$0xff] %v1278
  %1407 = vst [vmem:[#allocation5 + $0x298] sm:$0xff] %v1279
  %1408 = vst [vmem:[#allocation5 + $0x2a0] sm:$0xff] %v1280
  %1409 = vst [vmem:[#allocation5 + $0x2a8] sm:$0xff] %v1281
  %1410 = vst [vmem:[#allocation5 + $0x2b0] sm:$0xff] %v1282
  %1411 = vst [vmem:[#allocation5 + $0x2b8] sm:$0xff] %v1283
  %1412 = vst [vmem:[#allocation5 + $0x2c0] sm:$0xff] %v1284
  %1413 = vst [vmem:[#allocation5 + $0x2c8] sm:$0xff] %v1285
  %1414 = vst [vmem:[#allocation5 + $0x2d0] sm:$0xff] %v1286
  %1415 = vst [vmem:[#allocation5 + $0x2d8] sm:$0xff] %v1287
  %1416 = vst [vmem:[#allocation5 + $0x2e0] sm:$0xff] %v1288
  %1417 = vst [vmem:[#allocation5 + $0x2e8] sm:$0xff] %v1289
  %1418 = vst [vmem:[#allocation5 + $0x2f0] sm:$0xff] %v1290
  %1419 = vst [vmem:[#allocation5 + $0x2f8] sm:$0xff] %v1291
  %1420 = vst [vmem:[#allocation5 + $0x300] sm:$0xff] %v1292
  %1421 = vst [vmem:[#allocation5 + $0x308] sm:$0xff] %v1293
  %1422 = vst [vmem:[#allocation5 + $0x310] sm:$0xff] %v1294
  %1423 = vst [vmem:[#allocation5 + $0x318] sm:$0xff] %v1295
  %1424 = vst [vmem:[#allocation5 + $0x320] sm:$0xff] %v1296
  %1425 = vst [vmem:[#allocation5 + $0x328] sm:$0xff] %v1297
  %1426 = vst [vmem:[#allocation5 + $0x330] sm:$0xff] %v1298
  %1427 = vst [vmem:[#allocation5 + $0x338] sm:$0xff] %v1299
  %1428 = vst [vmem:[#allocation5 + $0x340] sm:$0xff] %v1300
  %1429 = vst [vmem:[#allocation5 + $0x348] sm:$0xff] %v1301
  %1430 = vst [vmem:[#allocation5 + $0x350] sm:$0xff] %v1302
  %1431 = vst [vmem:[#allocation5 + $0x358] sm:$0xff] %v1303
  %1432 = vst [vmem:[#allocation5 + $0x360] sm:$0xff] %v1304
  %1433 = vst [vmem:[#allocation5 + $0x368] sm:$0xff] %v1305
  %1434 = vst [vmem:[#allocation5 + $0x370] sm:$0xff] %v1306
  %1435 = vst [vmem:[#allocation5 + $0x378] sm:$0xff] %v1307
  %1436 = vst [vmem:[#allocation5 + $0x380] sm:$0xff] %v1308
  %1437 = vst [vmem:[#allocation5 + $0x388] sm:$0xff] %v1309
  %1438 = vst [vmem:[#allocation5 + $0x390] sm:$0xff] %v1310
  %1439 = vst [vmem:[#allocation5 + $0x398] sm:$0xff] %v1311
  %1440 = vst [vmem:[#allocation5 + $0x3a0] sm:$0xff] %v1312
  %1441 = vst [vmem:[#allocation5 + $0x3a8] sm:$0xff] %v1313
  %1442 = vst [vmem:[#allocation5 + $0x3b0] sm:$0xff] %v1314
  %1443 = vst [vmem:[#allocation5 + $0x3b8] sm:$0xff] %v1315
  %1444 = vst [vmem:[#allocation5 + $0x3c0] sm:$0xff] %v1316
  %1445 = vst [vmem:[#allocation5 + $0x3c8] sm:$0xff] %v1317
  %1446 = vst [vmem:[#allocation5 + $0x3d0] sm:$0xff] %v1318
  %1447 = vst [vmem:[#allocation5 + $0x3d8] sm:$0xff] %v1319
  %1448 = vst [vmem:[#allocation5 + $0x3e0] sm:$0xff] %v1320
  %1449 = vst [vmem:[#allocation5 + $0x3e8] sm:$0xff] %v1321
  %1450 = vst [vmem:[#allocation5 + $0x3f0] sm:$0xff] %v1322
  %1451 = vst [vmem:[#allocation5 + $0x3f8] sm:$0xff] %v1323
  loop: start=0, step=1, limit=100
  $region82: #{tpu_custom_call.1} parent=0 // loop_pre_header
    _
  $region83: #{tpu_custom_call.1} parent=0 // loop_header
    %s1453 = sphi 0, %s1457
    %p1454 = scmp.ge.s32.totalorder %s1453, 100
  $region84: #{tpu_custom_call.1} parent=0 // loop_header_branch
    %1456 = sbr.rel (%p1454) target = $region88
  $region85: #{tpu_custom_call.1} parent=0 // loop_body
    %v1458 = vld [vmem:[#allocation4] sm:$0x1]
    %s1459 = vtos %v1458
    %s1460 = sshra.s32 %s1459, 3
    %s1461 = sand.u32 %s1459, 7
    %s1462 = sshra.s32 %s1459, 3
    %s1463 = sand.u32 %s1459, 7
    %s1464 = smul.u32 %s1460, 3
    %s1465 = smul.u32 %s1464, 8
    %s1466 = sadd.s32 %s1465, %s1463
    %s1467 = scalar_lea.vmem %s4, %s1466
    %v1468 = vld [vmem:[%s1467] ss:$8 sm:$0x7]
    %v1469 = vlaneseq
    %vm1470 = vcmp.ge.s32.totalorder %v1469, 0
    %vm1471 = vcmp.lt.s32.totalorder %v1469, 384
    %vm1472 = vmand %vm1470, %vm1471
    %1473 = vst.msk [vmem:[#allocation6] ss:$8 sm:$0x7] %vm1472, %v1468
    %1474 = vst.msk [vmem:[#allocation6] ss:$8 sm:$0x0] %vm1472, %v1468
    %v1475 = vld [vmem:[#allocation4 + $0x1] sm:$0x1]
    %s1476 = vtos %v1475
    %s1477 = sshra.s32 %s1476, 3
    %s1478 = sand.u32 %s1476, 7
    %s1479 = sshra.s32 %s1476, 3
    %s1480 = sand.u32 %s1476, 7
    %s1481 = smul.u32 %s1477, 3
    %s1482 = smul.u32 %s1481, 8
    %s1483 = sadd.s32 %s1482, %s1480
    %s1484 = scalar_lea.vmem %s4, %s1483
    %v1485 = vld [vmem:[%s1484] ss:$8 sm:$0x7]
    %s1486 = scalar_lea.vmem [#allocation6], 1
    %1487 = vst.msk [vmem:[%s1486] ss:$8 sm:$0x7] %vm1472, %v1485
    %1488 = vst.msk [vmem:[%s1486] ss:$8 sm:$0x0] %vm1472, %v1485
    %v1489 = vld [vmem:[#allocation4 + $0x2] sm:$0x1]
    %s1490 = vtos %v1489
    %s1491 = sshra.s32 %s1490, 3
    %s1492 = sand.u32 %s1490, 7
    %s1493 = sshra.s32 %s1490, 3
    %s1494 = sand.u32 %s1490, 7
    %s1495 = smul.u32 %s1491, 3
    %s1496 = smul.u32 %s1495, 8
    %s1497 = sadd.s32 %s1496, %s1494
    %s1498 = scalar_lea.vmem %s4, %s1497
    %v1499 = vld [vmem:[%s1498] ss:$8 sm:$0x7]
    %s1500 = scalar_lea.vmem [#allocation6], 2
    %1501 = vst.msk [vmem:[%s1500] ss:$8 sm:$0x7] %vm1472, %v1499
    %1502 = vst.msk [vmem:[%s1500] ss:$8 sm:$0x0] %vm1472, %v1499
    %v1503 = vld [vmem:[#allocation4 + $0x3] sm:$0x1]
    %s1504 = vtos %v1503
    %s1505 = sshra.s32 %s1504, 3
    %s1506 = sand.u32 %s1504, 7
    %s1507 = sshra.s32 %s1504, 3
    %s1508 = sand.u32 %s1504, 7
    %s1509 = smul.u32 %s1505, 3
    %s1510 = smul.u32 %s1509, 8
    %s1511 = sadd.s32 %s1510, %s1508
    %s1512 = scalar_lea.vmem %s4, %s1511
    %v1513 = vld [vmem:[%s1512] ss:$8 sm:$0x7]
    %s1514 = scalar_lea.vmem [#allocation6], 3
    %1515 = vst.msk [vmem:[%s1514] ss:$8 sm:$0x7] %vm1472, %v1513
    %1516 = vst.msk [vmem:[%s1514] ss:$8 sm:$0x0] %vm1472, %v1513
    %v1517 = vld [vmem:[#allocation4 + $0x4] sm:$0x1]
    %s1518 = vtos %v1517
    %s1519 = sshra.s32 %s1518, 3
    %s1520 = sand.u32 %s1518, 7
    %s1521 = sshra.s32 %s1518, 3
    %s1522 = sand.u32 %s1518, 7
    %s1523 = smul.u32 %s1519, 3
    %s1524 = smul.u32 %s1523, 8
    %s1525 = sadd.s32 %s1524, %s1522
    %s1526 = scalar_lea.vmem %s4, %s1525
    %v1527 = vld [vmem:[%s1526] ss:$8 sm:$0x7]
    %s1528 = scalar_lea.vmem [#allocation6], 4
    %1529 = vst.msk [vmem:[%s1528] ss:$8 sm:$0x7] %vm1472, %v1527
    %1530 = vst.msk [vmem:[%s1528] ss:$8 sm:$0x0] %vm1472, %v1527
    %v1531 = vld [vmem:[#allocation4 + $0x5] sm:$0x1]
    %s1532 = vtos %v1531
    %s1533 = sshra.s32 %s1532, 3
    %s1534 = sand.u32 %s1532, 7
    %s1535 = sshra.s32 %s1532, 3
    %s1536 = sand.u32 %s1532, 7
    %s1537 = smul.u32 %s1533, 3
    %s1538 = smul.u32 %s1537, 8
    %s1539 = sadd.s32 %s1538, %s1536
    %s1540 = scalar_lea.vmem %s4, %s1539
    %v1541 = vld [vmem:[%s1540] ss:$8 sm:$0x7]
    %s1542 = scalar_lea.vmem [#allocation6], 5
    %1543 = vst.msk [vmem:[%s1542] ss:$8 sm:$0x7] %vm1472, %v1541
    %1544 = vst.msk [vmem:[%s1542] ss:$8 sm:$0x0] %vm1472, %v1541
    %v1545 = vld [vmem:[#allocation4 + $0x6] sm:$0x1]
    %s1546 = vtos %v1545
    %s1547 = sshra.s32 %s1546, 3
    %s1548 = sand.u32 %s1546, 7
    %s1549 = sshra.s32 %s1546, 3
    %s1550 = sand.u32 %s1546, 7
    %s1551 = smul.u32 %s1547, 3
    %s1552 = smul.u32 %s1551, 8
    %s1553 = sadd.s32 %s1552, %s1550
    %s1554 = scalar_lea.vmem %s4, %s1553
    %v1555 = vld [vmem:[%s1554] ss:$8 sm:$0x7]
    %s1556 = scalar_lea.vmem [#allocation6], 6
    %1557 = vst.msk [vmem:[%s1556] ss:$8 sm:$0x7] %vm1472, %v1555
    %1558 = vst.msk [vmem:[%s1556] ss:$8 sm:$0x0] %vm1472, %v1555
    %v1559 = vld [vmem:[#allocation4 + $0x7] sm:$0x1]
    %s1560 = vtos %v1559
    %s1561 = sshra.s32 %s1560, 3
    %s1562 = sand.u32 %s1560, 7
    %s1563 = sshra.s32 %s1560, 3
    %s1564 = sand.u32 %s1560, 7
    %s1565 = smul.u32 %s1561, 3
    %s1566 = smul.u32 %s1565, 8
    %s1567 = sadd.s32 %s1566, %s1564
    %s1568 = scalar_lea.vmem %s4, %s1567
    %v1569 = vld [vmem:[%s1568] ss:$8 sm:$0x7]
    %s1570 = scalar_lea.vmem [#allocation6], 7
    %1571 = vst.msk [vmem:[%s1570] ss:$8 sm:$0x7] %vm1472, %v1569
    %1572 = vst.msk [vmem:[%s1570] ss:$8 sm:$0x0] %vm1472, %v1569
    %v1573 = vld [vmem:[#allocation6] sm:$0xff]
    %v1574 = vld [vmem:[#allocation6 + $0x8] sm:$0xff]
    %v1575 = vld [vmem:[#allocation6 + $0x10] sm:$0xff]
    %v1576 = vld [vmem:[#allocation3] sm:$0xff]
    %v1577 = vpack.c.bf16 %v1576, %v1576
    %v1578 = vld [vmem:[#allocation2] sm:$0xff]
    %v1579 = vpack.c.bf16 %v1578, %v1578
    %v1580 = vld [vmem:[%s5] sm:$0xff]
    %v1581 = vld [vmem:[%s5 + $0x8] sm:$0xf]
    %v1582 = vld [vmem:[%s5 + $0xc] sm:$0xff]
    %v1583 = vld [vmem:[%s5 + $0x14] sm:$0xf]
    %v1584 = vld [vmem:[%s5 + $0x18] sm:$0xff]
    %v1585 = vld [vmem:[%s5 + $0x20] sm:$0xf]
    %v1586 = vld [vmem:[%s5 + $0x24] sm:$0xff]
    %v1587 = vld [vmem:[%s5 + $0x2c] sm:$0xf]
    %v1588 = vld [vmem:[%s5 + $0x30] sm:$0xff]
    %v1589 = vld [vmem:[%s5 + $0x38] sm:$0xf]
    %v1590 = vld [vmem:[%s5 + $0x3c] sm:$0xff]
    %v1591 = vld [vmem:[%s5 + $0x44] sm:$0xf]
    %v1592 = vld [vmem:[%s5 + $0x48] sm:$0xff]
    %v1593 = vld [vmem:[%s5 + $0x50] sm:$0xf]
    %v1594 = vld [vmem:[%s5 + $0x54] sm:$0xff]
    %v1595 = vld [vmem:[%s5 + $0x5c] sm:$0xf]
    %v1596 = vld [vmem:[%s5 + $0x60] sm:$0xff]
    %v1597 = vld [vmem:[%s5 + $0x68] sm:$0xf]
    %v1598 = vld [vmem:[%s5 + $0x6c] sm:$0xff]
    %v1599 = vld [vmem:[%s5 + $0x74] sm:$0xf]
    %v1600 = vld [vmem:[%s5 + $0x78] sm:$0xff]
    %v1601 = vld [vmem:[%s5 + $0x80] sm:$0xf]
    %v1602 = vld [vmem:[%s5 + $0x84] sm:$0xff]
    %v1603 = vld [vmem:[%s5 + $0x8c] sm:$0xf]
    %v1604 = vld [vmem:[%s5 + $0x90] sm:$0xff]
    %v1605 = vld [vmem:[%s5 + $0x98] sm:$0xf]
    %v1606 = vld [vmem:[%s5 + $0x9c] sm:$0xff]
    %v1607 = vld [vmem:[%s5 + $0xa4] sm:$0xf]
    %v1608 = vld [vmem:[%s5 + $0xa8] sm:$0xff]
    %v1609 = vld [vmem:[%s5 + $0xb0] sm:$0xf]
    %v1610 = vld [vmem:[%s5 + $0xb4] sm:$0xff]
    %v1611 = vld [vmem:[%s5 + $0xbc] sm:$0xf]
    %v1644 = vunpack.c.l.b16 %v1580
    %v1645 = vunpack.c.h.b16 %v1580
    %v1646 = vunpack.c.l.b16 %v1581
    %v1647 = vunpack.c.l.b16 %v1582
    %v1648 = vunpack.c.h.b16 %v1582
    %v1649 = vunpack.c.l.b16 %v1583
    %v1650 = vunpack.c.l.b16 %v1584
    %v1651 = vunpack.c.h.b16 %v1584
    %v1652 = vunpack.c.l.b16 %v1585
    %v1653 = vunpack.c.l.b16 %v1586
    %v1654 = vunpack.c.h.b16 %v1586
    %v1655 = vunpack.c.l.b16 %v1587
    %v1656 = vunpack.c.l.b16 %v1588
    %v1657 = vunpack.c.h.b16 %v1588
    %v1658 = vunpack.c.l.b16 %v1589
    %v1659 = vunpack.c.l.b16 %v1590
    %v1660 = vunpack.c.h.b16 %v1590
    %v1661 = vunpack.c.l.b16 %v1591
    %v1662 = vunpack.c.l.b16 %v1592
    %v1663 = vunpack.c.h.b16 %v1592
    %v1664 = vunpack.c.l.b16 %v1593
    %v1665 = vunpack.c.l.b16 %v1594
    %v1666 = vunpack.c.h.b16 %v1594
    %v1667 = vunpack.c.l.b16 %v1595
    %v1668 = vunpack.c.l.b16 %v1596
    %v1669 = vunpack.c.h.b16 %v1596
    %v1670 = vunpack.c.l.b16 %v1597
    %v1671 = vunpack.c.l.b16 %v1598
    %v1672 = vunpack.c.h.b16 %v1598
    %v1673 = vunpack.c.l.b16 %v1599
    %v1674 = vunpack.c.l.b16 %v1600
    %v1675 = vunpack.c.h.b16 %v1600
    %v1676 = vunpack.c.l.b16 %v1601
    %v1677 = vunpack.c.l.b16 %v1602
    %v1678 = vunpack.c.h.b16 %v1602
    %v1679 = vunpack.c.l.b16 %v1603
    %v1680 = vunpack.c.l.b16 %v1604
    %v1681 = vunpack.c.h.b16 %v1604
    %v1682 = vunpack.c.l.b16 %v1605
    %v1683 = vunpack.c.l.b16 %v1606
    %v1684 = vunpack.c.h.b16 %v1606
    %v1685 = vunpack.c.l.b16 %v1607
    %v1686 = vunpack.c.l.b16 %v1608
    %v1687 = vunpack.c.h.b16 %v1608
    %v1688 = vunpack.c.l.b16 %v1609
    %v1689 = vunpack.c.l.b16 %v1610
    %v1690 = vunpack.c.h.b16 %v1610
    %v1691 = vunpack.c.l.b16 %v1611
    %v1692 = vpack.c.b16 %v1647, %v1644
    %v1693 = vpack.c.b16 %v1648, %v1645
    %v1694 = vpack.c.b16 %v1649, %v1646
    %v1695 = vpack.c.b16 %v1653, %v1650
    %v1696 = vpack.c.b16 %v1654, %v1651
    %v1697 = vpack.c.b16 %v1655, %v1652
    %v1698 = vpack.c.b16 %v1659, %v1656
    %v1699 = vpack.c.b16 %v1660, %v1657
    %v1700 = vpack.c.b16 %v1661, %v1658
    %v1701 = vpack.c.b16 %v1665, %v1662
    %v1702 = vpack.c.b16 %v1666, %v1663
    %v1703 = vpack.c.b16 %v1667, %v1664
    %v1704 = vpack.c.b16 %v1671, %v1668
    %v1705 = vpack.c.b16 %v1672, %v1669
    %v1706 = vpack.c.b16 %v1673, %v1670
    %v1707 = vpack.c.b16 %v1677, %v1674
    %v1708 = vpack.c.b16 %v1678, %v1675
    %v1709 = vpack.c.b16 %v1679, %v1676
    %v1710 = vpack.c.b16 %v1683, %v1680
    %v1711 = vpack.c.b16 %v1684, %v1681
    %v1712 = vpack.c.b16 %v1685, %v1682
    %v1713 = vpack.c.b16 %v1689, %v1686
    %v1714 = vpack.c.b16 %v1690, %v1687
    %v1715 = vpack.c.b16 %v1691, %v1688
    %1740 = vmatprep.subr.bf16.mxu0 %v1693
    %1741 = vmatpush1.bf16.msra.mxu0 %v1692
    %1742 = vmatprep.subr.bf16.mxu0 %v1696
    %1743 = vmatpush1.bf16.msra.mxu0 %v1695
    %1744 = vmatprep.subr.bf16.mxu0 %v1699
    %1745 = vmatpush1.bf16.msra.mxu0 %v1698
    %1746 = vmatprep.subr.bf16.mxu0 %v1702
    %1747 = vmatpush1.bf16.msra.mxu0 %v1701
    %1748 = vmatprep.subr.bf16.mxu0 %v1705
    %1749 = vmatpush1.bf16.msra.mxu0 %v1704
    %1750 = vmatprep.subr.bf16.mxu0 %v1708
    %1751 = vmatpush1.bf16.msra.mxu0 %v1707
    %1752 = vmatprep.subr.bf16.mxu0 %v1711
    %1753 = vmatpush1.bf16.msra.mxu0 %v1710
    %1754 = vmatprep.subr.bf16.mxu0 %v1714
    %1755 = vmatpush1.bf16.msra.mxu0 %v1713
    %1756 = vmatprep.subr.bf16.mxu0 0
    %1757 = vmatpush1.bf16.msra.mxu0 0
    %1758 = vmatprep.subr.bf16.mxu0 0
    %1759 = vmatpush1.bf16.msra.mxu0 0
    %1760 = vmatprep.subr.bf16.mxu0 0
    %1761 = vmatpush1.bf16.msra.mxu0 0
    %1762 = vmatprep.subr.bf16.mxu0 0
    %1763 = vmatpush1.bf16.msra.mxu0 0
    %1764 = vmatprep.subr.bf16.mxu0 0
    %1765 = vmatpush1.bf16.msra.mxu0 0
    %1766 = vmatprep.subr.bf16.mxu0 0
    %1767 = vmatpush1.bf16.msra.mxu0 0
    %1768 = vmatprep.subr.bf16.mxu0 0
    %1769 = vmatpush1.bf16.msra.mxu0 0
    %1770 = vmatprep.subr.bf16.mxu0 0
    %1771 = vmatpush1.bf16.msra.mxu0 0
    %1772 = vmatprep.mubr.bf16.mxu0 0
    %1773 = vmatmul.mubr.bf16.gmra.mrb[0].mxu0 %v1577
    %v1774 = vpop.f32.mrb[0].mxu0
    %v1775 = vadd.f32 0.0, %v1774
    %v1776 = vpop.f32.mrb[0].mxu0
    %v1777 = vadd.f32 0.0, %v1776
    %v1778 = vpop.f32.mrb[0].mxu0
    %v1779 = vpop.f32.mrb[0].mxu0
    %1780 = vdwg.mxu0
    %1781 = vmatprep.subr.bf16.mxu0 0
    %1782 = vmatpush1.bf16.msra.mxu0 %v1694
    %1783 = vmatprep.subr.bf16.mxu0 0
    %1784 = vmatpush1.bf16.msra.mxu0 %v1697
    %1785 = vmatprep.subr.bf16.mxu0 0
    %1786 = vmatpush1.bf16.msra.mxu0 %v1700
    %1787 = vmatprep.subr.bf16.mxu0 0
    %1788 = vmatpush1.bf16.msra.mxu0 %v1703
    %1789 = vmatprep.subr.bf16.mxu0 0
    %1790 = vmatpush1.bf16.msra.mxu0 %v1706
    %1791 = vmatprep.subr.bf16.mxu0 0
    %1792 = vmatpush1.bf16.msra.mxu0 %v1709
    %1793 = vmatprep.subr.bf16.mxu0 0
    %1794 = vmatpush1.bf16.msra.mxu0 %v1712
    %1795 = vmatprep.subr.bf16.mxu0 0
    %1796 = vmatpush1.bf16.msra.mxu0 %v1715
    %1797 = vmatprep.subr.bf16.mxu0 0
    %1798 = vmatpush1.bf16.msra.mxu0 0
    %1799 = vmatprep.subr.bf16.mxu0 0
    %1800 = vmatpush1.bf16.msra.mxu0 0
    %1801 = vmatprep.subr.bf16.mxu0 0
    %1802 = vmatpush1.bf16.msra.mxu0 0
    %1803 = vmatprep.subr.bf16.mxu0 0
    %1804 = vmatpush1.bf16.msra.mxu0 0
    %1805 = vmatprep.subr.bf16.mxu0 0
    %1806 = vmatpush1.bf16.msra.mxu0 0
    %1807 = vmatprep.subr.bf16.mxu0 0
    %1808 = vmatpush1.bf16.msra.mxu0 0
    %1809 = vmatprep.subr.bf16.mxu0 0
    %1810 = vmatpush1.bf16.msra.mxu0 0
    %1811 = vmatprep.subr.bf16.mxu0 0
    %1812 = vmatpush1.bf16.msra.mxu0 0
    %1813 = vmatprep.mubr.bf16.mxu0 0
    %1814 = vmatmul.mubr.bf16.gmra.mrb[0].mxu0 %v1577
    %v1815 = vpop.f32.mrb[0].mxu0
    %v1816 = vadd.f32 0.0, %v1815
    %v1817 = vpop.f32.mrb[0].mxu0
    %v1818 = vpop.f32.mrb[0].mxu0
    %v1819 = vpop.f32.mrb[0].mxu0
    %1820 = vdwg.mxu0
    %v1821 = vadd.f32 %v1573, %v1775
    %v1822 = vadd.f32 %v1574, %v1777
    %v1823 = vadd.f32 %v1575, %v1816
    %v1824 = vld [vmem:[%s7] sm:$0x7]
    %v1826 = vlaneseq
    %v1827 = vshrl.u32 %v1826, 7
    %v1828 = vsub.s32 0, %v1827
    %v1829 = vrot.slane %v1824, %v1828
    %v1830 = vlaneseq
    %v1831 = vshrl.u32 %v1830, 7
    %v1832 = vsub.s32 1, %v1831
    %v1833 = vrot.slane %v1824, %v1832
    %v1834 = vlaneseq
    %v1835 = vshrl.u32 %v1834, 7
    %v1836 = vsub.s32 2, %v1835
    %v1837 = vrot.slane %v1824, %v1836
    %v1841 = vadd.f32 %v1821, %v1829
    %v1842 = vadd.f32 %v1822, %v1833
    %v1843 = vadd.f32 %v1823, %v1837
    %v1844 = vld [vmem:[%s6] sm:$0xff]
    %v1845 = vld [vmem:[%s6 + $0x8] sm:$0xf]
    %v1846 = vld [vmem:[%s6 + $0xc] sm:$0xff]
    %v1847 = vld [vmem:[%s6 + $0x14] sm:$0xf]
    %v1848 = vld [vmem:[%s6 + $0x18] sm:$0xff]
    %v1849 = vld [vmem:[%s6 + $0x20] sm:$0xf]
    %v1850 = vld [vmem:[%s6 + $0x24] sm:$0xff]
    %v1851 = vld [vmem:[%s6 + $0x2c] sm:$0xf]
    %v1852 = vld [vmem:[%s6 + $0x30] sm:$0xff]
    %v1853 = vld [vmem:[%s6 + $0x38] sm:$0xf]
    %v1854 = vld [vmem:[%s6 + $0x3c] sm:$0xff]
    %v1855 = vld [vmem:[%s6 + $0x44] sm:$0xf]
    %v1856 = vld [vmem:[%s6 + $0x48] sm:$0xff]
    %v1857 = vld [vmem:[%s6 + $0x50] sm:$0xf]
    %v1858 = vld [vmem:[%s6 + $0x54] sm:$0xff]
    %v1859 = vld [vmem:[%s6 + $0x5c] sm:$0xf]
    %v1860 = vld [vmem:[%s6 + $0x60] sm:$0xff]
    %v1861 = vld [vmem:[%s6 + $0x68] sm:$0xf]
    %v1862 = vld [vmem:[%s6 + $0x6c] sm:$0xff]
    %v1863 = vld [vmem:[%s6 + $0x74] sm:$0xf]
    %v1864 = vld [vmem:[%s6 + $0x78] sm:$0xff]
    %v1865 = vld [vmem:[%s6 + $0x80] sm:$0xf]
    %v1866 = vld [vmem:[%s6 + $0x84] sm:$0xff]
    %v1867 = vld [vmem:[%s6 + $0x8c] sm:$0xf]
    %v1868 = vld [vmem:[%s6 + $0x90] sm:$0xff]
    %v1869 = vld [vmem:[%s6 + $0x98] sm:$0xf]
    %v1870 = vld [vmem:[%s6 + $0x9c] sm:$0xff]
    %v1871 = vld [vmem:[%s6 + $0xa4] sm:$0xf]
    %v1872 = vld [vmem:[%s6 + $0xa8] sm:$0xff]
    %v1873 = vld [vmem:[%s6 + $0xb0] sm:$0xf]
    %v1874 = vld [vmem:[%s6 + $0xb4] sm:$0xff]
    %v1875 = vld [vmem:[%s6 + $0xbc] sm:$0xf]
    %v1908 = vunpack.c.l.b16 %v1844
    %v1909 = vunpack.c.h.b16 %v1844
    %v1910 = vunpack.c.l.b16 %v1845
    %v1911 = vunpack.c.l.b16 %v1846
    %v1912 = vunpack.c.h.b16 %v1846
    %v1913 = vunpack.c.l.b16 %v1847
    %v1914 = vunpack.c.l.b16 %v1848
    %v1915 = vunpack.c.h.b16 %v1848
    %v1916 = vunpack.c.l.b16 %v1849
    %v1917 = vunpack.c.l.b16 %v1850
    %v1918 = vunpack.c.h.b16 %v1850
    %v1919 = vunpack.c.l.b16 %v1851
    %v1920 = vunpack.c.l.b16 %v1852
    %v1921 = vunpack.c.h.b16 %v1852
    %v1922 = vunpack.c.l.b16 %v1853
    %v1923 = vunpack.c.l.b16 %v1854
    %v1924 = vunpack.c.h.b16 %v1854
    %v1925 = vunpack.c.l.b16 %v1855
    %v1926 = vunpack.c.l.b16 %v1856
    %v1927 = vunpack.c.h.b16 %v1856
    %v1928 = vunpack.c.l.b16 %v1857
    %v1929 = vunpack.c.l.b16 %v1858
    %v1930 = vunpack.c.h.b16 %v1858
    %v1931 = vunpack.c.l.b16 %v1859
    %v1932 = vunpack.c.l.b16 %v1860
    %v1933 = vunpack.c.h.b16 %v1860
    %v1934 = vunpack.c.l.b16 %v1861
    %v1935 = vunpack.c.l.b16 %v1862
    %v1936 = vunpack.c.h.b16 %v1862
    %v1937 = vunpack.c.l.b16 %v1863
    %v1938 = vunpack.c.l.b16 %v1864
    %v1939 = vunpack.c.h.b16 %v1864
    %v1940 = vunpack.c.l.b16 %v1865
    %v1941 = vunpack.c.l.b16 %v1866
    %v1942 = vunpack.c.h.b16 %v1866
    %v1943 = vunpack.c.l.b16 %v1867
    %v1944 = vunpack.c.l.b16 %v1868
    %v1945 = vunpack.c.h.b16 %v1868
    %v1946 = vunpack.c.l.b16 %v1869
    %v1947 = vunpack.c.l.b16 %v1870
    %v1948 = vunpack.c.h.b16 %v1870
    %v1949 = vunpack.c.l.b16 %v1871
    %v1950 = vunpack.c.l.b16 %v1872
    %v1951 = vunpack.c.h.b16 %v1872
    %v1952 = vunpack.c.l.b16 %v1873
    %v1953 = vunpack.c.l.b16 %v1874
    %v1954 = vunpack.c.h.b16 %v1874
    %v1955 = vunpack.c.l.b16 %v1875
    %v1956 = vpack.c.b16 %v1911, %v1908
    %v1957 = vpack.c.b16 %v1912, %v1909
    %v1958 = vpack.c.b16 %v1913, %v1910
    %v1959 = vpack.c.b16 %v1917, %v1914
    %v1960 = vpack.c.b16 %v1918, %v1915
    %v1961 = vpack.c.b16 %v1919, %v1916
    %v1962 = vpack.c.b16 %v1923, %v1920
    %v1963 = vpack.c.b16 %v1924, %v1921
    %v1964 = vpack.c.b16 %v1925, %v1922
    %v1965 = vpack.c.b16 %v1929, %v1926
    %v1966 = vpack.c.b16 %v1930, %v1927
    %v1967 = vpack.c.b16 %v1931, %v1928
    %v1968 = vpack.c.b16 %v1935, %v1932
    %v1969 = vpack.c.b16 %v1936, %v1933
    %v1970 = vpack.c.b16 %v1937, %v1934
    %v1971 = vpack.c.b16 %v1941, %v1938
    %v1972 = vpack.c.b16 %v1942, %v1939
    %v1973 = vpack.c.b16 %v1943, %v1940
    %v1974 = vpack.c.b16 %v1947, %v1944
    %v1975 = vpack.c.b16 %v1948, %v1945
    %v1976 = vpack.c.b16 %v1949, %v1946
    %v1977 = vpack.c.b16 %v1953, %v1950
    %v1978 = vpack.c.b16 %v1954, %v1951
    %v1979 = vpack.c.b16 %v1955, %v1952
    %2004 = vmatprep.subr.bf16.mxu0 %v1957
    %2005 = vmatpush1.bf16.msra.mxu0 %v1956
    %2006 = vmatprep.subr.bf16.mxu0 %v1960
    %2007 = vmatpush1.bf16.msra.mxu0 %v1959
    %2008 = vmatprep.subr.bf16.mxu0 %v1963
    %2009 = vmatpush1.bf16.msra.mxu0 %v1962
    %2010 = vmatprep.subr.bf16.mxu0 %v1966
    %2011 = vmatpush1.bf16.msra.mxu0 %v1965
    %2012 = vmatprep.subr.bf16.mxu0 %v1969
    %2013 = vmatpush1.bf16.msra.mxu0 %v1968
    %2014 = vmatprep.subr.bf16.mxu0 %v1972
    %2015 = vmatpush1.bf16.msra.mxu0 %v1971
    %2016 = vmatprep.subr.bf16.mxu0 %v1975
    %2017 = vmatpush1.bf16.msra.mxu0 %v1974
    %2018 = vmatprep.subr.bf16.mxu0 %v1978
    %2019 = vmatpush1.bf16.msra.mxu0 %v1977
    %2020 = vmatprep.subr.bf16.mxu0 0
    %2021 = vmatpush1.bf16.msra.mxu0 0
    %2022 = vmatprep.subr.bf16.mxu0 0
    %2023 = vmatpush1.bf16.msra.mxu0 0
    %2024 = vmatprep.subr.bf16.mxu0 0
    %2025 = vmatpush1.bf16.msra.mxu0 0
    %2026 = vmatprep.subr.bf16.mxu0 0
    %2027 = vmatpush1.bf16.msra.mxu0 0
    %2028 = vmatprep.subr.bf16.mxu0 0
    %2029 = vmatpush1.bf16.msra.mxu0 0
    %2030 = vmatprep.subr.bf16.mxu0 0
    %2031 = vmatpush1.bf16.msra.mxu0 0
    %2032 = vmatprep.subr.bf16.mxu0 0
    %2033 = vmatpush1.bf16.msra.mxu0 0
    %2034 = vmatprep.subr.bf16.mxu0 0
    %2035 = vmatpush1.bf16.msra.mxu0 0
    %2036 = vmatprep.mubr.bf16.mxu0 0
    %2037 = vmatmul.mubr.bf16.gmra.mrb[0].mxu0 %v1579
    %v2038 = vpop.f32.mrb[0].mxu0
    %v2039 = vadd.f32 0.0, %v2038
    %v2040 = vpop.f32.mrb[0].mxu0
    %v2041 = vadd.f32 0.0, %v2040
    %v2042 = vpop.f32.mrb[0].mxu0
    %v2043 = vpop.f32.mrb[0].mxu0
    %2044 = vdwg.mxu0
    %2045 = vmatprep.subr.bf16.mxu0 0
    %2046 = vmatpush1.bf16.msra.mxu0 %v1958
    %2047 = vmatprep.subr.bf16.mxu0 0
    %2048 = vmatpush1.bf16.msra.mxu0 %v1961
    %2049 = vmatprep.subr.bf16.mxu0 0
    %2050 = vmatpush1.bf16.msra.mxu0 %v1964
    %2051 = vmatprep.subr.bf16.mxu0 0
    %2052 = vmatpush1.bf16.msra.mxu0 %v1967
    %2053 = vmatprep.subr.bf16.mxu0 0
    %2054 = vmatpush1.bf16.msra.mxu0 %v1970
    %2055 = vmatprep.subr.bf16.mxu0 0
    %2056 = vmatpush1.bf16.msra.mxu0 %v1973
    %2057 = vmatprep.subr.bf16.mxu0 0
    %2058 = vmatpush1.bf16.msra.mxu0 %v1976
    %2059 = vmatprep.subr.bf16.mxu0 0
    %2060 = vmatpush1.bf16.msra.mxu0 %v1979
    %2061 = vmatprep.subr.bf16.mxu0 0
    %2062 = vmatpush1.bf16.msra.mxu0 0
    %2063 = vmatprep.subr.bf16.mxu0 0
    %2064 = vmatpush1.bf16.msra.mxu0 0
    %2065 = vmatprep.subr.bf16.mxu0 0
    %2066 = vmatpush1.bf16.msra.mxu0 0
    %2067 = vmatprep.subr.bf16.mxu0 0
    %2068 = vmatpush1.bf16.msra.mxu0 0
    %2069 = vmatprep.subr.bf16.mxu0 0
    %2070 = vmatpush1.bf16.msra.mxu0 0
    %2071 = vmatprep.subr.bf16.mxu0 0
    %2072 = vmatpush1.bf16.msra.mxu0 0
    %2073 = vmatprep.subr.bf16.mxu0 0
    %2074 = vmatpush1.bf16.msra.mxu0 0
    %2075 = vmatprep.subr.bf16.mxu0 0
    %2076 = vmatpush1.bf16.msra.mxu0 0
    %2077 = vmatprep.mubr.bf16.mxu0 0
    %2078 = vmatmul.mubr.bf16.gmra.mrb[0].mxu0 %v1579
    %v2079 = vpop.f32.mrb[0].mxu0
    %v2080 = vadd.f32 0.0, %v2079
    %v2081 = vpop.f32.mrb[0].mxu0
    %v2082 = vpop.f32.mrb[0].mxu0
    %v2083 = vpop.f32.mrb[0].mxu0
    %2084 = vdwg.mxu0
    %v2085 = vadd.f32 %v1841, %v2039
    %v2086 = vxor.u32 %v2085, 2147483648
    %v2087 = vmul.f32 %v2086, 1.442695
    %v2088 = vpow.pop %v2087
    %v2089 = vadd.f32 %v2088, 1.0
    %v2090 = vrcp.pop %v2089
    %v2091 = vmul.f32 1.0, %v2090
    %v2092 = vadd.f32 %v1842, %v2041
    %v2093 = vxor.u32 %v2092, 2147483648
    %v2094 = vmul.f32 %v2093, 1.442695
    %v2095 = vpow.pop %v2094
    %v2096 = vadd.f32 %v2095, 1.0
    %v2097 = vrcp.pop %v2096
    %v2098 = vmul.f32 1.0, %v2097
    %v2099 = vld [vmem:[%s8] sm:$0x1]
    %v2101 = vlaneseq
    %v2102 = vshrl.u32 %v2101, 7
    %v2103 = vsub.s32 0, %v2102
    %v2104 = vrot.slane %v2099, %v2103
    %v2106 = vadd.f32 %v2080, %v2104
    %v2107 = vmul.f32 %v2091, %v2106
    %v2108 = vadd.f32 %v1843, %v2107
    %v2109 = vtanh.pop %v2108
    %v2110 = vsub.f32 1.0, %v2098
    %v2111 = vmul.f32 %v2110, %v2109
    %v2112 = vmul.f32 %v2098, %v1578
    %v2113 = vadd.f32 %v2111, %v2112
    %2114 = vst [vmem:[#allocation2] sm:$0xff] %v2113
    %v2115 = vpack.c.bf16 %v2113, %v2113
    %s2116 = scalar_lea.vmem [#allocation2], 8
    %v2117 = vld [vmem:[%s2116] sm:$0xff]
    %v2118 = vpack.c.bf16 %v2117, %v2117
    %v2119 = vld [vmem:[%s9] sm:$0xff]
    %v2120 = vld [vmem:[%s9 + $0x8] sm:$0xf]
    %v2121 = vld [vmem:[%s9 + $0xc] sm:$0xff]
    %v2122 = vld [vmem:[%s9 + $0x14] sm:$0xf]
    %v2123 = vld [vmem:[%s9 + $0x18] sm:$0xff]
    %v2124 = vld [vmem:[%s9 + $0x20] sm:$0xf]
    %v2125 = vld [vmem:[%s9 + $0x24] sm:$0xff]
    %v2126 = vld [vmem:[%s9 + $0x2c] sm:$0xf]
    %v2127 = vld [vmem:[%s9 + $0x30] sm:$0xff]
    %v2128 = vld [vmem:[%s9 + $0x38] sm:$0xf]
    %v2129 = vld [vmem:[%s9 + $0x3c] sm:$0xff]
    %v2130 = vld [vmem:[%s9 + $0x44] sm:$0xf]
    %v2131 = vld [vmem:[%s9 + $0x48] sm:$0xff]
    %v2132 = vld [vmem:[%s9 + $0x50] sm:$0xf]
    %v2133 = vld [vmem:[%s9 + $0x54] sm:$0xff]
    %v2134 = vld [vmem:[%s9 + $0x5c] sm:$0xf]
    %v2135 = vld [vmem:[%s9 + $0x60] sm:$0xff]
    %v2136 = vld [vmem:[%s9 + $0x68] sm:$0xf]
    %v2137 = vld [vmem:[%s9 + $0x6c] sm:$0xff]
    %v2138 = vld [vmem:[%s9 + $0x74] sm:$0xf]
    %v2139 = vld [vmem:[%s9 + $0x78] sm:$0xff]
    %v2140 = vld [vmem:[%s9 + $0x80] sm:$0xf]
    %v2141 = vld [vmem:[%s9 + $0x84] sm:$0xff]
    %v2142 = vld [vmem:[%s9 + $0x8c] sm:$0xf]
    %v2143 = vld [vmem:[%s9 + $0x90] sm:$0xff]
    %v2144 = vld [vmem:[%s9 + $0x98] sm:$0xf]
    %v2145 = vld [vmem:[%s9 + $0x9c] sm:$0xff]
    %v2146 = vld [vmem:[%s9 + $0xa4] sm:$0xf]
    %v2147 = vld [vmem:[%s9 + $0xa8] sm:$0xff]
    %v2148 = vld [vmem:[%s9 + $0xb0] sm:$0xf]
    %v2149 = vld [vmem:[%s9 + $0xb4] sm:$0xff]
    %v2150 = vld [vmem:[%s9 + $0xbc] sm:$0xf]
    %v2151 = vld [vmem:[%s11] sm:$0x7]
    %v2153 = vlaneseq
    %v2154 = vshrl.u32 %v2153, 7
    %v2155 = vsub.s32 0, %v2154
    %v2156 = vrot.slane %v2151, %v2155
    %v2157 = vlaneseq
    %v2158 = vshrl.u32 %v2157, 7
    %v2159 = vsub.s32 1, %v2158
    %v2160 = vrot.slane %v2151, %v2159
    %v2161 = vlaneseq
    %v2162 = vshrl.u32 %v2161, 7
    %v2163 = vsub.s32 2, %v2162
    %v2164 = vrot.slane %v2151, %v2163
    %v2200 = vunpack.c.l.b16 %v2119
    %v2201 = vunpack.c.h.b16 %v2119
    %v2202 = vunpack.c.l.b16 %v2120
    %v2203 = vunpack.c.l.b16 %v2121
    %v2204 = vunpack.c.h.b16 %v2121
    %v2205 = vunpack.c.l.b16 %v2122
    %v2206 = vunpack.c.l.b16 %v2123
    %v2207 = vunpack.c.h.b16 %v2123
    %v2208 = vunpack.c.l.b16 %v2124
    %v2209 = vunpack.c.l.b16 %v2125
    %v2210 = vunpack.c.h.b16 %v2125
    %v2211 = vunpack.c.l.b16 %v2126
    %v2212 = vunpack.c.l.b16 %v2127
    %v2213 = vunpack.c.h.b16 %v2127
    %v2214 = vunpack.c.l.b16 %v2128
    %v2215 = vunpack.c.l.b16 %v2129
    %v2216 = vunpack.c.h.b16 %v2129
    %v2217 = vunpack.c.l.b16 %v2130
    %v2218 = vunpack.c.l.b16 %v2131
    %v2219 = vunpack.c.h.b16 %v2131
    %v2220 = vunpack.c.l.b16 %v2132
    %v2221 = vunpack.c.l.b16 %v2133
    %v2222 = vunpack.c.h.b16 %v2133
    %v2223 = vunpack.c.l.b16 %v2134
    %v2224 = vunpack.c.l.b16 %v2135
    %v2225 = vunpack.c.h.b16 %v2135
    %v2226 = vunpack.c.l.b16 %v2136
    %v2227 = vunpack.c.l.b16 %v2137
    %v2228 = vunpack.c.h.b16 %v2137
    %v2229 = vunpack.c.l.b16 %v2138
    %v2230 = vunpack.c.l.b16 %v2139
    %v2231 = vunpack.c.h.b16 %v2139
    %v2232 = vunpack.c.l.b16 %v2140
    %v2233 = vunpack.c.l.b16 %v2141
    %v2234 = vunpack.c.h.b16 %v2141
    %v2235 = vunpack.c.l.b16 %v2142
    %v2236 = vunpack.c.l.b16 %v2143
    %v2237 = vunpack.c.h.b16 %v2143
    %v2238 = vunpack.c.l.b16 %v2144
    %v2239 = vunpack.c.l.b16 %v2145
    %v2240 = vunpack.c.h.b16 %v2145
    %v2241 = vunpack.c.l.b16 %v2146
    %v2242 = vunpack.c.l.b16 %v2147
    %v2243 = vunpack.c.h.b16 %v2147
    %v2244 = vunpack.c.l.b16 %v2148
    %v2245 = vunpack.c.l.b16 %v2149
    %v2246 = vunpack.c.h.b16 %v2149
    %v2247 = vunpack.c.l.b16 %v2150
    %v2248 = vpack.c.b16 %v2203, %v2200
    %v2249 = vpack.c.b16 %v2204, %v2201
    %v2250 = vpack.c.b16 %v2205, %v2202
    %v2251 = vpack.c.b16 %v2209, %v2206
    %v2252 = vpack.c.b16 %v2210, %v2207
    %v2253 = vpack.c.b16 %v2211, %v2208
    %v2254 = vpack.c.b16 %v2215, %v2212
    %v2255 = vpack.c.b16 %v2216, %v2213
    %v2256 = vpack.c.b16 %v2217, %v2214
    %v2257 = vpack.c.b16 %v2221, %v2218
    %v2258 = vpack.c.b16 %v2222, %v2219
    %v2259 = vpack.c.b16 %v2223, %v2220
    %v2260 = vpack.c.b16 %v2227, %v2224
    %v2261 = vpack.c.b16 %v2228, %v2225
    %v2262 = vpack.c.b16 %v2229, %v2226
    %v2263 = vpack.c.b16 %v2233, %v2230
    %v2264 = vpack.c.b16 %v2234, %v2231
    %v2265 = vpack.c.b16 %v2235, %v2232
    %v2266 = vpack.c.b16 %v2239, %v2236
    %v2267 = vpack.c.b16 %v2240, %v2237
    %v2268 = vpack.c.b16 %v2241, %v2238
    %v2269 = vpack.c.b16 %v2245, %v2242
    %v2270 = vpack.c.b16 %v2246, %v2243
    %v2271 = vpack.c.b16 %v2247, %v2244
    %2296 = vmatprep.subr.bf16.mxu0 %v2249
    %2297 = vmatpush1.bf16.msra.mxu0 %v2248
    %2298 = vmatprep.subr.bf16.mxu0 %v2252
    %2299 = vmatpush1.bf16.msra.mxu0 %v2251
    %2300 = vmatprep.subr.bf16.mxu0 %v2255
    %2301 = vmatpush1.bf16.msra.mxu0 %v2254
    %2302 = vmatprep.subr.bf16.mxu0 %v2258
    %2303 = vmatpush1.bf16.msra.mxu0 %v2257
    %2304 = vmatprep.subr.bf16.mxu0 %v2261
    %2305 = vmatpush1.bf16.msra.mxu0 %v2260
    %2306 = vmatprep.subr.bf16.mxu0 %v2264
    %2307 = vmatpush1.bf16.msra.mxu0 %v2263
    %2308 = vmatprep.subr.bf16.mxu0 %v2267
    %2309 = vmatpush1.bf16.msra.mxu0 %v2266
    %2310 = vmatprep.subr.bf16.mxu0 %v2270
    %2311 = vmatpush1.bf16.msra.mxu0 %v2269
    %2312 = vmatprep.subr.bf16.mxu0 0
    %2313 = vmatpush1.bf16.msra.mxu0 0
    %2314 = vmatprep.subr.bf16.mxu0 0
    %2315 = vmatpush1.bf16.msra.mxu0 0
    %2316 = vmatprep.subr.bf16.mxu0 0
    %2317 = vmatpush1.bf16.msra.mxu0 0
    %2318 = vmatprep.subr.bf16.mxu0 0
    %2319 = vmatpush1.bf16.msra.mxu0 0
    %2320 = vmatprep.subr.bf16.mxu0 0
    %2321 = vmatpush1.bf16.msra.mxu0 0
    %2322 = vmatprep.subr.bf16.mxu0 0
    %2323 = vmatpush1.bf16.msra.mxu0 0
    %2324 = vmatprep.subr.bf16.mxu0 0
    %2325 = vmatpush1.bf16.msra.mxu0 0
    %2326 = vmatprep.subr.bf16.mxu0 0
    %2327 = vmatpush1.bf16.msra.mxu0 0
    %2328 = vmatprep.mubr.bf16.mxu0 0
    %2329 = vmatmul.mubr.bf16.gmra.mrb[0].mxu0 %v2115
    %v2330 = vpop.f32.mrb[0].mxu0
    %v2331 = vadd.f32 %v2156, %v2330
    %v2332 = vpop.f32.mrb[0].mxu0
    %v2333 = vadd.f32 %v2160, %v2332
    %v2334 = vpop.f32.mrb[0].mxu0
    %v2335 = vpop.f32.mrb[0].mxu0
    %2336 = vdwg.mxu0
    %2337 = vmatprep.subr.bf16.mxu0 0
    %2338 = vmatpush1.bf16.msra.mxu0 %v2250
    %2339 = vmatprep.subr.bf16.mxu0 0
    %2340 = vmatpush1.bf16.msra.mxu0 %v2253
    %2341 = vmatprep.subr.bf16.mxu0 0
    %2342 = vmatpush1.bf16.msra.mxu0 %v2256
    %2343 = vmatprep.subr.bf16.mxu0 0
    %2344 = vmatpush1.bf16.msra.mxu0 %v2259
    %2345 = vmatprep.subr.bf16.mxu0 0
    %2346 = vmatpush1.bf16.msra.mxu0 %v2262
    %2347 = vmatprep.subr.bf16.mxu0 0
    %2348 = vmatpush1.bf16.msra.mxu0 %v2265
    %2349 = vmatprep.subr.bf16.mxu0 0
    %2350 = vmatpush1.bf16.msra.mxu0 %v2268
    %2351 = vmatprep.subr.bf16.mxu0 0
    %2352 = vmatpush1.bf16.msra.mxu0 %v2271
    %2353 = vmatprep.subr.bf16.mxu0 0
    %2354 = vmatpush1.bf16.msra.mxu0 0
    %2355 = vmatprep.subr.bf16.mxu0 0
    %2356 = vmatpush1.bf16.msra.mxu0 0
    %2357 = vmatprep.subr.bf16.mxu0 0
    %2358 = vmatpush1.bf16.msra.mxu0 0
    %2359 = vmatprep.subr.bf16.mxu0 0
    %2360 = vmatpush1.bf16.msra.mxu0 0
    %2361 = vmatprep.subr.bf16.mxu0 0
    %2362 = vmatpush1.bf16.msra.mxu0 0
    %2363 = vmatprep.subr.bf16.mxu0 0
    %2364 = vmatpush1.bf16.msra.mxu0 0
    %2365 = vmatprep.subr.bf16.mxu0 0
    %2366 = vmatpush1.bf16.msra.mxu0 0
    %2367 = vmatprep.subr.bf16.mxu0 0
    %2368 = vmatpush1.bf16.msra.mxu0 0
    %2369 = vmatprep.mubr.bf16.mxu0 0
    %2370 = vmatmul.mubr.bf16.gmra.mrb[0].mxu0 %v2115
    %v2371 = vpop.f32.mrb[0].mxu0
    %v2372 = vadd.f32 %v2164, %v2371
    %v2373 = vpop.f32.mrb[0].mxu0
    %v2374 = vpop.f32.mrb[0].mxu0
    %v2375 = vpop.f32.mrb[0].mxu0
    %2376 = vdwg.mxu0
    %v2377 = vld [vmem:[%s10] sm:$0xff]
    %v2378 = vld [vmem:[%s10 + $0x8] sm:$0xf]
    %v2379 = vld [vmem:[%s10 + $0xc] sm:$0xff]
    %v2380 = vld [vmem:[%s10 + $0x14] sm:$0xf]
    %v2381 = vld [vmem:[%s10 + $0x18] sm:$0xff]
    %v2382 = vld [vmem:[%s10 + $0x20] sm:$0xf]
    %v2383 = vld [vmem:[%s10 + $0x24] sm:$0xff]
    %v2384 = vld [vmem:[%s10 + $0x2c] sm:$0xf]
    %v2385 = vld [vmem:[%s10 + $0x30] sm:$0xff]
    %v2386 = vld [vmem:[%s10 + $0x38] sm:$0xf]
    %v2387 = vld [vmem:[%s10 + $0x3c] sm:$0xff]
    %v2388 = vld [vmem:[%s10 + $0x44] sm:$0xf]
    %v2389 = vld [vmem:[%s10 + $0x48] sm:$0xff]
    %v2390 = vld [vmem:[%s10 + $0x50] sm:$0xf]
    %v2391 = vld [vmem:[%s10 + $0x54] sm:$0xff]
    %v2392 = vld [vmem:[%s10 + $0x5c] sm:$0xf]
    %v2393 = vld [vmem:[%s10 + $0x60] sm:$0xff]
    %v2394 = vld [vmem:[%s10 + $0x68] sm:$0xf]
    %v2395 = vld [vmem:[%s10 + $0x6c] sm:$0xff]
    %v2396 = vld [vmem:[%s10 + $0x74] sm:$0xf]
    %v2397 = vld [vmem:[%s10 + $0x78] sm:$0xff]
    %v2398 = vld [vmem:[%s10 + $0x80] sm:$0xf]
    %v2399 = vld [vmem:[%s10 + $0x84] sm:$0xff]
    %v2400 = vld [vmem:[%s10 + $0x8c] sm:$0xf]
    %v2401 = vld [vmem:[%s10 + $0x90] sm:$0xff]
    %v2402 = vld [vmem:[%s10 + $0x98] sm:$0xf]
    %v2403 = vld [vmem:[%s10 + $0x9c] sm:$0xff]
    %v2404 = vld [vmem:[%s10 + $0xa4] sm:$0xf]
    %v2405 = vld [vmem:[%s10 + $0xa8] sm:$0xff]
    %v2406 = vld [vmem:[%s10 + $0xb0] sm:$0xf]
    %v2407 = vld [vmem:[%s10 + $0xb4] sm:$0xff]
    %v2408 = vld [vmem:[%s10 + $0xbc] sm:$0xf]
    %v2441 = vunpack.c.l.b16 %v2377
    %v2442 = vunpack.c.h.b16 %v2377
    %v2443 = vunpack.c.l.b16 %v2378
    %v2444 = vunpack.c.l.b16 %v2379
    %v2445 = vunpack.c.h.b16 %v2379
    %v2446 = vunpack.c.l.b16 %v2380
    %v2447 = vunpack.c.l.b16 %v2381
    %v2448 = vunpack.c.h.b16 %v2381
    %v2449 = vunpack.c.l.b16 %v2382
    %v2450 = vunpack.c.l.b16 %v2383
    %v2451 = vunpack.c.h.b16 %v2383
    %v2452 = vunpack.c.l.b16 %v2384
    %v2453 = vunpack.c.l.b16 %v2385
    %v2454 = vunpack.c.h.b16 %v2385
    %v2455 = vunpack.c.l.b16 %v2386
    %v2456 = vunpack.c.l.b16 %v2387
    %v2457 = vunpack.c.h.b16 %v2387
    %v2458 = vunpack.c.l.b16 %v2388
    %v2459 = vunpack.c.l.b16 %v2389
    %v2460 = vunpack.c.h.b16 %v2389
    %v2461 = vunpack.c.l.b16 %v2390
    %v2462 = vunpack.c.l.b16 %v2391
    %v2463 = vunpack.c.h.b16 %v2391
    %v2464 = vunpack.c.l.b16 %v2392
    %v2465 = vunpack.c.l.b16 %v2393
    %v2466 = vunpack.c.h.b16 %v2393
    %v2467 = vunpack.c.l.b16 %v2394
    %v2468 = vunpack.c.l.b16 %v2395
    %v2469 = vunpack.c.h.b16 %v2395
    %v2470 = vunpack.c.l.b16 %v2396
    %v2471 = vunpack.c.l.b16 %v2397
    %v2472 = vunpack.c.h.b16 %v2397
    %v2473 = vunpack.c.l.b16 %v2398
    %v2474 = vunpack.c.l.b16 %v2399
    %v2475 = vunpack.c.h.b16 %v2399
    %v2476 = vunpack.c.l.b16 %v2400
    %v2477 = vunpack.c.l.b16 %v2401
    %v2478 = vunpack.c.h.b16 %v2401
    %v2479 = vunpack.c.l.b16 %v2402
    %v2480 = vunpack.c.l.b16 %v2403
    %v2481 = vunpack.c.h.b16 %v2403
    %v2482 = vunpack.c.l.b16 %v2404
    %v2483 = vunpack.c.l.b16 %v2405
    %v2484 = vunpack.c.h.b16 %v2405
    %v2485 = vunpack.c.l.b16 %v2406
    %v2486 = vunpack.c.l.b16 %v2407
    %v2487 = vunpack.c.h.b16 %v2407
    %v2488 = vunpack.c.l.b16 %v2408
    %v2489 = vpack.c.b16 %v2444, %v2441
    %v2490 = vpack.c.b16 %v2445, %v2442
    %v2491 = vpack.c.b16 %v2446, %v2443
    %v2492 = vpack.c.b16 %v2450, %v2447
    %v2493 = vpack.c.b16 %v2451, %v2448
    %v2494 = vpack.c.b16 %v2452, %v2449
    %v2495 = vpack.c.b16 %v2456, %v2453
    %v2496 = vpack.c.b16 %v2457, %v2454
    %v2497 = vpack.c.b16 %v2458, %v2455
    %v2498 = vpack.c.b16 %v2462, %v2459
    %v2499 = vpack.c.b16 %v2463, %v2460
    %v2500 = vpack.c.b16 %v2464, %v2461
    %v2501 = vpack.c.b16 %v2468, %v2465
    %v2502 = vpack.c.b16 %v2469, %v2466
    %v2503 = vpack.c.b16 %v2470, %v2467
    %v2504 = vpack.c.b16 %v2474, %v2471
    %v2505 = vpack.c.b16 %v2475, %v2472
    %v2506 = vpack.c.b16 %v2476, %v2473
    %v2507 = vpack.c.b16 %v2480, %v2477
    %v2508 = vpack.c.b16 %v2481, %v2478
    %v2509 = vpack.c.b16 %v2482, %v2479
    %v2510 = vpack.c.b16 %v2486, %v2483
    %v2511 = vpack.c.b16 %v2487, %v2484
    %v2512 = vpack.c.b16 %v2488, %v2485
    %2537 = vmatprep.subr.bf16.mxu0 %v2490
    %2538 = vmatpush1.bf16.msra.mxu0 %v2489
    %2539 = vmatprep.subr.bf16.mxu0 %v2493
    %2540 = vmatpush1.bf16.msra.mxu0 %v2492
    %2541 = vmatprep.subr.bf16.mxu0 %v2496
    %2542 = vmatpush1.bf16.msra.mxu0 %v2495
    %2543 = vmatprep.subr.bf16.mxu0 %v2499
    %2544 = vmatpush1.bf16.msra.mxu0 %v2498
    %2545 = vmatprep.subr.bf16.mxu0 %v2502
    %2546 = vmatpush1.bf16.msra.mxu0 %v2501
    %2547 = vmatprep.subr.bf16.mxu0 %v2505
    %2548 = vmatpush1.bf16.msra.mxu0 %v2504
    %2549 = vmatprep.subr.bf16.mxu0 %v2508
    %2550 = vmatpush1.bf16.msra.mxu0 %v2507
    %2551 = vmatprep.subr.bf16.mxu0 %v2511
    %2552 = vmatpush1.bf16.msra.mxu0 %v2510
    %2553 = vmatprep.subr.bf16.mxu0 0
    %2554 = vmatpush1.bf16.msra.mxu0 0
    %2555 = vmatprep.subr.bf16.mxu0 0
    %2556 = vmatpush1.bf16.msra.mxu0 0
    %2557 = vmatprep.subr.bf16.mxu0 0
    %2558 = vmatpush1.bf16.msra.mxu0 0
    %2559 = vmatprep.subr.bf16.mxu0 0
    %2560 = vmatpush1.bf16.msra.mxu0 0
    %2561 = vmatprep.subr.bf16.mxu0 0
    %2562 = vmatpush1.bf16.msra.mxu0 0
    %2563 = vmatprep.subr.bf16.mxu0 0
    %2564 = vmatpush1.bf16.msra.mxu0 0
    %2565 = vmatprep.subr.bf16.mxu0 0
    %2566 = vmatpush1.bf16.msra.mxu0 0
    %2567 = vmatprep.subr.bf16.mxu0 0
    %2568 = vmatpush1.bf16.msra.mxu0 0
    %2569 = vmatprep.mubr.bf16.mxu0 0
    %2570 = vmatmul.mubr.bf16.gmra.mrb[0].mxu0 %v2118
    %v2571 = vpop.f32.mrb[0].mxu0
    %v2572 = vadd.f32 0.0, %v2571
    %v2573 = vpop.f32.mrb[0].mxu0
    %v2574 = vadd.f32 0.0, %v2573
    %v2575 = vpop.f32.mrb[0].mxu0
    %v2576 = vpop.f32.mrb[0].mxu0
    %2577 = vdwg.mxu0
    %2578 = vmatprep.subr.bf16.mxu0 0
    %2579 = vmatpush1.bf16.msra.mxu0 %v2491
    %2580 = vmatprep.subr.bf16.mxu0 0
    %2581 = vmatpush1.bf16.msra.mxu0 %v2494
    %2582 = vmatprep.subr.bf16.mxu0 0
    %2583 = vmatpush1.bf16.msra.mxu0 %v2497
    %2584 = vmatprep.subr.bf16.mxu0 0
    %2585 = vmatpush1.bf16.msra.mxu0 %v2500
    %2586 = vmatprep.subr.bf16.mxu0 0
    %2587 = vmatpush1.bf16.msra.mxu0 %v2503
    %2588 = vmatprep.subr.bf16.mxu0 0
    %2589 = vmatpush1.bf16.msra.mxu0 %v2506
    %2590 = vmatprep.subr.bf16.mxu0 0
    %2591 = vmatpush1.bf16.msra.mxu0 %v2509
    %2592 = vmatprep.subr.bf16.mxu0 0
    %2593 = vmatpush1.bf16.msra.mxu0 %v2512
    %2594 = vmatprep.subr.bf16.mxu0 0
    %2595 = vmatpush1.bf16.msra.mxu0 0
    %2596 = vmatprep.subr.bf16.mxu0 0
    %2597 = vmatpush1.bf16.msra.mxu0 0
    %2598 = vmatprep.subr.bf16.mxu0 0
    %2599 = vmatpush1.bf16.msra.mxu0 0
    %2600 = vmatprep.subr.bf16.mxu0 0
    %2601 = vmatpush1.bf16.msra.mxu0 0
    %2602 = vmatprep.subr.bf16.mxu0 0
    %2603 = vmatpush1.bf16.msra.mxu0 0
    %2604 = vmatprep.subr.bf16.mxu0 0
    %2605 = vmatpush1.bf16.msra.mxu0 0
    %2606 = vmatprep.subr.bf16.mxu0 0
    %2607 = vmatpush1.bf16.msra.mxu0 0
    %2608 = vmatprep.subr.bf16.mxu0 0
    %2609 = vmatpush1.bf16.msra.mxu0 0
    %2610 = vmatprep.mubr.bf16.mxu0 0
    %2611 = vmatmul.mubr.bf16.gmra.mrb[0].mxu0 %v2118
    %v2612 = vpop.f32.mrb[0].mxu0
    %v2613 = vadd.f32 0.0, %v2612
    %v2614 = vpop.f32.mrb[0].mxu0
    %v2615 = vpop.f32.mrb[0].mxu0
    %v2616 = vpop.f32.mrb[0].mxu0
    %2617 = vdwg.mxu0
    %v2618 = vadd.f32 %v2331, %v2572
    %v2619 = vxor.u32 %v2618, 2147483648
    %v2620 = vmul.f32 %v2619, 1.442695
    %v2621 = vpow.pop %v2620
    %v2622 = vadd.f32 %v2621, 1.0
    %v2623 = vrcp.pop %v2622
    %v2624 = vmul.f32 1.0, %v2623
    %v2625 = vadd.f32 %v2333, %v2574
    %v2626 = vxor.u32 %v2625, 2147483648
    %v2627 = vmul.f32 %v2626, 1.442695
    %v2628 = vpow.pop %v2627
    %v2629 = vadd.f32 %v2628, 1.0
    %v2630 = vrcp.pop %v2629
    %v2631 = vmul.f32 1.0, %v2630
    %v2632 = vld [vmem:[%s12] sm:$0x1]
    %v2634 = vlaneseq
    %v2635 = vshrl.u32 %v2634, 7
    %v2636 = vsub.s32 0, %v2635
    %v2637 = vrot.slane %v2632, %v2636
    %v2639 = vadd.f32 %v2613, %v2637
    %v2640 = vmul.f32 %v2624, %v2639
    %v2641 = vadd.f32 %v2372, %v2640
    %v2642 = vtanh.pop %v2641
    %v2643 = vsub.f32 1.0, %v2631
    %v2644 = vmul.f32 %v2643, %v2642
    %v2645 = vmul.f32 %v2631, %v2117
    %v2646 = vadd.f32 %v2644, %v2645
    %2647 = vst [vmem:[%s2116] sm:$0xff] %v2646
    %v2648 = vpack.c.bf16 %v2646, %v2646
    %v2649 = vld [vmem:[%s15] sm:$0xff]
    %v2650 = vld [vmem:[%s15 + $0x8] sm:$0xff]
    %v2651 = vld [vmem:[%s15 + $0x10] sm:$0xff]
    %v2652 = vld [vmem:[%s15 + $0x18] sm:$0xff]
    %v2653 = vld [vmem:[%s15 + $0x20] sm:$0xff]
    %v2654 = vld [vmem:[%s15 + $0x28] sm:$0xff]
    %v2655 = vld [vmem:[%s15 + $0x30] sm:$0xff]
    %v2656 = vld [vmem:[%s15 + $0x38] sm:$0xff]
    %v2657 = vld [vmem:[%s15 + $0x40] sm:$0xff]
    %v2658 = vld [vmem:[%s15 + $0x48] sm:$0xff]
    %v2659 = vld [vmem:[%s15 + $0x50] sm:$0xff]
    %v2660 = vld [vmem:[%s15 + $0x58] sm:$0xff]
    %v2661 = vld [vmem:[%s15 + $0x60] sm:$0xff]
    %v2662 = vld [vmem:[%s15 + $0x68] sm:$0xff]
    %v2663 = vld [vmem:[%s15 + $0x70] sm:$0xff]
    %v2664 = vld [vmem:[%s15 + $0x78] sm:$0xff]
    %v2681 = vunpack.c.l.b16 %v2649
    %v2682 = vunpack.c.h.b16 %v2649
    %v2683 = vunpack.c.l.b16 %v2650
    %v2684 = vunpack.c.h.b16 %v2650
    %v2685 = vunpack.c.l.b16 %v2651
    %v2686 = vunpack.c.h.b16 %v2651
    %v2687 = vunpack.c.l.b16 %v2652
    %v2688 = vunpack.c.h.b16 %v2652
    %v2689 = vunpack.c.l.b16 %v2653
    %v2690 = vunpack.c.h.b16 %v2653
    %v2691 = vunpack.c.l.b16 %v2654
    %v2692 = vunpack.c.h.b16 %v2654
    %v2693 = vunpack.c.l.b16 %v2655
    %v2694 = vunpack.c.h.b16 %v2655
    %v2695 = vunpack.c.l.b16 %v2656
    %v2696 = vunpack.c.h.b16 %v2656
    %v2697 = vunpack.c.l.b16 %v2657
    %v2698 = vunpack.c.h.b16 %v2657
    %v2699 = vunpack.c.l.b16 %v2658
    %v2700 = vunpack.c.h.b16 %v2658
    %v2701 = vunpack.c.l.b16 %v2659
    %v2702 = vunpack.c.h.b16 %v2659
    %v2703 = vunpack.c.l.b16 %v2660
    %v2704 = vunpack.c.h.b16 %v2660
    %v2705 = vunpack.c.l.b16 %v2661
    %v2706 = vunpack.c.h.b16 %v2661
    %v2707 = vunpack.c.l.b16 %v2662
    %v2708 = vunpack.c.h.b16 %v2662
    %v2709 = vunpack.c.l.b16 %v2663
    %v2710 = vunpack.c.h.b16 %v2663
    %v2711 = vunpack.c.l.b16 %v2664
    %v2712 = vunpack.c.h.b16 %v2664
    %v2713 = vpack.c.b16 %v2683, %v2681
    %v2714 = vpack.c.b16 %v2684, %v2682
    %v2715 = vpack.c.b16 %v2687, %v2685
    %v2716 = vpack.c.b16 %v2688, %v2686
    %v2717 = vpack.c.b16 %v2691, %v2689
    %v2718 = vpack.c.b16 %v2692, %v2690
    %v2719 = vpack.c.b16 %v2695, %v2693
    %v2720 = vpack.c.b16 %v2696, %v2694
    %v2721 = vpack.c.b16 %v2699, %v2697
    %v2722 = vpack.c.b16 %v2700, %v2698
    %v2723 = vpack.c.b16 %v2703, %v2701
    %v2724 = vpack.c.b16 %v2704, %v2702
    %v2725 = vpack.c.b16 %v2707, %v2705
    %v2726 = vpack.c.b16 %v2708, %v2706
    %v2727 = vpack.c.b16 %v2711, %v2709
    %v2728 = vpack.c.b16 %v2712, %v2710
    %2745 = vmatprep.subr.bf16.mxu0 %v2714
    %2746 = vmatpush1.bf16.msra.mxu0 %v2713
    %2747 = vmatprep.subr.bf16.mxu0 %v2716
    %2748 = vmatpush1.bf16.msra.mxu0 %v2715
    %2749 = vmatprep.subr.bf16.mxu0 %v2718
    %2750 = vmatpush1.bf16.msra.mxu0 %v2717
    %2751 = vmatprep.subr.bf16.mxu0 %v2720
    %2752 = vmatpush1.bf16.msra.mxu0 %v2719
    %2753 = vmatprep.subr.bf16.mxu0 %v2722
    %2754 = vmatpush1.bf16.msra.mxu0 %v2721
    %2755 = vmatprep.subr.bf16.mxu0 %v2724
    %2756 = vmatpush1.bf16.msra.mxu0 %v2723
    %2757 = vmatprep.subr.bf16.mxu0 %v2726
    %2758 = vmatpush1.bf16.msra.mxu0 %v2725
    %2759 = vmatprep.subr.bf16.mxu0 %v2728
    %2760 = vmatpush1.bf16.msra.mxu0 %v2727
    %2761 = vmatprep.subr.bf16.mxu0 0
    %2762 = vmatpush1.bf16.msra.mxu0 0
    %2763 = vmatprep.subr.bf16.mxu0 0
    %2764 = vmatpush1.bf16.msra.mxu0 0
    %2765 = vmatprep.subr.bf16.mxu0 0
    %2766 = vmatpush1.bf16.msra.mxu0 0
    %2767 = vmatprep.subr.bf16.mxu0 0
    %2768 = vmatpush1.bf16.msra.mxu0 0
    %2769 = vmatprep.subr.bf16.mxu0 0
    %2770 = vmatpush1.bf16.msra.mxu0 0
    %2771 = vmatprep.subr.bf16.mxu0 0
    %2772 = vmatpush1.bf16.msra.mxu0 0
    %2773 = vmatprep.subr.bf16.mxu0 0
    %2774 = vmatpush1.bf16.msra.mxu0 0
    %2775 = vmatprep.subr.bf16.mxu0 0
    %2776 = vmatpush1.bf16.msra.mxu0 0
    %2777 = vmatprep.mubr.bf16.mxu0 0
    %2778 = vmatmul.mubr.bf16.gmra.mrb[0].mxu0 %v2648
    %v2779 = vpop.f32.mrb[0].mxu0
    %v2780 = vadd.f32 0.0, %v2779
    %v2781 = vpop.f32.mrb[0].mxu0
    %v2782 = vadd.f32 0.0, %v2781
    %v2783 = vpop.f32.mrb[0].mxu0
    %v2784 = vpop.f32.mrb[0].mxu0
    %2785 = vdwg.mxu0
    %v2786 = vld [vmem:[#allocation5] sm:$0xff]
    %v2787 = vld [vmem:[#allocation5 + $0x8] sm:$0xff]
    %v2788 = vld [vmem:[#allocation5 + $0x10] sm:$0xff]
    %v2789 = vld [vmem:[#allocation5 + $0x18] sm:$0xff]
    %v2790 = vld [vmem:[#allocation5 + $0x20] sm:$0xff]
    %v2791 = vld [vmem:[#allocation5 + $0x28] sm:$0xff]
    %v2792 = vld [vmem:[#allocation5 + $0x30] sm:$0xff]
    %v2793 = vld [vmem:[#allocation5 + $0x38] sm:$0xff]
    %v2794 = vld [vmem:[#allocation5 + $0x40] sm:$0xff]
    %v2795 = vld [vmem:[#allocation5 + $0x48] sm:$0xff]
    %v2796 = vld [vmem:[#allocation5 + $0x50] sm:$0xff]
    %v2797 = vld [vmem:[#allocation5 + $0x58] sm:$0xff]
    %v2798 = vld [vmem:[#allocation5 + $0x60] sm:$0xff]
    %v2799 = vld [vmem:[#allocation5 + $0x68] sm:$0xff]
    %v2800 = vld [vmem:[#allocation5 + $0x70] sm:$0xff]
    %v2801 = vld [vmem:[#allocation5 + $0x78] sm:$0xff]
    %v2802 = vld [vmem:[#allocation5 + $0x80] sm:$0xff]
    %v2803 = vld [vmem:[#allocation5 + $0x88] sm:$0xff]
    %v2804 = vld [vmem:[#allocation5 + $0x90] sm:$0xff]
    %v2805 = vld [vmem:[#allocation5 + $0x98] sm:$0xff]
    %v2806 = vld [vmem:[#allocation5 + $0xa0] sm:$0xff]
    %v2807 = vld [vmem:[#allocation5 + $0xa8] sm:$0xff]
    %v2808 = vld [vmem:[#allocation5 + $0xb0] sm:$0xff]
    %v2809 = vld [vmem:[#allocation5 + $0xb8] sm:$0xff]
    %v2810 = vld [vmem:[#allocation5 + $0xc0] sm:$0xff]
    %v2811 = vld [vmem:[#allocation5 + $0xc8] sm:$0xff]
    %v2812 = vld [vmem:[#allocation5 + $0xd0] sm:$0xff]
    %v2813 = vld [vmem:[#allocation5 + $0xd8] sm:$0xff]
    %v2814 = vld [vmem:[#allocation5 + $0xe0] sm:$0xff]
    %v2815 = vld [vmem:[#allocation5 + $0xe8] sm:$0xff]
    %v2816 = vld [vmem:[#allocation5 + $0xf0] sm:$0xff]
    %v2817 = vld [vmem:[#allocation5 + $0xf8] sm:$0xff]
    %v2818 = vld [vmem:[#allocation5 + $0x100] sm:$0xff]
    %v2819 = vld [vmem:[#allocation5 + $0x108] sm:$0xff]
    %v2820 = vld [vmem:[#allocation5 + $0x110] sm:$0xff]
    %v2821 = vld [vmem:[#allocation5 + $0x118] sm:$0xff]
    %v2822 = vld [vmem:[#allocation5 + $0x120] sm:$0xff]
    %v2823 = vld [vmem:[#allocation5 + $0x128] sm:$0xff]
    %v2824 = vld [vmem:[#allocation5 + $0x130] sm:$0xff]
    %v2825 = vld [vmem:[#allocation5 + $0x138] sm:$0xff]
    %v2826 = vld [vmem:[#allocation5 + $0x140] sm:$0xff]
    %v2827 = vld [vmem:[#allocation5 + $0x148] sm:$0xff]
    %v2828 = vld [vmem:[#allocation5 + $0x150] sm:$0xff]
    %v2829 = vld [vmem:[#allocation5 + $0x158] sm:$0xff]
    %v2830 = vld [vmem:[#allocation5 + $0x160] sm:$0xff]
    %v2831 = vld [vmem:[#allocation5 + $0x168] sm:$0xff]
    %v2832 = vld [vmem:[#allocation5 + $0x170] sm:$0xff]
    %v2833 = vld [vmem:[#allocation5 + $0x178] sm:$0xff]
    %v2834 = vld [vmem:[#allocation5 + $0x180] sm:$0xff]
    %v2835 = vld [vmem:[#allocation5 + $0x188] sm:$0xff]
    %v2836 = vld [vmem:[#allocation5 + $0x190] sm:$0xff]
    %v2837 = vld [vmem:[#allocation5 + $0x198] sm:$0xff]
    %v2838 = vld [vmem:[#allocation5 + $0x1a0] sm:$0xff]
    %v2839 = vld [vmem:[#allocation5 + $0x1a8] sm:$0xff]
    %v2840 = vld [vmem:[#allocation5 + $0x1b0] sm:$0xff]
    %v2841 = vld [vmem:[#allocation5 + $0x1b8] sm:$0xff]
    %v2842 = vld [vmem:[#allocation5 + $0x1c0] sm:$0xff]
    %v2843 = vld [vmem:[#allocation5 + $0x1c8] sm:$0xff]
    %v2844 = vld [vmem:[#allocation5 + $0x1d0] sm:$0xff]
    %v2845 = vld [vmem:[#allocation5 + $0x1d8] sm:$0xff]
    %v2846 = vld [vmem:[#allocation5 + $0x1e0] sm:$0xff]
    %v2847 = vld [vmem:[#allocation5 + $0x1e8] sm:$0xff]
    %v2848 = vld [vmem:[#allocation5 + $0x1f0] sm:$0xff]
    %v2849 = vld [vmem:[#allocation5 + $0x1f8] sm:$0xff]
    %v2850 = vld [vmem:[#allocation5 + $0x200] sm:$0xff]
    %v2851 = vld [vmem:[#allocation5 + $0x208] sm:$0xff]
    %v2852 = vld [vmem:[#allocation5 + $0x210] sm:$0xff]
    %v2853 = vld [vmem:[#allocation5 + $0x218] sm:$0xff]
    %v2854 = vld [vmem:[#allocation5 + $0x220] sm:$0xff]
    %v2855 = vld [vmem:[#allocation5 + $0x228] sm:$0xff]
    %v2856 = vld [vmem:[#allocation5 + $0x230] sm:$0xff]
    %v2857 = vld [vmem:[#allocation5 + $0x238] sm:$0xff]
    %v2858 = vld [vmem:[#allocation5 + $0x240] sm:$0xff]
    %v2859 = vld [vmem:[#allocation5 + $0x248] sm:$0xff]
    %v2860 = vld [vmem:[#allocation5 + $0x250] sm:$0xff]
    %v2861 = vld [vmem:[#allocation5 + $0x258] sm:$0xff]
    %v2862 = vld [vmem:[#allocation5 + $0x260] sm:$0xff]
    %v2863 = vld [vmem:[#allocation5 + $0x268] sm:$0xff]
    %v2864 = vld [vmem:[#allocation5 + $0x270] sm:$0xff]
    %v2865 = vld [vmem:[#allocation5 + $0x278] sm:$0xff]
    %v2866 = vld [vmem:[#allocation5 + $0x280] sm:$0xff]
    %v2867 = vld [vmem:[#allocation5 + $0x288] sm:$0xff]
    %v2868 = vld [vmem:[#allocation5 + $0x290] sm:$0xff]
    %v2869 = vld [vmem:[#allocation5 + $0x298] sm:$0xff]
    %v2870 = vld [vmem:[#allocation5 + $0x2a0] sm:$0xff]
    %v2871 = vld [vmem:[#allocation5 + $0x2a8] sm:$0xff]
    %v2872 = vld [vmem:[#allocation5 + $0x2b0] sm:$0xff]
    %v2873 = vld [vmem:[#allocation5 + $0x2b8] sm:$0xff]
    %v2874 = vld [vmem:[#allocation5 + $0x2c0] sm:$0xff]
    %v2875 = vld [vmem:[#allocation5 + $0x2c8] sm:$0xff]
    %v2876 = vld [vmem:[#allocation5 + $0x2d0] sm:$0xff]
    %v2877 = vld [vmem:[#allocation5 + $0x2d8] sm:$0xff]
    %v2878 = vld [vmem:[#allocation5 + $0x2e0] sm:$0xff]
    %v2879 = vld [vmem:[#allocation5 + $0x2e8] sm:$0xff]
    %v2880 = vld [vmem:[#allocation5 + $0x2f0] sm:$0xff]
    %v2881 = vld [vmem:[#allocation5 + $0x2f8] sm:$0xff]
    %v2882 = vld [vmem:[#allocation5 + $0x300] sm:$0xff]
    %v2883 = vld [vmem:[#allocation5 + $0x308] sm:$0xff]
    %v2884 = vld [vmem:[#allocation5 + $0x310] sm:$0xff]
    %v2885 = vld [vmem:[#allocation5 + $0x318] sm:$0xff]
    %v2886 = vld [vmem:[#allocation5 + $0x320] sm:$0xff]
    %v2887 = vld [vmem:[#allocation5 + $0x328] sm:$0xff]
    %v2888 = vld [vmem:[#allocation5 + $0x330] sm:$0xff]
    %v2889 = vld [vmem:[#allocation5 + $0x338] sm:$0xff]
    %v2890 = vld [vmem:[#allocation5 + $0x340] sm:$0xff]
    %v2891 = vld [vmem:[#allocation5 + $0x348] sm:$0xff]
    %v2892 = vld [vmem:[#allocation5 + $0x350] sm:$0xff]
    %v2893 = vld [vmem:[#allocation5 + $0x358] sm:$0xff]
    %v2894 = vld [vmem:[#allocation5 + $0x360] sm:$0xff]
    %v2895 = vld [vmem:[#allocation5 + $0x368] sm:$0xff]
    %v2896 = vld [vmem:[#allocation5 + $0x370] sm:$0xff]
    %v2897 = vld [vmem:[#allocation5 + $0x378] sm:$0xff]
    %v2898 = vld [vmem:[#allocation5 + $0x380] sm:$0xff]
    %v2899 = vld [vmem:[#allocation5 + $0x388] sm:$0xff]
    %v2900 = vld [vmem:[#allocation5 + $0x390] sm:$0xff]
    %v2901 = vld [vmem:[#allocation5 + $0x398] sm:$0xff]
    %v2902 = vld [vmem:[#allocation5 + $0x3a0] sm:$0xff]
    %v2903 = vld [vmem:[#allocation5 + $0x3a8] sm:$0xff]
    %v2904 = vld [vmem:[#allocation5 + $0x3b0] sm:$0xff]
    %v2905 = vld [vmem:[#allocation5 + $0x3b8] sm:$0xff]
    %v2906 = vld [vmem:[#allocation5 + $0x3c0] sm:$0xff]
    %v2907 = vld [vmem:[#allocation5 + $0x3c8] sm:$0xff]
    %v2908 = vld [vmem:[#allocation5 + $0x3d0] sm:$0xff]
    %v2909 = vld [vmem:[#allocation5 + $0x3d8] sm:$0xff]
    %v2910 = vld [vmem:[#allocation5 + $0x3e0] sm:$0xff]
    %v2911 = vld [vmem:[#allocation5 + $0x3e8] sm:$0xff]
    %v2912 = vld [vmem:[#allocation5 + $0x3f0] sm:$0xff]
    %v2913 = vld [vmem:[#allocation5 + $0x3f8] sm:$0xff]
    %v2914 = vunpack.c.l.bf16 %v2786
    %v2915 = vunpack.c.h.bf16 %v2786
    %v2916 = vunpack.c.l.bf16 %v2788
    %v2917 = vunpack.c.h.bf16 %v2788
    %v2918 = vunpack.c.l.bf16 %v2790
    %v2919 = vunpack.c.h.bf16 %v2790
    %v2920 = vunpack.c.l.bf16 %v2792
    %v2921 = vunpack.c.h.bf16 %v2792
    %v2922 = vunpack.c.l.bf16 %v2794
    %v2923 = vunpack.c.h.bf16 %v2794
    %v2924 = vunpack.c.l.bf16 %v2796
    %v2925 = vunpack.c.h.bf16 %v2796
    %v2926 = vunpack.c.l.bf16 %v2798
    %v2927 = vunpack.c.h.bf16 %v2798
    %v2928 = vunpack.c.l.bf16 %v2800
    %v2929 = vunpack.c.h.bf16 %v2800
    %v2930 = vunpack.c.l.bf16 %v2802
    %v2931 = vunpack.c.h.bf16 %v2802
    %v2932 = vunpack.c.l.bf16 %v2804
    %v2933 = vunpack.c.h.bf16 %v2804
    %v2934 = vunpack.c.l.bf16 %v2806
    %v2935 = vunpack.c.h.bf16 %v2806
    %v2936 = vunpack.c.l.bf16 %v2808
    %v2937 = vunpack.c.h.bf16 %v2808
    %v2938 = vunpack.c.l.bf16 %v2810
    %v2939 = vunpack.c.h.bf16 %v2810
    %v2940 = vunpack.c.l.bf16 %v2812
    %v2941 = vunpack.c.h.bf16 %v2812
    %v2942 = vunpack.c.l.bf16 %v2814
    %v2943 = vunpack.c.h.bf16 %v2814
    %v2944 = vunpack.c.l.bf16 %v2816
    %v2945 = vunpack.c.h.bf16 %v2816
    %v2946 = vunpack.c.l.bf16 %v2818
    %v2947 = vunpack.c.h.bf16 %v2818
    %v2948 = vunpack.c.l.bf16 %v2820
    %v2949 = vunpack.c.h.bf16 %v2820
    %v2950 = vunpack.c.l.bf16 %v2822
    %v2951 = vunpack.c.h.bf16 %v2822
    %v2952 = vunpack.c.l.bf16 %v2824
    %v2953 = vunpack.c.h.bf16 %v2824
    %v2954 = vunpack.c.l.bf16 %v2826
    %v2955 = vunpack.c.h.bf16 %v2826
    %v2956 = vunpack.c.l.bf16 %v2828
    %v2957 = vunpack.c.h.bf16 %v2828
    %v2958 = vunpack.c.l.bf16 %v2830
    %v2959 = vunpack.c.h.bf16 %v2830
    %v2960 = vunpack.c.l.bf16 %v2832
    %v2961 = vunpack.c.h.bf16 %v2832
    %v2962 = vunpack.c.l.bf16 %v2834
    %v2963 = vunpack.c.h.bf16 %v2834
    %v2964 = vunpack.c.l.bf16 %v2836
    %v2965 = vunpack.c.h.bf16 %v2836
    %v2966 = vunpack.c.l.bf16 %v2838
    %v2967 = vunpack.c.h.bf16 %v2838
    %v2968 = vunpack.c.l.bf16 %v2840
    %v2969 = vunpack.c.h.bf16 %v2840
    %v2970 = vunpack.c.l.bf16 %v2842
    %v2971 = vunpack.c.h.bf16 %v2842
    %v2972 = vunpack.c.l.bf16 %v2844
    %v2973 = vunpack.c.h.bf16 %v2844
    %v2974 = vunpack.c.l.bf16 %v2846
    %v2975 = vunpack.c.h.bf16 %v2846
    %v2976 = vunpack.c.l.bf16 %v2848
    %v2977 = vunpack.c.h.bf16 %v2848
    %v2978 = vunpack.c.l.bf16 %v2850
    %v2979 = vunpack.c.h.bf16 %v2850
    %v2980 = vunpack.c.l.bf16 %v2852
    %v2981 = vunpack.c.h.bf16 %v2852
    %v2982 = vunpack.c.l.bf16 %v2854
    %v2983 = vunpack.c.h.bf16 %v2854
    %v2984 = vunpack.c.l.bf16 %v2856
    %v2985 = vunpack.c.h.bf16 %v2856
    %v2986 = vunpack.c.l.bf16 %v2858
    %v2987 = vunpack.c.h.bf16 %v2858
    %v2988 = vunpack.c.l.bf16 %v2860
    %v2989 = vunpack.c.h.bf16 %v2860
    %v2990 = vunpack.c.l.bf16 %v2862
    %v2991 = vunpack.c.h.bf16 %v2862
    %v2992 = vunpack.c.l.bf16 %v2864
    %v2993 = vunpack.c.h.bf16 %v2864
    %v2994 = vunpack.c.l.bf16 %v2866
    %v2995 = vunpack.c.h.bf16 %v2866
    %v2996 = vunpack.c.l.bf16 %v2868
    %v2997 = vunpack.c.h.bf16 %v2868
    %v2998 = vunpack.c.l.bf16 %v2870
    %v2999 = vunpack.c.h.bf16 %v2870
    %v3000 = vunpack.c.l.bf16 %v2872
    %v3001 = vunpack.c.h.bf16 %v2872
    %v3002 = vunpack.c.l.bf16 %v2874
    %v3003 = vunpack.c.h.bf16 %v2874
    %v3004 = vunpack.c.l.bf16 %v2876
    %v3005 = vunpack.c.h.bf16 %v2876
    %v3006 = vunpack.c.l.bf16 %v2878
    %v3007 = vunpack.c.h.bf16 %v2878
    %v3008 = vunpack.c.l.bf16 %v2880
    %v3009 = vunpack.c.h.bf16 %v2880
    %v3010 = vunpack.c.l.bf16 %v2882
    %v3011 = vunpack.c.h.bf16 %v2882
    %v3012 = vunpack.c.l.bf16 %v2884
    %v3013 = vunpack.c.h.bf16 %v2884
    %v3014 = vunpack.c.l.bf16 %v2886
    %v3015 = vunpack.c.h.bf16 %v2886
    %v3016 = vunpack.c.l.bf16 %v2888
    %v3017 = vunpack.c.h.bf16 %v2888
    %v3018 = vunpack.c.l.bf16 %v2890
    %v3019 = vunpack.c.h.bf16 %v2890
    %v3020 = vunpack.c.l.bf16 %v2892
    %v3021 = vunpack.c.h.bf16 %v2892
    %v3022 = vunpack.c.l.bf16 %v2894
    %v3023 = vunpack.c.h.bf16 %v2894
    %v3024 = vunpack.c.l.bf16 %v2896
    %v3025 = vunpack.c.h.bf16 %v2896
    %v3026 = vunpack.c.l.bf16 %v2898
    %v3027 = vunpack.c.h.bf16 %v2898
    %v3028 = vunpack.c.l.bf16 %v2900
    %v3029 = vunpack.c.h.bf16 %v2900
    %v3030 = vunpack.c.l.bf16 %v2902
    %v3031 = vunpack.c.h.bf16 %v2902
    %v3032 = vunpack.c.l.bf16 %v2904
    %v3033 = vunpack.c.h.bf16 %v2904
    %v3034 = vunpack.c.l.bf16 %v2906
    %v3035 = vunpack.c.h.bf16 %v2906
    %v3036 = vunpack.c.l.bf16 %v2908
    %v3037 = vunpack.c.h.bf16 %v2908
    %v3038 = vunpack.c.l.bf16 %v2910
    %v3039 = vunpack.c.h.bf16 %v2910
    %v3040 = vunpack.c.l.bf16 %v2912
    %v3041 = vunpack.c.h.bf16 %v2912
    %v3043 = vcombine.high %v2780, %v2780
    %v3045 = vunpack.c.l.s4 1966171168
    %v3046 = vunpack.c.0.s8 %v3045
    %v3047 = vlaneseq
    %v3048 = vshrl.u32 %v3047, 7
    %v3049 = vsub.s32 %v3046, %v3048
    %v3050 = vrot.slane %v2780, %v3049
    %v3052 = vunpack.c.l.s4 1966171168
    %v3053 = vunpack.c.0.s8 %v3052
    %v3054 = vlaneseq
    %v3055 = vshrl.u32 %v3054, 7
    %v3056 = vsub.s32 %v3053, %v3055
    %v3057 = vrot.slane %v3043, %v3056
    %v3058 = vcombine.high %v3050, %v3050
    %v3059 = vcombine.high %v3057, %v3057
    %v3061 = vunpack.c.l.s4 1966171168
    %v3062 = vunpack.c.0.s8 %v3061
    %v3063 = vlaneseq
    %v3064 = vshrl.u32 %v3063, 7
    %v3065 = vsub.s32 %v3062, %v3064
    %v3066 = vrot.slane %v3050, %v3065
    %v3068 = vunpack.c.l.s4 1966171168
    %v3069 = vunpack.c.0.s8 %v3068
    %v3070 = vlaneseq
    %v3071 = vshrl.u32 %v3070, 7
    %v3072 = vsub.s32 %v3069, %v3071
    %v3073 = vrot.slane %v3057, %v3072
    %v3075 = vunpack.c.l.s4 1966171168
    %v3076 = vunpack.c.0.s8 %v3075
    %v3077 = vlaneseq
    %v3078 = vshrl.u32 %v3077, 7
    %v3079 = vsub.s32 %v3076, %v3078
    %v3080 = vrot.slane %v3058, %v3079
    %v3082 = vunpack.c.l.s4 1966171168
    %v3083 = vunpack.c.0.s8 %v3082
    %v3084 = vlaneseq
    %v3085 = vshrl.u32 %v3084, 7
    %v3086 = vsub.s32 %v3083, %v3085
    %v3087 = vrot.slane %v3059, %v3086
    %v3088 = vcombine.high %v3066, %v3066
    %v3089 = vcombine.high %v3073, %v3073
    %v3090 = vcombine.high %v3080, %v3080
    %v3091 = vcombine.high %v3087, %v3087
    %v3092 = vlaneseq
    %v3093 = vshrl.u32 %v3092, 7
    %v3094 = vsub.s32 0, %v3093
    %v3095 = vrot.slane %v3066, %v3094
    %v3096 = vlaneseq
    %v3097 = vshrl.u32 %v3096, 7
    %v3098 = vsub.s32 0, %v3097
    %v3099 = vrot.slane %v3080, %v3098
    %v3100 = vlaneseq
    %v3101 = vshrl.u32 %v3100, 7
    %v3102 = vsub.s32 0, %v3101
    %v3103 = vrot.slane %v3088, %v3102
    %v3104 = vlaneseq
    %v3105 = vshrl.u32 %v3104, 7
    %v3106 = vsub.s32 0, %v3105
    %v3107 = vrot.slane %v3090, %v3106
    %v3108 = vlaneseq
    %v3109 = vshrl.u32 %v3108, 7
    %v3110 = vsub.s32 0, %v3109
    %v3111 = vrot.slane %v3073, %v3110
    %v3112 = vlaneseq
    %v3113 = vshrl.u32 %v3112, 7
    %v3114 = vsub.s32 0, %v3113
    %v3115 = vrot.slane %v3087, %v3114
    %v3116 = vlaneseq
    %v3117 = vshrl.u32 %v3116, 7
    %v3118 = vsub.s32 0, %v3117
    %v3119 = vrot.slane %v3089, %v3118
    %v3120 = vlaneseq
    %v3121 = vshrl.u32 %v3120, 7
    %v3122 = vsub.s32 0, %v3121
    %v3123 = vrot.slane %v3091, %v3122
    %v3132 = vadd.f32 %v2914, %v3095
    %v3133 = vadd.f32 %v2915, %v3095
    %v3134 = vadd.f32 %v2916, %v3095
    %v3135 = vadd.f32 %v2917, %v3095
    %v3136 = vadd.f32 %v2918, %v3095
    %v3137 = vadd.f32 %v2919, %v3095
    %v3138 = vadd.f32 %v2920, %v3095
    %v3139 = vadd.f32 %v2921, %v3095
    %v3140 = vadd.f32 %v2922, %v3095
    %v3141 = vadd.f32 %v2923, %v3095
    %v3142 = vadd.f32 %v2924, %v3095
    %v3143 = vadd.f32 %v2925, %v3095
    %v3144 = vadd.f32 %v2926, %v3095
    %v3145 = vadd.f32 %v2927, %v3095
    %v3146 = vadd.f32 %v2928, %v3095
    %v3147 = vadd.f32 %v2929, %v3095
    %v3148 = vadd.f32 %v2930, %v3099
    %v3149 = vadd.f32 %v2931, %v3099
    %v3150 = vadd.f32 %v2932, %v3099
    %v3151 = vadd.f32 %v2933, %v3099
    %v3152 = vadd.f32 %v2934, %v3099
    %v3153 = vadd.f32 %v2935, %v3099
    %v3154 = vadd.f32 %v2936, %v3099
    %v3155 = vadd.f32 %v2937, %v3099
    %v3156 = vadd.f32 %v2938, %v3099
    %v3157 = vadd.f32 %v2939, %v3099
    %v3158 = vadd.f32 %v2940, %v3099
    %v3159 = vadd.f32 %v2941, %v3099
    %v3160 = vadd.f32 %v2942, %v3099
    %v3161 = vadd.f32 %v2943, %v3099
    %v3162 = vadd.f32 %v2944, %v3099
    %v3163 = vadd.f32 %v2945, %v3099
    %v3164 = vadd.f32 %v2946, %v3103
    %v3165 = vadd.f32 %v2947, %v3103
    %v3166 = vadd.f32 %v2948, %v3103
    %v3167 = vadd.f32 %v2949, %v3103
    %v3168 = vadd.f32 %v2950, %v3103
    %v3169 = vadd.f32 %v2951, %v3103
    %v3170 = vadd.f32 %v2952, %v3103
    %v3171 = vadd.f32 %v2953, %v3103
    %v3172 = vadd.f32 %v2954, %v3103
    %v3173 = vadd.f32 %v2955, %v3103
    %v3174 = vadd.f32 %v2956, %v3103
    %v3175 = vadd.f32 %v2957, %v3103
    %v3176 = vadd.f32 %v2958, %v3103
    %v3177 = vadd.f32 %v2959, %v3103
    %v3178 = vadd.f32 %v2960, %v3103
    %v3179 = vadd.f32 %v2961, %v3103
    %v3180 = vadd.f32 %v2962, %v3107
    %v3181 = vadd.f32 %v2963, %v3107
    %v3182 = vadd.f32 %v2964, %v3107
    %v3183 = vadd.f32 %v2965, %v3107
    %v3184 = vadd.f32 %v2966, %v3107
    %v3185 = vadd.f32 %v2967, %v3107
    %v3186 = vadd.f32 %v2968, %v3107
    %v3187 = vadd.f32 %v2969, %v3107
    %v3188 = vadd.f32 %v2970, %v3107
    %v3189 = vadd.f32 %v2971, %v3107
    %v3190 = vadd.f32 %v2972, %v3107
    %v3191 = vadd.f32 %v2973, %v3107
    %v3192 = vadd.f32 %v2974, %v3107
    %v3193 = vadd.f32 %v2975, %v3107
    %v3194 = vadd.f32 %v2976, %v3107
    %v3195 = vadd.f32 %v2977, %v3107
    %v3196 = vadd.f32 %v2978, %v3111
    %v3197 = vadd.f32 %v2979, %v3111
    %v3198 = vadd.f32 %v2980, %v3111
    %v3199 = vadd.f32 %v2981, %v3111
    %v3200 = vadd.f32 %v2982, %v3111
    %v3201 = vadd.f32 %v2983, %v3111
    %v3202 = vadd.f32 %v2984, %v3111
    %v3203 = vadd.f32 %v2985, %v3111
    %v3204 = vadd.f32 %v2986, %v3111
    %v3205 = vadd.f32 %v2987, %v3111
    %v3206 = vadd.f32 %v2988, %v3111
    %v3207 = vadd.f32 %v2989, %v3111
    %v3208 = vadd.f32 %v2990, %v3111
    %v3209 = vadd.f32 %v2991, %v3111
    %v3210 = vadd.f32 %v2992, %v3111
    %v3211 = vadd.f32 %v2993, %v3111
    %v3212 = vadd.f32 %v2994, %v3115
    %v3213 = vadd.f32 %v2995, %v3115
    %v3214 = vadd.f32 %v2996, %v3115
    %v3215 = vadd.f32 %v2997, %v3115
    %v3216 = vadd.f32 %v2998, %v3115
    %v3217 = vadd.f32 %v2999, %v3115
    %v3218 = vadd.f32 %v3000, %v3115
    %v3219 = vadd.f32 %v3001, %v3115
    %v3220 = vadd.f32 %v3002, %v3115
    %v3221 = vadd.f32 %v3003, %v3115
    %v3222 = vadd.f32 %v3004, %v3115
    %v3223 = vadd.f32 %v3005, %v3115
    %v3224 = vadd.f32 %v3006, %v3115
    %v3225 = vadd.f32 %v3007, %v3115
    %v3226 = vadd.f32 %v3008, %v3115
    %v3227 = vadd.f32 %v3009, %v3115
    %v3228 = vadd.f32 %v3010, %v3119
    %v3229 = vadd.f32 %v3011, %v3119
    %v3230 = vadd.f32 %v3012, %v3119
    %v3231 = vadd.f32 %v3013, %v3119
    %v3232 = vadd.f32 %v3014, %v3119
    %v3233 = vadd.f32 %v3015, %v3119
    %v3234 = vadd.f32 %v3016, %v3119
    %v3235 = vadd.f32 %v3017, %v3119
    %v3236 = vadd.f32 %v3018, %v3119
    %v3237 = vadd.f32 %v3019, %v3119
    %v3238 = vadd.f32 %v3020, %v3119
    %v3239 = vadd.f32 %v3021, %v3119
    %v3240 = vadd.f32 %v3022, %v3119
    %v3241 = vadd.f32 %v3023, %v3119
    %v3242 = vadd.f32 %v3024, %v3119
    %v3243 = vadd.f32 %v3025, %v3119
    %v3244 = vadd.f32 %v3026, %v3123
    %v3245 = vadd.f32 %v3027, %v3123
    %v3246 = vadd.f32 %v3028, %v3123
    %v3247 = vadd.f32 %v3029, %v3123
    %v3248 = vadd.f32 %v3030, %v3123
    %v3249 = vadd.f32 %v3031, %v3123
    %v3250 = vadd.f32 %v3032, %v3123
    %v3251 = vadd.f32 %v3033, %v3123
    %v3252 = vadd.f32 %v3034, %v3123
    %v3253 = vadd.f32 %v3035, %v3123
    %v3254 = vadd.f32 %v3036, %v3123
    %v3255 = vadd.f32 %v3037, %v3123
    %v3256 = vadd.f32 %v3038, %v3123
    %v3257 = vadd.f32 %v3039, %v3123
    %v3258 = vadd.f32 %v3040, %v3123
    %v3259 = vadd.f32 %v3041, %v3123
    %v3260 = vmax.f32 %v3132, 0.0
    %v3261 = vmax.f32 %v3133, 0.0
    %v3262 = vmax.f32 %v3134, 0.0
    %v3263 = vmax.f32 %v3135, 0.0
    %v3264 = vmax.f32 %v3136, 0.0
    %v3265 = vmax.f32 %v3137, 0.0
    %v3266 = vmax.f32 %v3138, 0.0
    %v3267 = vmax.f32 %v3139, 0.0
    %v3268 = vmax.f32 %v3140, 0.0
    %v3269 = vmax.f32 %v3141, 0.0
    %v3270 = vmax.f32 %v3142, 0.0
    %v3271 = vmax.f32 %v3143, 0.0
    %v3272 = vmax.f32 %v3144, 0.0
    %v3273 = vmax.f32 %v3145, 0.0
    %v3274 = vmax.f32 %v3146, 0.0
    %v3275 = vmax.f32 %v3147, 0.0
    %v3276 = vmax.f32 %v3148, 0.0
    %v3277 = vmax.f32 %v3149, 0.0
    %v3278 = vmax.f32 %v3150, 0.0
    %v3279 = vmax.f32 %v3151, 0.0
    %v3280 = vmax.f32 %v3152, 0.0
    %v3281 = vmax.f32 %v3153, 0.0
    %v3282 = vmax.f32 %v3154, 0.0
    %v3283 = vmax.f32 %v3155, 0.0
    %v3284 = vmax.f32 %v3156, 0.0
    %v3285 = vmax.f32 %v3157, 0.0
    %v3286 = vmax.f32 %v3158, 0.0
    %v3287 = vmax.f32 %v3159, 0.0
    %v3288 = vmax.f32 %v3160, 0.0
    %v3289 = vmax.f32 %v3161, 0.0
    %v3290 = vmax.f32 %v3162, 0.0
    %v3291 = vmax.f32 %v3163, 0.0
    %v3292 = vmax.f32 %v3164, 0.0
    %v3293 = vmax.f32 %v3165, 0.0
    %v3294 = vmax.f32 %v3166, 0.0
    %v3295 = vmax.f32 %v3167, 0.0
    %v3296 = vmax.f32 %v3168, 0.0
    %v3297 = vmax.f32 %v3169, 0.0
    %v3298 = vmax.f32 %v3170, 0.0
    %v3299 = vmax.f32 %v3171, 0.0
    %v3300 = vmax.f32 %v3172, 0.0
    %v3301 = vmax.f32 %v3173, 0.0
    %v3302 = vmax.f32 %v3174, 0.0
    %v3303 = vmax.f32 %v3175, 0.0
    %v3304 = vmax.f32 %v3176, 0.0
    %v3305 = vmax.f32 %v3177, 0.0
    %v3306 = vmax.f32 %v3178, 0.0
    %v3307 = vmax.f32 %v3179, 0.0
    %v3308 = vmax.f32 %v3180, 0.0
    %v3309 = vmax.f32 %v3181, 0.0
    %v3310 = vmax.f32 %v3182, 0.0
    %v3311 = vmax.f32 %v3183, 0.0
    %v3312 = vmax.f32 %v3184, 0.0
    %v3313 = vmax.f32 %v3185, 0.0
    %v3314 = vmax.f32 %v3186, 0.0
    %v3315 = vmax.f32 %v3187, 0.0
    %v3316 = vmax.f32 %v3188, 0.0
    %v3317 = vmax.f32 %v3189, 0.0
    %v3318 = vmax.f32 %v3190, 0.0
    %v3319 = vmax.f32 %v3191, 0.0
    %v3320 = vmax.f32 %v3192, 0.0
    %v3321 = vmax.f32 %v3193, 0.0
    %v3322 = vmax.f32 %v3194, 0.0
    %v3323 = vmax.f32 %v3195, 0.0
    %v3324 = vmax.f32 %v3196, 0.0
    %v3325 = vmax.f32 %v3197, 0.0
    %v3326 = vmax.f32 %v3198, 0.0
    %v3327 = vmax.f32 %v3199, 0.0
    %v3328 = vmax.f32 %v3200, 0.0
    %v3329 = vmax.f32 %v3201, 0.0
    %v3330 = vmax.f32 %v3202, 0.0
    %v3331 = vmax.f32 %v3203, 0.0
    %v3332 = vmax.f32 %v3204, 0.0
    %v3333 = vmax.f32 %v3205, 0.0
    %v3334 = vmax.f32 %v3206, 0.0
    %v3335 = vmax.f32 %v3207, 0.0
    %v3336 = vmax.f32 %v3208, 0.0
    %v3337 = vmax.f32 %v3209, 0.0
    %v3338 = vmax.f32 %v3210, 0.0
    %v3339 = vmax.f32 %v3211, 0.0
    %v3340 = vmax.f32 %v3212, 0.0
    %v3341 = vmax.f32 %v3213, 0.0
    %v3342 = vmax.f32 %v3214, 0.0
    %v3343 = vmax.f32 %v3215, 0.0
    %v3344 = vmax.f32 %v3216, 0.0
    %v3345 = vmax.f32 %v3217, 0.0
    %v3346 = vmax.f32 %v3218, 0.0
    %v3347 = vmax.f32 %v3219, 0.0
    %v3348 = vmax.f32 %v3220, 0.0
    %v3349 = vmax.f32 %v3221, 0.0
    %v3350 = vmax.f32 %v3222, 0.0
    %v3351 = vmax.f32 %v3223, 0.0
    %v3352 = vmax.f32 %v3224, 0.0
    %v3353 = vmax.f32 %v3225, 0.0
    %v3354 = vmax.f32 %v3226, 0.0
    %v3355 = vmax.f32 %v3227, 0.0
    %v3356 = vmax.f32 %v3228, 0.0
    %v3357 = vmax.f32 %v3229, 0.0
    %v3358 = vmax.f32 %v3230, 0.0
    %v3359 = vmax.f32 %v3231, 0.0
    %v3360 = vmax.f32 %v3232, 0.0
    %v3361 = vmax.f32 %v3233, 0.0
    %v3362 = vmax.f32 %v3234, 0.0
    %v3363 = vmax.f32 %v3235, 0.0
    %v3364 = vmax.f32 %v3236, 0.0
    %v3365 = vmax.f32 %v3237, 0.0
    %v3366 = vmax.f32 %v3238, 0.0
    %v3367 = vmax.f32 %v3239, 0.0
    %v3368 = vmax.f32 %v3240, 0.0
    %v3369 = vmax.f32 %v3241, 0.0
    %v3370 = vmax.f32 %v3242, 0.0
    %v3371 = vmax.f32 %v3243, 0.0
    %v3372 = vmax.f32 %v3244, 0.0
    %v3373 = vmax.f32 %v3245, 0.0
    %v3374 = vmax.f32 %v3246, 0.0
    %v3375 = vmax.f32 %v3247, 0.0
    %v3376 = vmax.f32 %v3248, 0.0
    %v3377 = vmax.f32 %v3249, 0.0
    %v3378 = vmax.f32 %v3250, 0.0
    %v3379 = vmax.f32 %v3251, 0.0
    %v3380 = vmax.f32 %v3252, 0.0
    %v3381 = vmax.f32 %v3253, 0.0
    %v3382 = vmax.f32 %v3254, 0.0
    %v3383 = vmax.f32 %v3255, 0.0
    %v3384 = vmax.f32 %v3256, 0.0
    %v3385 = vmax.f32 %v3257, 0.0
    %v3386 = vmax.f32 %v3258, 0.0
    %v3387 = vmax.f32 %v3259, 0.0
    %v3388 = vld [vmem:[%s16] sm:$0x1]
    %v3390 = vlaneseq
    %v3391 = vshrl.u32 %v3390, 7
    %v3392 = vsub.s32 0, %v3391
    %v3393 = vrot.slane %v3388, %v3392
    %v3395 = vmul.f32 %v3260, %v3393
    %v3396 = vmul.f32 %v3261, %v3393
    %v3397 = vmul.f32 %v3262, %v3393
    %v3398 = vmul.f32 %v3263, %v3393
    %v3399 = vmul.f32 %v3264, %v3393
    %v3400 = vmul.f32 %v3265, %v3393
    %v3401 = vmul.f32 %v3266, %v3393
    %v3402 = vmul.f32 %v3267, %v3393
    %v3403 = vmul.f32 %v3268, %v3393
    %v3404 = vmul.f32 %v3269, %v3393
    %v3405 = vmul.f32 %v3270, %v3393
    %v3406 = vmul.f32 %v3271, %v3393
    %v3407 = vmul.f32 %v3272, %v3393
    %v3408 = vmul.f32 %v3273, %v3393
    %v3409 = vmul.f32 %v3274, %v3393
    %v3410 = vmul.f32 %v3275, %v3393
    %v3411 = vmul.f32 %v3276, %v3393
    %v3412 = vmul.f32 %v3277, %v3393
    %v3413 = vmul.f32 %v3278, %v3393
    %v3414 = vmul.f32 %v3279, %v3393
    %v3415 = vmul.f32 %v3280, %v3393
    %v3416 = vmul.f32 %v3281, %v3393
    %v3417 = vmul.f32 %v3282, %v3393
    %v3418 = vmul.f32 %v3283, %v3393
    %v3419 = vmul.f32 %v3284, %v3393
    %v3420 = vmul.f32 %v3285, %v3393
    %v3421 = vmul.f32 %v3286, %v3393
    %v3422 = vmul.f32 %v3287, %v3393
    %v3423 = vmul.f32 %v3288, %v3393
    %v3424 = vmul.f32 %v3289, %v3393
    %v3425 = vmul.f32 %v3290, %v3393
    %v3426 = vmul.f32 %v3291, %v3393
    %v3427 = vmul.f32 %v3292, %v3393
    %v3428 = vmul.f32 %v3293, %v3393
    %v3429 = vmul.f32 %v3294, %v3393
    %v3430 = vmul.f32 %v3295, %v3393
    %v3431 = vmul.f32 %v3296, %v3393
    %v3432 = vmul.f32 %v3297, %v3393
    %v3433 = vmul.f32 %v3298, %v3393
    %v3434 = vmul.f32 %v3299, %v3393
    %v3435 = vmul.f32 %v3300, %v3393
    %v3436 = vmul.f32 %v3301, %v3393
    %v3437 = vmul.f32 %v3302, %v3393
    %v3438 = vmul.f32 %v3303, %v3393
    %v3439 = vmul.f32 %v3304, %v3393
    %v3440 = vmul.f32 %v3305, %v3393
    %v3441 = vmul.f32 %v3306, %v3393
    %v3442 = vmul.f32 %v3307, %v3393
    %v3443 = vmul.f32 %v3308, %v3393
    %v3444 = vmul.f32 %v3309, %v3393
    %v3445 = vmul.f32 %v3310, %v3393
    %v3446 = vmul.f32 %v3311, %v3393
    %v3447 = vmul.f32 %v3312, %v3393
    %v3448 = vmul.f32 %v3313, %v3393
    %v3449 = vmul.f32 %v3314, %v3393
    %v3450 = vmul.f32 %v3315, %v3393
    %v3451 = vmul.f32 %v3316, %v3393
    %v3452 = vmul.f32 %v3317, %v3393
    %v3453 = vmul.f32 %v3318, %v3393
    %v3454 = vmul.f32 %v3319, %v3393
    %v3455 = vmul.f32 %v3320, %v3393
    %v3456 = vmul.f32 %v3321, %v3393
    %v3457 = vmul.f32 %v3322, %v3393
    %v3458 = vmul.f32 %v3323, %v3393
    %v3459 = vmul.f32 %v3324, %v3393
    %v3460 = vmul.f32 %v3325, %v3393
    %v3461 = vmul.f32 %v3326, %v3393
    %v3462 = vmul.f32 %v3327, %v3393
    %v3463 = vmul.f32 %v3328, %v3393
    %v3464 = vmul.f32 %v3329, %v3393
    %v3465 = vmul.f32 %v3330, %v3393
    %v3466 = vmul.f32 %v3331, %v3393
    %v3467 = vmul.f32 %v3332, %v3393
    %v3468 = vmul.f32 %v3333, %v3393
    %v3469 = vmul.f32 %v3334, %v3393
    %v3470 = vmul.f32 %v3335, %v3393
    %v3471 = vmul.f32 %v3336, %v3393
    %v3472 = vmul.f32 %v3337, %v3393
    %v3473 = vmul.f32 %v3338, %v3393
    %v3474 = vmul.f32 %v3339, %v3393
    %v3475 = vmul.f32 %v3340, %v3393
    %v3476 = vmul.f32 %v3341, %v3393
    %v3477 = vmul.f32 %v3342, %v3393
    %v3478 = vmul.f32 %v3343, %v3393
    %v3479 = vmul.f32 %v3344, %v3393
    %v3480 = vmul.f32 %v3345, %v3393
    %v3481 = vmul.f32 %v3346, %v3393
    %v3482 = vmul.f32 %v3347, %v3393
    %v3483 = vmul.f32 %v3348, %v3393
    %v3484 = vmul.f32 %v3349, %v3393
    %v3485 = vmul.f32 %v3350, %v3393
    %v3486 = vmul.f32 %v3351, %v3393
    %v3487 = vmul.f32 %v3352, %v3393
    %v3488 = vmul.f32 %v3353, %v3393
    %v3489 = vmul.f32 %v3354, %v3393
    %v3490 = vmul.f32 %v3355, %v3393
    %v3491 = vmul.f32 %v3356, %v3393
    %v3492 = vmul.f32 %v3357, %v3393
    %v3493 = vmul.f32 %v3358, %v3393
    %v3494 = vmul.f32 %v3359, %v3393
    %v3495 = vmul.f32 %v3360, %v3393
    %v3496 = vmul.f32 %v3361, %v3393
    %v3497 = vmul.f32 %v3362, %v3393
    %v3498 = vmul.f32 %v3363, %v3393
    %v3499 = vmul.f32 %v3364, %v3393
    %v3500 = vmul.f32 %v3365, %v3393
    %v3501 = vmul.f32 %v3366, %v3393
    %v3502 = vmul.f32 %v3367, %v3393
    %v3503 = vmul.f32 %v3368, %v3393
    %v3504 = vmul.f32 %v3369, %v3393
    %v3505 = vmul.f32 %v3370, %v3393
    %v3506 = vmul.f32 %v3371, %v3393
    %v3507 = vmul.f32 %v3372, %v3393
    %v3508 = vmul.f32 %v3373, %v3393
    %v3509 = vmul.f32 %v3374, %v3393
    %v3510 = vmul.f32 %v3375, %v3393
    %v3511 = vmul.f32 %v3376, %v3393
    %v3512 = vmul.f32 %v3377, %v3393
    %v3513 = vmul.f32 %v3378, %v3393
    %v3514 = vmul.f32 %v3379, %v3393
    %v3515 = vmul.f32 %v3380, %v3393
    %v3516 = vmul.f32 %v3381, %v3393
    %v3517 = vmul.f32 %v3382, %v3393
    %v3518 = vmul.f32 %v3383, %v3393
    %v3519 = vmul.f32 %v3384, %v3393
    %v3520 = vmul.f32 %v3385, %v3393
    %v3521 = vmul.f32 %v3386, %v3393
    %v3522 = vmul.f32 %v3387, %v3393
    %3523 = vadd.xlane.f32.xlu0 %v3395
    %v3524 = vpop.xlane.xlu0 %3523
    %3525 = vadd.xlane.f32.xlu0 %v3396
    %v3526 = vpop.xlane.xlu0 %3525
    %3527 = vadd.xlane.f32.xlu0 %v3397
    %v3528 = vpop.xlane.xlu0 %3527
    %3529 = vadd.xlane.f32.xlu0 %v3398
    %v3530 = vpop.xlane.xlu0 %3529
    %3531 = vadd.xlane.f32.xlu0 %v3399
    %v3532 = vpop.xlane.xlu0 %3531
    %3533 = vadd.xlane.f32.xlu0 %v3400
    %v3534 = vpop.xlane.xlu0 %3533
    %3535 = vadd.xlane.f32.xlu0 %v3401
    %v3536 = vpop.xlane.xlu0 %3535
    %3537 = vadd.xlane.f32.xlu0 %v3402
    %v3538 = vpop.xlane.xlu0 %3537
    %3539 = vadd.xlane.f32.xlu0 %v3403
    %v3540 = vpop.xlane.xlu0 %3539
    %3541 = vadd.xlane.f32.xlu0 %v3404
    %v3542 = vpop.xlane.xlu0 %3541
    %3543 = vadd.xlane.f32.xlu0 %v3405
    %v3544 = vpop.xlane.xlu0 %3543
    %3545 = vadd.xlane.f32.xlu0 %v3406
    %v3546 = vpop.xlane.xlu0 %3545
    %3547 = vadd.xlane.f32.xlu0 %v3407
    %v3548 = vpop.xlane.xlu0 %3547
    %3549 = vadd.xlane.f32.xlu0 %v3408
    %v3550 = vpop.xlane.xlu0 %3549
    %3551 = vadd.xlane.f32.xlu0 %v3409
    %v3552 = vpop.xlane.xlu0 %3551
    %3553 = vadd.xlane.f32.xlu0 %v3410
    %v3554 = vpop.xlane.xlu0 %3553
    %3555 = vadd.xlane.f32.xlu0 %v3411
    %v3556 = vpop.xlane.xlu0 %3555
    %3557 = vadd.xlane.f32.xlu0 %v3412
    %v3558 = vpop.xlane.xlu0 %3557
    %3559 = vadd.xlane.f32.xlu0 %v3413
    %v3560 = vpop.xlane.xlu0 %3559
    %3561 = vadd.xlane.f32.xlu0 %v3414
    %v3562 = vpop.xlane.xlu0 %3561
    %3563 = vadd.xlane.f32.xlu0 %v3415
    %v3564 = vpop.xlane.xlu0 %3563
    %3565 = vadd.xlane.f32.xlu0 %v3416
    %v3566 = vpop.xlane.xlu0 %3565
    %3567 = vadd.xlane.f32.xlu0 %v3417
    %v3568 = vpop.xlane.xlu0 %3567
    %3569 = vadd.xlane.f32.xlu0 %v3418
    %v3570 = vpop.xlane.xlu0 %3569
    %3571 = vadd.xlane.f32.xlu0 %v3419
    %v3572 = vpop.xlane.xlu0 %3571
    %3573 = vadd.xlane.f32.xlu0 %v3420
    %v3574 = vpop.xlane.xlu0 %3573
    %3575 = vadd.xlane.f32.xlu0 %v3421
    %v3576 = vpop.xlane.xlu0 %3575
    %3577 = vadd.xlane.f32.xlu0 %v3422
    %v3578 = vpop.xlane.xlu0 %3577
    %3579 = vadd.xlane.f32.xlu0 %v3423
    %v3580 = vpop.xlane.xlu0 %3579
    %3581 = vadd.xlane.f32.xlu0 %v3424
    %v3582 = vpop.xlane.xlu0 %3581
    %3583 = vadd.xlane.f32.xlu0 %v3425
    %v3584 = vpop.xlane.xlu0 %3583
    %3585 = vadd.xlane.f32.xlu0 %v3426
    %v3586 = vpop.xlane.xlu0 %3585
    %3587 = vadd.xlane.f32.xlu0 %v3427
    %v3588 = vpop.xlane.xlu0 %3587
    %3589 = vadd.xlane.f32.xlu0 %v3428
    %v3590 = vpop.xlane.xlu0 %3589
    %3591 = vadd.xlane.f32.xlu0 %v3429
    %v3592 = vpop.xlane.xlu0 %3591
    %3593 = vadd.xlane.f32.xlu0 %v3430
    %v3594 = vpop.xlane.xlu0 %3593
    %3595 = vadd.xlane.f32.xlu0 %v3431
    %v3596 = vpop.xlane.xlu0 %3595
    %3597 = vadd.xlane.f32.xlu0 %v3432
    %v3598 = vpop.xlane.xlu0 %3597
    %3599 = vadd.xlane.f32.xlu0 %v3433
    %v3600 = vpop.xlane.xlu0 %3599
    %3601 = vadd.xlane.f32.xlu0 %v3434
    %v3602 = vpop.xlane.xlu0 %3601
    %3603 = vadd.xlane.f32.xlu0 %v3435
    %v3604 = vpop.xlane.xlu0 %3603
    %3605 = vadd.xlane.f32.xlu0 %v3436
    %v3606 = vpop.xlane.xlu0 %3605
    %3607 = vadd.xlane.f32.xlu0 %v3437
    %v3608 = vpop.xlane.xlu0 %3607
    %3609 = vadd.xlane.f32.xlu0 %v3438
    %v3610 = vpop.xlane.xlu0 %3609
    %3611 = vadd.xlane.f32.xlu0 %v3439
    %v3612 = vpop.xlane.xlu0 %3611
    %3613 = vadd.xlane.f32.xlu0 %v3440
    %v3614 = vpop.xlane.xlu0 %3613
    %3615 = vadd.xlane.f32.xlu0 %v3441
    %v3616 = vpop.xlane.xlu0 %3615
    %3617 = vadd.xlane.f32.xlu0 %v3442
    %v3618 = vpop.xlane.xlu0 %3617
    %3619 = vadd.xlane.f32.xlu0 %v3443
    %v3620 = vpop.xlane.xlu0 %3619
    %3621 = vadd.xlane.f32.xlu0 %v3444
    %v3622 = vpop.xlane.xlu0 %3621
    %3623 = vadd.xlane.f32.xlu0 %v3445
    %v3624 = vpop.xlane.xlu0 %3623
    %3625 = vadd.xlane.f32.xlu0 %v3446
    %v3626 = vpop.xlane.xlu0 %3625
    %3627 = vadd.xlane.f32.xlu0 %v3447
    %v3628 = vpop.xlane.xlu0 %3627
    %3629 = vadd.xlane.f32.xlu0 %v3448
    %v3630 = vpop.xlane.xlu0 %3629
    %3631 = vadd.xlane.f32.xlu0 %v3449
    %v3632 = vpop.xlane.xlu0 %3631
    %3633 = vadd.xlane.f32.xlu0 %v3450
    %v3634 = vpop.xlane.xlu0 %3633
    %3635 = vadd.xlane.f32.xlu0 %v3451
    %v3636 = vpop.xlane.xlu0 %3635
    %3637 = vadd.xlane.f32.xlu0 %v3452
    %v3638 = vpop.xlane.xlu0 %3637
    %3639 = vadd.xlane.f32.xlu0 %v3453
    %v3640 = vpop.xlane.xlu0 %3639
    %3641 = vadd.xlane.f32.xlu0 %v3454
    %v3642 = vpop.xlane.xlu0 %3641
    %3643 = vadd.xlane.f32.xlu0 %v3455
    %v3644 = vpop.xlane.xlu0 %3643
    %3645 = vadd.xlane.f32.xlu0 %v3456
    %v3646 = vpop.xlane.xlu0 %3645
    %3647 = vadd.xlane.f32.xlu0 %v3457
    %v3648 = vpop.xlane.xlu0 %3647
    %3649 = vadd.xlane.f32.xlu0 %v3458
    %v3650 = vpop.xlane.xlu0 %3649
    %3651 = vadd.xlane.f32.xlu0 %v3459
    %v3652 = vpop.xlane.xlu0 %3651
    %3653 = vadd.xlane.f32.xlu0 %v3460
    %v3654 = vpop.xlane.xlu0 %3653
    %3655 = vadd.xlane.f32.xlu0 %v3461
    %v3656 = vpop.xlane.xlu0 %3655
    %3657 = vadd.xlane.f32.xlu0 %v3462
    %v3658 = vpop.xlane.xlu0 %3657
    %3659 = vadd.xlane.f32.xlu0 %v3463
    %v3660 = vpop.xlane.xlu0 %3659
    %3661 = vadd.xlane.f32.xlu0 %v3464
    %v3662 = vpop.xlane.xlu0 %3661
    %3663 = vadd.xlane.f32.xlu0 %v3465
    %v3664 = vpop.xlane.xlu0 %3663
    %3665 = vadd.xlane.f32.xlu0 %v3466
    %v3666 = vpop.xlane.xlu0 %3665
    %3667 = vadd.xlane.f32.xlu0 %v3467
    %v3668 = vpop.xlane.xlu0 %3667
    %3669 = vadd.xlane.f32.xlu0 %v3468
    %v3670 = vpop.xlane.xlu0 %3669
    %3671 = vadd.xlane.f32.xlu0 %v3469
    %v3672 = vpop.xlane.xlu0 %3671
    %3673 = vadd.xlane.f32.xlu0 %v3470
    %v3674 = vpop.xlane.xlu0 %3673
    %3675 = vadd.xlane.f32.xlu0 %v3471
    %v3676 = vpop.xlane.xlu0 %3675
    %3677 = vadd.xlane.f32.xlu0 %v3472
    %v3678 = vpop.xlane.xlu0 %3677
    %3679 = vadd.xlane.f32.xlu0 %v3473
    %v3680 = vpop.xlane.xlu0 %3679
    %3681 = vadd.xlane.f32.xlu0 %v3474
    %v3682 = vpop.xlane.xlu0 %3681
    %3683 = vadd.xlane.f32.xlu0 %v3475
    %v3684 = vpop.xlane.xlu0 %3683
    %3685 = vadd.xlane.f32.xlu0 %v3476
    %v3686 = vpop.xlane.xlu0 %3685
    %3687 = vadd.xlane.f32.xlu0 %v3477
    %v3688 = vpop.xlane.xlu0 %3687
    %3689 = vadd.xlane.f32.xlu0 %v3478
    %v3690 = vpop.xlane.xlu0 %3689
    %3691 = vadd.xlane.f32.xlu0 %v3479
    %v3692 = vpop.xlane.xlu0 %3691
    %3693 = vadd.xlane.f32.xlu0 %v3480
    %v3694 = vpop.xlane.xlu0 %3693
    %3695 = vadd.xlane.f32.xlu0 %v3481
    %v3696 = vpop.xlane.xlu0 %3695
    %3697 = vadd.xlane.f32.xlu0 %v3482
    %v3698 = vpop.xlane.xlu0 %3697
    %3699 = vadd.xlane.f32.xlu0 %v3483
    %v3700 = vpop.xlane.xlu0 %3699
    %3701 = vadd.xlane.f32.xlu0 %v3484
    %v3702 = vpop.xlane.xlu0 %3701
    %3703 = vadd.xlane.f32.xlu0 %v3485
    %v3704 = vpop.xlane.xlu0 %3703
    %3705 = vadd.xlane.f32.xlu0 %v3486
    %v3706 = vpop.xlane.xlu0 %3705
    %3707 = vadd.xlane.f32.xlu0 %v3487
    %v3708 = vpop.xlane.xlu0 %3707
    %3709 = vadd.xlane.f32.xlu0 %v3488
    %v3710 = vpop.xlane.xlu0 %3709
    %3711 = vadd.xlane.f32.xlu0 %v3489
    %v3712 = vpop.xlane.xlu0 %3711
    %3713 = vadd.xlane.f32.xlu0 %v3490
    %v3714 = vpop.xlane.xlu0 %3713
    %3715 = vadd.xlane.f32.xlu0 %v3491
    %v3716 = vpop.xlane.xlu0 %3715
    %3717 = vadd.xlane.f32.xlu0 %v3492
    %v3718 = vpop.xlane.xlu0 %3717
    %3719 = vadd.xlane.f32.xlu0 %v3493
    %v3720 = vpop.xlane.xlu0 %3719
    %3721 = vadd.xlane.f32.xlu0 %v3494
    %v3722 = vpop.xlane.xlu0 %3721
    %3723 = vadd.xlane.f32.xlu0 %v3495
    %v3724 = vpop.xlane.xlu0 %3723
    %3725 = vadd.xlane.f32.xlu0 %v3496
    %v3726 = vpop.xlane.xlu0 %3725
    %3727 = vadd.xlane.f32.xlu0 %v3497
    %v3728 = vpop.xlane.xlu0 %3727
    %3729 = vadd.xlane.f32.xlu0 %v3498
    %v3730 = vpop.xlane.xlu0 %3729
    %3731 = vadd.xlane.f32.xlu0 %v3499
    %v3732 = vpop.xlane.xlu0 %3731
    %3733 = vadd.xlane.f32.xlu0 %v3500
    %v3734 = vpop.xlane.xlu0 %3733
    %3735 = vadd.xlane.f32.xlu0 %v3501
    %v3736 = vpop.xlane.xlu0 %3735
    %3737 = vadd.xlane.f32.xlu0 %v3502
    %v3738 = vpop.xlane.xlu0 %3737
    %3739 = vadd.xlane.f32.xlu0 %v3503
    %v3740 = vpop.xlane.xlu0 %3739
    %3741 = vadd.xlane.f32.xlu0 %v3504
    %v3742 = vpop.xlane.xlu0 %3741
    %3743 = vadd.xlane.f32.xlu0 %v3505
    %v3744 = vpop.xlane.xlu0 %3743
    %3745 = vadd.xlane.f32.xlu0 %v3506
    %v3746 = vpop.xlane.xlu0 %3745
    %3747 = vadd.xlane.f32.xlu0 %v3507
    %v3748 = vpop.xlane.xlu0 %3747
    %3749 = vadd.xlane.f32.xlu0 %v3508
    %v3750 = vpop.xlane.xlu0 %3749
    %3751 = vadd.xlane.f32.xlu0 %v3509
    %v3752 = vpop.xlane.xlu0 %3751
    %3753 = vadd.xlane.f32.xlu0 %v3510
    %v3754 = vpop.xlane.xlu0 %3753
    %3755 = vadd.xlane.f32.xlu0 %v3511
    %v3756 = vpop.xlane.xlu0 %3755
    %3757 = vadd.xlane.f32.xlu0 %v3512
    %v3758 = vpop.xlane.xlu0 %3757
    %3759 = vadd.xlane.f32.xlu0 %v3513
    %v3760 = vpop.xlane.xlu0 %3759
    %3761 = vadd.xlane.f32.xlu0 %v3514
    %v3762 = vpop.xlane.xlu0 %3761
    %3763 = vadd.xlane.f32.xlu0 %v3515
    %v3764 = vpop.xlane.xlu0 %3763
    %3765 = vadd.xlane.f32.xlu0 %v3516
    %v3766 = vpop.xlane.xlu0 %3765
    %3767 = vadd.xlane.f32.xlu0 %v3517
    %v3768 = vpop.xlane.xlu0 %3767
    %3769 = vadd.xlane.f32.xlu0 %v3518
    %v3770 = vpop.xlane.xlu0 %3769
    %3771 = vadd.xlane.f32.xlu0 %v3519
    %v3772 = vpop.xlane.xlu0 %3771
    %3773 = vadd.xlane.f32.xlu0 %v3520
    %v3774 = vpop.xlane.xlu0 %3773
    %3775 = vadd.xlane.f32.xlu0 %v3521
    %v3776 = vpop.xlane.xlu0 %3775
    %3777 = vadd.xlane.f32.xlu0 %v3522
    %v3778 = vpop.xlane.xlu0 %3777
    %v3779 = vlaneseq
    %v3780 = vand.u32 %v3779, 127
    %v3781 = vld [vmem:[%s1] sm:$0xff]
    %3782 = vset.pattern.permute.xlu0 0
    %3783 = vperm.xlu0 %3782, %v3781
    %v3784 = vpop.permute.xlu0 %3783
    %vm3785 = vcmp.ge.s32.totalorder %v3780, %v3784
    %v3914 = vlaneseq
    %v3915 = vshrl.u32 %v3914, 7
    %v3916 = vsub.s32 %v3780, %v3915
    %v3917 = vrot.slane %v3524, %v3916
    %v3918 = vadd.s32 %v3780, 4294967288
    %v3919 = vlaneseq
    %v3920 = vshrl.u32 %v3919, 7
    %v3921 = vsub.s32 %v3918, %v3920
    %v3922 = vrot.slane %v3526, %v3921
    %vm3923 = vcmask 130112
    %v3924 = vsel %vm3923, %v3922, %v3917
    %v3925 = vadd.s32 %v3780, 4294967280
    %v3926 = vlaneseq
    %v3927 = vshrl.u32 %v3926, 7
    %v3928 = vsub.s32 %v3925, %v3927
    %v3929 = vrot.slane %v3528, %v3928
    %vm3930 = vcmask 195712
    %v3931 = vsel %vm3930, %v3929, %v3924
    %v3932 = vadd.s32 %v3780, 4294967272
    %v3933 = vlaneseq
    %v3934 = vshrl.u32 %v3933, 7
    %v3935 = vsub.s32 %v3932, %v3934
    %v3936 = vrot.slane %v3530, %v3935
    %vm3937 = vcmask 261312
    %v3938 = vsel %vm3937, %v3936, %v3931
    %v3939 = vadd.s32 %v3780, 4294967264
    %v3940 = vlaneseq
    %v3941 = vshrl.u32 %v3940, 7
    %v3942 = vsub.s32 %v3939, %v3941
    %v3943 = vrot.slane %v3532, %v3942
    %vm3944 = vcmask 326912
    %v3945 = vsel %vm3944, %v3943, %v3938
    %v3946 = vadd.s32 %v3780, 4294967256
    %v3947 = vlaneseq
    %v3948 = vshrl.u32 %v3947, 7
    %v3949 = vsub.s32 %v3946, %v3948
    %v3950 = vrot.slane %v3534, %v3949
    %vm3951 = vcmask 392512
    %v3952 = vsel %vm3951, %v3950, %v3945
    %v3953 = vadd.s32 %v3780, 4294967248
    %v3954 = vlaneseq
    %v3955 = vshrl.u32 %v3954, 7
    %v3956 = vsub.s32 %v3953, %v3955
    %v3957 = vrot.slane %v3536, %v3956
    %vm3958 = vcmask 458112
    %v3959 = vsel %vm3958, %v3957, %v3952
    %v3960 = vadd.s32 %v3780, 4294967240
    %v3961 = vlaneseq
    %v3962 = vshrl.u32 %v3961, 7
    %v3963 = vsub.s32 %v3960, %v3962
    %v3964 = vrot.slane %v3538, %v3963
    %vm3965 = vcmask 523712
    %v3966 = vsel %vm3965, %v3964, %v3959
    %v3967 = vadd.s32 %v3780, 4294967232
    %v3968 = vlaneseq
    %v3969 = vshrl.u32 %v3968, 7
    %v3970 = vsub.s32 %v3967, %v3969
    %v3971 = vrot.slane %v3540, %v3970
    %vm3972 = vcmask 589312
    %v3973 = vsel %vm3972, %v3971, %v3966
    %v3974 = vadd.s32 %v3780, 4294967224
    %v3975 = vlaneseq
    %v3976 = vshrl.u32 %v3975, 7
    %v3977 = vsub.s32 %v3974, %v3976
    %v3978 = vrot.slane %v3542, %v3977
    %vm3979 = vcmask 654912
    %v3980 = vsel %vm3979, %v3978, %v3973
    %v3981 = vadd.s32 %v3780, 4294967216
    %v3982 = vlaneseq
    %v3983 = vshrl.u32 %v3982, 7
    %v3984 = vsub.s32 %v3981, %v3983
    %v3985 = vrot.slane %v3544, %v3984
    %vm3986 = vcmask 720512
    %v3987 = vsel %vm3986, %v3985, %v3980
    %v3988 = vadd.s32 %v3780, 4294967208
    %v3989 = vlaneseq
    %v3990 = vshrl.u32 %v3989, 7
    %v3991 = vsub.s32 %v3988, %v3990
    %v3992 = vrot.slane %v3546, %v3991
    %vm3993 = vcmask 786112
    %v3994 = vsel %vm3993, %v3992, %v3987
    %v3995 = vadd.s32 %v3780, 4294967200
    %v3996 = vlaneseq
    %v3997 = vshrl.u32 %v3996, 7
    %v3998 = vsub.s32 %v3995, %v3997
    %v3999 = vrot.slane %v3548, %v3998
    %vm4000 = vcmask 851712
    %v4001 = vsel %vm4000, %v3999, %v3994
    %v4002 = vadd.s32 %v3780, 4294967192
    %v4003 = vlaneseq
    %v4004 = vshrl.u32 %v4003, 7
    %v4005 = vsub.s32 %v4002, %v4004
    %v4006 = vrot.slane %v3550, %v4005
    %vm4007 = vcmask 917312
    %v4008 = vsel %vm4007, %v4006, %v4001
    %v4009 = vadd.s32 %v3780, 4294967184
    %v4010 = vlaneseq
    %v4011 = vshrl.u32 %v4010, 7
    %v4012 = vsub.s32 %v4009, %v4011
    %v4013 = vrot.slane %v3552, %v4012
    %vm4014 = vcmask 982912
    %v4015 = vsel %vm4014, %v4013, %v4008
    %v4016 = vadd.s32 %v3780, 4294967176
    %v4017 = vlaneseq
    %v4018 = vshrl.u32 %v4017, 7
    %v4019 = vsub.s32 %v4016, %v4018
    %v4020 = vrot.slane %v3554, %v4019
    %vm4021 = vcmask 1048512
    %v4022 = vsel %vm4021, %v4020, %v4015
    %v4023 = vlaneseq
    %v4024 = vshrl.u32 %v4023, 7
    %v4025 = vsub.s32 %v3780, %v4024
    %v4026 = vrot.slane %v3556, %v4025
    %v4027 = vlaneseq
    %v4028 = vshrl.u32 %v4027, 7
    %v4029 = vsub.s32 %v3918, %v4028
    %v4030 = vrot.slane %v3558, %v4029
    %v4031 = vsel %vm3923, %v4030, %v4026
    %v4032 = vlaneseq
    %v4033 = vshrl.u32 %v4032, 7
    %v4034 = vsub.s32 %v3925, %v4033
    %v4035 = vrot.slane %v3560, %v4034
    %v4036 = vsel %vm3930, %v4035, %v4031
    %v4037 = vlaneseq
    %v4038 = vshrl.u32 %v4037, 7
    %v4039 = vsub.s32 %v3932, %v4038
    %v4040 = vrot.slane %v3562, %v4039
    %v4041 = vsel %vm3937, %v4040, %v4036
    %v4042 = vlaneseq
    %v4043 = vshrl.u32 %v4042, 7
    %v4044 = vsub.s32 %v3939, %v4043
    %v4045 = vrot.slane %v3564, %v4044
    %v4046 = vsel %vm3944, %v4045, %v4041
    %v4047 = vlaneseq
    %v4048 = vshrl.u32 %v4047, 7
    %v4049 = vsub.s32 %v3946, %v4048
    %v4050 = vrot.slane %v3566, %v4049
    %v4051 = vsel %vm3951, %v4050, %v4046
    %v4052 = vlaneseq
    %v4053 = vshrl.u32 %v4052, 7
    %v4054 = vsub.s32 %v3953, %v4053
    %v4055 = vrot.slane %v3568, %v4054
    %v4056 = vsel %vm3958, %v4055, %v4051
    %v4057 = vlaneseq
    %v4058 = vshrl.u32 %v4057, 7
    %v4059 = vsub.s32 %v3960, %v4058
    %v4060 = vrot.slane %v3570, %v4059
    %v4061 = vsel %vm3965, %v4060, %v4056
    %v4062 = vlaneseq
    %v4063 = vshrl.u32 %v4062, 7
    %v4064 = vsub.s32 %v3967, %v4063
    %v4065 = vrot.slane %v3572, %v4064
    %v4066 = vsel %vm3972, %v4065, %v4061
    %v4067 = vlaneseq
    %v4068 = vshrl.u32 %v4067, 7
    %v4069 = vsub.s32 %v3974, %v4068
    %v4070 = vrot.slane %v3574, %v4069
    %v4071 = vsel %vm3979, %v4070, %v4066
    %v4072 = vlaneseq
    %v4073 = vshrl.u32 %v4072, 7
    %v4074 = vsub.s32 %v3981, %v4073
    %v4075 = vrot.slane %v3576, %v4074
    %v4076 = vsel %vm3986, %v4075, %v4071
    %v4077 = vlaneseq
    %v4078 = vshrl.u32 %v4077, 7
    %v4079 = vsub.s32 %v3988, %v4078
    %v4080 = vrot.slane %v3578, %v4079
    %v4081 = vsel %vm3993, %v4080, %v4076
    %v4082 = vlaneseq
    %v4083 = vshrl.u32 %v4082, 7
    %v4084 = vsub.s32 %v3995, %v4083
    %v4085 = vrot.slane %v3580, %v4084
    %v4086 = vsel %vm4000, %v4085, %v4081
    %v4087 = vlaneseq
    %v4088 = vshrl.u32 %v4087, 7
    %v4089 = vsub.s32 %v4002, %v4088
    %v4090 = vrot.slane %v3582, %v4089
    %v4091 = vsel %vm4007, %v4090, %v4086
    %v4092 = vlaneseq
    %v4093 = vshrl.u32 %v4092, 7
    %v4094 = vsub.s32 %v4009, %v4093
    %v4095 = vrot.slane %v3584, %v4094
    %v4096 = vsel %vm4014, %v4095, %v4091
    %v4097 = vlaneseq
    %v4098 = vshrl.u32 %v4097, 7
    %v4099 = vsub.s32 %v4016, %v4098
    %v4100 = vrot.slane %v3586, %v4099
    %v4101 = vsel %vm4021, %v4100, %v4096
    %v4102 = vlaneseq
    %v4103 = vshrl.u32 %v4102, 7
    %v4104 = vsub.s32 %v3780, %v4103
    %v4105 = vrot.slane %v3588, %v4104
    %v4106 = vlaneseq
    %v4107 = vshrl.u32 %v4106, 7
    %v4108 = vsub.s32 %v3918, %v4107
    %v4109 = vrot.slane %v3590, %v4108
    %v4110 = vsel %vm3923, %v4109, %v4105
    %v4111 = vlaneseq
    %v4112 = vshrl.u32 %v4111, 7
    %v4113 = vsub.s32 %v3925, %v4112
    %v4114 = vrot.slane %v3592, %v4113
    %v4115 = vsel %vm3930, %v4114, %v4110
    %v4116 = vlaneseq
    %v4117 = vshrl.u32 %v4116, 7
    %v4118 = vsub.s32 %v3932, %v4117
    %v4119 = vrot.slane %v3594, %v4118
    %v4120 = vsel %vm3937, %v4119, %v4115
    %v4121 = vlaneseq
    %v4122 = vshrl.u32 %v4121, 7
    %v4123 = vsub.s32 %v3939, %v4122
    %v4124 = vrot.slane %v3596, %v4123
    %v4125 = vsel %vm3944, %v4124, %v4120
    %v4126 = vlaneseq
    %v4127 = vshrl.u32 %v4126, 7
    %v4128 = vsub.s32 %v3946, %v4127
    %v4129 = vrot.slane %v3598, %v4128
    %v4130 = vsel %vm3951, %v4129, %v4125
    %v4131 = vlaneseq
    %v4132 = vshrl.u32 %v4131, 7
    %v4133 = vsub.s32 %v3953, %v4132
    %v4134 = vrot.slane %v3600, %v4133
    %v4135 = vsel %vm3958, %v4134, %v4130
    %v4136 = vlaneseq
    %v4137 = vshrl.u32 %v4136, 7
    %v4138 = vsub.s32 %v3960, %v4137
    %v4139 = vrot.slane %v3602, %v4138
    %v4140 = vsel %vm3965, %v4139, %v4135
    %v4141 = vlaneseq
    %v4142 = vshrl.u32 %v4141, 7
    %v4143 = vsub.s32 %v3967, %v4142
    %v4144 = vrot.slane %v3604, %v4143
    %v4145 = vsel %vm3972, %v4144, %v4140
    %v4146 = vlaneseq
    %v4147 = vshrl.u32 %v4146, 7
    %v4148 = vsub.s32 %v3974, %v4147
    %v4149 = vrot.slane %v3606, %v4148
    %v4150 = vsel %vm3979, %v4149, %v4145
    %v4151 = vlaneseq
    %v4152 = vshrl.u32 %v4151, 7
    %v4153 = vsub.s32 %v3981, %v4152
    %v4154 = vrot.slane %v3608, %v4153
    %v4155 = vsel %vm3986, %v4154, %v4150
    %v4156 = vlaneseq
    %v4157 = vshrl.u32 %v4156, 7
    %v4158 = vsub.s32 %v3988, %v4157
    %v4159 = vrot.slane %v3610, %v4158
    %v4160 = vsel %vm3993, %v4159, %v4155
    %v4161 = vlaneseq
    %v4162 = vshrl.u32 %v4161, 7
    %v4163 = vsub.s32 %v3995, %v4162
    %v4164 = vrot.slane %v3612, %v4163
    %v4165 = vsel %vm4000, %v4164, %v4160
    %v4166 = vlaneseq
    %v4167 = vshrl.u32 %v4166, 7
    %v4168 = vsub.s32 %v4002, %v4167
    %v4169 = vrot.slane %v3614, %v4168
    %v4170 = vsel %vm4007, %v4169, %v4165
    %v4171 = vlaneseq
    %v4172 = vshrl.u32 %v4171, 7
    %v4173 = vsub.s32 %v4009, %v4172
    %v4174 = vrot.slane %v3616, %v4173
    %v4175 = vsel %vm4014, %v4174, %v4170
    %v4176 = vlaneseq
    %v4177 = vshrl.u32 %v4176, 7
    %v4178 = vsub.s32 %v4016, %v4177
    %v4179 = vrot.slane %v3618, %v4178
    %v4180 = vsel %vm4021, %v4179, %v4175
    %v4181 = vlaneseq
    %v4182 = vshrl.u32 %v4181, 7
    %v4183 = vsub.s32 %v3780, %v4182
    %v4184 = vrot.slane %v3620, %v4183
    %v4185 = vlaneseq
    %v4186 = vshrl.u32 %v4185, 7
    %v4187 = vsub.s32 %v3918, %v4186
    %v4188 = vrot.slane %v3622, %v4187
    %v4189 = vsel %vm3923, %v4188, %v4184
    %v4190 = vlaneseq
    %v4191 = vshrl.u32 %v4190, 7
    %v4192 = vsub.s32 %v3925, %v4191
    %v4193 = vrot.slane %v3624, %v4192
    %v4194 = vsel %vm3930, %v4193, %v4189
    %v4195 = vlaneseq
    %v4196 = vshrl.u32 %v4195, 7
    %v4197 = vsub.s32 %v3932, %v4196
    %v4198 = vrot.slane %v3626, %v4197
    %v4199 = vsel %vm3937, %v4198, %v4194
    %v4200 = vlaneseq
    %v4201 = vshrl.u32 %v4200, 7
    %v4202 = vsub.s32 %v3939, %v4201
    %v4203 = vrot.slane %v3628, %v4202
    %v4204 = vsel %vm3944, %v4203, %v4199
    %v4205 = vlaneseq
    %v4206 = vshrl.u32 %v4205, 7
    %v4207 = vsub.s32 %v3946, %v4206
    %v4208 = vrot.slane %v3630, %v4207
    %v4209 = vsel %vm3951, %v4208, %v4204
    %v4210 = vlaneseq
    %v4211 = vshrl.u32 %v4210, 7
    %v4212 = vsub.s32 %v3953, %v4211
    %v4213 = vrot.slane %v3632, %v4212
    %v4214 = vsel %vm3958, %v4213, %v4209
    %v4215 = vlaneseq
    %v4216 = vshrl.u32 %v4215, 7
    %v4217 = vsub.s32 %v3960, %v4216
    %v4218 = vrot.slane %v3634, %v4217
    %v4219 = vsel %vm3965, %v4218, %v4214
    %v4220 = vlaneseq
    %v4221 = vshrl.u32 %v4220, 7
    %v4222 = vsub.s32 %v3967, %v4221
    %v4223 = vrot.slane %v3636, %v4222
    %v4224 = vsel %vm3972, %v4223, %v4219
    %v4225 = vlaneseq
    %v4226 = vshrl.u32 %v4225, 7
    %v4227 = vsub.s32 %v3974, %v4226
    %v4228 = vrot.slane %v3638, %v4227
    %v4229 = vsel %vm3979, %v4228, %v4224
    %v4230 = vlaneseq
    %v4231 = vshrl.u32 %v4230, 7
    %v4232 = vsub.s32 %v3981, %v4231
    %v4233 = vrot.slane %v3640, %v4232
    %v4234 = vsel %vm3986, %v4233, %v4229
    %v4235 = vlaneseq
    %v4236 = vshrl.u32 %v4235, 7
    %v4237 = vsub.s32 %v3988, %v4236
    %v4238 = vrot.slane %v3642, %v4237
    %v4239 = vsel %vm3993, %v4238, %v4234
    %v4240 = vlaneseq
    %v4241 = vshrl.u32 %v4240, 7
    %v4242 = vsub.s32 %v3995, %v4241
    %v4243 = vrot.slane %v3644, %v4242
    %v4244 = vsel %vm4000, %v4243, %v4239
    %v4245 = vlaneseq
    %v4246 = vshrl.u32 %v4245, 7
    %v4247 = vsub.s32 %v4002, %v4246
    %v4248 = vrot.slane %v3646, %v4247
    %v4249 = vsel %vm4007, %v4248, %v4244
    %v4250 = vlaneseq
    %v4251 = vshrl.u32 %v4250, 7
    %v4252 = vsub.s32 %v4009, %v4251
    %v4253 = vrot.slane %v3648, %v4252
    %v4254 = vsel %vm4014, %v4253, %v4249
    %v4255 = vlaneseq
    %v4256 = vshrl.u32 %v4255, 7
    %v4257 = vsub.s32 %v4016, %v4256
    %v4258 = vrot.slane %v3650, %v4257
    %v4259 = vsel %vm4021, %v4258, %v4254
    %v4260 = vlaneseq
    %v4261 = vshrl.u32 %v4260, 7
    %v4262 = vsub.s32 %v3780, %v4261
    %v4263 = vrot.slane %v3652, %v4262
    %v4264 = vlaneseq
    %v4265 = vshrl.u32 %v4264, 7
    %v4266 = vsub.s32 %v3918, %v4265
    %v4267 = vrot.slane %v3654, %v4266
    %v4268 = vsel %vm3923, %v4267, %v4263
    %v4269 = vlaneseq
    %v4270 = vshrl.u32 %v4269, 7
    %v4271 = vsub.s32 %v3925, %v4270
    %v4272 = vrot.slane %v3656, %v4271
    %v4273 = vsel %vm3930, %v4272, %v4268
    %v4274 = vlaneseq
    %v4275 = vshrl.u32 %v4274, 7
    %v4276 = vsub.s32 %v3932, %v4275
    %v4277 = vrot.slane %v3658, %v4276
    %v4278 = vsel %vm3937, %v4277, %v4273
    %v4279 = vlaneseq
    %v4280 = vshrl.u32 %v4279, 7
    %v4281 = vsub.s32 %v3939, %v4280
    %v4282 = vrot.slane %v3660, %v4281
    %v4283 = vsel %vm3944, %v4282, %v4278
    %v4284 = vlaneseq
    %v4285 = vshrl.u32 %v4284, 7
    %v4286 = vsub.s32 %v3946, %v4285
    %v4287 = vrot.slane %v3662, %v4286
    %v4288 = vsel %vm3951, %v4287, %v4283
    %v4289 = vlaneseq
    %v4290 = vshrl.u32 %v4289, 7
    %v4291 = vsub.s32 %v3953, %v4290
    %v4292 = vrot.slane %v3664, %v4291
    %v4293 = vsel %vm3958, %v4292, %v4288
    %v4294 = vlaneseq
    %v4295 = vshrl.u32 %v4294, 7
    %v4296 = vsub.s32 %v3960, %v4295
    %v4297 = vrot.slane %v3666, %v4296
    %v4298 = vsel %vm3965, %v4297, %v4293
    %v4299 = vlaneseq
    %v4300 = vshrl.u32 %v4299, 7
    %v4301 = vsub.s32 %v3967, %v4300
    %v4302 = vrot.slane %v3668, %v4301
    %v4303 = vsel %vm3972, %v4302, %v4298
    %v4304 = vlaneseq
    %v4305 = vshrl.u32 %v4304, 7
    %v4306 = vsub.s32 %v3974, %v4305
    %v4307 = vrot.slane %v3670, %v4306
    %v4308 = vsel %vm3979, %v4307, %v4303
    %v4309 = vlaneseq
    %v4310 = vshrl.u32 %v4309, 7
    %v4311 = vsub.s32 %v3981, %v4310
    %v4312 = vrot.slane %v3672, %v4311
    %v4313 = vsel %vm3986, %v4312, %v4308
    %v4314 = vlaneseq
    %v4315 = vshrl.u32 %v4314, 7
    %v4316 = vsub.s32 %v3988, %v4315
    %v4317 = vrot.slane %v3674, %v4316
    %v4318 = vsel %vm3993, %v4317, %v4313
    %v4319 = vlaneseq
    %v4320 = vshrl.u32 %v4319, 7
    %v4321 = vsub.s32 %v3995, %v4320
    %v4322 = vrot.slane %v3676, %v4321
    %v4323 = vsel %vm4000, %v4322, %v4318
    %v4324 = vlaneseq
    %v4325 = vshrl.u32 %v4324, 7
    %v4326 = vsub.s32 %v4002, %v4325
    %v4327 = vrot.slane %v3678, %v4326
    %v4328 = vsel %vm4007, %v4327, %v4323
    %v4329 = vlaneseq
    %v4330 = vshrl.u32 %v4329, 7
    %v4331 = vsub.s32 %v4009, %v4330
    %v4332 = vrot.slane %v3680, %v4331
    %v4333 = vsel %vm4014, %v4332, %v4328
    %v4334 = vlaneseq
    %v4335 = vshrl.u32 %v4334, 7
    %v4336 = vsub.s32 %v4016, %v4335
    %v4337 = vrot.slane %v3682, %v4336
    %v4338 = vsel %vm4021, %v4337, %v4333
    %v4339 = vlaneseq
    %v4340 = vshrl.u32 %v4339, 7
    %v4341 = vsub.s32 %v3780, %v4340
    %v4342 = vrot.slane %v3684, %v4341
    %v4343 = vlaneseq
    %v4344 = vshrl.u32 %v4343, 7
    %v4345 = vsub.s32 %v3918, %v4344
    %v4346 = vrot.slane %v3686, %v4345
    %v4347 = vsel %vm3923, %v4346, %v4342
    %v4348 = vlaneseq
    %v4349 = vshrl.u32 %v4348, 7
    %v4350 = vsub.s32 %v3925, %v4349
    %v4351 = vrot.slane %v3688, %v4350
    %v4352 = vsel %vm3930, %v4351, %v4347
    %v4353 = vlaneseq
    %v4354 = vshrl.u32 %v4353, 7
    %v4355 = vsub.s32 %v3932, %v4354
    %v4356 = vrot.slane %v3690, %v4355
    %v4357 = vsel %vm3937, %v4356, %v4352
    %v4358 = vlaneseq
    %v4359 = vshrl.u32 %v4358, 7
    %v4360 = vsub.s32 %v3939, %v4359
    %v4361 = vrot.slane %v3692, %v4360
    %v4362 = vsel %vm3944, %v4361, %v4357
    %v4363 = vlaneseq
    %v4364 = vshrl.u32 %v4363, 7
    %v4365 = vsub.s32 %v3946, %v4364
    %v4366 = vrot.slane %v3694, %v4365
    %v4367 = vsel %vm3951, %v4366, %v4362
    %v4368 = vlaneseq
    %v4369 = vshrl.u32 %v4368, 7
    %v4370 = vsub.s32 %v3953, %v4369
    %v4371 = vrot.slane %v3696, %v4370
    %v4372 = vsel %vm3958, %v4371, %v4367
    %v4373 = vlaneseq
    %v4374 = vshrl.u32 %v4373, 7
    %v4375 = vsub.s32 %v3960, %v4374
    %v4376 = vrot.slane %v3698, %v4375
    %v4377 = vsel %vm3965, %v4376, %v4372
    %v4378 = vlaneseq
    %v4379 = vshrl.u32 %v4378, 7
    %v4380 = vsub.s32 %v3967, %v4379
    %v4381 = vrot.slane %v3700, %v4380
    %v4382 = vsel %vm3972, %v4381, %v4377
    %v4383 = vlaneseq
    %v4384 = vshrl.u32 %v4383, 7
    %v4385 = vsub.s32 %v3974, %v4384
    %v4386 = vrot.slane %v3702, %v4385
    %v4387 = vsel %vm3979, %v4386, %v4382
    %v4388 = vlaneseq
    %v4389 = vshrl.u32 %v4388, 7
    %v4390 = vsub.s32 %v3981, %v4389
    %v4391 = vrot.slane %v3704, %v4390
    %v4392 = vsel %vm3986, %v4391, %v4387
    %v4393 = vlaneseq
    %v4394 = vshrl.u32 %v4393, 7
    %v4395 = vsub.s32 %v3988, %v4394
    %v4396 = vrot.slane %v3706, %v4395
    %v4397 = vsel %vm3993, %v4396, %v4392
    %v4398 = vlaneseq
    %v4399 = vshrl.u32 %v4398, 7
    %v4400 = vsub.s32 %v3995, %v4399
    %v4401 = vrot.slane %v3708, %v4400
    %v4402 = vsel %vm4000, %v4401, %v4397
    %v4403 = vlaneseq
    %v4404 = vshrl.u32 %v4403, 7
    %v4405 = vsub.s32 %v4002, %v4404
    %v4406 = vrot.slane %v3710, %v4405
    %v4407 = vsel %vm4007, %v4406, %v4402
    %v4408 = vlaneseq
    %v4409 = vshrl.u32 %v4408, 7
    %v4410 = vsub.s32 %v4009, %v4409
    %v4411 = vrot.slane %v3712, %v4410
    %v4412 = vsel %vm4014, %v4411, %v4407
    %v4413 = vlaneseq
    %v4414 = vshrl.u32 %v4413, 7
    %v4415 = vsub.s32 %v4016, %v4414
    %v4416 = vrot.slane %v3714, %v4415
    %v4417 = vsel %vm4021, %v4416, %v4412
    %v4418 = vlaneseq
    %v4419 = vshrl.u32 %v4418, 7
    %v4420 = vsub.s32 %v3780, %v4419
    %v4421 = vrot.slane %v3716, %v4420
    %v4422 = vlaneseq
    %v4423 = vshrl.u32 %v4422, 7
    %v4424 = vsub.s32 %v3918, %v4423
    %v4425 = vrot.slane %v3718, %v4424
    %v4426 = vsel %vm3923, %v4425, %v4421
    %v4427 = vlaneseq
    %v4428 = vshrl.u32 %v4427, 7
    %v4429 = vsub.s32 %v3925, %v4428
    %v4430 = vrot.slane %v3720, %v4429
    %v4431 = vsel %vm3930, %v4430, %v4426
    %v4432 = vlaneseq
    %v4433 = vshrl.u32 %v4432, 7
    %v4434 = vsub.s32 %v3932, %v4433
    %v4435 = vrot.slane %v3722, %v4434
    %v4436 = vsel %vm3937, %v4435, %v4431
    %v4437 = vlaneseq
    %v4438 = vshrl.u32 %v4437, 7
    %v4439 = vsub.s32 %v3939, %v4438
    %v4440 = vrot.slane %v3724, %v4439
    %v4441 = vsel %vm3944, %v4440, %v4436
    %v4442 = vlaneseq
    %v4443 = vshrl.u32 %v4442, 7
    %v4444 = vsub.s32 %v3946, %v4443
    %v4445 = vrot.slane %v3726, %v4444
    %v4446 = vsel %vm3951, %v4445, %v4441
    %v4447 = vlaneseq
    %v4448 = vshrl.u32 %v4447, 7
    %v4449 = vsub.s32 %v3953, %v4448
    %v4450 = vrot.slane %v3728, %v4449
    %v4451 = vsel %vm3958, %v4450, %v4446
    %v4452 = vlaneseq
    %v4453 = vshrl.u32 %v4452, 7
    %v4454 = vsub.s32 %v3960, %v4453
    %v4455 = vrot.slane %v3730, %v4454
    %v4456 = vsel %vm3965, %v4455, %v4451
    %v4457 = vlaneseq
    %v4458 = vshrl.u32 %v4457, 7
    %v4459 = vsub.s32 %v3967, %v4458
    %v4460 = vrot.slane %v3732, %v4459
    %v4461 = vsel %vm3972, %v4460, %v4456
    %v4462 = vlaneseq
    %v4463 = vshrl.u32 %v4462, 7
    %v4464 = vsub.s32 %v3974, %v4463
    %v4465 = vrot.slane %v3734, %v4464
    %v4466 = vsel %vm3979, %v4465, %v4461
    %v4467 = vlaneseq
    %v4468 = vshrl.u32 %v4467, 7
    %v4469 = vsub.s32 %v3981, %v4468
    %v4470 = vrot.slane %v3736, %v4469
    %v4471 = vsel %vm3986, %v4470, %v4466
    %v4472 = vlaneseq
    %v4473 = vshrl.u32 %v4472, 7
    %v4474 = vsub.s32 %v3988, %v4473
    %v4475 = vrot.slane %v3738, %v4474
    %v4476 = vsel %vm3993, %v4475, %v4471
    %v4477 = vlaneseq
    %v4478 = vshrl.u32 %v4477, 7
    %v4479 = vsub.s32 %v3995, %v4478
    %v4480 = vrot.slane %v3740, %v4479
    %v4481 = vsel %vm4000, %v4480, %v4476
    %v4482 = vlaneseq
    %v4483 = vshrl.u32 %v4482, 7
    %v4484 = vsub.s32 %v4002, %v4483
    %v4485 = vrot.slane %v3742, %v4484
    %v4486 = vsel %vm4007, %v4485, %v4481
    %v4487 = vlaneseq
    %v4488 = vshrl.u32 %v4487, 7
    %v4489 = vsub.s32 %v4009, %v4488
    %v4490 = vrot.slane %v3744, %v4489
    %v4491 = vsel %vm4014, %v4490, %v4486
    %v4492 = vlaneseq
    %v4493 = vshrl.u32 %v4492, 7
    %v4494 = vsub.s32 %v4016, %v4493
    %v4495 = vrot.slane %v3746, %v4494
    %v4496 = vsel %vm4021, %v4495, %v4491
    %v4497 = vlaneseq
    %v4498 = vshrl.u32 %v4497, 7
    %v4499 = vsub.s32 %v3780, %v4498
    %v4500 = vrot.slane %v3748, %v4499
    %v4501 = vlaneseq
    %v4502 = vshrl.u32 %v4501, 7
    %v4503 = vsub.s32 %v3918, %v4502
    %v4504 = vrot.slane %v3750, %v4503
    %v4505 = vsel %vm3923, %v4504, %v4500
    %v4506 = vlaneseq
    %v4507 = vshrl.u32 %v4506, 7
    %v4508 = vsub.s32 %v3925, %v4507
    %v4509 = vrot.slane %v3752, %v4508
    %v4510 = vsel %vm3930, %v4509, %v4505
    %v4511 = vlaneseq
    %v4512 = vshrl.u32 %v4511, 7
    %v4513 = vsub.s32 %v3932, %v4512
    %v4514 = vrot.slane %v3754, %v4513
    %v4515 = vsel %vm3937, %v4514, %v4510
    %v4516 = vlaneseq
    %v4517 = vshrl.u32 %v4516, 7
    %v4518 = vsub.s32 %v3939, %v4517
    %v4519 = vrot.slane %v3756, %v4518
    %v4520 = vsel %vm3944, %v4519, %v4515
    %v4521 = vlaneseq
    %v4522 = vshrl.u32 %v4521, 7
    %v4523 = vsub.s32 %v3946, %v4522
    %v4524 = vrot.slane %v3758, %v4523
    %v4525 = vsel %vm3951, %v4524, %v4520
    %v4526 = vlaneseq
    %v4527 = vshrl.u32 %v4526, 7
    %v4528 = vsub.s32 %v3953, %v4527
    %v4529 = vrot.slane %v3760, %v4528
    %v4530 = vsel %vm3958, %v4529, %v4525
    %v4531 = vlaneseq
    %v4532 = vshrl.u32 %v4531, 7
    %v4533 = vsub.s32 %v3960, %v4532
    %v4534 = vrot.slane %v3762, %v4533
    %v4535 = vsel %vm3965, %v4534, %v4530
    %v4536 = vlaneseq
    %v4537 = vshrl.u32 %v4536, 7
    %v4538 = vsub.s32 %v3967, %v4537
    %v4539 = vrot.slane %v3764, %v4538
    %v4540 = vsel %vm3972, %v4539, %v4535
    %v4541 = vlaneseq
    %v4542 = vshrl.u32 %v4541, 7
    %v4543 = vsub.s32 %v3974, %v4542
    %v4544 = vrot.slane %v3766, %v4543
    %v4545 = vsel %vm3979, %v4544, %v4540
    %v4546 = vlaneseq
    %v4547 = vshrl.u32 %v4546, 7
    %v4548 = vsub.s32 %v3981, %v4547
    %v4549 = vrot.slane %v3768, %v4548
    %v4550 = vsel %vm3986, %v4549, %v4545
    %v4551 = vlaneseq
    %v4552 = vshrl.u32 %v4551, 7
    %v4553 = vsub.s32 %v3988, %v4552
    %v4554 = vrot.slane %v3770, %v4553
    %v4555 = vsel %vm3993, %v4554, %v4550
    %v4556 = vlaneseq
    %v4557 = vshrl.u32 %v4556, 7
    %v4558 = vsub.s32 %v3995, %v4557
    %v4559 = vrot.slane %v3772, %v4558
    %v4560 = vsel %vm4000, %v4559, %v4555
    %v4561 = vlaneseq
    %v4562 = vshrl.u32 %v4561, 7
    %v4563 = vsub.s32 %v4002, %v4562
    %v4564 = vrot.slane %v3774, %v4563
    %v4565 = vsel %vm4007, %v4564, %v4560
    %v4566 = vlaneseq
    %v4567 = vshrl.u32 %v4566, 7
    %v4568 = vsub.s32 %v4009, %v4567
    %v4569 = vrot.slane %v3776, %v4568
    %v4570 = vsel %vm4014, %v4569, %v4565
    %v4571 = vlaneseq
    %v4572 = vshrl.u32 %v4571, 7
    %v4573 = vsub.s32 %v4016, %v4572
    %v4574 = vrot.slane %v3778, %v4573
    %v4575 = vsel %vm4021, %v4574, %v4570
    %vm4576 = vcmask 1041409
    %v4577 = vsel %vm4576, %v4101, %v4022
    %vm4578 = vcmask 1042434
    %v4579 = vsel %vm4578, %v4180, %v4577
    %vm4580 = vcmask 1043459
    %v4581 = vsel %vm4580, %v4259, %v4579
    %vm4582 = vcmask 1044484
    %v4583 = vsel %vm4582, %v4338, %v4581
    %vm4584 = vcmask 1045509
    %v4585 = vsel %vm4584, %v4417, %v4583
    %vm4586 = vcmask 1046534
    %v4587 = vsel %vm4586, %v4496, %v4585
    %vm4588 = vcmask 1047559
    %v4589 = vsel %vm4588, %v4575, %v4587
    %v4591 = vsel %vm3785, -inf, %v4589
    %4592 = vmax.xlane.f32.xlu0 %v4591
    %v4593 = vpop.xlane.xlu0 %4592
    %v4594 = vsub.f32 %v4591, %v4593
    %v4595 = vmul.f32 %v4594, 1.442695
    %v4596 = vpow.pop %v4595
    %4597 = vadd.xlane.f32.xlu0 %v4596
    %v4598 = vpop.xlane.xlu0 %4597
    %v4599 = vrcp.pop %v4598
    %v4600 = vmul.f32 %v4596, %v4599
    %s4601 = sand.u32 %s1453, 1
    %p4602 = scmp.ge.s32.totalorder %s1453, 2
    // Predicated region
    $region89: #{tpu_custom_call.1} parent=85 // pred_check
      %p4603 = pneg %p4602
    $region90: #{tpu_custom_call.1} parent=85 // pred_check_branch
      %4605 = sbr.rel (%p4603) target = $region92
    $region91: #{tpu_custom_call.1} parent=85 // pred_region
      %s4606 = scalar_lea.sflag [#allocation8], %s4601
      %s4607 = smul.u32 8, 1
      %s4608 = sshll.u32 %s4607, 4
      %4609 = dma.done %s4606, %s4608
    $region92: #{tpu_custom_call.1} parent=85 // pred_fallthru
      _
    %s4610 = smul.u32 %s4601, 8
    %s4611 = scalar_lea.vmem [#allocation7], %s4610
    %4612 = vst [vmem:[%s4611] sm:$0xff] %v4600
    %s4613 = smul.u32 %s1453, 8
    %s4614 = smul.addr %s4613, 16
    %s4615 = scalar_lea.hbm %s21, %s4614
    %s4616 = scalar_lea.sflag [#allocation8], %s4601
    // Predicated region
    $region93: #{tpu_custom_call.1} parent=85 // pred_check
      _
    $region94: #{tpu_custom_call.1} parent=85 // pred_check_branch
      %4618 = sbr.rel target = $region96
    $region95: #{tpu_custom_call.1} parent=85 // pred_region
      %4619 = sst [smem:[#allocation11]] [#allocation10]
      %4620 = sst [smem:[#allocation12]] [#allocation9]
    $region96: #{tpu_custom_call.1} parent=85 // pred_fallthru
      _
    %4622 = shalt.err (0)
    %s4624 = sshll.u32 %s4611, 4
    %s4625 = int_to_ptr.vmem [resolvable:$true] %s4624
    %4627 = dma.vmem_to_hbm [thread:$0]  %s4625, 128, %s4615, %s4616
    %v4628 = vpack.c.bf16 %v4600, %v4600
    %v4631 = vunpack.c.l.s4 1966171168
    %v4632 = vunpack.c.0.s8 %v4631
    %v4633 = vlaneseq
    %v4634 = vshrl.u32 %v4633, 7
    %v4635 = vsub.s32 %v4632, %v4634
    %v4636 = vrot.slane %v4628, %v4635
    %v4637 = vcombine.high %v4636, %v4636
    %v4639 = vunpack.c.l.s4 1966171168
    %v4640 = vunpack.c.0.s8 %v4639
    %v4641 = vlaneseq
    %v4642 = vshrl.u32 %v4641, 7
    %v4643 = vsub.s32 %v4640, %v4642
    %v4644 = vrot.slane %v4636, %v4643
    %v4646 = vunpack.c.l.s4 1966171168
    %v4647 = vunpack.c.0.s8 %v4646
    %v4648 = vlaneseq
    %v4649 = vshrl.u32 %v4648, 7
    %v4650 = vsub.s32 %v4647, %v4649
    %v4651 = vrot.slane %v4637, %v4650
    %v4652 = vcombine.high %v4644, %v4644
    %v4653 = vcombine.high %v4651, %v4651
    %v4654 = vunpack.i.l.s16 %v4644
    %v4655 = vunpack.i.h.s16 %v4644
    %v4656 = vunpack.i.l.s16 %v4651
    %v4657 = vunpack.i.h.s16 %v4651
    %v4658 = vunpack.i.l.s16 %v4652
    %v4659 = vunpack.i.h.s16 %v4652
    %v4660 = vunpack.i.l.s16 %v4653
    %v4661 = vunpack.i.h.s16 %v4653
    %v4662 = vpack.i.b16 %v4654, %v4654
    %v4663 = vlaneseq
    %v4664 = vshrl.u32 %v4663, 7
    %v4665 = vsub.s32 0, %v4664
    %v4666 = vrot.slane %v4662, %v4665
    %4668 = vmatprep.subr.bf16.mxu0 0
    %4669 = vmatpush1.bf16.msra.mxu0 %v2787
    %4670 = vmatprep.subr.bf16.mxu0 0
    %4671 = vmatpush1.bf16.msra.mxu0 %v2789
    %4672 = vmatprep.subr.bf16.mxu0 0
    %4673 = vmatpush1.bf16.msra.mxu0 %v2791
    %4674 = vmatprep.subr.bf16.mxu0 0
    %4675 = vmatpush1.bf16.msra.mxu0 %v2793
    %4676 = vmatprep.subr.bf16.mxu0 0
    %4677 = vmatpush1.bf16.msra.mxu0 %v2795
    %4678 = vmatprep.subr.bf16.mxu0 0
    %4679 = vmatpush1.bf16.msra.mxu0 %v2797
    %4680 = vmatprep.subr.bf16.mxu0 0
    %4681 = vmatpush1.bf16.msra.mxu0 %v2799
    %4682 = vmatprep.subr.bf16.mxu0 0
    %4683 = vmatpush1.bf16.msra.mxu0 %v2801
    %4684 = vmatprep.subr.bf16.mxu0 0
    %4685 = vmatpush1.bf16.msra.mxu0 0
    %4686 = vmatprep.subr.bf16.mxu0 0
    %4687 = vmatpush1.bf16.msra.mxu0 0
    %4688 = vmatprep.subr.bf16.mxu0 0
    %4689 = vmatpush1.bf16.msra.mxu0 0
    %4690 = vmatprep.subr.bf16.mxu0 0
    %4691 = vmatpush1.bf16.msra.mxu0 0
    %4692 = vmatprep.subr.bf16.mxu0 0
    %4693 = vmatpush1.bf16.msra.mxu0 0
    %4694 = vmatprep.subr.bf16.mxu0 0
    %4695 = vmatpush1.bf16.msra.mxu0 0
    %4696 = vmatprep.subr.bf16.mxu0 0
    %4697 = vmatpush1.bf16.msra.mxu0 0
    %4698 = vmatprep.subr.bf16.mxu0 0
    %4699 = vmatpush1.bf16.msra.mxu0 0
    %4700 = vmatprep.mubr.bf16.mxu0 0
    %4701 = vmatmul.mubr.bf16.gmra.mrb[0].mxu0 %v4666
    %v4702 = vpop.f32.mrb[0].mxu0
    %v4703 = vadd.f32 0.0, %v4702
    %v4704 = vpop.f32.mrb[0].mxu0
    %v4705 = vpop.f32.mrb[0].mxu0
    %v4706 = vpop.f32.mrb[0].mxu0
    %4707 = vdwg.mxu0
    %v4708 = vpack.i.b16 %v4655, %v4655
    %v4709 = vlaneseq
    %v4710 = vshrl.u32 %v4709, 7
    %v4711 = vsub.s32 0, %v4710
    %v4712 = vrot.slane %v4708, %v4711
    %4714 = vmatprep.subr.bf16.mxu0 0
    %4715 = vmatpush1.bf16.msra.mxu0 %v2803
    %4716 = vmatprep.subr.bf16.mxu0 0
    %4717 = vmatpush1.bf16.msra.mxu0 %v2805
    %4718 = vmatprep.subr.bf16.mxu0 0
    %4719 = vmatpush1.bf16.msra.mxu0 %v2807
    %4720 = vmatprep.subr.bf16.mxu0 0
    %4721 = vmatpush1.bf16.msra.mxu0 %v2809
    %4722 = vmatprep.subr.bf16.mxu0 0
    %4723 = vmatpush1.bf16.msra.mxu0 %v2811
    %4724 = vmatprep.subr.bf16.mxu0 0
    %4725 = vmatpush1.bf16.msra.mxu0 %v2813
    %4726 = vmatprep.subr.bf16.mxu0 0
    %4727 = vmatpush1.bf16.msra.mxu0 %v2815
    %4728 = vmatprep.subr.bf16.mxu0 0
    %4729 = vmatpush1.bf16.msra.mxu0 %v2817
    %4730 = vmatprep.subr.bf16.mxu0 0
    %4731 = vmatpush1.bf16.msra.mxu0 0
    %4732 = vmatprep.subr.bf16.mxu0 0
    %4733 = vmatpush1.bf16.msra.mxu0 0
    %4734 = vmatprep.subr.bf16.mxu0 0
    %4735 = vmatpush1.bf16.msra.mxu0 0
    %4736 = vmatprep.subr.bf16.mxu0 0
    %4737 = vmatpush1.bf16.msra.mxu0 0
    %4738 = vmatprep.subr.bf16.mxu0 0
    %4739 = vmatpush1.bf16.msra.mxu0 0
    %4740 = vmatprep.subr.bf16.mxu0 0
    %4741 = vmatpush1.bf16.msra.mxu0 0
    %4742 = vmatprep.subr.bf16.mxu0 0
    %4743 = vmatpush1.bf16.msra.mxu0 0
    %4744 = vmatprep.subr.bf16.mxu0 0
    %4745 = vmatpush1.bf16.msra.mxu0 0
    %4746 = vmatprep.mubr.bf16.mxu0 0
    %4747 = vmatmul.mubr.bf16.gmra.mrb[0].mxu0 %v4712
    %v4748 = vpop.f32.mrb[0].mxu0
    %v4749 = vadd.f32 0.0, %v4748
    %v4750 = vpop.f32.mrb[0].mxu0
    %v4751 = vpop.f32.mrb[0].mxu0
    %v4752 = vpop.f32.mrb[0].mxu0
    %4753 = vdwg.mxu0
    %v4754 = vpack.i.b16 %v4656, %v4656
    %v4755 = vlaneseq
    %v4756 = vshrl.u32 %v4755, 7
    %v4757 = vsub.s32 0, %v4756
    %v4758 = vrot.slane %v4754, %v4757
    %4760 = vmatprep.subr.bf16.mxu0 0
    %4761 = vmatpush1.bf16.msra.mxu0 %v2819
    %4762 = vmatprep.subr.bf16.mxu0 0
    %4763 = vmatpush1.bf16.msra.mxu0 %v2821
    %4764 = vmatprep.subr.bf16.mxu0 0
    %4765 = vmatpush1.bf16.msra.mxu0 %v2823
    %4766 = vmatprep.subr.bf16.mxu0 0
    %4767 = vmatpush1.bf16.msra.mxu0 %v2825
    %4768 = vmatprep.subr.bf16.mxu0 0
    %4769 = vmatpush1.bf16.msra.mxu0 %v2827
    %4770 = vmatprep.subr.bf16.mxu0 0
    %4771 = vmatpush1.bf16.msra.mxu0 %v2829
    %4772 = vmatprep.subr.bf16.mxu0 0
    %4773 = vmatpush1.bf16.msra.mxu0 %v2831
    %4774 = vmatprep.subr.bf16.mxu0 0
    %4775 = vmatpush1.bf16.msra.mxu0 %v2833
    %4776 = vmatprep.subr.bf16.mxu0 0
    %4777 = vmatpush1.bf16.msra.mxu0 0
    %4778 = vmatprep.subr.bf16.mxu0 0
    %4779 = vmatpush1.bf16.msra.mxu0 0
    %4780 = vmatprep.subr.bf16.mxu0 0
    %4781 = vmatpush1.bf16.msra.mxu0 0
    %4782 = vmatprep.subr.bf16.mxu0 0
    %4783 = vmatpush1.bf16.msra.mxu0 0
    %4784 = vmatprep.subr.bf16.mxu0 0
    %4785 = vmatpush1.bf16.msra.mxu0 0
    %4786 = vmatprep.subr.bf16.mxu0 0
    %4787 = vmatpush1.bf16.msra.mxu0 0
    %4788 = vmatprep.subr.bf16.mxu0 0
    %4789 = vmatpush1.bf16.msra.mxu0 0
    %4790 = vmatprep.subr.bf16.mxu0 0
    %4791 = vmatpush1.bf16.msra.mxu0 0
    %4792 = vmatprep.mubr.bf16.mxu0 0
    %4793 = vmatmul.mubr.bf16.gmra.mrb[0].mxu0 %v4758
    %v4794 = vpop.f32.mrb[0].mxu0
    %v4795 = vadd.f32 0.0, %v4794
    %v4796 = vpop.f32.mrb[0].mxu0
    %v4797 = vpop.f32.mrb[0].mxu0
    %v4798 = vpop.f32.mrb[0].mxu0
    %4799 = vdwg.mxu0
    %v4800 = vpack.i.b16 %v4657, %v4657
    %v4801 = vlaneseq
    %v4802 = vshrl.u32 %v4801, 7
    %v4803 = vsub.s32 0, %v4802
    %v4804 = vrot.slane %v4800, %v4803
    %4806 = vmatprep.subr.bf16.mxu0 0
    %4807 = vmatpush1.bf16.msra.mxu0 %v2835
    %4808 = vmatprep.subr.bf16.mxu0 0
    %4809 = vmatpush1.bf16.msra.mxu0 %v2837
    %4810 = vmatprep.subr.bf16.mxu0 0
    %4811 = vmatpush1.bf16.msra.mxu0 %v2839
    %4812 = vmatprep.subr.bf16.mxu0 0
    %4813 = vmatpush1.bf16.msra.mxu0 %v2841
    %4814 = vmatprep.subr.bf16.mxu0 0
    %4815 = vmatpush1.bf16.msra.mxu0 %v2843
    %4816 = vmatprep.subr.bf16.mxu0 0
    %4817 = vmatpush1.bf16.msra.mxu0 %v2845
    %4818 = vmatprep.subr.bf16.mxu0 0
    %4819 = vmatpush1.bf16.msra.mxu0 %v2847
    %4820 = vmatprep.subr.bf16.mxu0 0
    %4821 = vmatpush1.bf16.msra.mxu0 %v2849
    %4822 = vmatprep.subr.bf16.mxu0 0
    %4823 = vmatpush1.bf16.msra.mxu0 0
    %4824 = vmatprep.subr.bf16.mxu0 0
    %4825 = vmatpush1.bf16.msra.mxu0 0
    %4826 = vmatprep.subr.bf16.mxu0 0
    %4827 = vmatpush1.bf16.msra.mxu0 0
    %4828 = vmatprep.subr.bf16.mxu0 0
    %4829 = vmatpush1.bf16.msra.mxu0 0
    %4830 = vmatprep.subr.bf16.mxu0 0
    %4831 = vmatpush1.bf16.msra.mxu0 0
    %4832 = vmatprep.subr.bf16.mxu0 0
    %4833 = vmatpush1.bf16.msra.mxu0 0
    %4834 = vmatprep.subr.bf16.mxu0 0
    %4835 = vmatpush1.bf16.msra.mxu0 0
    %4836 = vmatprep.subr.bf16.mxu0 0
    %4837 = vmatpush1.bf16.msra.mxu0 0
    %4838 = vmatprep.mubr.bf16.mxu0 0
    %4839 = vmatmul.mubr.bf16.gmra.mrb[0].mxu0 %v4804
    %v4840 = vpop.f32.mrb[0].mxu0
    %v4841 = vadd.f32 0.0, %v4840
    %v4842 = vpop.f32.mrb[0].mxu0
    %v4843 = vpop.f32.mrb[0].mxu0
    %v4844 = vpop.f32.mrb[0].mxu0
    %4845 = vdwg.mxu0
    %v4846 = vpack.i.b16 %v4658, %v4658
    %v4847 = vlaneseq
    %v4848 = vshrl.u32 %v4847, 7
    %v4849 = vsub.s32 0, %v4848
    %v4850 = vrot.slane %v4846, %v4849
    %4852 = vmatprep.subr.bf16.mxu0 0
    %4853 = vmatpush1.bf16.msra.mxu0 %v2851
    %4854 = vmatprep.subr.bf16.mxu0 0
    %4855 = vmatpush1.bf16.msra.mxu0 %v2853
    %4856 = vmatprep.subr.bf16.mxu0 0
    %4857 = vmatpush1.bf16.msra.mxu0 %v2855
    %4858 = vmatprep.subr.bf16.mxu0 0
    %4859 = vmatpush1.bf16.msra.mxu0 %v2857
    %4860 = vmatprep.subr.bf16.mxu0 0
    %4861 = vmatpush1.bf16.msra.mxu0 %v2859
    %4862 = vmatprep.subr.bf16.mxu0 0
    %4863 = vmatpush1.bf16.msra.mxu0 %v2861
    %4864 = vmatprep.subr.bf16.mxu0 0
    %4865 = vmatpush1.bf16.msra.mxu0 %v2863
    %4866 = vmatprep.subr.bf16.mxu0 0
    %4867 = vmatpush1.bf16.msra.mxu0 %v2865
    %4868 = vmatprep.subr.bf16.mxu0 0
    %4869 = vmatpush1.bf16.msra.mxu0 0
    %4870 = vmatprep.subr.bf16.mxu0 0
    %4871 = vmatpush1.bf16.msra.mxu0 0
    %4872 = vmatprep.subr.bf16.mxu0 0
    %4873 = vmatpush1.bf16.msra.mxu0 0
    %4874 = vmatprep.subr.bf16.mxu0 0
    %4875 = vmatpush1.bf16.msra.mxu0 0
    %4876 = vmatprep.subr.bf16.mxu0 0
    %4877 = vmatpush1.bf16.msra.mxu0 0
    %4878 = vmatprep.subr.bf16.mxu0 0
    %4879 = vmatpush1.bf16.msra.mxu0 0
    %4880 = vmatprep.subr.bf16.mxu0 0
    %4881 = vmatpush1.bf16.msra.mxu0 0
    %4882 = vmatprep.subr.bf16.mxu0 0
    %4883 = vmatpush1.bf16.msra.mxu0 0
    %4884 = vmatprep.mubr.bf16.mxu0 0
    %4885 = vmatmul.mubr.bf16.gmra.mrb[0].mxu0 %v4850
    %v4886 = vpop.f32.mrb[0].mxu0
    %v4887 = vadd.f32 0.0, %v4886
    %v4888 = vpop.f32.mrb[0].mxu0
    %v4889 = vpop.f32.mrb[0].mxu0
    %v4890 = vpop.f32.mrb[0].mxu0
    %4891 = vdwg.mxu0
    %v4892 = vpack.i.b16 %v4659, %v4659
    %v4893 = vlaneseq
    %v4894 = vshrl.u32 %v4893, 7
    %v4895 = vsub.s32 0, %v4894
    %v4896 = vrot.slane %v4892, %v4895
    %4898 = vmatprep.subr.bf16.mxu0 0
    %4899 = vmatpush1.bf16.msra.mxu0 %v2867
    %4900 = vmatprep.subr.bf16.mxu0 0
    %4901 = vmatpush1.bf16.msra.mxu0 %v2869
    %4902 = vmatprep.subr.bf16.mxu0 0
    %4903 = vmatpush1.bf16.msra.mxu0 %v2871
    %4904 = vmatprep.subr.bf16.mxu0 0
    %4905 = vmatpush1.bf16.msra.mxu0 %v2873
    %4906 = vmatprep.subr.bf16.mxu0 0
    %4907 = vmatpush1.bf16.msra.mxu0 %v2875
    %4908 = vmatprep.subr.bf16.mxu0 0
    %4909 = vmatpush1.bf16.msra.mxu0 %v2877
    %4910 = vmatprep.subr.bf16.mxu0 0
    %4911 = vmatpush1.bf16.msra.mxu0 %v2879
    %4912 = vmatprep.subr.bf16.mxu0 0
    %4913 = vmatpush1.bf16.msra.mxu0 %v2881
    %4914 = vmatprep.subr.bf16.mxu0 0
    %4915 = vmatpush1.bf16.msra.mxu0 0
    %4916 = vmatprep.subr.bf16.mxu0 0
    %4917 = vmatpush1.bf16.msra.mxu0 0
    %4918 = vmatprep.subr.bf16.mxu0 0
    %4919 = vmatpush1.bf16.msra.mxu0 0
    %4920 = vmatprep.subr.bf16.mxu0 0
    %4921 = vmatpush1.bf16.msra.mxu0 0
    %4922 = vmatprep.subr.bf16.mxu0 0
    %4923 = vmatpush1.bf16.msra.mxu0 0
    %4924 = vmatprep.subr.bf16.mxu0 0
    %4925 = vmatpush1.bf16.msra.mxu0 0
    %4926 = vmatprep.subr.bf16.mxu0 0
    %4927 = vmatpush1.bf16.msra.mxu0 0
    %4928 = vmatprep.subr.bf16.mxu0 0
    %4929 = vmatpush1.bf16.msra.mxu0 0
    %4930 = vmatprep.mubr.bf16.mxu0 0
    %4931 = vmatmul.mubr.bf16.gmra.mrb[0].mxu0 %v4896
    %v4932 = vpop.f32.mrb[0].mxu0
    %v4933 = vadd.f32 0.0, %v4932
    %v4934 = vpop.f32.mrb[0].mxu0
    %v4935 = vpop.f32.mrb[0].mxu0
    %v4936 = vpop.f32.mrb[0].mxu0
    %4937 = vdwg.mxu0
    %v4938 = vpack.i.b16 %v4660, %v4660
    %v4939 = vlaneseq
    %v4940 = vshrl.u32 %v4939, 7
    %v4941 = vsub.s32 0, %v4940
    %v4942 = vrot.slane %v4938, %v4941
    %4944 = vmatprep.subr.bf16.mxu0 0
    %4945 = vmatpush1.bf16.msra.mxu0 %v2883
    %4946 = vmatprep.subr.bf16.mxu0 0
    %4947 = vmatpush1.bf16.msra.mxu0 %v2885
    %4948 = vmatprep.subr.bf16.mxu0 0
    %4949 = vmatpush1.bf16.msra.mxu0 %v2887
    %4950 = vmatprep.subr.bf16.mxu0 0
    %4951 = vmatpush1.bf16.msra.mxu0 %v2889
    %4952 = vmatprep.subr.bf16.mxu0 0
    %4953 = vmatpush1.bf16.msra.mxu0 %v2891
    %4954 = vmatprep.subr.bf16.mxu0 0
    %4955 = vmatpush1.bf16.msra.mxu0 %v2893
    %4956 = vmatprep.subr.bf16.mxu0 0
    %4957 = vmatpush1.bf16.msra.mxu0 %v2895
    %4958 = vmatprep.subr.bf16.mxu0 0
    %4959 = vmatpush1.bf16.msra.mxu0 %v2897
    %4960 = vmatprep.subr.bf16.mxu0 0
    %4961 = vmatpush1.bf16.msra.mxu0 0
    %4962 = vmatprep.subr.bf16.mxu0 0
    %4963 = vmatpush1.bf16.msra.mxu0 0
    %4964 = vmatprep.subr.bf16.mxu0 0
    %4965 = vmatpush1.bf16.msra.mxu0 0
    %4966 = vmatprep.subr.bf16.mxu0 0
    %4967 = vmatpush1.bf16.msra.mxu0 0
    %4968 = vmatprep.subr.bf16.mxu0 0
    %4969 = vmatpush1.bf16.msra.mxu0 0
    %4970 = vmatprep.subr.bf16.mxu0 0
    %4971 = vmatpush1.bf16.msra.mxu0 0
    %4972 = vmatprep.subr.bf16.mxu0 0
    %4973 = vmatpush1.bf16.msra.mxu0 0
    %4974 = vmatprep.subr.bf16.mxu0 0
    %4975 = vmatpush1.bf16.msra.mxu0 0
    %4976 = vmatprep.mubr.bf16.mxu0 0
    %4977 = vmatmul.mubr.bf16.gmra.mrb[0].mxu0 %v4942
    %v4978 = vpop.f32.mrb[0].mxu0
    %v4979 = vadd.f32 0.0, %v4978
    %v4980 = vpop.f32.mrb[0].mxu0
    %v4981 = vpop.f32.mrb[0].mxu0
    %v4982 = vpop.f32.mrb[0].mxu0
    %4983 = vdwg.mxu0
    %v4984 = vpack.i.b16 %v4661, %v4661
    %v4985 = vlaneseq
    %v4986 = vshrl.u32 %v4985, 7
    %v4987 = vsub.s32 0, %v4986
    %v4988 = vrot.slane %v4984, %v4987
    %4990 = vmatprep.subr.bf16.mxu0 0
    %4991 = vmatpush1.bf16.msra.mxu0 %v2899
    %4992 = vmatprep.subr.bf16.mxu0 0
    %4993 = vmatpush1.bf16.msra.mxu0 %v2901
    %4994 = vmatprep.subr.bf16.mxu0 0
    %4995 = vmatpush1.bf16.msra.mxu0 %v2903
    %4996 = vmatprep.subr.bf16.mxu0 0
    %4997 = vmatpush1.bf16.msra.mxu0 %v2905
    %4998 = vmatprep.subr.bf16.mxu0 0
    %4999 = vmatpush1.bf16.msra.mxu0 %v2907
    %5000 = vmatprep.subr.bf16.mxu0 0
    %5001 = vmatpush1.bf16.msra.mxu0 %v2909
    %5002 = vmatprep.subr.bf16.mxu0 0
    %5003 = vmatpush1.bf16.msra.mxu0 %v2911
    %5004 = vmatprep.subr.bf16.mxu0 0
    %5005 = vmatpush1.bf16.msra.mxu0 %v2913
    %5006 = vmatprep.subr.bf16.mxu0 0
    %5007 = vmatpush1.bf16.msra.mxu0 0
    %5008 = vmatprep.subr.bf16.mxu0 0
    %5009 = vmatpush1.bf16.msra.mxu0 0
    %5010 = vmatprep.subr.bf16.mxu0 0
    %5011 = vmatpush1.bf16.msra.mxu0 0
    %5012 = vmatprep.subr.bf16.mxu0 0
    %5013 = vmatpush1.bf16.msra.mxu0 0
    %5014 = vmatprep.subr.bf16.mxu0 0
    %5015 = vmatpush1.bf16.msra.mxu0 0
    %5016 = vmatprep.subr.bf16.mxu0 0
    %5017 = vmatpush1.bf16.msra.mxu0 0
    %5018 = vmatprep.subr.bf16.mxu0 0
    %5019 = vmatpush1.bf16.msra.mxu0 0
    %5020 = vmatprep.subr.bf16.mxu0 0
    %5021 = vmatpush1.bf16.msra.mxu0 0
    %5022 = vmatprep.mubr.bf16.mxu0 0
    %5023 = vmatmul.mubr.bf16.gmra.mrb[0].mxu0 %v4988
    %v5024 = vpop.f32.mrb[0].mxu0
    %v5025 = vadd.f32 0.0, %v5024
    %v5026 = vpop.f32.mrb[0].mxu0
    %v5027 = vpop.f32.mrb[0].mxu0
    %v5028 = vpop.f32.mrb[0].mxu0
    %5029 = vdwg.mxu0
    %v5031 = vrot.slane %v2782, 1
    %v5032 = vrot.slane %v2782, 2
    %v5033 = vrot.slane %v2782, 3
    %v5034 = vrot.slane %v2782, 4
    %v5035 = vrot.slane %v2782, 5
    %v5036 = vrot.slane %v2782, 6
    %v5037 = vrot.slane %v2782, 7
    %v5046 = vadd.f32 %v4703, %v2782
    %v5047 = vadd.f32 %v4749, %v5031
    %v5048 = vadd.f32 %v4795, %v5032
    %v5049 = vadd.f32 %v4841, %v5033
    %v5050 = vadd.f32 %v4887, %v5034
    %v5051 = vadd.f32 %v4933, %v5035
    %v5052 = vadd.f32 %v4979, %v5036
    %v5053 = vadd.f32 %v5025, %v5037
    %v5054 = vld [vmem:[%s17] sm:$0x1]
    %v5056 = vlaneseq
    %v5057 = vshrl.u32 %v5056, 7
    %v5058 = vsub.s32 0, %v5057
    %v5059 = vrot.slane %v5054, %v5058
    %v5061 = vadd.f32 %v5046, %v5059
    %v5062 = vadd.f32 %v5047, %v5059
    %v5063 = vadd.f32 %v5048, %v5059
    %v5064 = vadd.f32 %v5049, %v5059
    %v5065 = vadd.f32 %v5050, %v5059
    %v5066 = vadd.f32 %v5051, %v5059
    %v5067 = vadd.f32 %v5052, %v5059
    %v5068 = vadd.f32 %v5053, %v5059
    %v5069 = vmax.f32 %v5061, 0.0
    %v5070 = vmax.f32 %v5062, 0.0
    %v5071 = vmax.f32 %v5063, 0.0
    %v5072 = vmax.f32 %v5064, 0.0
    %v5073 = vmax.f32 %v5065, 0.0
    %v5074 = vmax.f32 %v5066, 0.0
    %v5075 = vmax.f32 %v5067, 0.0
    %v5076 = vmax.f32 %v5068, 0.0
    %v5085 = vrot.slane %v5070, 7
    %v5086 = vsel %vm4576, %v5085, %v5069
    %v5087 = vrot.slane %v5071, 6
    %v5088 = vsel %vm4578, %v5087, %v5086
    %v5089 = vrot.slane %v5072, 5
    %v5090 = vsel %vm4580, %v5089, %v5088
    %v5091 = vrot.slane %v5073, 4
    %v5092 = vsel %vm4582, %v5091, %v5090
    %v5093 = vrot.slane %v5074, 3
    %v5094 = vsel %vm4584, %v5093, %v5092
    %v5095 = vrot.slane %v5075, 2
    %v5096 = vsel %vm4586, %v5095, %v5094
    %v5097 = vrot.slane %v5076, 1
    %v5098 = vsel %vm4588, %v5097, %v5096
    %5100 = vst [vmem:[#allocation3] sm:$0xff] %v5098
    %v5101 = vpack.c.bf16 %v5069, %v5069
    %v5102 = vpack.c.bf16 %v5070, %v5070
    %v5103 = vpack.c.bf16 %v5071, %v5071
    %v5104 = vpack.c.bf16 %v5072, %v5072
    %v5105 = vpack.c.bf16 %v5073, %v5073
    %v5106 = vpack.c.bf16 %v5074, %v5074
    %v5107 = vpack.c.bf16 %v5075, %v5075
    %v5108 = vpack.c.bf16 %v5076, %v5076
    %v5109 = vld [vmem:[%s18] sm:$0xf]
    %v5110 = vld [vmem:[%s18 + $0x4] sm:$0xf]
    %v5111 = vld [vmem:[%s18 + $0x8] sm:$0xf]
    %v5112 = vld [vmem:[%s18 + $0xc] sm:$0xf]
    %v5113 = vld [vmem:[%s18 + $0x10] sm:$0xf]
    %v5114 = vld [vmem:[%s18 + $0x14] sm:$0xf]
    %v5115 = vld [vmem:[%s18 + $0x18] sm:$0xf]
    %v5116 = vld [vmem:[%s18 + $0x1c] sm:$0xf]
    %v5117 = vld [vmem:[%s18 + $0x20] sm:$0xf]
    %v5118 = vld [vmem:[%s18 + $0x24] sm:$0xf]
    %v5119 = vld [vmem:[%s18 + $0x28] sm:$0xf]
    %v5120 = vld [vmem:[%s18 + $0x2c] sm:$0xf]
    %v5121 = vld [vmem:[%s18 + $0x30] sm:$0xf]
    %v5122 = vld [vmem:[%s18 + $0x34] sm:$0xf]
    %v5123 = vld [vmem:[%s18 + $0x38] sm:$0xf]
    %v5124 = vld [vmem:[%s18 + $0x3c] sm:$0xf]
    %v5125 = vld [vmem:[%s19] sm:$0x1]
    %v5127 = vlaneseq
    %v5128 = vshrl.u32 %v5127, 7
    %v5129 = vsub.s32 0, %v5128
    %v5130 = vrot.slane %v5125, %v5129
    %v5140 = vunpack.c.l.b16 %v5101
    %v5141 = vunpack.c.l.b16 %v5102
    %v5142 = vunpack.c.l.b16 %v5103
    %v5143 = vunpack.c.l.b16 %v5104
    %v5144 = vunpack.c.l.b16 %v5105
    %v5145 = vunpack.c.l.b16 %v5106
    %v5146 = vunpack.c.l.b16 %v5107
    %v5147 = vunpack.c.l.b16 %v5108
    %v5148 = vrot.slane %v5141, 7
    %v5149 = vsel %vm4576, %v5148, %v5140
    %v5150 = vrot.slane %v5142, 6
    %v5151 = vsel %vm4578, %v5150, %v5149
    %v5152 = vrot.slane %v5143, 5
    %v5153 = vsel %vm4580, %v5152, %v5151
    %v5154 = vrot.slane %v5144, 4
    %v5155 = vsel %vm4582, %v5154, %v5153
    %v5156 = vrot.slane %v5145, 3
    %v5157 = vsel %vm4584, %v5156, %v5155
    %v5158 = vrot.slane %v5146, 2
    %v5159 = vsel %vm4586, %v5158, %v5157
    %v5160 = vrot.slane %v5147, 1
    %v5161 = vsel %vm4588, %v5160, %v5159
    %v5162 = vpack.c.b16 %v5161, %v5161
    %v5180 = vunpack.c.l.b16 %v5109
    %v5181 = vunpack.c.l.b16 %v5110
    %v5182 = vunpack.c.l.b16 %v5111
    %v5183 = vunpack.c.l.b16 %v5112
    %v5184 = vunpack.c.l.b16 %v5113
    %v5185 = vunpack.c.l.b16 %v5114
    %v5186 = vunpack.c.l.b16 %v5115
    %v5187 = vunpack.c.l.b16 %v5116
    %v5188 = vunpack.c.l.b16 %v5117
    %v5189 = vunpack.c.l.b16 %v5118
    %v5190 = vunpack.c.l.b16 %v5119
    %v5191 = vunpack.c.l.b16 %v5120
    %v5192 = vunpack.c.l.b16 %v5121
    %v5193 = vunpack.c.l.b16 %v5122
    %v5194 = vunpack.c.l.b16 %v5123
    %v5195 = vunpack.c.l.b16 %v5124
    %v5196 = vpack.c.b16 %v5181, %v5180
    %v5197 = vpack.c.b16 %v5183, %v5182
    %v5198 = vpack.c.b16 %v5185, %v5184
    %v5199 = vpack.c.b16 %v5187, %v5186
    %v5200 = vpack.c.b16 %v5189, %v5188
    %v5201 = vpack.c.b16 %v5191, %v5190
    %v5202 = vpack.c.b16 %v5193, %v5192
    %v5203 = vpack.c.b16 %v5195, %v5194
    %5212 = vmatprep.subr.bf16.mxu0 0
    %5213 = vmatpush1.bf16.msra.mxu0 %v5196
    %5214 = vmatprep.subr.bf16.mxu0 0
    %5215 = vmatpush1.bf16.msra.mxu0 %v5197
    %5216 = vmatprep.subr.bf16.mxu0 0
    %5217 = vmatpush1.bf16.msra.mxu0 %v5198
    %5218 = vmatprep.subr.bf16.mxu0 0
    %5219 = vmatpush1.bf16.msra.mxu0 %v5199
    %5220 = vmatprep.subr.bf16.mxu0 0
    %5221 = vmatpush1.bf16.msra.mxu0 %v5200
    %5222 = vmatprep.subr.bf16.mxu0 0
    %5223 = vmatpush1.bf16.msra.mxu0 %v5201
    %5224 = vmatprep.subr.bf16.mxu0 0
    %5225 = vmatpush1.bf16.msra.mxu0 %v5202
    %5226 = vmatprep.subr.bf16.mxu0 0
    %5227 = vmatpush1.bf16.msra.mxu0 %v5203
    %5228 = vmatprep.subr.bf16.mxu0 0
    %5229 = vmatpush1.bf16.msra.mxu0 0
    %5230 = vmatprep.subr.bf16.mxu0 0
    %5231 = vmatpush1.bf16.msra.mxu0 0
    %5232 = vmatprep.subr.bf16.mxu0 0
    %5233 = vmatpush1.bf16.msra.mxu0 0
    %5234 = vmatprep.subr.bf16.mxu0 0
    %5235 = vmatpush1.bf16.msra.mxu0 0
    %5236 = vmatprep.subr.bf16.mxu0 0
    %5237 = vmatpush1.bf16.msra.mxu0 0
    %5238 = vmatprep.subr.bf16.mxu0 0
    %5239 = vmatpush1.bf16.msra.mxu0 0
    %5240 = vmatprep.subr.bf16.mxu0 0
    %5241 = vmatpush1.bf16.msra.mxu0 0
    %5242 = vmatprep.subr.bf16.mxu0 0
    %5243 = vmatpush1.bf16.msra.mxu0 0
    %5244 = vmatprep.mubr.bf16.mxu0 0
    %5245 = vmatmul.mubr.bf16.gmra.mrb[0].mxu0 %v5162
    %v5246 = vpop.f32.mrb[0].mxu0
    %v5247 = vadd.f32 %v5130, %v5246
    %v5248 = vpop.f32.mrb[0].mxu0
    %v5249 = vpop.f32.mrb[0].mxu0
    %v5250 = vpop.f32.mrb[0].mxu0
    %5251 = vdwg.mxu0
    %vm5252 = vcmask 130048
    %v5253 = vsel %vm5252, %v5247, -inf
    %5254 = vmax.xlane.f32.xlu0 %v5253
    %v5255 = vpop.xlane.xlu0 %5254
    %vm5256 = vcmp.eq.f32.partialorder %v5247, %v5255
    %v5257 = vsel %vm5256, %v3780, 16
    %v5258 = vsel %vm5252, %v5257, 2147483647
    %v5259 = vand.u32 %v5258, 65535
    %v5260 = vshra.s32 %v5258, 16
    %v5261 = vcvt.s32.f32 %v5259
    %v5262 = vcvt.s32.f32 %v5260
    %5263 = vmin.xlane.f32.xlu0 %v5262
    %v5264 = vpop.xlane.xlu0 %5263
    %vm5265 = vcmp.eq.f32.partialorder %v5262, %v5264
    %v5266 = vsel %vm5265, %v5261, inf
    %5267 = vmin.xlane.f32.xlu0 %v5266
    %v5268 = vpop.xlane.xlu0 %5267
    %v5269 = vcvt.f32.s32 %v5268
    %v5270 = vcvt.f32.s32 %v5264
    %v5271 = vshll.u32 %v5270, 16
    %v5272 = vadd.s32 %v5271, %v5269
    %vm5273 = vcmp.lt.s32.totalorder %v5272, 15
    %v5274 = vsel %vm5273, %v5272, 15
    %s5275 = sadd.s32 %s1453, 1
    %v5276 = vlaneseq
    %v5277 = vshrl.u32 %v5276, 7
    %v5278 = vsub.s32 %v3780, %v5277
    %v5279 = vrot.slane %v5274, %v5278
    %s5280 = scalar_lea.vmem %s20, %s5275
    %5281 = vst.msk [vmem:[%s5280] sm:$0x1] %vm74, %v5279
    %5282 = vst.msk [vmem:[#allocation4] sm:$0xff] %vm76, %v5274
  $region86: #{tpu_custom_call.1} parent=0 // loop_footer
    %s1457 = sadd.s32 1, %s1453
  $region87: #{tpu_custom_call.1} parent=0 // loop_footer_branch
    %1452 = sbr.rel target = $region83
  $region88: #{tpu_custom_call.1} parent=0 // loop_exit
    _
  %s5283 = scalar_lea.sflag [#allocation8], 1
  %s5284 = smul.u32 8, 1
  %s5285 = sshll.u32 %s5284, 4
  %5286 = dma.done %s5283, %s5285
  %s5287 = sshll.u32 %s5284, 4
  %5288 = dma.done [#allocation8], %s5287
  // Predicated region
  $region97: #{tpu_custom_call.1} parent=0 // pred_check
    _
  $region98: #{tpu_custom_call.1} parent=0 // pred_check_branch
    %5290 = sbr.rel (0) target = $region100
  $region99: #{tpu_custom_call.1} parent=0 // pred_region
    _
  $region100: #{tpu_custom_call.1} parent=0 // pred_fallthru
    _
  // Predicated region
  $region101: #{tpu_custom_call.1} parent=0 // pred_check
    _
  $region102: #{tpu_custom_call.1} parent=0 // pred_check_branch
    %5292 = sbr.rel (0) target = $region104
  $region103: #{tpu_custom_call.1} parent=0 // pred_region
    _
  $region104: #{tpu_custom_call.1} parent=0 // pred_fallthru
    _
  %5293 = vsyncmov [#allocation8]
  %s5294 = vpop.sfrf %5293
  %p5295 = scmp.eq.s32.totalorder %s5294, 0
  %p5296 = pneg %p5295
  %5298 = shalt.err (%p5296)
  %s5299 = scalar_lea.sflag [#allocation8], 1
  %5300 = vsyncmov %s5299
  %s5301 = vpop.sfrf %5300
  %p5302 = scmp.eq.s32.totalorder %s5301, 0
  %p5303 = pneg %p5302
  %5305 = shalt.err (%p5303)

// kernel: tpu_custom_call.1
$region0: #{tpu_custom_call.1}
  #allocation0 [shape = 'u32[]', space=smem, size = 0x4, offset = 0x4, fixed_abs, tag = 'smem constant byte address 0x4 - core index']
  #allocation1 [shape = 'u32[144,128]{1,0:T(1,128)}', space=vmem, size = 0x12000, scoped, tag = 'internal scratch']
  #allocation2 [shape = 'f32[2,8,128]{2,1,0:T(8,128)}', space=vmem, size = 0x2000, scoped, tag = 'scratch operand']
  #allocation3 [shape = 'f32[8,128]{1,0:T(8,128)}', space=vmem, size = 0x1000, scoped, tag = 'scratch operand']
  #allocation4 [shape = 's32[8,1]{1,0:T(8,128)}', space=vmem, size = 0x1000, scoped, tag = 'scratch operand']
  #allocation5 [shape = 'bf16[8,128,256]{2,1,0:T(16,128)(2,1)}', space=vmem, size = 0x80000, scoped, tag = 'scratch operand']
  #allocation6 [shape = 'f32[8,384]{1,0:T(8,128)}', space=vmem, size = 0x3000, scoped, tag = 'scratch operand']
  %s0 = inlined_call_operand.vmem [shape: f32[8,128,64], index: 0, kind: input, shape index: {}]
  %s1 = inlined_call_operand.vmem [shape: s32[8,1], index: 1, kind: input, shape index: {}]
  %s2 = inlined_call_operand.vmem [shape: f32[2,8,128], index: 2, kind: input, shape index: {}]
  %s3 = inlined_call_operand.vmem [shape: f32[8,128], index: 3, kind: input, shape index: {}]
  %s4 = inlined_call_operand.vmem [shape: f32[16,384], index: 4, kind: input, shape index: {}]
  %s5 = inlined_call_operand.vmem [shape: bf16[128,384], index: 5, kind: input, shape index: {}]
  %s6 = inlined_call_operand.vmem [shape: bf16[128,384], index: 6, kind: input, shape index: {}]
  %s7 = inlined_call_operand.vmem [shape: f32[1,384], index: 7, kind: input, shape index: {}]
  %s8 = inlined_call_operand.vmem [shape: f32[1,128], index: 8, kind: input, shape index: {}]
  %s9 = inlined_call_operand.vmem [shape: bf16[128,384], index: 9, kind: input, shape index: {}]
  %s10 = inlined_call_operand.vmem [shape: bf16[128,384], index: 10, kind: input, shape index: {}]
  %s11 = inlined_call_operand.vmem [shape: f32[1,384], index: 11, kind: input, shape index: {}]
  %s12 = inlined_call_operand.vmem [shape: f32[1,128], index: 12, kind: input, shape index: {}]
  %s13 = inlined_call_operand.vmem [shape: bf16[64,256], index: 13, kind: input, shape index: {}]
  %s14 = inlined_call_operand.vmem [shape: f32[1,256], index: 14, kind: input, shape index: {}]
  %s15 = inlined_call_operand.vmem [shape: bf16[128,256], index: 15, kind: input, shape index: {}]
  %s16 = inlined_call_operand.vmem [shape: f32[1,128], index: 16, kind: input, shape index: {}]
  %s17 = inlined_call_operand.vmem [shape: f32[1,128], index: 17, kind: input, shape index: {}]
  %s18 = inlined_call_operand.vmem [shape: bf16[128,16], index: 18, kind: input, shape index: {}]
  %s19 = inlined_call_operand.vmem [shape: f32[1,16], index: 19, kind: input, shape index: {}]
  %s20 = inlined_call_operand.vmem [shape: s32[101,8], index: 20, kind: output, shape index: {0}]
  %s21 = inlined_call_operand.hbm [shape: f32[100,8,128], index: 21, kind: output, shape index: {1}]
  %22 = xla_tuple %s20, %s21
  %s23 = sld [smem:[#allocation0]]
  $region105: #{tpu_custom_call.1} parent=0
    _
  %s25 = ssub.s32 1, %s23
  %s26 = scalar_select 0, %s25, %s23
  $region1: #{tpu_custom_call.1} parent=0
    #allocation7 [shape = 'u8[409600]{0}', space=vmem, size = 0x64000, scoped, tag = 'output window, operand 1, single buffered']
    #allocation8 [shape = 's32[1]{0}', space=sflag, size = 0x4, scoped, tag = 'scoped memory for tpu_custom_call.1']
    %27 = vsyncpa [#allocation8], 0
    // Predicated region
    $region2: #{tpu_custom_call.1} parent=1 // pred_check
      _
    $region3: #{tpu_custom_call.1} parent=1 // pred_check_branch
      %29 = sbr.rel (0) target = $region5
    $region4: #{tpu_custom_call.1} parent=1 // pred_region
      _
    $region5: #{tpu_custom_call.1} parent=1 // pred_fallthru
      _
    // Predicated region
    $region6: #{tpu_custom_call.1} parent=1 // pred_check
      _
    $region7: #{tpu_custom_call.1} parent=1 // pred_check_branch
      %31 = sbr.rel (0) target = $region9
    $region8: #{tpu_custom_call.1} parent=1 // pred_region
      _
    $region9: #{tpu_custom_call.1} parent=1 // pred_fallthru
      _
    // Predicated region
    $region10: #{tpu_custom_call.1} parent=1 // pred_check
      _
    $region11: #{tpu_custom_call.1} parent=1 // pred_check_branch
      %33 = sbr.rel (0) target = $region13
    $region12: #{tpu_custom_call.1} parent=1 // pred_region
      _
    $region13: #{tpu_custom_call.1} parent=1 // pred_fallthru
      _
    // Predicated region
    $region14: #{tpu_custom_call.1} parent=1 // pred_check
      _
    $region15: #{tpu_custom_call.1} parent=1 // pred_check_branch
      %35 = sbr.rel (0) target = $region17
    $region16: #{tpu_custom_call.1} parent=1 // pred_region
      _
    $region17: #{tpu_custom_call.1} parent=1 // pred_fallthru
      _
    // Predicated region
    $region18: #{tpu_custom_call.1} parent=1 // pred_check
      _
    $region19: #{tpu_custom_call.1} parent=1 // pred_check_branch
      %37 = sbr.rel (0) target = $region21
    $region20: #{tpu_custom_call.1} parent=1 // pred_region
      _
    $region21: #{tpu_custom_call.1} parent=1 // pred_fallthru
      _
    // Predicated region
    $region22: #{tpu_custom_call.1} parent=1 // pred_check
      _
    $region23: #{tpu_custom_call.1} parent=1 // pred_check_branch
      %39 = sbr.rel (0) target = $region25
    $region24: #{tpu_custom_call.1} parent=1 // pred_region
      _
    $region25: #{tpu_custom_call.1} parent=1 // pred_fallthru
      _
    // Predicated region
    $region26: #{tpu_custom_call.1} parent=1 // pred_check
      _
    $region27: #{tpu_custom_call.1} parent=1 // pred_check_branch
      %41 = sbr.rel (0) target = $region29
    $region28: #{tpu_custom_call.1} parent=1 // pred_region
      _
    $region29: #{tpu_custom_call.1} parent=1 // pred_fallthru
      _
    // Predicated region
    $region30: #{tpu_custom_call.1} parent=1 // pred_check
      _
    $region31: #{tpu_custom_call.1} parent=1 // pred_check_branch
      %43 = sbr.rel (0) target = $region33
    $region32: #{tpu_custom_call.1} parent=1 // pred_region
      _
    $region33: #{tpu_custom_call.1} parent=1 // pred_fallthru
      _
    // Predicated region
    $region34: #{tpu_custom_call.1} parent=1 // pred_check
      _
    $region35: #{tpu_custom_call.1} parent=1 // pred_check_branch
      %45 = sbr.rel (0) target = $region37
    $region36: #{tpu_custom_call.1} parent=1 // pred_region
      _
    $region37: #{tpu_custom_call.1} parent=1 // pred_fallthru
      _
    // Predicated region
    $region38: #{tpu_custom_call.1} parent=1 // pred_check
      _
    $region39: #{tpu_custom_call.1} parent=1 // pred_check_branch
      %47 = sbr.rel (0) target = $region41
    $region40: #{tpu_custom_call.1} parent=1 // pred_region
      _
    $region41: #{tpu_custom_call.1} parent=1 // pred_fallthru
      _
    // Predicated region
    $region42: #{tpu_custom_call.1} parent=1 // pred_check
      _
    $region43: #{tpu_custom_call.1} parent=1 // pred_check_branch
      %49 = sbr.rel (0) target = $region45
    $region44: #{tpu_custom_call.1} parent=1 // pred_region
      _
    $region45: #{tpu_custom_call.1} parent=1 // pred_fallthru
      _
    // Predicated region
    $region46: #{tpu_custom_call.1} parent=1 // pred_check
      _
    $region47: #{tpu_custom_call.1} parent=1 // pred_check_branch
      %51 = sbr.rel (0) target = $region49
    $region48: #{tpu_custom_call.1} parent=1 // pred_region
      _
    $region49: #{tpu_custom_call.1} parent=1 // pred_fallthru
      _
    // Predicated region
    $region50: #{tpu_custom_call.1} parent=1 // pred_check
      _
    $region51: #{tpu_custom_call.1} parent=1 // pred_check_branch
      %53 = sbr.rel (0) target = $region53
    $region52: #{tpu_custom_call.1} parent=1 // pred_region
      _
    $region53: #{tpu_custom_call.1} parent=1 // pred_fallthru
      _
    // Predicated region
    $region54: #{tpu_custom_call.1} parent=1 // pred_check
      _
    $region55: #{tpu_custom_call.1} parent=1 // pred_check_branch
      %55 = sbr.rel (0) target = $region57
    $region56: #{tpu_custom_call.1} parent=1 // pred_region
      _
    $region57: #{tpu_custom_call.1} parent=1 // pred_fallthru
      _
    // Predicated region
    $region58: #{tpu_custom_call.1} parent=1 // pred_check
      _
    $region59: #{tpu_custom_call.1} parent=1 // pred_check_branch
      %57 = sbr.rel (0) target = $region61
    $region60: #{tpu_custom_call.1} parent=1 // pred_region
      _
    $region61: #{tpu_custom_call.1} parent=1 // pred_fallthru
      _
    // Predicated region
    $region62: #{tpu_custom_call.1} parent=1 // pred_check
      _
    $region63: #{tpu_custom_call.1} parent=1 // pred_check_branch
      %59 = sbr.rel (0) target = $region65
    $region64: #{tpu_custom_call.1} parent=1 // pred_region
      _
    $region65: #{tpu_custom_call.1} parent=1 // pred_fallthru
      _
    // Predicated region
    $region66: #{tpu_custom_call.1} parent=1 // pred_check
      _
    $region67: #{tpu_custom_call.1} parent=1 // pred_check_branch
      %61 = sbr.rel (0) target = $region69
    $region68: #{tpu_custom_call.1} parent=1 // pred_region
      _
    $region69: #{tpu_custom_call.1} parent=1 // pred_fallthru
      _
    // Predicated region
    $region70: #{tpu_custom_call.1} parent=1 // pred_check
      _
    $region71: #{tpu_custom_call.1} parent=1 // pred_check_branch
      %63 = sbr.rel (0) target = $region73
    $region72: #{tpu_custom_call.1} parent=1 // pred_region
      _
    $region73: #{tpu_custom_call.1} parent=1 // pred_fallthru
      _
    // Predicated region
    $region74: #{tpu_custom_call.1} parent=1 // pred_check
      _
    $region75: #{tpu_custom_call.1} parent=1 // pred_check_branch
      %65 = sbr.rel (0) target = $region77
    $region76: #{tpu_custom_call.1} parent=1 // pred_region
      _
    $region77: #{tpu_custom_call.1} parent=1 // pred_fallthru
      _
    // Predicated region
    $region78: #{tpu_custom_call.1} parent=1 // pred_check
      _
    $region79: #{tpu_custom_call.1} parent=1 // pred_check_branch
      %67 = sbr.rel (0) target = $region81
    $region80: #{tpu_custom_call.1} parent=1 // pred_region
      _
    $region81: #{tpu_custom_call.1} parent=1 // pred_fallthru
      _
    %v69 = vld [vmem:[%s2] sm:$0xff]
    %v70 = vld [vmem:[%s2 + $0x8] sm:$0xff]
    %71 = vst [vmem:[#allocation2] sm:$0xff] %v69
    %72 = vst [vmem:[#allocation2 + $0x8] sm:$0xff] %v70
    %v73 = vld [vmem:[%s3] sm:$0xff]
    %74 = vst [vmem:[#allocation3] sm:$0xff] %v73
    %vm75 = vcmask 57344
    %76 = vst.msk [vmem:[%s20] sm:$0x1] %vm75, 3
    %vm77 = vcmask 7168
    %78 = vst.msk [vmem:[#allocation4] sm:$0xff] %vm77, 3
    %v79 = vld [vmem:[%s0] sm:$0xff]
    %v80 = vld [vmem:[%s0 + $0x8] sm:$0xff]
    %v81 = vld [vmem:[%s0 + $0x10] sm:$0xff]
    %v82 = vld [vmem:[%s0 + $0x18] sm:$0xff]
    %v83 = vld [vmem:[%s0 + $0x20] sm:$0xff]
    %v84 = vld [vmem:[%s0 + $0x28] sm:$0xff]
    %v85 = vld [vmem:[%s0 + $0x30] sm:$0xff]
    %v86 = vld [vmem:[%s0 + $0x38] sm:$0xff]
    %v87 = vld [vmem:[%s0 + $0x40] sm:$0xff]
    %v88 = vld [vmem:[%s0 + $0x48] sm:$0xff]
    %v89 = vld [vmem:[%s0 + $0x50] sm:$0xff]
    %v90 = vld [vmem:[%s0 + $0x58] sm:$0xff]
    %v91 = vld [vmem:[%s0 + $0x60] sm:$0xff]
    %v92 = vld [vmem:[%s0 + $0x68] sm:$0xff]
    %v93 = vld [vmem:[%s0 + $0x70] sm:$0xff]
    %v94 = vld [vmem:[%s0 + $0x78] sm:$0xff]
    %v95 = vld [vmem:[%s0 + $0x80] sm:$0xff]
    %v96 = vld [vmem:[%s0 + $0x88] sm:$0xff]
    %v97 = vld [vmem:[%s0 + $0x90] sm:$0xff]
    %v98 = vld [vmem:[%s0 + $0x98] sm:$0xff]
    %v99 = vld [vmem:[%s0 + $0xa0] sm:$0xff]
    %v100 = vld [vmem:[%s0 + $0xa8] sm:$0xff]
    %v101 = vld [vmem:[%s0 + $0xb0] sm:$0xff]
    %v102 = vld [vmem:[%s0 + $0xb8] sm:$0xff]
    %v103 = vld [vmem:[%s0 + $0xc0] sm:$0xff]
    %v104 = vld [vmem:[%s0 + $0xc8] sm:$0xff]
    %v105 = vld [vmem:[%s0 + $0xd0] sm:$0xff]
    %v106 = vld [vmem:[%s0 + $0xd8] sm:$0xff]
    %v107 = vld [vmem:[%s0 + $0xe0] sm:$0xff]
    %v108 = vld [vmem:[%s0 + $0xe8] sm:$0xff]
    %v109 = vld [vmem:[%s0 + $0xf0] sm:$0xff]
    %v110 = vld [vmem:[%s0 + $0xf8] sm:$0xff]
    %v111 = vld [vmem:[%s0 + $0x100] sm:$0xff]
    %v112 = vld [vmem:[%s0 + $0x108] sm:$0xff]
    %v113 = vld [vmem:[%s0 + $0x110] sm:$0xff]
    %v114 = vld [vmem:[%s0 + $0x118] sm:$0xff]
    %v115 = vld [vmem:[%s0 + $0x120] sm:$0xff]
    %v116 = vld [vmem:[%s0 + $0x128] sm:$0xff]
    %v117 = vld [vmem:[%s0 + $0x130] sm:$0xff]
    %v118 = vld [vmem:[%s0 + $0x138] sm:$0xff]
    %v119 = vld [vmem:[%s0 + $0x140] sm:$0xff]
    %v120 = vld [vmem:[%s0 + $0x148] sm:$0xff]
    %v121 = vld [vmem:[%s0 + $0x150] sm:$0xff]
    %v122 = vld [vmem:[%s0 + $0x158] sm:$0xff]
    %v123 = vld [vmem:[%s0 + $0x160] sm:$0xff]
    %v124 = vld [vmem:[%s0 + $0x168] sm:$0xff]
    %v125 = vld [vmem:[%s0 + $0x170] sm:$0xff]
    %v126 = vld [vmem:[%s0 + $0x178] sm:$0xff]
    %v127 = vld [vmem:[%s0 + $0x180] sm:$0xff]
    %v128 = vld [vmem:[%s0 + $0x188] sm:$0xff]
    %v129 = vld [vmem:[%s0 + $0x190] sm:$0xff]
    %v130 = vld [vmem:[%s0 + $0x198] sm:$0xff]
    %v131 = vld [vmem:[%s0 + $0x1a0] sm:$0xff]
    %v132 = vld [vmem:[%s0 + $0x1a8] sm:$0xff]
    %v133 = vld [vmem:[%s0 + $0x1b0] sm:$0xff]
    %v134 = vld [vmem:[%s0 + $0x1b8] sm:$0xff]
    %v135 = vld [vmem:[%s0 + $0x1c0] sm:$0xff]
    %v136 = vld [vmem:[%s0 + $0x1c8] sm:$0xff]
    %v137 = vld [vmem:[%s0 + $0x1d0] sm:$0xff]
    %v138 = vld [vmem:[%s0 + $0x1d8] sm:$0xff]
    %v139 = vld [vmem:[%s0 + $0x1e0] sm:$0xff]
    %v140 = vld [vmem:[%s0 + $0x1e8] sm:$0xff]
    %v141 = vld [vmem:[%s0 + $0x1f0] sm:$0xff]
    %v142 = vld [vmem:[%s0 + $0x1f8] sm:$0xff]
    %v143 = vld [vmem:[%s0 + $0x200] sm:$0xff]
    %v144 = vld [vmem:[%s0 + $0x208] sm:$0xff]
    %v145 = vld [vmem:[%s0 + $0x210] sm:$0xff]
    %v146 = vld [vmem:[%s0 + $0x218] sm:$0xff]
    %v147 = vld [vmem:[%s0 + $0x220] sm:$0xff]
    %v148 = vld [vmem:[%s0 + $0x228] sm:$0xff]
    %v149 = vld [vmem:[%s0 + $0x230] sm:$0xff]
    %v150 = vld [vmem:[%s0 + $0x238] sm:$0xff]
    %v151 = vld [vmem:[%s0 + $0x240] sm:$0xff]
    %v152 = vld [vmem:[%s0 + $0x248] sm:$0xff]
    %v153 = vld [vmem:[%s0 + $0x250] sm:$0xff]
    %v154 = vld [vmem:[%s0 + $0x258] sm:$0xff]
    %v155 = vld [vmem:[%s0 + $0x260] sm:$0xff]
    %v156 = vld [vmem:[%s0 + $0x268] sm:$0xff]
    %v157 = vld [vmem:[%s0 + $0x270] sm:$0xff]
    %v158 = vld [vmem:[%s0 + $0x278] sm:$0xff]
    %v159 = vld [vmem:[%s0 + $0x280] sm:$0xff]
    %v160 = vld [vmem:[%s0 + $0x288] sm:$0xff]
    %v161 = vld [vmem:[%s0 + $0x290] sm:$0xff]
    %v162 = vld [vmem:[%s0 + $0x298] sm:$0xff]
    %v163 = vld [vmem:[%s0 + $0x2a0] sm:$0xff]
    %v164 = vld [vmem:[%s0 + $0x2a8] sm:$0xff]
    %v165 = vld [vmem:[%s0 + $0x2b0] sm:$0xff]
    %v166 = vld [vmem:[%s0 + $0x2b8] sm:$0xff]
    %v167 = vld [vmem:[%s0 + $0x2c0] sm:$0xff]
    %v168 = vld [vmem:[%s0 + $0x2c8] sm:$0xff]
    %v169 = vld [vmem:[%s0 + $0x2d0] sm:$0xff]
    %v170 = vld [vmem:[%s0 + $0x2d8] sm:$0xff]
    %v171 = vld [vmem:[%s0 + $0x2e0] sm:$0xff]
    %v172 = vld [vmem:[%s0 + $0x2e8] sm:$0xff]
    %v173 = vld [vmem:[%s0 + $0x2f0] sm:$0xff]
    %v174 = vld [vmem:[%s0 + $0x2f8] sm:$0xff]
    %v175 = vld [vmem:[%s0 + $0x300] sm:$0xff]
    %v176 = vld [vmem:[%s0 + $0x308] sm:$0xff]
    %v177 = vld [vmem:[%s0 + $0x310] sm:$0xff]
    %v178 = vld [vmem:[%s0 + $0x318] sm:$0xff]
    %v179 = vld [vmem:[%s0 + $0x320] sm:$0xff]
    %v180 = vld [vmem:[%s0 + $0x328] sm:$0xff]
    %v181 = vld [vmem:[%s0 + $0x330] sm:$0xff]
    %v182 = vld [vmem:[%s0 + $0x338] sm:$0xff]
    %v183 = vld [vmem:[%s0 + $0x340] sm:$0xff]
    %v184 = vld [vmem:[%s0 + $0x348] sm:$0xff]
    %v185 = vld [vmem:[%s0 + $0x350] sm:$0xff]
    %v186 = vld [vmem:[%s0 + $0x358] sm:$0xff]
    %v187 = vld [vmem:[%s0 + $0x360] sm:$0xff]
    %v188 = vld [vmem:[%s0 + $0x368] sm:$0xff]
    %v189 = vld [vmem:[%s0 + $0x370] sm:$0xff]
    %v190 = vld [vmem:[%s0 + $0x378] sm:$0xff]
    %v191 = vld [vmem:[%s0 + $0x380] sm:$0xff]
    %v192 = vld [vmem:[%s0 + $0x388] sm:$0xff]
    %v193 = vld [vmem:[%s0 + $0x390] sm:$0xff]
    %v194 = vld [vmem:[%s0 + $0x398] sm:$0xff]
    %v195 = vld [vmem:[%s0 + $0x3a0] sm:$0xff]
    %v196 = vld [vmem:[%s0 + $0x3a8] sm:$0xff]
    %v197 = vld [vmem:[%s0 + $0x3b0] sm:$0xff]
    %v198 = vld [vmem:[%s0 + $0x3b8] sm:$0xff]
    %v199 = vld [vmem:[%s0 + $0x3c0] sm:$0xff]
    %v200 = vld [vmem:[%s0 + $0x3c8] sm:$0xff]
    %v201 = vld [vmem:[%s0 + $0x3d0] sm:$0xff]
    %v202 = vld [vmem:[%s0 + $0x3d8] sm:$0xff]
    %v203 = vld [vmem:[%s0 + $0x3e0] sm:$0xff]
    %v204 = vld [vmem:[%s0 + $0x3e8] sm:$0xff]
    %v205 = vld [vmem:[%s0 + $0x3f0] sm:$0xff]
    %v206 = vld [vmem:[%s0 + $0x3f8] sm:$0xff]
    %v207 = vpack.c.bf16 %v80, %v79
    %v208 = vpack.c.bf16 %v82, %v81
    %v209 = vpack.c.bf16 %v84, %v83
    %v210 = vpack.c.bf16 %v86, %v85
    %v211 = vpack.c.bf16 %v88, %v87
    %v212 = vpack.c.bf16 %v90, %v89
    %v213 = vpack.c.bf16 %v92, %v91
    %v214 = vpack.c.bf16 %v94, %v93
    %v215 = vpack.c.bf16 %v96, %v95
    %v216 = vpack.c.bf16 %v98, %v97
    %v217 = vpack.c.bf16 %v100, %v99
    %v218 = vpack.c.bf16 %v102, %v101
    %v219 = vpack.c.bf16 %v104, %v103
    %v220 = vpack.c.bf16 %v106, %v105
    %v221 = vpack.c.bf16 %v108, %v107
    %v222 = vpack.c.bf16 %v110, %v109
    %v223 = vpack.c.bf16 %v112, %v111
    %v224 = vpack.c.bf16 %v114, %v113
    %v225 = vpack.c.bf16 %v116, %v115
    %v226 = vpack.c.bf16 %v118, %v117
    %v227 = vpack.c.bf16 %v120, %v119
    %v228 = vpack.c.bf16 %v122, %v121
    %v229 = vpack.c.bf16 %v124, %v123
    %v230 = vpack.c.bf16 %v126, %v125
    %v231 = vpack.c.bf16 %v128, %v127
    %v232 = vpack.c.bf16 %v130, %v129
    %v233 = vpack.c.bf16 %v132, %v131
    %v234 = vpack.c.bf16 %v134, %v133
    %v235 = vpack.c.bf16 %v136, %v135
    %v236 = vpack.c.bf16 %v138, %v137
    %v237 = vpack.c.bf16 %v140, %v139
    %v238 = vpack.c.bf16 %v142, %v141
    %v239 = vpack.c.bf16 %v144, %v143
    %v240 = vpack.c.bf16 %v146, %v145
    %v241 = vpack.c.bf16 %v148, %v147
    %v242 = vpack.c.bf16 %v150, %v149
    %v243 = vpack.c.bf16 %v152, %v151
    %v244 = vpack.c.bf16 %v154, %v153
    %v245 = vpack.c.bf16 %v156, %v155
    %v246 = vpack.c.bf16 %v158, %v157
    %v247 = vpack.c.bf16 %v160, %v159
    %v248 = vpack.c.bf16 %v162, %v161
    %v249 = vpack.c.bf16 %v164, %v163
    %v250 = vpack.c.bf16 %v166, %v165
    %v251 = vpack.c.bf16 %v168, %v167
    %v252 = vpack.c.bf16 %v170, %v169
    %v253 = vpack.c.bf16 %v172, %v171
    %v254 = vpack.c.bf16 %v174, %v173
    %v255 = vpack.c.bf16 %v176, %v175
    %v256 = vpack.c.bf16 %v178, %v177
    %v257 = vpack.c.bf16 %v180, %v179
    %v258 = vpack.c.bf16 %v182, %v181
    %v259 = vpack.c.bf16 %v184, %v183
    %v260 = vpack.c.bf16 %v186, %v185
    %v261 = vpack.c.bf16 %v188, %v187
    %v262 = vpack.c.bf16 %v190, %v189
    %v263 = vpack.c.bf16 %v192, %v191
    %v264 = vpack.c.bf16 %v194, %v193
    %v265 = vpack.c.bf16 %v196, %v195
    %v266 = vpack.c.bf16 %v198, %v197
    %v267 = vpack.c.bf16 %v200, %v199
    %v268 = vpack.c.bf16 %v202, %v201
    %v269 = vpack.c.bf16 %v204, %v203
    %v270 = vpack.c.bf16 %v206, %v205
    %v271 = vld [vmem:[%s13] sm:$0xff]
    %v272 = vld [vmem:[%s13 + $0x8] sm:$0xff]
    %v273 = vld [vmem:[%s13 + $0x10] sm:$0xff]
    %v274 = vld [vmem:[%s13 + $0x18] sm:$0xff]
    %v275 = vld [vmem:[%s13 + $0x20] sm:$0xff]
    %v276 = vld [vmem:[%s13 + $0x28] sm:$0xff]
    %v277 = vld [vmem:[%s13 + $0x30] sm:$0xff]
    %v278 = vld [vmem:[%s13 + $0x38] sm:$0xff]
    %v279 = vld [vmem:[%s14] sm:$0x3]
    %v281 = vlaneseq
    %v282 = vshrl.u32 %v281, 7
    %v283 = vsub.s32 0, %v282
    %v284 = vrot.slane %v279, %v283
    %v285 = vlaneseq
    %v286 = vshrl.u32 %v285, 7
    %v287 = vsub.s32 1, %v286
    %v288 = vrot.slane %v279, %v287
    %v299 = vunpack.c.l.b16 %v271
    %v300 = vunpack.c.h.b16 %v271
    %v301 = vunpack.c.l.b16 %v272
    %v302 = vunpack.c.h.b16 %v272
    %v303 = vunpack.c.l.b16 %v273
    %v304 = vunpack.c.h.b16 %v273
    %v305 = vunpack.c.l.b16 %v274
    %v306 = vunpack.c.h.b16 %v274
    %v307 = vunpack.c.l.b16 %v275
    %v308 = vunpack.c.h.b16 %v275
    %v309 = vunpack.c.l.b16 %v276
    %v310 = vunpack.c.h.b16 %v276
    %v311 = vunpack.c.l.b16 %v277
    %v312 = vunpack.c.h.b16 %v277
    %v313 = vunpack.c.l.b16 %v278
    %v314 = vunpack.c.h.b16 %v278
    %v315 = vpack.c.b16 %v301, %v299
    %v316 = vpack.c.b16 %v302, %v300
    %v317 = vpack.c.b16 %v305, %v303
    %v318 = vpack.c.b16 %v306, %v304
    %v319 = vpack.c.b16 %v309, %v307
    %v320 = vpack.c.b16 %v310, %v308
    %v321 = vpack.c.b16 %v313, %v311
    %v322 = vpack.c.b16 %v314, %v312
    %vm331 = vcmask 523264
    %v333 = vsel %vm331, %v207, 0
    %v336 = vsel %vm331, %v208, 0
    %v339 = vsel %vm331, %v209, 0
    %v342 = vsel %vm331, %v210, 0
    %v345 = vsel %vm331, %v211, 0
    %v348 = vsel %vm331, %v212, 0
    %v351 = vsel %vm331, %v213, 0
    %v354 = vsel %vm331, %v214, 0
    %v357 = vsel %vm331, %v215, 0
    %v360 = vsel %vm331, %v216, 0
    %v363 = vsel %vm331, %v217, 0
    %v366 = vsel %vm331, %v218, 0
    %v369 = vsel %vm331, %v219, 0
    %v372 = vsel %vm331, %v220, 0
    %v375 = vsel %vm331, %v221, 0
    %v378 = vsel %vm331, %v222, 0
    %v381 = vsel %vm331, %v223, 0
    %v384 = vsel %vm331, %v224, 0
    %v387 = vsel %vm331, %v225, 0
    %v390 = vsel %vm331, %v226, 0
    %v393 = vsel %vm331, %v227, 0
    %v396 = vsel %vm331, %v228, 0
    %v399 = vsel %vm331, %v229, 0
    %v402 = vsel %vm331, %v230, 0
    %v405 = vsel %vm331, %v231, 0
    %v408 = vsel %vm331, %v232, 0
    %v411 = vsel %vm331, %v233, 0
    %v414 = vsel %vm331, %v234, 0
    %v417 = vsel %vm331, %v235, 0
    %v420 = vsel %vm331, %v236, 0
    %v423 = vsel %vm331, %v237, 0
    %v426 = vsel %vm331, %v238, 0
    %v429 = vsel %vm331, %v239, 0
    %v432 = vsel %vm331, %v240, 0
    %v435 = vsel %vm331, %v241, 0
    %v438 = vsel %vm331, %v242, 0
    %v441 = vsel %vm331, %v243, 0
    %v444 = vsel %vm331, %v244, 0
    %v447 = vsel %vm331, %v245, 0
    %v450 = vsel %vm331, %v246, 0
    %v453 = vsel %vm331, %v247, 0
    %v456 = vsel %vm331, %v248, 0
    %v459 = vsel %vm331, %v249, 0
    %v462 = vsel %vm331, %v250, 0
    %v465 = vsel %vm331, %v251, 0
    %v468 = vsel %vm331, %v252, 0
    %v471 = vsel %vm331, %v253, 0
    %v474 = vsel %vm331, %v254, 0
    %v477 = vsel %vm331, %v255, 0
    %v480 = vsel %vm331, %v256, 0
    %v483 = vsel %vm331, %v257, 0
    %v486 = vsel %vm331, %v258, 0
    %v489 = vsel %vm331, %v259, 0
    %v492 = vsel %vm331, %v260, 0
    %v495 = vsel %vm331, %v261, 0
    %v498 = vsel %vm331, %v262, 0
    %v501 = vsel %vm331, %v263, 0
    %v504 = vsel %vm331, %v264, 0
    %v507 = vsel %vm331, %v265, 0
    %v510 = vsel %vm331, %v266, 0
    %v513 = vsel %vm331, %v267, 0
    %v516 = vsel %vm331, %v268, 0
    %v519 = vsel %vm331, %v269, 0
    %v522 = vsel %vm331, %v270, 0
    %524 = vmatprep.subr.bf16.mxu0 %v316
    %525 = vmatpush1.bf16.msra.mxu0 %v315
    %526 = vmatprep.subr.bf16.mxu0 %v318
    %527 = vmatpush1.bf16.msra.mxu0 %v317
    %528 = vmatprep.subr.bf16.mxu0 %v320
    %529 = vmatpush1.bf16.msra.mxu0 %v319
    %530 = vmatprep.subr.bf16.mxu0 %v322
    %531 = vmatpush1.bf16.msra.mxu0 %v321
    %532 = vmatprep.subr.bf16.mxu0 0
    %533 = vmatpush1.bf16.msra.mxu0 0
    %534 = vmatprep.subr.bf16.mxu0 0
    %535 = vmatpush1.bf16.msra.mxu0 0
    %536 = vmatprep.subr.bf16.mxu0 0
    %537 = vmatpush1.bf16.msra.mxu0 0
    %538 = vmatprep.subr.bf16.mxu0 0
    %539 = vmatpush1.bf16.msra.mxu0 0
    %540 = vmatprep.subr.bf16.mxu0 0
    %541 = vmatpush1.bf16.msra.mxu0 0
    %542 = vmatprep.subr.bf16.mxu0 0
    %543 = vmatpush1.bf16.msra.mxu0 0
    %544 = vmatprep.subr.bf16.mxu0 0
    %545 = vmatpush1.bf16.msra.mxu0 0
    %546 = vmatprep.subr.bf16.mxu0 0
    %547 = vmatpush1.bf16.msra.mxu0 0
    %548 = vmatprep.subr.bf16.mxu0 0
    %549 = vmatpush1.bf16.msra.mxu0 0
    %550 = vmatprep.subr.bf16.mxu0 0
    %551 = vmatpush1.bf16.msra.mxu0 0
    %552 = vmatprep.subr.bf16.mxu0 0
    %553 = vmatpush1.bf16.msra.mxu0 0
    %554 = vmatprep.subr.bf16.mxu0 0
    %555 = vmatpush1.bf16.msra.mxu0 0
    %556 = vmatprep.mubr.bf16.mxu0 0
    %557 = vmatmul.mubr.bf16.gmra.mrb[0].mxu0 %v333
    %v558 = vpop.f32.mrb[0].mxu0
    %v559 = vadd.f32 %v284, %v558
    %v560 = vpop.f32.mrb[0].mxu0
    %v561 = vadd.f32 %v288, %v560
    %v562 = vpop.f32.mrb[0].mxu0
    %v563 = vadd.f32 %v284, %v562
    %v564 = vpop.f32.mrb[0].mxu0
    %v565 = vadd.f32 %v288, %v564
    %566 = vmatprep.mubr.bf16.mxu0 0
    %567 = vmatmul.mubr.bf16.gmra.mrb[0].mxu0 %v336
    %v568 = vpop.f32.mrb[0].mxu0
    %v569 = vadd.f32 %v284, %v568
    %v570 = vpop.f32.mrb[0].mxu0
    %v571 = vadd.f32 %v288, %v570
    %v572 = vpop.f32.mrb[0].mxu0
    %v573 = vadd.f32 %v284, %v572
    %v574 = vpop.f32.mrb[0].mxu0
    %v575 = vadd.f32 %v288, %v574
    %576 = vmatprep.mubr.bf16.mxu0 0
    %577 = vmatmul.mubr.bf16.gmra.mrb[0].mxu0 %v339
    %v578 = vpop.f32.mrb[0].mxu0
    %v579 = vadd.f32 %v284, %v578
    %v580 = vpop.f32.mrb[0].mxu0
    %v581 = vadd.f32 %v288, %v580
    %v582 = vpop.f32.mrb[0].mxu0
    %v583 = vadd.f32 %v284, %v582
    %v584 = vpop.f32.mrb[0].mxu0
    %v585 = vadd.f32 %v288, %v584
    %586 = vmatprep.mubr.bf16.mxu0 0
    %587 = vmatmul.mubr.bf16.gmra.mrb[0].mxu0 %v342
    %v588 = vpop.f32.mrb[0].mxu0
    %v589 = vadd.f32 %v284, %v588
    %v590 = vpop.f32.mrb[0].mxu0
    %v591 = vadd.f32 %v288, %v590
    %v592 = vpop.f32.mrb[0].mxu0
    %v593 = vadd.f32 %v284, %v592
    %v594 = vpop.f32.mrb[0].mxu0
    %v595 = vadd.f32 %v288, %v594
    %596 = vmatprep.mubr.bf16.mxu0 0
    %597 = vmatmul.mubr.bf16.gmra.mrb[0].mxu0 %v345
    %v598 = vpop.f32.mrb[0].mxu0
    %v599 = vadd.f32 %v284, %v598
    %v600 = vpop.f32.mrb[0].mxu0
    %v601 = vadd.f32 %v288, %v600
    %v602 = vpop.f32.mrb[0].mxu0
    %v603 = vadd.f32 %v284, %v602
    %v604 = vpop.f32.mrb[0].mxu0
    %v605 = vadd.f32 %v288, %v604
    %606 = vmatprep.mubr.bf16.mxu0 0
    %607 = vmatmul.mubr.bf16.gmra.mrb[0].mxu0 %v348
    %v608 = vpop.f32.mrb[0].mxu0
    %v609 = vadd.f32 %v284, %v608
    %v610 = vpop.f32.mrb[0].mxu0
    %v611 = vadd.f32 %v288, %v610
    %v612 = vpop.f32.mrb[0].mxu0
    %v613 = vadd.f32 %v284, %v612
    %v614 = vpop.f32.mrb[0].mxu0
    %v615 = vadd.f32 %v288, %v614
    %616 = vmatprep.mubr.bf16.mxu0 0
    %617 = vmatmul.mubr.bf16.gmra.mrb[0].mxu0 %v351
    %v618 = vpop.f32.mrb[0].mxu0
    %v619 = vadd.f32 %v284, %v618
    %v620 = vpop.f32.mrb[0].mxu0
    %v621 = vadd.f32 %v288, %v620
    %v622 = vpop.f32.mrb[0].mxu0
    %v623 = vadd.f32 %v284, %v622
    %v624 = vpop.f32.mrb[0].mxu0
    %v625 = vadd.f32 %v288, %v624
    %626 = vmatprep.mubr.bf16.mxu0 0
    %627 = vmatmul.mubr.bf16.gmra.mrb[0].mxu0 %v354
    %v628 = vpop.f32.mrb[0].mxu0
    %v629 = vadd.f32 %v284, %v628
    %v630 = vpop.f32.mrb[0].mxu0
    %v631 = vadd.f32 %v288, %v630
    %v632 = vpop.f32.mrb[0].mxu0
    %v633 = vadd.f32 %v284, %v632
    %v634 = vpop.f32.mrb[0].mxu0
    %v635 = vadd.f32 %v288, %v634
    %636 = vmatprep.mubr.bf16.mxu0 0
    %637 = vmatmul.mubr.bf16.gmra.mrb[0].mxu0 %v357
    %v638 = vpop.f32.mrb[0].mxu0
    %v639 = vadd.f32 %v284, %v638
    %v640 = vpop.f32.mrb[0].mxu0
    %v641 = vadd.f32 %v288, %v640
    %v642 = vpop.f32.mrb[0].mxu0
    %v643 = vadd.f32 %v284, %v642
    %v644 = vpop.f32.mrb[0].mxu0
    %v645 = vadd.f32 %v288, %v644
    %646 = vmatprep.mubr.bf16.mxu0 0
    %647 = vmatmul.mubr.bf16.gmra.mrb[0].mxu0 %v360
    %v648 = vpop.f32.mrb[0].mxu0
    %v649 = vadd.f32 %v284, %v648
    %v650 = vpop.f32.mrb[0].mxu0
    %v651 = vadd.f32 %v288, %v650
    %v652 = vpop.f32.mrb[0].mxu0
    %v653 = vadd.f32 %v284, %v652
    %v654 = vpop.f32.mrb[0].mxu0
    %v655 = vadd.f32 %v288, %v654
    %656 = vmatprep.mubr.bf16.mxu0 0
    %657 = vmatmul.mubr.bf16.gmra.mrb[0].mxu0 %v363
    %v658 = vpop.f32.mrb[0].mxu0
    %v659 = vadd.f32 %v284, %v658
    %v660 = vpop.f32.mrb[0].mxu0
    %v661 = vadd.f32 %v288, %v660
    %v662 = vpop.f32.mrb[0].mxu0
    %v663 = vadd.f32 %v284, %v662
    %v664 = vpop.f32.mrb[0].mxu0
    %v665 = vadd.f32 %v288, %v664
    %666 = vmatprep.mubr.bf16.mxu0 0
    %667 = vmatmul.mubr.bf16.gmra.mrb[0].mxu0 %v366
    %v668 = vpop.f32.mrb[0].mxu0
    %v669 = vadd.f32 %v284, %v668
    %v670 = vpop.f32.mrb[0].mxu0
    %v671 = vadd.f32 %v288, %v670
    %v672 = vpop.f32.mrb[0].mxu0
    %v673 = vadd.f32 %v284, %v672
    %v674 = vpop.f32.mrb[0].mxu0
    %v675 = vadd.f32 %v288, %v674
    %676 = vmatprep.mubr.bf16.mxu0 0
    %677 = vmatmul.mubr.bf16.gmra.mrb[0].mxu0 %v369
    %v678 = vpop.f32.mrb[0].mxu0
    %v679 = vadd.f32 %v284, %v678
    %v680 = vpop.f32.mrb[0].mxu0
    %v681 = vadd.f32 %v288, %v680
    %v682 = vpop.f32.mrb[0].mxu0
    %v683 = vadd.f32 %v284, %v682
    %v684 = vpop.f32.mrb[0].mxu0
    %v685 = vadd.f32 %v288, %v684
    %686 = vmatprep.mubr.bf16.mxu0 0
    %687 = vmatmul.mubr.bf16.gmra.mrb[0].mxu0 %v372
    %v688 = vpop.f32.mrb[0].mxu0
    %v689 = vadd.f32 %v284, %v688
    %v690 = vpop.f32.mrb[0].mxu0
    %v691 = vadd.f32 %v288, %v690
    %v692 = vpop.f32.mrb[0].mxu0
    %v693 = vadd.f32 %v284, %v692
    %v694 = vpop.f32.mrb[0].mxu0
    %v695 = vadd.f32 %v288, %v694
    %696 = vmatprep.mubr.bf16.mxu0 0
    %697 = vmatmul.mubr.bf16.gmra.mrb[0].mxu0 %v375
    %v698 = vpop.f32.mrb[0].mxu0
    %v699 = vadd.f32 %v284, %v698
    %v700 = vpop.f32.mrb[0].mxu0
    %v701 = vadd.f32 %v288, %v700
    %v702 = vpop.f32.mrb[0].mxu0
    %v703 = vadd.f32 %v284, %v702
    %v704 = vpop.f32.mrb[0].mxu0
    %v705 = vadd.f32 %v288, %v704
    %706 = vmatprep.mubr.bf16.mxu0 0
    %707 = vmatmul.mubr.bf16.gmra.mrb[0].mxu0 %v378
    %v708 = vpop.f32.mrb[0].mxu0
    %v709 = vadd.f32 %v284, %v708
    %v710 = vpop.f32.mrb[0].mxu0
    %v711 = vadd.f32 %v288, %v710
    %v712 = vpop.f32.mrb[0].mxu0
    %v713 = vadd.f32 %v284, %v712
    %v714 = vpop.f32.mrb[0].mxu0
    %v715 = vadd.f32 %v288, %v714
    %716 = vmatprep.mubr.bf16.mxu0 0
    %717 = vmatmul.mubr.bf16.gmra.mrb[0].mxu0 %v381
    %v718 = vpop.f32.mrb[0].mxu0
    %v719 = vadd.f32 %v284, %v718
    %v720 = vpop.f32.mrb[0].mxu0
    %v721 = vadd.f32 %v288, %v720
    %v722 = vpop.f32.mrb[0].mxu0
    %v723 = vadd.f32 %v284, %v722
    %v724 = vpop.f32.mrb[0].mxu0
    %v725 = vadd.f32 %v288, %v724
    %726 = vmatprep.mubr.bf16.mxu0 0
    %727 = vmatmul.mubr.bf16.gmra.mrb[0].mxu0 %v384
    %v728 = vpop.f32.mrb[0].mxu0
    %v729 = vadd.f32 %v284, %v728
    %v730 = vpop.f32.mrb[0].mxu0
    %v731 = vadd.f32 %v288, %v730
    %v732 = vpop.f32.mrb[0].mxu0
    %v733 = vadd.f32 %v284, %v732
    %v734 = vpop.f32.mrb[0].mxu0
    %v735 = vadd.f32 %v288, %v734
    %736 = vmatprep.mubr.bf16.mxu0 0
    %737 = vmatmul.mubr.bf16.gmra.mrb[0].mxu0 %v387
    %v738 = vpop.f32.mrb[0].mxu0
    %v739 = vadd.f32 %v284, %v738
    %v740 = vpop.f32.mrb[0].mxu0
    %v741 = vadd.f32 %v288, %v740
    %v742 = vpop.f32.mrb[0].mxu0
    %v743 = vadd.f32 %v284, %v742
    %v744 = vpop.f32.mrb[0].mxu0
    %v745 = vadd.f32 %v288, %v744
    %746 = vmatprep.mubr.bf16.mxu0 0
    %747 = vmatmul.mubr.bf16.gmra.mrb[0].mxu0 %v390
    %v748 = vpop.f32.mrb[0].mxu0
    %v749 = vadd.f32 %v284, %v748
    %v750 = vpop.f32.mrb[0].mxu0
    %v751 = vadd.f32 %v288, %v750
    %v752 = vpop.f32.mrb[0].mxu0
    %v753 = vadd.f32 %v284, %v752
    %v754 = vpop.f32.mrb[0].mxu0
    %v755 = vadd.f32 %v288, %v754
    %756 = vmatprep.mubr.bf16.mxu0 0
    %757 = vmatmul.mubr.bf16.gmra.mrb[0].mxu0 %v393
    %v758 = vpop.f32.mrb[0].mxu0
    %v759 = vadd.f32 %v284, %v758
    %v760 = vpop.f32.mrb[0].mxu0
    %v761 = vadd.f32 %v288, %v760
    %v762 = vpop.f32.mrb[0].mxu0
    %v763 = vadd.f32 %v284, %v762
    %v764 = vpop.f32.mrb[0].mxu0
    %v765 = vadd.f32 %v288, %v764
    %766 = vmatprep.mubr.bf16.mxu0 0
    %767 = vmatmul.mubr.bf16.gmra.mrb[0].mxu0 %v396
    %v768 = vpop.f32.mrb[0].mxu0
    %v769 = vadd.f32 %v284, %v768
    %v770 = vpop.f32.mrb[0].mxu0
    %v771 = vadd.f32 %v288, %v770
    %v772 = vpop.f32.mrb[0].mxu0
    %v773 = vadd.f32 %v284, %v772
    %v774 = vpop.f32.mrb[0].mxu0
    %v775 = vadd.f32 %v288, %v774
    %776 = vmatprep.mubr.bf16.mxu0 0
    %777 = vmatmul.mubr.bf16.gmra.mrb[0].mxu0 %v399
    %v778 = vpop.f32.mrb[0].mxu0
    %v779 = vadd.f32 %v284, %v778
    %v780 = vpop.f32.mrb[0].mxu0
    %v781 = vadd.f32 %v288, %v780
    %v782 = vpop.f32.mrb[0].mxu0
    %v783 = vadd.f32 %v284, %v782
    %v784 = vpop.f32.mrb[0].mxu0
    %v785 = vadd.f32 %v288, %v784
    %786 = vmatprep.mubr.bf16.mxu0 0
    %787 = vmatmul.mubr.bf16.gmra.mrb[0].mxu0 %v402
    %v788 = vpop.f32.mrb[0].mxu0
    %v789 = vadd.f32 %v284, %v788
    %v790 = vpop.f32.mrb[0].mxu0
    %v791 = vadd.f32 %v288, %v790
    %v792 = vpop.f32.mrb[0].mxu0
    %v793 = vadd.f32 %v284, %v792
    %v794 = vpop.f32.mrb[0].mxu0
    %v795 = vadd.f32 %v288, %v794
    %796 = vmatprep.mubr.bf16.mxu0 0
    %797 = vmatmul.mubr.bf16.gmra.mrb[0].mxu0 %v405
    %v798 = vpop.f32.mrb[0].mxu0
    %v799 = vadd.f32 %v284, %v798
    %v800 = vpop.f32.mrb[0].mxu0
    %v801 = vadd.f32 %v288, %v800
    %v802 = vpop.f32.mrb[0].mxu0
    %v803 = vadd.f32 %v284, %v802
    %v804 = vpop.f32.mrb[0].mxu0
    %v805 = vadd.f32 %v288, %v804
    %806 = vmatprep.mubr.bf16.mxu0 0
    %807 = vmatmul.mubr.bf16.gmra.mrb[0].mxu0 %v408
    %v808 = vpop.f32.mrb[0].mxu0
    %v809 = vadd.f32 %v284, %v808
    %v810 = vpop.f32.mrb[0].mxu0
    %v811 = vadd.f32 %v288, %v810
    %v812 = vpop.f32.mrb[0].mxu0
    %v813 = vadd.f32 %v284, %v812
    %v814 = vpop.f32.mrb[0].mxu0
    %v815 = vadd.f32 %v288, %v814
    %816 = vmatprep.mubr.bf16.mxu0 0
    %817 = vmatmul.mubr.bf16.gmra.mrb[0].mxu0 %v411
    %v818 = vpop.f32.mrb[0].mxu0
    %v819 = vadd.f32 %v284, %v818
    %v820 = vpop.f32.mrb[0].mxu0
    %v821 = vadd.f32 %v288, %v820
    %v822 = vpop.f32.mrb[0].mxu0
    %v823 = vadd.f32 %v284, %v822
    %v824 = vpop.f32.mrb[0].mxu0
    %v825 = vadd.f32 %v288, %v824
    %826 = vmatprep.mubr.bf16.mxu0 0
    %827 = vmatmul.mubr.bf16.gmra.mrb[0].mxu0 %v414
    %v828 = vpop.f32.mrb[0].mxu0
    %v829 = vadd.f32 %v284, %v828
    %v830 = vpop.f32.mrb[0].mxu0
    %v831 = vadd.f32 %v288, %v830
    %v832 = vpop.f32.mrb[0].mxu0
    %v833 = vadd.f32 %v284, %v832
    %v834 = vpop.f32.mrb[0].mxu0
    %v835 = vadd.f32 %v288, %v834
    %836 = vmatprep.mubr.bf16.mxu0 0
    %837 = vmatmul.mubr.bf16.gmra.mrb[0].mxu0 %v417
    %v838 = vpop.f32.mrb[0].mxu0
    %v839 = vadd.f32 %v284, %v838
    %v840 = vpop.f32.mrb[0].mxu0
    %v841 = vadd.f32 %v288, %v840
    %v842 = vpop.f32.mrb[0].mxu0
    %v843 = vadd.f32 %v284, %v842
    %v844 = vpop.f32.mrb[0].mxu0
    %v845 = vadd.f32 %v288, %v844
    %846 = vmatprep.mubr.bf16.mxu0 0
    %847 = vmatmul.mubr.bf16.gmra.mrb[0].mxu0 %v420
    %v848 = vpop.f32.mrb[0].mxu0
    %v849 = vadd.f32 %v284, %v848
    %v850 = vpop.f32.mrb[0].mxu0
    %v851 = vadd.f32 %v288, %v850
    %v852 = vpop.f32.mrb[0].mxu0
    %v853 = vadd.f32 %v284, %v852
    %v854 = vpop.f32.mrb[0].mxu0
    %v855 = vadd.f32 %v288, %v854
    %856 = vmatprep.mubr.bf16.mxu0 0
    %857 = vmatmul.mubr.bf16.gmra.mrb[0].mxu0 %v423
    %v858 = vpop.f32.mrb[0].mxu0
    %v859 = vadd.f32 %v284, %v858
    %v860 = vpop.f32.mrb[0].mxu0
    %v861 = vadd.f32 %v288, %v860
    %v862 = vpop.f32.mrb[0].mxu0
    %v863 = vadd.f32 %v284, %v862
    %v864 = vpop.f32.mrb[0].mxu0
    %v865 = vadd.f32 %v288, %v864
    %866 = vmatprep.mubr.bf16.mxu0 0
    %867 = vmatmul.mubr.bf16.gmra.mrb[0].mxu0 %v426
    %v868 = vpop.f32.mrb[0].mxu0
    %v869 = vadd.f32 %v284, %v868
    %v870 = vpop.f32.mrb[0].mxu0
    %v871 = vadd.f32 %v288, %v870
    %v872 = vpop.f32.mrb[0].mxu0
    %v873 = vadd.f32 %v284, %v872
    %v874 = vpop.f32.mrb[0].mxu0
    %v875 = vadd.f32 %v288, %v874
    %876 = vmatprep.mubr.bf16.mxu0 0
    %877 = vmatmul.mubr.bf16.gmra.mrb[0].mxu0 %v429
    %v878 = vpop.f32.mrb[0].mxu0
    %v879 = vadd.f32 %v284, %v878
    %v880 = vpop.f32.mrb[0].mxu0
    %v881 = vadd.f32 %v288, %v880
    %v882 = vpop.f32.mrb[0].mxu0
    %v883 = vadd.f32 %v284, %v882
    %v884 = vpop.f32.mrb[0].mxu0
    %v885 = vadd.f32 %v288, %v884
    %886 = vmatprep.mubr.bf16.mxu0 0
    %887 = vmatmul.mubr.bf16.gmra.mrb[0].mxu0 %v432
    %v888 = vpop.f32.mrb[0].mxu0
    %v889 = vadd.f32 %v284, %v888
    %v890 = vpop.f32.mrb[0].mxu0
    %v891 = vadd.f32 %v288, %v890
    %v892 = vpop.f32.mrb[0].mxu0
    %v893 = vadd.f32 %v284, %v892
    %v894 = vpop.f32.mrb[0].mxu0
    %v895 = vadd.f32 %v288, %v894
    %896 = vmatprep.mubr.bf16.mxu0 0
    %897 = vmatmul.mubr.bf16.gmra.mrb[0].mxu0 %v435
    %v898 = vpop.f32.mrb[0].mxu0
    %v899 = vadd.f32 %v284, %v898
    %v900 = vpop.f32.mrb[0].mxu0
    %v901 = vadd.f32 %v288, %v900
    %v902 = vpop.f32.mrb[0].mxu0
    %v903 = vadd.f32 %v284, %v902
    %v904 = vpop.f32.mrb[0].mxu0
    %v905 = vadd.f32 %v288, %v904
    %906 = vmatprep.mubr.bf16.mxu0 0
    %907 = vmatmul.mubr.bf16.gmra.mrb[0].mxu0 %v438
    %v908 = vpop.f32.mrb[0].mxu0
    %v909 = vadd.f32 %v284, %v908
    %v910 = vpop.f32.mrb[0].mxu0
    %v911 = vadd.f32 %v288, %v910
    %v912 = vpop.f32.mrb[0].mxu0
    %v913 = vadd.f32 %v284, %v912
    %v914 = vpop.f32.mrb[0].mxu0
    %v915 = vadd.f32 %v288, %v914
    %916 = vmatprep.mubr.bf16.mxu0 0
    %917 = vmatmul.mubr.bf16.gmra.mrb[0].mxu0 %v441
    %v918 = vpop.f32.mrb[0].mxu0
    %v919 = vadd.f32 %v284, %v918
    %v920 = vpop.f32.mrb[0].mxu0
    %v921 = vadd.f32 %v288, %v920
    %v922 = vpop.f32.mrb[0].mxu0
    %v923 = vadd.f32 %v284, %v922
    %v924 = vpop.f32.mrb[0].mxu0
    %v925 = vadd.f32 %v288, %v924
    %926 = vmatprep.mubr.bf16.mxu0 0
    %927 = vmatmul.mubr.bf16.gmra.mrb[0].mxu0 %v444
    %v928 = vpop.f32.mrb[0].mxu0
    %v929 = vadd.f32 %v284, %v928
    %v930 = vpop.f32.mrb[0].mxu0
    %v931 = vadd.f32 %v288, %v930
    %v932 = vpop.f32.mrb[0].mxu0
    %v933 = vadd.f32 %v284, %v932
    %v934 = vpop.f32.mrb[0].mxu0
    %v935 = vadd.f32 %v288, %v934
    %936 = vmatprep.mubr.bf16.mxu0 0
    %937 = vmatmul.mubr.bf16.gmra.mrb[0].mxu0 %v447
    %v938 = vpop.f32.mrb[0].mxu0
    %v939 = vadd.f32 %v284, %v938
    %v940 = vpop.f32.mrb[0].mxu0
    %v941 = vadd.f32 %v288, %v940
    %v942 = vpop.f32.mrb[0].mxu0
    %v943 = vadd.f32 %v284, %v942
    %v944 = vpop.f32.mrb[0].mxu0
    %v945 = vadd.f32 %v288, %v944
    %946 = vmatprep.mubr.bf16.mxu0 0
    %947 = vmatmul.mubr.bf16.gmra.mrb[0].mxu0 %v450
    %v948 = vpop.f32.mrb[0].mxu0
    %v949 = vadd.f32 %v284, %v948
    %v950 = vpop.f32.mrb[0].mxu0
    %v951 = vadd.f32 %v288, %v950
    %v952 = vpop.f32.mrb[0].mxu0
    %v953 = vadd.f32 %v284, %v952
    %v954 = vpop.f32.mrb[0].mxu0
    %v955 = vadd.f32 %v288, %v954
    %956 = vmatprep.mubr.bf16.mxu0 0
    %957 = vmatmul.mubr.bf16.gmra.mrb[0].mxu0 %v453
    %v958 = vpop.f32.mrb[0].mxu0
    %v959 = vadd.f32 %v284, %v958
    %v960 = vpop.f32.mrb[0].mxu0
    %v961 = vadd.f32 %v288, %v960
    %v962 = vpop.f32.mrb[0].mxu0
    %v963 = vadd.f32 %v284, %v962
    %v964 = vpop.f32.mrb[0].mxu0
    %v965 = vadd.f32 %v288, %v964
    %966 = vmatprep.mubr.bf16.mxu0 0
    %967 = vmatmul.mubr.bf16.gmra.mrb[0].mxu0 %v456
    %v968 = vpop.f32.mrb[0].mxu0
    %v969 = vadd.f32 %v284, %v968
    %v970 = vpop.f32.mrb[0].mxu0
    %v971 = vadd.f32 %v288, %v970
    %v972 = vpop.f32.mrb[0].mxu0
    %v973 = vadd.f32 %v284, %v972
    %v974 = vpop.f32.mrb[0].mxu0
    %v975 = vadd.f32 %v288, %v974
    %976 = vmatprep.mubr.bf16.mxu0 0
    %977 = vmatmul.mubr.bf16.gmra.mrb[0].mxu0 %v459
    %v978 = vpop.f32.mrb[0].mxu0
    %v979 = vadd.f32 %v284, %v978
    %v980 = vpop.f32.mrb[0].mxu0
    %v981 = vadd.f32 %v288, %v980
    %v982 = vpop.f32.mrb[0].mxu0
    %v983 = vadd.f32 %v284, %v982
    %v984 = vpop.f32.mrb[0].mxu0
    %v985 = vadd.f32 %v288, %v984
    %986 = vmatprep.mubr.bf16.mxu0 0
    %987 = vmatmul.mubr.bf16.gmra.mrb[0].mxu0 %v462
    %v988 = vpop.f32.mrb[0].mxu0
    %v989 = vadd.f32 %v284, %v988
    %v990 = vpop.f32.mrb[0].mxu0
    %v991 = vadd.f32 %v288, %v990
    %v992 = vpop.f32.mrb[0].mxu0
    %v993 = vadd.f32 %v284, %v992
    %v994 = vpop.f32.mrb[0].mxu0
    %v995 = vadd.f32 %v288, %v994
    %996 = vmatprep.mubr.bf16.mxu0 0
    %997 = vmatmul.mubr.bf16.gmra.mrb[0].mxu0 %v465
    %v998 = vpop.f32.mrb[0].mxu0
    %v999 = vadd.f32 %v284, %v998
    %v1000 = vpop.f32.mrb[0].mxu0
    %v1001 = vadd.f32 %v288, %v1000
    %v1002 = vpop.f32.mrb[0].mxu0
    %v1003 = vadd.f32 %v284, %v1002
    %v1004 = vpop.f32.mrb[0].mxu0
    %v1005 = vadd.f32 %v288, %v1004
    %1006 = vmatprep.mubr.bf16.mxu0 0
    %1007 = vmatmul.mubr.bf16.gmra.mrb[0].mxu0 %v468
    %v1008 = vpop.f32.mrb[0].mxu0
    %v1009 = vadd.f32 %v284, %v1008
    %v1010 = vpop.f32.mrb[0].mxu0
    %v1011 = vadd.f32 %v288, %v1010
    %v1012 = vpop.f32.mrb[0].mxu0
    %v1013 = vadd.f32 %v284, %v1012
    %v1014 = vpop.f32.mrb[0].mxu0
    %v1015 = vadd.f32 %v288, %v1014
    %1016 = vmatprep.mubr.bf16.mxu0 0
    %1017 = vmatmul.mubr.bf16.gmra.mrb[0].mxu0 %v471
    %v1018 = vpop.f32.mrb[0].mxu0
    %v1019 = vadd.f32 %v284, %v1018
    %v1020 = vpop.f32.mrb[0].mxu0
    %v1021 = vadd.f32 %v288, %v1020
    %v1022 = vpop.f32.mrb[0].mxu0
    %v1023 = vadd.f32 %v284, %v1022
    %v1024 = vpop.f32.mrb[0].mxu0
    %v1025 = vadd.f32 %v288, %v1024
    %1026 = vmatprep.mubr.bf16.mxu0 0
    %1027 = vmatmul.mubr.bf16.gmra.mrb[0].mxu0 %v474
    %v1028 = vpop.f32.mrb[0].mxu0
    %v1029 = vadd.f32 %v284, %v1028
    %v1030 = vpop.f32.mrb[0].mxu0
    %v1031 = vadd.f32 %v288, %v1030
    %v1032 = vpop.f32.mrb[0].mxu0
    %v1033 = vadd.f32 %v284, %v1032
    %v1034 = vpop.f32.mrb[0].mxu0
    %v1035 = vadd.f32 %v288, %v1034
    %1036 = vmatprep.mubr.bf16.mxu0 0
    %1037 = vmatmul.mubr.bf16.gmra.mrb[0].mxu0 %v477
    %v1038 = vpop.f32.mrb[0].mxu0
    %v1039 = vadd.f32 %v284, %v1038
    %v1040 = vpop.f32.mrb[0].mxu0
    %v1041 = vadd.f32 %v288, %v1040
    %v1042 = vpop.f32.mrb[0].mxu0
    %v1043 = vadd.f32 %v284, %v1042
    %v1044 = vpop.f32.mrb[0].mxu0
    %v1045 = vadd.f32 %v288, %v1044
    %1046 = vmatprep.mubr.bf16.mxu0 0
    %1047 = vmatmul.mubr.bf16.gmra.mrb[0].mxu0 %v480
    %v1048 = vpop.f32.mrb[0].mxu0
    %v1049 = vadd.f32 %v284, %v1048
    %v1050 = vpop.f32.mrb[0].mxu0
    %v1051 = vadd.f32 %v288, %v1050
    %v1052 = vpop.f32.mrb[0].mxu0
    %v1053 = vadd.f32 %v284, %v1052
    %v1054 = vpop.f32.mrb[0].mxu0
    %v1055 = vadd.f32 %v288, %v1054
    %1056 = vmatprep.mubr.bf16.mxu0 0
    %1057 = vmatmul.mubr.bf16.gmra.mrb[0].mxu0 %v483
    %v1058 = vpop.f32.mrb[0].mxu0
    %v1059 = vadd.f32 %v284, %v1058
    %v1060 = vpop.f32.mrb[0].mxu0
    %v1061 = vadd.f32 %v288, %v1060
    %v1062 = vpop.f32.mrb[0].mxu0
    %v1063 = vadd.f32 %v284, %v1062
    %v1064 = vpop.f32.mrb[0].mxu0
    %v1065 = vadd.f32 %v288, %v1064
    %1066 = vmatprep.mubr.bf16.mxu0 0
    %1067 = vmatmul.mubr.bf16.gmra.mrb[0].mxu0 %v486
    %v1068 = vpop.f32.mrb[0].mxu0
    %v1069 = vadd.f32 %v284, %v1068
    %v1070 = vpop.f32.mrb[0].mxu0
    %v1071 = vadd.f32 %v288, %v1070
    %v1072 = vpop.f32.mrb[0].mxu0
    %v1073 = vadd.f32 %v284, %v1072
    %v1074 = vpop.f32.mrb[0].mxu0
    %v1075 = vadd.f32 %v288, %v1074
    %1076 = vmatprep.mubr.bf16.mxu0 0
    %1077 = vmatmul.mubr.bf16.gmra.mrb[0].mxu0 %v489
    %v1078 = vpop.f32.mrb[0].mxu0
    %v1079 = vadd.f32 %v284, %v1078
    %v1080 = vpop.f32.mrb[0].mxu0
    %v1081 = vadd.f32 %v288, %v1080
    %v1082 = vpop.f32.mrb[0].mxu0
    %v1083 = vadd.f32 %v284, %v1082
    %v1084 = vpop.f32.mrb[0].mxu0
    %v1085 = vadd.f32 %v288, %v1084
    %1086 = vmatprep.mubr.bf16.mxu0 0
    %1087 = vmatmul.mubr.bf16.gmra.mrb[0].mxu0 %v492
    %v1088 = vpop.f32.mrb[0].mxu0
    %v1089 = vadd.f32 %v284, %v1088
    %v1090 = vpop.f32.mrb[0].mxu0
    %v1091 = vadd.f32 %v288, %v1090
    %v1092 = vpop.f32.mrb[0].mxu0
    %v1093 = vadd.f32 %v284, %v1092
    %v1094 = vpop.f32.mrb[0].mxu0
    %v1095 = vadd.f32 %v288, %v1094
    %1096 = vmatprep.mubr.bf16.mxu0 0
    %1097 = vmatmul.mubr.bf16.gmra.mrb[0].mxu0 %v495
    %v1098 = vpop.f32.mrb[0].mxu0
    %v1099 = vadd.f32 %v284, %v1098
    %v1100 = vpop.f32.mrb[0].mxu0
    %v1101 = vadd.f32 %v288, %v1100
    %v1102 = vpop.f32.mrb[0].mxu0
    %v1103 = vadd.f32 %v284, %v1102
    %v1104 = vpop.f32.mrb[0].mxu0
    %v1105 = vadd.f32 %v288, %v1104
    %1106 = vmatprep.mubr.bf16.mxu0 0
    %1107 = vmatmul.mubr.bf16.gmra.mrb[0].mxu0 %v498
    %v1108 = vpop.f32.mrb[0].mxu0
    %v1109 = vadd.f32 %v284, %v1108
    %v1110 = vpop.f32.mrb[0].mxu0
    %v1111 = vadd.f32 %v288, %v1110
    %v1112 = vpop.f32.mrb[0].mxu0
    %v1113 = vadd.f32 %v284, %v1112
    %v1114 = vpop.f32.mrb[0].mxu0
    %v1115 = vadd.f32 %v288, %v1114
    %1116 = vmatprep.mubr.bf16.mxu0 0
    %1117 = vmatmul.mubr.bf16.gmra.mrb[0].mxu0 %v501
    %v1118 = vpop.f32.mrb[0].mxu0
    %v1119 = vadd.f32 %v284, %v1118
    %v1120 = vpop.f32.mrb[0].mxu0
    %v1121 = vadd.f32 %v288, %v1120
    %v1122 = vpop.f32.mrb[0].mxu0
    %v1123 = vadd.f32 %v284, %v1122
    %v1124 = vpop.f32.mrb[0].mxu0
    %v1125 = vadd.f32 %v288, %v1124
    %1126 = vmatprep.mubr.bf16.mxu0 0
    %1127 = vmatmul.mubr.bf16.gmra.mrb[0].mxu0 %v504
    %v1128 = vpop.f32.mrb[0].mxu0
    %v1129 = vadd.f32 %v284, %v1128
    %v1130 = vpop.f32.mrb[0].mxu0
    %v1131 = vadd.f32 %v288, %v1130
    %v1132 = vpop.f32.mrb[0].mxu0
    %v1133 = vadd.f32 %v284, %v1132
    %v1134 = vpop.f32.mrb[0].mxu0
    %v1135 = vadd.f32 %v288, %v1134
    %1136 = vmatprep.mubr.bf16.mxu0 0
    %1137 = vmatmul.mubr.bf16.gmra.mrb[0].mxu0 %v507
    %v1138 = vpop.f32.mrb[0].mxu0
    %v1139 = vadd.f32 %v284, %v1138
    %v1140 = vpop.f32.mrb[0].mxu0
    %v1141 = vadd.f32 %v288, %v1140
    %v1142 = vpop.f32.mrb[0].mxu0
    %v1143 = vadd.f32 %v284, %v1142
    %v1144 = vpop.f32.mrb[0].mxu0
    %v1145 = vadd.f32 %v288, %v1144
    %1146 = vmatprep.mubr.bf16.mxu0 0
    %1147 = vmatmul.mubr.bf16.gmra.mrb[0].mxu0 %v510
    %v1148 = vpop.f32.mrb[0].mxu0
    %v1149 = vadd.f32 %v284, %v1148
    %v1150 = vpop.f32.mrb[0].mxu0
    %v1151 = vadd.f32 %v288, %v1150
    %v1152 = vpop.f32.mrb[0].mxu0
    %v1153 = vadd.f32 %v284, %v1152
    %v1154 = vpop.f32.mrb[0].mxu0
    %v1155 = vadd.f32 %v288, %v1154
    %1156 = vmatprep.mubr.bf16.mxu0 0
    %1157 = vmatmul.mubr.bf16.gmra.mrb[0].mxu0 %v513
    %v1158 = vpop.f32.mrb[0].mxu0
    %v1159 = vadd.f32 %v284, %v1158
    %v1160 = vpop.f32.mrb[0].mxu0
    %v1161 = vadd.f32 %v288, %v1160
    %v1162 = vpop.f32.mrb[0].mxu0
    %v1163 = vadd.f32 %v284, %v1162
    %v1164 = vpop.f32.mrb[0].mxu0
    %v1165 = vadd.f32 %v288, %v1164
    %1166 = vmatprep.mubr.bf16.mxu0 0
    %1167 = vmatmul.mubr.bf16.gmra.mrb[0].mxu0 %v516
    %v1168 = vpop.f32.mrb[0].mxu0
    %v1169 = vadd.f32 %v284, %v1168
    %v1170 = vpop.f32.mrb[0].mxu0
    %v1171 = vadd.f32 %v288, %v1170
    %v1172 = vpop.f32.mrb[0].mxu0
    %v1173 = vadd.f32 %v284, %v1172
    %v1174 = vpop.f32.mrb[0].mxu0
    %v1175 = vadd.f32 %v288, %v1174
    %1176 = vmatprep.mubr.bf16.mxu0 0
    %1177 = vmatmul.mubr.bf16.gmra.mrb[0].mxu0 %v519
    %v1178 = vpop.f32.mrb[0].mxu0
    %v1179 = vadd.f32 %v284, %v1178
    %v1180 = vpop.f32.mrb[0].mxu0
    %v1181 = vadd.f32 %v288, %v1180
    %v1182 = vpop.f32.mrb[0].mxu0
    %v1183 = vadd.f32 %v284, %v1182
    %v1184 = vpop.f32.mrb[0].mxu0
    %v1185 = vadd.f32 %v288, %v1184
    %1186 = vmatprep.mubr.bf16.mxu0 0
    %1187 = vmatmul.mubr.bf16.gmra.mrb[0].mxu0 %v522
    %v1188 = vpop.f32.mrb[0].mxu0
    %v1189 = vadd.f32 %v284, %v1188
    %v1190 = vpop.f32.mrb[0].mxu0
    %v1191 = vadd.f32 %v288, %v1190
    %v1192 = vpop.f32.mrb[0].mxu0
    %v1193 = vadd.f32 %v284, %v1192
    %v1194 = vpop.f32.mrb[0].mxu0
    %v1195 = vadd.f32 %v288, %v1194
    %1196 = vdwg.mxu0
    %v1197 = vpack.c.bf16 %v563, %v559
    %v1198 = vpack.c.bf16 %v565, %v561
    %v1199 = vpack.c.bf16 %v573, %v569
    %v1200 = vpack.c.bf16 %v575, %v571
    %v1201 = vpack.c.bf16 %v583, %v579
    %v1202 = vpack.c.bf16 %v585, %v581
    %v1203 = vpack.c.bf16 %v593, %v589
    %v1204 = vpack.c.bf16 %v595, %v591
    %v1205 = vpack.c.bf16 %v603, %v599
    %v1206 = vpack.c.bf16 %v605, %v601
    %v1207 = vpack.c.bf16 %v613, %v609
    %v1208 = vpack.c.bf16 %v615, %v611
    %v1209 = vpack.c.bf16 %v623, %v619
    %v1210 = vpack.c.bf16 %v625, %v621
    %v1211 = vpack.c.bf16 %v633, %v629
    %v1212 = vpack.c.bf16 %v635, %v631
    %v1213 = vpack.c.bf16 %v643, %v639
    %v1214 = vpack.c.bf16 %v645, %v641
    %v1215 = vpack.c.bf16 %v653, %v649
    %v1216 = vpack.c.bf16 %v655, %v651
    %v1217 = vpack.c.bf16 %v663, %v659
    %v1218 = vpack.c.bf16 %v665, %v661
    %v1219 = vpack.c.bf16 %v673, %v669
    %v1220 = vpack.c.bf16 %v675, %v671
    %v1221 = vpack.c.bf16 %v683, %v679
    %v1222 = vpack.c.bf16 %v685, %v681
    %v1223 = vpack.c.bf16 %v693, %v689
    %v1224 = vpack.c.bf16 %v695, %v691
    %v1225 = vpack.c.bf16 %v703, %v699
    %v1226 = vpack.c.bf16 %v705, %v701
    %v1227 = vpack.c.bf16 %v713, %v709
    %v1228 = vpack.c.bf16 %v715, %v711
    %v1229 = vpack.c.bf16 %v723, %v719
    %v1230 = vpack.c.bf16 %v725, %v721
    %v1231 = vpack.c.bf16 %v733, %v729
    %v1232 = vpack.c.bf16 %v735, %v731
    %v1233 = vpack.c.bf16 %v743, %v739
    %v1234 = vpack.c.bf16 %v745, %v741
    %v1235 = vpack.c.bf16 %v753, %v749
    %v1236 = vpack.c.bf16 %v755, %v751
    %v1237 = vpack.c.bf16 %v763, %v759
    %v1238 = vpack.c.bf16 %v765, %v761
    %v1239 = vpack.c.bf16 %v773, %v769
    %v1240 = vpack.c.bf16 %v775, %v771
    %v1241 = vpack.c.bf16 %v783, %v779
    %v1242 = vpack.c.bf16 %v785, %v781
    %v1243 = vpack.c.bf16 %v793, %v789
    %v1244 = vpack.c.bf16 %v795, %v791
    %v1245 = vpack.c.bf16 %v803, %v799
    %v1246 = vpack.c.bf16 %v805, %v801
    %v1247 = vpack.c.bf16 %v813, %v809
    %v1248 = vpack.c.bf16 %v815, %v811
    %v1249 = vpack.c.bf16 %v823, %v819
    %v1250 = vpack.c.bf16 %v825, %v821
    %v1251 = vpack.c.bf16 %v833, %v829
    %v1252 = vpack.c.bf16 %v835, %v831
    %v1253 = vpack.c.bf16 %v843, %v839
    %v1254 = vpack.c.bf16 %v845, %v841
    %v1255 = vpack.c.bf16 %v853, %v849
    %v1256 = vpack.c.bf16 %v855, %v851
    %v1257 = vpack.c.bf16 %v863, %v859
    %v1258 = vpack.c.bf16 %v865, %v861
    %v1259 = vpack.c.bf16 %v873, %v869
    %v1260 = vpack.c.bf16 %v875, %v871
    %v1261 = vpack.c.bf16 %v883, %v879
    %v1262 = vpack.c.bf16 %v885, %v881
    %v1263 = vpack.c.bf16 %v893, %v889
    %v1264 = vpack.c.bf16 %v895, %v891
    %v1265 = vpack.c.bf16 %v903, %v899
    %v1266 = vpack.c.bf16 %v905, %v901
    %v1267 = vpack.c.bf16 %v913, %v909
    %v1268 = vpack.c.bf16 %v915, %v911
    %v1269 = vpack.c.bf16 %v923, %v919
    %v1270 = vpack.c.bf16 %v925, %v921
    %v1271 = vpack.c.bf16 %v933, %v929
    %v1272 = vpack.c.bf16 %v935, %v931
    %v1273 = vpack.c.bf16 %v943, %v939
    %v1274 = vpack.c.bf16 %v945, %v941
    %v1275 = vpack.c.bf16 %v953, %v949
    %v1276 = vpack.c.bf16 %v955, %v951
    %v1277 = vpack.c.bf16 %v963, %v959
    %v1278 = vpack.c.bf16 %v965, %v961
    %v1279 = vpack.c.bf16 %v973, %v969
    %v1280 = vpack.c.bf16 %v975, %v971
    %v1281 = vpack.c.bf16 %v983, %v979
    %v1282 = vpack.c.bf16 %v985, %v981
    %v1283 = vpack.c.bf16 %v993, %v989
    %v1284 = vpack.c.bf16 %v995, %v991
    %v1285 = vpack.c.bf16 %v1003, %v999
    %v1286 = vpack.c.bf16 %v1005, %v1001
    %v1287 = vpack.c.bf16 %v1013, %v1009
    %v1288 = vpack.c.bf16 %v1015, %v1011
    %v1289 = vpack.c.bf16 %v1023, %v1019
    %v1290 = vpack.c.bf16 %v1025, %v1021
    %v1291 = vpack.c.bf16 %v1033, %v1029
    %v1292 = vpack.c.bf16 %v1035, %v1031
    %v1293 = vpack.c.bf16 %v1043, %v1039
    %v1294 = vpack.c.bf16 %v1045, %v1041
    %v1295 = vpack.c.bf16 %v1053, %v1049
    %v1296 = vpack.c.bf16 %v1055, %v1051
    %v1297 = vpack.c.bf16 %v1063, %v1059
    %v1298 = vpack.c.bf16 %v1065, %v1061
    %v1299 = vpack.c.bf16 %v1073, %v1069
    %v1300 = vpack.c.bf16 %v1075, %v1071
    %v1301 = vpack.c.bf16 %v1083, %v1079
    %v1302 = vpack.c.bf16 %v1085, %v1081
    %v1303 = vpack.c.bf16 %v1093, %v1089
    %v1304 = vpack.c.bf16 %v1095, %v1091
    %v1305 = vpack.c.bf16 %v1103, %v1099
    %v1306 = vpack.c.bf16 %v1105, %v1101
    %v1307 = vpack.c.bf16 %v1113, %v1109
    %v1308 = vpack.c.bf16 %v1115, %v1111
    %v1309 = vpack.c.bf16 %v1123, %v1119
    %v1310 = vpack.c.bf16 %v1125, %v1121
    %v1311 = vpack.c.bf16 %v1133, %v1129
    %v1312 = vpack.c.bf16 %v1135, %v1131
    %v1313 = vpack.c.bf16 %v1143, %v1139
    %v1314 = vpack.c.bf16 %v1145, %v1141
    %v1315 = vpack.c.bf16 %v1153, %v1149
    %v1316 = vpack.c.bf16 %v1155, %v1151
    %v1317 = vpack.c.bf16 %v1163, %v1159
    %v1318 = vpack.c.bf16 %v1165, %v1161
    %v1319 = vpack.c.bf16 %v1173, %v1169
    %v1320 = vpack.c.bf16 %v1175, %v1171
    %v1321 = vpack.c.bf16 %v1183, %v1179
    %v1322 = vpack.c.bf16 %v1185, %v1181
    %v1323 = vpack.c.bf16 %v1193, %v1189
    %v1324 = vpack.c.bf16 %v1195, %v1191
    %1325 = vst [vmem:[#allocation5] sm:$0xff] %v1197
    %1326 = vst [vmem:[#allocation5 + $0x8] sm:$0xff] %v1198
    %1327 = vst [vmem:[#allocation5 + $0x10] sm:$0xff] %v1199
    %1328 = vst [vmem:[#allocation5 + $0x18] sm:$0xff] %v1200
    %1329 = vst [vmem:[#allocation5 + $0x20] sm:$0xff] %v1201
    %1330 = vst [vmem:[#allocation5 + $0x28] sm:$0xff] %v1202
    %1331 = vst [vmem:[#allocation5 + $0x30] sm:$0xff] %v1203
    %1332 = vst [vmem:[#allocation5 + $0x38] sm:$0xff] %v1204
    %1333 = vst [vmem:[#allocation5 + $0x40] sm:$0xff] %v1205
    %1334 = vst [vmem:[#allocation5 + $0x48] sm:$0xff] %v1206
    %1335 = vst [vmem:[#allocation5 + $0x50] sm:$0xff] %v1207
    %1336 = vst [vmem:[#allocation5 + $0x58] sm:$0xff] %v1208
    %1337 = vst [vmem:[#allocation5 + $0x60] sm:$0xff] %v1209
    %1338 = vst [vmem:[#allocation5 + $0x68] sm:$0xff] %v1210
    %1339 = vst [vmem:[#allocation5 + $0x70] sm:$0xff] %v1211
    %1340 = vst [vmem:[#allocation5 + $0x78] sm:$0xff] %v1212
    %1341 = vst [vmem:[#allocation5 + $0x80] sm:$0xff] %v1213
    %1342 = vst [vmem:[#allocation5 + $0x88] sm:$0xff] %v1214
    %1343 = vst [vmem:[#allocation5 + $0x90] sm:$0xff] %v1215
    %1344 = vst [vmem:[#allocation5 + $0x98] sm:$0xff] %v1216
    %1345 = vst [vmem:[#allocation5 + $0xa0] sm:$0xff] %v1217
    %1346 = vst [vmem:[#allocation5 + $0xa8] sm:$0xff] %v1218
    %1347 = vst [vmem:[#allocation5 + $0xb0] sm:$0xff] %v1219
    %1348 = vst [vmem:[#allocation5 + $0xb8] sm:$0xff] %v1220
    %1349 = vst [vmem:[#allocation5 + $0xc0] sm:$0xff] %v1221
    %1350 = vst [vmem:[#allocation5 + $0xc8] sm:$0xff] %v1222
    %1351 = vst [vmem:[#allocation5 + $0xd0] sm:$0xff] %v1223
    %1352 = vst [vmem:[#allocation5 + $0xd8] sm:$0xff] %v1224
    %1353 = vst [vmem:[#allocation5 + $0xe0] sm:$0xff] %v1225
    %1354 = vst [vmem:[#allocation5 + $0xe8] sm:$0xff] %v1226
    %1355 = vst [vmem:[#allocation5 + $0xf0] sm:$0xff] %v1227
    %1356 = vst [vmem:[#allocation5 + $0xf8] sm:$0xff] %v1228
    %1357 = vst [vmem:[#allocation5 + $0x100] sm:$0xff] %v1229
    %1358 = vst [vmem:[#allocation5 + $0x108] sm:$0xff] %v1230
    %1359 = vst [vmem:[#allocation5 + $0x110] sm:$0xff] %v1231
    %1360 = vst [vmem:[#allocation5 + $0x118] sm:$0xff] %v1232
    %1361 = vst [vmem:[#allocation5 + $0x120] sm:$0xff] %v1233
    %1362 = vst [vmem:[#allocation5 + $0x128] sm:$0xff] %v1234
    %1363 = vst [vmem:[#allocation5 + $0x130] sm:$0xff] %v1235
    %1364 = vst [vmem:[#allocation5 + $0x138] sm:$0xff] %v1236
    %1365 = vst [vmem:[#allocation5 + $0x140] sm:$0xff] %v1237
    %1366 = vst [vmem:[#allocation5 + $0x148] sm:$0xff] %v1238
    %1367 = vst [vmem:[#allocation5 + $0x150] sm:$0xff] %v1239
    %1368 = vst [vmem:[#allocation5 + $0x158] sm:$0xff] %v1240
    %1369 = vst [vmem:[#allocation5 + $0x160] sm:$0xff] %v1241
    %1370 = vst [vmem:[#allocation5 + $0x168] sm:$0xff] %v1242
    %1371 = vst [vmem:[#allocation5 + $0x170] sm:$0xff] %v1243
    %1372 = vst [vmem:[#allocation5 + $0x178] sm:$0xff] %v1244
    %1373 = vst [vmem:[#allocation5 + $0x180] sm:$0xff] %v1245
    %1374 = vst [vmem:[#allocation5 + $0x188] sm:$0xff] %v1246
    %1375 = vst [vmem:[#allocation5 + $0x190] sm:$0xff] %v1247
    %1376 = vst [vmem:[#allocation5 + $0x198] sm:$0xff] %v1248
    %1377 = vst [vmem:[#allocation5 + $0x1a0] sm:$0xff] %v1249
    %1378 = vst [vmem:[#allocation5 + $0x1a8] sm:$0xff] %v1250
    %1379 = vst [vmem:[#allocation5 + $0x1b0] sm:$0xff] %v1251
    %1380 = vst [vmem:[#allocation5 + $0x1b8] sm:$0xff] %v1252
    %1381 = vst [vmem:[#allocation5 + $0x1c0] sm:$0xff] %v1253
    %1382 = vst [vmem:[#allocation5 + $0x1c8] sm:$0xff] %v1254
    %1383 = vst [vmem:[#allocation5 + $0x1d0] sm:$0xff] %v1255
    %1384 = vst [vmem:[#allocation5 + $0x1d8] sm:$0xff] %v1256
    %1385 = vst [vmem:[#allocation5 + $0x1e0] sm:$0xff] %v1257
    %1386 = vst [vmem:[#allocation5 + $0x1e8] sm:$0xff] %v1258
    %1387 = vst [vmem:[#allocation5 + $0x1f0] sm:$0xff] %v1259
    %1388 = vst [vmem:[#allocation5 + $0x1f8] sm:$0xff] %v1260
    %1389 = vst [vmem:[#allocation5 + $0x200] sm:$0xff] %v1261
    %1390 = vst [vmem:[#allocation5 + $0x208] sm:$0xff] %v1262
    %1391 = vst [vmem:[#allocation5 + $0x210] sm:$0xff] %v1263
    %1392 = vst [vmem:[#allocation5 + $0x218] sm:$0xff] %v1264
    %1393 = vst [vmem:[#allocation5 + $0x220] sm:$0xff] %v1265
    %1394 = vst [vmem:[#allocation5 + $0x228] sm:$0xff] %v1266
    %1395 = vst [vmem:[#allocation5 + $0x230] sm:$0xff] %v1267
    %1396 = vst [vmem:[#allocation5 + $0x238] sm:$0xff] %v1268
    %1397 = vst [vmem:[#allocation5 + $0x240] sm:$0xff] %v1269
    %1398 = vst [vmem:[#allocation5 + $0x248] sm:$0xff] %v1270
    %1399 = vst [vmem:[#allocation5 + $0x250] sm:$0xff] %v1271
    %1400 = vst [vmem:[#allocation5 + $0x258] sm:$0xff] %v1272
    %1401 = vst [vmem:[#allocation5 + $0x260] sm:$0xff] %v1273
    %1402 = vst [vmem:[#allocation5 + $0x268] sm:$0xff] %v1274
    %1403 = vst [vmem:[#allocation5 + $0x270] sm:$0xff] %v1275
    %1404 = vst [vmem:[#allocation5 + $0x278] sm:$0xff] %v1276
    %1405 = vst [vmem:[#allocation5 + $0x280] sm:$0xff] %v1277
    %1406 = vst [vmem:[#allocation5 + $0x288] sm:$0xff] %v1278
    %1407 = vst [vmem:[#allocation5 + $0x290] sm:$0xff] %v1279
    %1408 = vst [vmem:[#allocation5 + $0x298] sm:$0xff] %v1280
    %1409 = vst [vmem:[#allocation5 + $0x2a0] sm:$0xff] %v1281
    %1410 = vst [vmem:[#allocation5 + $0x2a8] sm:$0xff] %v1282
    %1411 = vst [vmem:[#allocation5 + $0x2b0] sm:$0xff] %v1283
    %1412 = vst [vmem:[#allocation5 + $0x2b8] sm:$0xff] %v1284
    %1413 = vst [vmem:[#allocation5 + $0x2c0] sm:$0xff] %v1285
    %1414 = vst [vmem:[#allocation5 + $0x2c8] sm:$0xff] %v1286
    %1415 = vst [vmem:[#allocation5 + $0x2d0] sm:$0xff] %v1287
    %1416 = vst [vmem:[#allocation5 + $0x2d8] sm:$0xff] %v1288
    %1417 = vst [vmem:[#allocation5 + $0x2e0] sm:$0xff] %v1289
    %1418 = vst [vmem:[#allocation5 + $0x2e8] sm:$0xff] %v1290
    %1419 = vst [vmem:[#allocation5 + $0x2f0] sm:$0xff] %v1291
    %1420 = vst [vmem:[#allocation5 + $0x2f8] sm:$0xff] %v1292
    %1421 = vst [vmem:[#allocation5 + $0x300] sm:$0xff] %v1293
    %1422 = vst [vmem:[#allocation5 + $0x308] sm:$0xff] %v1294
    %1423 = vst [vmem:[#allocation5 + $0x310] sm:$0xff] %v1295
    %1424 = vst [vmem:[#allocation5 + $0x318] sm:$0xff] %v1296
    %1425 = vst [vmem:[#allocation5 + $0x320] sm:$0xff] %v1297
    %1426 = vst [vmem:[#allocation5 + $0x328] sm:$0xff] %v1298
    %1427 = vst [vmem:[#allocation5 + $0x330] sm:$0xff] %v1299
    %1428 = vst [vmem:[#allocation5 + $0x338] sm:$0xff] %v1300
    %1429 = vst [vmem:[#allocation5 + $0x340] sm:$0xff] %v1301
    %1430 = vst [vmem:[#allocation5 + $0x348] sm:$0xff] %v1302
    %1431 = vst [vmem:[#allocation5 + $0x350] sm:$0xff] %v1303
    %1432 = vst [vmem:[#allocation5 + $0x358] sm:$0xff] %v1304
    %1433 = vst [vmem:[#allocation5 + $0x360] sm:$0xff] %v1305
    %1434 = vst [vmem:[#allocation5 + $0x368] sm:$0xff] %v1306
    %1435 = vst [vmem:[#allocation5 + $0x370] sm:$0xff] %v1307
    %1436 = vst [vmem:[#allocation5 + $0x378] sm:$0xff] %v1308
    %1437 = vst [vmem:[#allocation5 + $0x380] sm:$0xff] %v1309
    %1438 = vst [vmem:[#allocation5 + $0x388] sm:$0xff] %v1310
    %1439 = vst [vmem:[#allocation5 + $0x390] sm:$0xff] %v1311
    %1440 = vst [vmem:[#allocation5 + $0x398] sm:$0xff] %v1312
    %1441 = vst [vmem:[#allocation5 + $0x3a0] sm:$0xff] %v1313
    %1442 = vst [vmem:[#allocation5 + $0x3a8] sm:$0xff] %v1314
    %1443 = vst [vmem:[#allocation5 + $0x3b0] sm:$0xff] %v1315
    %1444 = vst [vmem:[#allocation5 + $0x3b8] sm:$0xff] %v1316
    %1445 = vst [vmem:[#allocation5 + $0x3c0] sm:$0xff] %v1317
    %1446 = vst [vmem:[#allocation5 + $0x3c8] sm:$0xff] %v1318
    %1447 = vst [vmem:[#allocation5 + $0x3d0] sm:$0xff] %v1319
    %1448 = vst [vmem:[#allocation5 + $0x3d8] sm:$0xff] %v1320
    %1449 = vst [vmem:[#allocation5 + $0x3e0] sm:$0xff] %v1321
    %1450 = vst [vmem:[#allocation5 + $0x3e8] sm:$0xff] %v1322
    %1451 = vst [vmem:[#allocation5 + $0x3f0] sm:$0xff] %v1323
    %1452 = vst [vmem:[#allocation5 + $0x3f8] sm:$0xff] %v1324
    loop: start=0, step=1, limit=100
    $region82: #{tpu_custom_call.1} parent=1 // loop_pre_header
      _
    $region83: #{tpu_custom_call.1} parent=1 // loop_header
      %s1454 = sphi 0, %s1458
      %p1455 = scmp.ge.s32.totalorder %s1454, 100
    $region84: #{tpu_custom_call.1} parent=1 // loop_header_branch
      %1457 = sbr.rel (%p1455) target = $region88
    $region85: #{tpu_custom_call.1} parent=1 // loop_body
      %v1459 = vlaneseq
      %v1460 = vand.u32 %v1459, 127
      %v1461 = vld [vmem:[#allocation4] sm:$0xff]
      %1462 = vset.pattern.permute.xlu0 0
      %1463 = vperm.xlu0 %1462, %v1461
      %v1464 = vpop.permute.xlu0 %1463
      %vm1465 = vcmp.eq.s32.totalorder %v1460, %v1464
      %v1466 = vsel %vm1465, 1, 0
      %v1467 = vcvt.s32.f32 %v1466
      %v1468 = vld [vmem:[%s4] sm:$0xff]
      %v1469 = vld [vmem:[%s4 + $0x8] sm:$0xff]
      %v1470 = vld [vmem:[%s4 + $0x10] sm:$0xff]
      %v1471 = vld [vmem:[%s4 + $0x18] sm:$0xff]
      %v1472 = vld [vmem:[%s4 + $0x20] sm:$0xff]
      %v1473 = vld [vmem:[%s4 + $0x28] sm:$0xff]
      %v1474 = vld [vmem:[#allocation3] sm:$0xff]
      %v1475 = vpack.c.bf16 %v1474, %v1474
      %v1476 = vld [vmem:[#allocation2] sm:$0xff]
      %v1477 = vpack.c.bf16 %v1476, %v1476
      %v1478 = vld [vmem:[%s5] sm:$0xff]
      %v1479 = vld [vmem:[%s5 + $0x8] sm:$0xf]
      %v1480 = vld [vmem:[%s5 + $0xc] sm:$0xff]
      %v1481 = vld [vmem:[%s5 + $0x14] sm:$0xf]
      %v1482 = vld [vmem:[%s5 + $0x18] sm:$0xff]
      %v1483 = vld [vmem:[%s5 + $0x20] sm:$0xf]
      %v1484 = vld [vmem:[%s5 + $0x24] sm:$0xff]
      %v1485 = vld [vmem:[%s5 + $0x2c] sm:$0xf]
      %v1486 = vld [vmem:[%s5 + $0x30] sm:$0xff]
      %v1487 = vld [vmem:[%s5 + $0x38] sm:$0xf]
      %v1488 = vld [vmem:[%s5 + $0x3c] sm:$0xff]
      %v1489 = vld [vmem:[%s5 + $0x44] sm:$0xf]
      %v1490 = vld [vmem:[%s5 + $0x48] sm:$0xff]
      %v1491 = vld [vmem:[%s5 + $0x50] sm:$0xf]
      %v1492 = vld [vmem:[%s5 + $0x54] sm:$0xff]
      %v1493 = vld [vmem:[%s5 + $0x5c] sm:$0xf]
      %v1494 = vld [vmem:[%s5 + $0x60] sm:$0xff]
      %v1495 = vld [vmem:[%s5 + $0x68] sm:$0xf]
      %v1496 = vld [vmem:[%s5 + $0x6c] sm:$0xff]
      %v1497 = vld [vmem:[%s5 + $0x74] sm:$0xf]
      %v1498 = vld [vmem:[%s5 + $0x78] sm:$0xff]
      %v1499 = vld [vmem:[%s5 + $0x80] sm:$0xf]
      %v1500 = vld [vmem:[%s5 + $0x84] sm:$0xff]
      %v1501 = vld [vmem:[%s5 + $0x8c] sm:$0xf]
      %v1502 = vld [vmem:[%s5 + $0x90] sm:$0xff]
      %v1503 = vld [vmem:[%s5 + $0x98] sm:$0xf]
      %v1504 = vld [vmem:[%s5 + $0x9c] sm:$0xff]
      %v1505 = vld [vmem:[%s5 + $0xa4] sm:$0xf]
      %v1506 = vld [vmem:[%s5 + $0xa8] sm:$0xff]
      %v1507 = vld [vmem:[%s5 + $0xb0] sm:$0xf]
      %v1508 = vld [vmem:[%s5 + $0xb4] sm:$0xff]
      %v1509 = vld [vmem:[%s5 + $0xbc] sm:$0xf]
      %v1542 = vunpack.c.l.b16 %v1478
      %v1543 = vunpack.c.h.b16 %v1478
      %v1544 = vunpack.c.l.b16 %v1479
      %v1545 = vunpack.c.l.b16 %v1480
      %v1546 = vunpack.c.h.b16 %v1480
      %v1547 = vunpack.c.l.b16 %v1481
      %v1548 = vunpack.c.l.b16 %v1482
      %v1549 = vunpack.c.h.b16 %v1482
      %v1550 = vunpack.c.l.b16 %v1483
      %v1551 = vunpack.c.l.b16 %v1484
      %v1552 = vunpack.c.h.b16 %v1484
      %v1553 = vunpack.c.l.b16 %v1485
      %v1554 = vunpack.c.l.b16 %v1486
      %v1555 = vunpack.c.h.b16 %v1486
      %v1556 = vunpack.c.l.b16 %v1487
      %v1557 = vunpack.c.l.b16 %v1488
      %v1558 = vunpack.c.h.b16 %v1488
      %v1559 = vunpack.c.l.b16 %v1489
      %v1560 = vunpack.c.l.b16 %v1490
      %v1561 = vunpack.c.h.b16 %v1490
      %v1562 = vunpack.c.l.b16 %v1491
      %v1563 = vunpack.c.l.b16 %v1492
      %v1564 = vunpack.c.h.b16 %v1492
      %v1565 = vunpack.c.l.b16 %v1493
      %v1566 = vunpack.c.l.b16 %v1494
      %v1567 = vunpack.c.h.b16 %v1494
      %v1568 = vunpack.c.l.b16 %v1495
      %v1569 = vunpack.c.l.b16 %v1496
      %v1570 = vunpack.c.h.b16 %v1496
      %v1571 = vunpack.c.l.b16 %v1497
      %v1572 = vunpack.c.l.b16 %v1498
      %v1573 = vunpack.c.h.b16 %v1498
      %v1574 = vunpack.c.l.b16 %v1499
      %v1575 = vunpack.c.l.b16 %v1500
      %v1576 = vunpack.c.h.b16 %v1500
      %v1577 = vunpack.c.l.b16 %v1501
      %v1578 = vunpack.c.l.b16 %v1502
      %v1579 = vunpack.c.h.b16 %v1502
      %v1580 = vunpack.c.l.b16 %v1503
      %v1581 = vunpack.c.l.b16 %v1504
      %v1582 = vunpack.c.h.b16 %v1504
      %v1583 = vunpack.c.l.b16 %v1505
      %v1584 = vunpack.c.l.b16 %v1506
      %v1585 = vunpack.c.h.b16 %v1506
      %v1586 = vunpack.c.l.b16 %v1507
      %v1587 = vunpack.c.l.b16 %v1508
      %v1588 = vunpack.c.h.b16 %v1508
      %v1589 = vunpack.c.l.b16 %v1509
      %v1590 = vpack.c.b16 %v1545, %v1542
      %v1591 = vpack.c.b16 %v1546, %v1543
      %v1592 = vpack.c.b16 %v1547, %v1544
      %v1593 = vpack.c.b16 %v1551, %v1548
      %v1594 = vpack.c.b16 %v1552, %v1549
      %v1595 = vpack.c.b16 %v1553, %v1550
      %v1596 = vpack.c.b16 %v1557, %v1554
      %v1597 = vpack.c.b16 %v1558, %v1555
      %v1598 = vpack.c.b16 %v1559, %v1556
      %v1599 = vpack.c.b16 %v1563, %v1560
      %v1600 = vpack.c.b16 %v1564, %v1561
      %v1601 = vpack.c.b16 %v1565, %v1562
      %v1602 = vpack.c.b16 %v1569, %v1566
      %v1603 = vpack.c.b16 %v1570, %v1567
      %v1604 = vpack.c.b16 %v1571, %v1568
      %v1605 = vpack.c.b16 %v1575, %v1572
      %v1606 = vpack.c.b16 %v1576, %v1573
      %v1607 = vpack.c.b16 %v1577, %v1574
      %v1608 = vpack.c.b16 %v1581, %v1578
      %v1609 = vpack.c.b16 %v1582, %v1579
      %v1610 = vpack.c.b16 %v1583, %v1580
      %v1611 = vpack.c.b16 %v1587, %v1584
      %v1612 = vpack.c.b16 %v1588, %v1585
      %v1613 = vpack.c.b16 %v1589, %v1586
      %1638 = vmatprep.subr.bf16.mxu0 %v1591
      %1639 = vmatpush1.bf16.msra.mxu0 %v1590
      %1640 = vmatprep.subr.bf16.mxu0 %v1594
      %1641 = vmatpush1.bf16.msra.mxu0 %v1593
      %1642 = vmatprep.subr.bf16.mxu0 %v1597
      %1643 = vmatpush1.bf16.msra.mxu0 %v1596
      %1644 = vmatprep.subr.bf16.mxu0 %v1600
      %1645 = vmatpush1.bf16.msra.mxu0 %v1599
      %1646 = vmatprep.subr.bf16.mxu0 %v1603
      %1647 = vmatpush1.bf16.msra.mxu0 %v1602
      %1648 = vmatprep.subr.bf16.mxu0 %v1606
      %1649 = vmatpush1.bf16.msra.mxu0 %v1605
      %1650 = vmatprep.subr.bf16.mxu0 %v1609
      %1651 = vmatpush1.bf16.msra.mxu0 %v1608
      %1652 = vmatprep.subr.bf16.mxu0 %v1612
      %1653 = vmatpush1.bf16.msra.mxu0 %v1611
      %1654 = vmatprep.subr.bf16.mxu0 0
      %1655 = vmatpush1.bf16.msra.mxu0 0
      %1656 = vmatprep.subr.bf16.mxu0 0
      %1657 = vmatpush1.bf16.msra.mxu0 0
      %1658 = vmatprep.subr.bf16.mxu0 0
      %1659 = vmatpush1.bf16.msra.mxu0 0
      %1660 = vmatprep.subr.bf16.mxu0 0
      %1661 = vmatpush1.bf16.msra.mxu0 0
      %1662 = vmatprep.subr.bf16.mxu0 0
      %1663 = vmatpush1.bf16.msra.mxu0 0
      %1664 = vmatprep.subr.bf16.mxu0 0
      %1665 = vmatpush1.bf16.msra.mxu0 0
      %1666 = vmatprep.subr.bf16.mxu0 0
      %1667 = vmatpush1.bf16.msra.mxu0 0
      %1668 = vmatprep.subr.bf16.mxu0 0
      %1669 = vmatpush1.bf16.msra.mxu0 0
      %1670 = vmatprep.mubr.bf16.mxu0 0
      %1671 = vmatmul.mubr.bf16.gmra.mrb[0].mxu0 %v1475
      %v1672 = vpop.f32.mrb[0].mxu0
      %v1673 = vadd.f32 0.0, %v1672
      %v1674 = vpop.f32.mrb[0].mxu0
      %v1675 = vadd.f32 0.0, %v1674
      %v1676 = vpop.f32.mrb[0].mxu0
      %v1677 = vpop.f32.mrb[0].mxu0
      %1678 = vdwg.mxu0
      %1679 = vmatprep.subr.bf16.mxu0 0
      %1680 = vmatpush1.bf16.msra.mxu0 %v1592
      %1681 = vmatprep.subr.bf16.mxu0 0
      %1682 = vmatpush1.bf16.msra.mxu0 %v1595
      %1683 = vmatprep.subr.bf16.mxu0 0
      %1684 = vmatpush1.bf16.msra.mxu0 %v1598
      %1685 = vmatprep.subr.bf16.mxu0 0
      %1686 = vmatpush1.bf16.msra.mxu0 %v1601
      %1687 = vmatprep.subr.bf16.mxu0 0
      %1688 = vmatpush1.bf16.msra.mxu0 %v1604
      %1689 = vmatprep.subr.bf16.mxu0 0
      %1690 = vmatpush1.bf16.msra.mxu0 %v1607
      %1691 = vmatprep.subr.bf16.mxu0 0
      %1692 = vmatpush1.bf16.msra.mxu0 %v1610
      %1693 = vmatprep.subr.bf16.mxu0 0
      %1694 = vmatpush1.bf16.msra.mxu0 %v1613
      %1695 = vmatprep.subr.bf16.mxu0 0
      %1696 = vmatpush1.bf16.msra.mxu0 0
      %1697 = vmatprep.subr.bf16.mxu0 0
      %1698 = vmatpush1.bf16.msra.mxu0 0
      %1699 = vmatprep.subr.bf16.mxu0 0
      %1700 = vmatpush1.bf16.msra.mxu0 0
      %1701 = vmatprep.subr.bf16.mxu0 0
      %1702 = vmatpush1.bf16.msra.mxu0 0
      %1703 = vmatprep.subr.bf16.mxu0 0
      %1704 = vmatpush1.bf16.msra.mxu0 0
      %1705 = vmatprep.subr.bf16.mxu0 0
      %1706 = vmatpush1.bf16.msra.mxu0 0
      %1707 = vmatprep.subr.bf16.mxu0 0
      %1708 = vmatpush1.bf16.msra.mxu0 0
      %1709 = vmatprep.subr.bf16.mxu0 0
      %1710 = vmatpush1.bf16.msra.mxu0 0
      %1711 = vmatprep.mubr.bf16.mxu0 0
      %1712 = vmatmul.mubr.bf16.gmra.mrb[0].mxu0 %v1475
      %v1713 = vpop.f32.mrb[0].mxu0
      %v1714 = vadd.f32 0.0, %v1713
      %v1715 = vpop.f32.mrb[0].mxu0
      %v1716 = vpop.f32.mrb[0].mxu0
      %v1717 = vpop.f32.mrb[0].mxu0
      %1718 = vdwg.mxu0
      %vm1719 = vcmask 130048
      %v1721 = vsel %vm1719, %v1467, 0
      %1723 = vmatprep.subr.mxu0 %v1469
      %1724 = vmatpush1.msra.mxu0 %v1468
      %1725 = vmatprep.subr.mxu0 %v1472
      %1726 = vmatpush1.msra.mxu0 %v1471
      %1727 = vmatprep.subr.mxu0 0.0
      %1728 = vmatpush1.msra.mxu0 0.0
      %1729 = vmatprep.subr.mxu0 0.0
      %1730 = vmatpush1.msra.mxu0 0.0
      %1731 = vmatprep.subr.mxu0 0.0
      %1732 = vmatpush1.msra.mxu0 0.0
      %1733 = vmatprep.subr.mxu0 0.0
      %1734 = vmatpush1.msra.mxu0 0.0
      %1735 = vmatprep.subr.mxu0 0.0
      %1736 = vmatpush1.msra.mxu0 0.0
      %1737 = vmatprep.subr.mxu0 0.0
      %1738 = vmatpush1.msra.mxu0 0.0
      %1739 = vmatprep.subr.mxu0 0.0
      %1740 = vmatpush1.msra.mxu0 0.0
      %1741 = vmatprep.subr.mxu0 0.0
      %1742 = vmatpush1.msra.mxu0 0.0
      %1743 = vmatprep.subr.mxu0 0.0
      %1744 = vmatpush1.msra.mxu0 0.0
      %1745 = vmatprep.subr.mxu0 0.0
      %1746 = vmatpush1.msra.mxu0 0.0
      %1747 = vmatprep.subr.mxu0 0.0
      %1748 = vmatpush1.msra.mxu0 0.0
      %1749 = vmatprep.subr.mxu0 0.0
      %1750 = vmatpush1.msra.mxu0 0.0
      %1751 = vmatprep.subr.mxu0 0.0
      %1752 = vmatpush1.msra.mxu0 0.0
      %1753 = vmatprep.subr.mxu0 0.0
      %1754 = vmatpush1.msra.mxu0 0.0
      %1755 = vmatprep.subr.mxu0 0.0
      %1756 = vmatpush1.msra.mxu0 0.0
      %1757 = vmatprep.subr.mxu0 0.0
      %1758 = vmatpush1.msra.mxu0 0.0
      %1759 = vmatprep.subr.mxu0 0.0
      %1760 = vmatpush1.msra.mxu0 0.0
      %1761 = vmatprep.subr.mxu0 0.0
      %1762 = vmatpush1.msra.mxu0 0.0
      %1763 = vmatprep.subr.mxu0 0.0
      %1764 = vmatpush1.msra.mxu0 0.0
      %1765 = vmatprep.subr.mxu0 0.0
      %1766 = vmatpush1.msra.mxu0 0.0
      %1767 = vmatprep.subr.mxu0 0.0
      %1768 = vmatpush1.msra.mxu0 0.0
      %1769 = vmatprep.subr.mxu0 0.0
      %1770 = vmatpush1.msra.mxu0 0.0
      %1771 = vmatprep.subr.mxu0 0.0
      %1772 = vmatpush1.msra.mxu0 0.0
      %1773 = vmatprep.subr.mxu0 0.0
      %1774 = vmatpush1.msra.mxu0 0.0
      %1775 = vmatprep.subr.mxu0 0.0
      %1776 = vmatpush1.msra.mxu0 0.0
      %1777 = vmatprep.subr.mxu0 0.0
      %1778 = vmatpush1.msra.mxu0 0.0
      %1779 = vmatprep.subr.mxu0 0.0
      %1780 = vmatpush1.msra.mxu0 0.0
      %1781 = vmatprep.subr.mxu0 0.0
      %1782 = vmatpush1.msra.mxu0 0.0
      %1783 = vmatprep.subr.mxu0 0.0
      %1784 = vmatpush1.msra.mxu0 0.0
      %1785 = vmatprep.subr.mxu0 0.0
      %1786 = vmatpush1.msra.mxu0 0.0
      %1787 = vmatprep.mubr.f32.mxu0 0.0
      %1788 = vmatmul.mubr.f32.gmra.mrb[0].mxu0 %v1721
      %v1789 = vpop.f32.mrb[0].mxu0
      %v1790 = vadd.f32 %v1673, %v1789
      %v1791 = vpop.f32.mrb[0].mxu0
      %v1792 = vadd.f32 %v1675, %v1791
      %1793 = vdwg.mxu0
      %1794 = vmatprep.subr.mxu0 0.0
      %1795 = vmatpush1.msra.mxu0 %v1470
      %1796 = vmatprep.subr.mxu0 0.0
      %1797 = vmatpush1.msra.mxu0 %v1473
      %1798 = vmatprep.subr.mxu0 0.0
      %1799 = vmatpush1.msra.mxu0 0.0
      %1800 = vmatprep.subr.mxu0 0.0
      %1801 = vmatpush1.msra.mxu0 0.0
      %1802 = vmatprep.subr.mxu0 0.0
      %1803 = vmatpush1.msra.mxu0 0.0
      %1804 = vmatprep.subr.mxu0 0.0
      %1805 = vmatpush1.msra.mxu0 0.0
      %1806 = vmatprep.subr.mxu0 0.0
      %1807 = vmatpush1.msra.mxu0 0.0
      %1808 = vmatprep.subr.mxu0 0.0
      %1809 = vmatpush1.msra.mxu0 0.0
      %1810 = vmatprep.subr.mxu0 0.0
      %1811 = vmatpush1.msra.mxu0 0.0
      %1812 = vmatprep.subr.mxu0 0.0
      %1813 = vmatpush1.msra.mxu0 0.0
      %1814 = vmatprep.subr.mxu0 0.0
      %1815 = vmatpush1.msra.mxu0 0.0
      %1816 = vmatprep.subr.mxu0 0.0
      %1817 = vmatpush1.msra.mxu0 0.0
      %1818 = vmatprep.subr.mxu0 0.0
      %1819 = vmatpush1.msra.mxu0 0.0
      %1820 = vmatprep.subr.mxu0 0.0
      %1821 = vmatpush1.msra.mxu0 0.0
      %1822 = vmatprep.subr.mxu0 0.0
      %1823 = vmatpush1.msra.mxu0 0.0
      %1824 = vmatprep.subr.mxu0 0.0
      %1825 = vmatpush1.msra.mxu0 0.0
      %1826 = vmatprep.subr.mxu0 0.0
      %1827 = vmatpush1.msra.mxu0 0.0
      %1828 = vmatprep.subr.mxu0 0.0
      %1829 = vmatpush1.msra.mxu0 0.0
      %1830 = vmatprep.subr.mxu0 0.0
      %1831 = vmatpush1.msra.mxu0 0.0
      %1832 = vmatprep.subr.mxu0 0.0
      %1833 = vmatpush1.msra.mxu0 0.0
      %1834 = vmatprep.subr.mxu0 0.0
      %1835 = vmatpush1.msra.mxu0 0.0
      %1836 = vmatprep.subr.mxu0 0.0
      %1837 = vmatpush1.msra.mxu0 0.0
      %1838 = vmatprep.subr.mxu0 0.0
      %1839 = vmatpush1.msra.mxu0 0.0
      %1840 = vmatprep.subr.mxu0 0.0
      %1841 = vmatpush1.msra.mxu0 0.0
      %1842 = vmatprep.subr.mxu0 0.0
      %1843 = vmatpush1.msra.mxu0 0.0
      %1844 = vmatprep.subr.mxu0 0.0
      %1845 = vmatpush1.msra.mxu0 0.0
      %1846 = vmatprep.subr.mxu0 0.0
      %1847 = vmatpush1.msra.mxu0 0.0
      %1848 = vmatprep.subr.mxu0 0.0
      %1849 = vmatpush1.msra.mxu0 0.0
      %1850 = vmatprep.subr.mxu0 0.0
      %1851 = vmatpush1.msra.mxu0 0.0
      %1852 = vmatprep.subr.mxu0 0.0
      %1853 = vmatpush1.msra.mxu0 0.0
      %1854 = vmatprep.subr.mxu0 0.0
      %1855 = vmatpush1.msra.mxu0 0.0
      %1856 = vmatprep.subr.mxu0 0.0
      %1857 = vmatpush1.msra.mxu0 0.0
      %1858 = vmatprep.mubr.f32.mxu0 0.0
      %1859 = vmatmul.mubr.f32.gmra.mrb[0].mxu0 %v1721
      %v1860 = vpop.f32.mrb[0].mxu0
      %v1861 = vadd.f32 %v1714, %v1860
      %v1862 = vpop.f32.mrb[0].mxu0
      %1863 = vdwg.mxu0
      %v1864 = vld [vmem:[%s7] sm:$0x7]
      %v1866 = vlaneseq
      %v1867 = vshrl.u32 %v1866, 7
      %v1868 = vsub.s32 0, %v1867
      %v1869 = vrot.slane %v1864, %v1868
      %v1870 = vlaneseq
      %v1871 = vshrl.u32 %v1870, 7
      %v1872 = vsub.s32 1, %v1871
      %v1873 = vrot.slane %v1864, %v1872
      %v1874 = vlaneseq
      %v1875 = vshrl.u32 %v1874, 7
      %v1876 = vsub.s32 2, %v1875
      %v1877 = vrot.slane %v1864, %v1876
      %v1881 = vadd.f32 %v1790, %v1869
      %v1882 = vadd.f32 %v1792, %v1873
      %v1883 = vadd.f32 %v1861, %v1877
      %v1884 = vld [vmem:[%s6] sm:$0xff]
      %v1885 = vld [vmem:[%s6 + $0x8] sm:$0xf]
      %v1886 = vld [vmem:[%s6 + $0xc] sm:$0xff]
      %v1887 = vld [vmem:[%s6 + $0x14] sm:$0xf]
      %v1888 = vld [vmem:[%s6 + $0x18] sm:$0xff]
      %v1889 = vld [vmem:[%s6 + $0x20] sm:$0xf]
      %v1890 = vld [vmem:[%s6 + $0x24] sm:$0xff]
      %v1891 = vld [vmem:[%s6 + $0x2c] sm:$0xf]
      %v1892 = vld [vmem:[%s6 + $0x30] sm:$0xff]
      %v1893 = vld [vmem:[%s6 + $0x38] sm:$0xf]
      %v1894 = vld [vmem:[%s6 + $0x3c] sm:$0xff]
      %v1895 = vld [vmem:[%s6 + $0x44] sm:$0xf]
      %v1896 = vld [vmem:[%s6 + $0x48] sm:$0xff]
      %v1897 = vld [vmem:[%s6 + $0x50] sm:$0xf]
      %v1898 = vld [vmem:[%s6 + $0x54] sm:$0xff]
      %v1899 = vld [vmem:[%s6 + $0x5c] sm:$0xf]
      %v1900 = vld [vmem:[%s6 + $0x60] sm:$0xff]
      %v1901 = vld [vmem:[%s6 + $0x68] sm:$0xf]
      %v1902 = vld [vmem:[%s6 + $0x6c] sm:$0xff]
      %v1903 = vld [vmem:[%s6 + $0x74] sm:$0xf]
      %v1904 = vld [vmem:[%s6 + $0x78] sm:$0xff]
      %v1905 = vld [vmem:[%s6 + $0x80] sm:$0xf]
      %v1906 = vld [vmem:[%s6 + $0x84] sm:$0xff]
      %v1907 = vld [vmem:[%s6 + $0x8c] sm:$0xf]
      %v1908 = vld [vmem:[%s6 + $0x90] sm:$0xff]
      %v1909 = vld [vmem:[%s6 + $0x98] sm:$0xf]
      %v1910 = vld [vmem:[%s6 + $0x9c] sm:$0xff]
      %v1911 = vld [vmem:[%s6 + $0xa4] sm:$0xf]
      %v1912 = vld [vmem:[%s6 + $0xa8] sm:$0xff]
      %v1913 = vld [vmem:[%s6 + $0xb0] sm:$0xf]
      %v1914 = vld [vmem:[%s6 + $0xb4] sm:$0xff]
      %v1915 = vld [vmem:[%s6 + $0xbc] sm:$0xf]
      %v1948 = vunpack.c.l.b16 %v1884
      %v1949 = vunpack.c.h.b16 %v1884
      %v1950 = vunpack.c.l.b16 %v1885
      %v1951 = vunpack.c.l.b16 %v1886
      %v1952 = vunpack.c.h.b16 %v1886
      %v1953 = vunpack.c.l.b16 %v1887
      %v1954 = vunpack.c.l.b16 %v1888
      %v1955 = vunpack.c.h.b16 %v1888
      %v1956 = vunpack.c.l.b16 %v1889
      %v1957 = vunpack.c.l.b16 %v1890
      %v1958 = vunpack.c.h.b16 %v1890
      %v1959 = vunpack.c.l.b16 %v1891
      %v1960 = vunpack.c.l.b16 %v1892
      %v1961 = vunpack.c.h.b16 %v1892
      %v1962 = vunpack.c.l.b16 %v1893
      %v1963 = vunpack.c.l.b16 %v1894
      %v1964 = vunpack.c.h.b16 %v1894
      %v1965 = vunpack.c.l.b16 %v1895
      %v1966 = vunpack.c.l.b16 %v1896
      %v1967 = vunpack.c.h.b16 %v1896
      %v1968 = vunpack.c.l.b16 %v1897
      %v1969 = vunpack.c.l.b16 %v1898
      %v1970 = vunpack.c.h.b16 %v1898
      %v1971 = vunpack.c.l.b16 %v1899
      %v1972 = vunpack.c.l.b16 %v1900
      %v1973 = vunpack.c.h.b16 %v1900
      %v1974 = vunpack.c.l.b16 %v1901
      %v1975 = vunpack.c.l.b16 %v1902
      %v1976 = vunpack.c.h.b16 %v1902
      %v1977 = vunpack.c.l.b16 %v1903
      %v1978 = vunpack.c.l.b16 %v1904
      %v1979 = vunpack.c.h.b16 %v1904
      %v1980 = vunpack.c.l.b16 %v1905
      %v1981 = vunpack.c.l.b16 %v1906
      %v1982 = vunpack.c.h.b16 %v1906
      %v1983 = vunpack.c.l.b16 %v1907
      %v1984 = vunpack.c.l.b16 %v1908
      %v1985 = vunpack.c.h.b16 %v1908
      %v1986 = vunpack.c.l.b16 %v1909
      %v1987 = vunpack.c.l.b16 %v1910
      %v1988 = vunpack.c.h.b16 %v1910
      %v1989 = vunpack.c.l.b16 %v1911
      %v1990 = vunpack.c.l.b16 %v1912
      %v1991 = vunpack.c.h.b16 %v1912
      %v1992 = vunpack.c.l.b16 %v1913
      %v1993 = vunpack.c.l.b16 %v1914
      %v1994 = vunpack.c.h.b16 %v1914
      %v1995 = vunpack.c.l.b16 %v1915
      %v1996 = vpack.c.b16 %v1951, %v1948
      %v1997 = vpack.c.b16 %v1952, %v1949
      %v1998 = vpack.c.b16 %v1953, %v1950
      %v1999 = vpack.c.b16 %v1957, %v1954
      %v2000 = vpack.c.b16 %v1958, %v1955
      %v2001 = vpack.c.b16 %v1959, %v1956
      %v2002 = vpack.c.b16 %v1963, %v1960
      %v2003 = vpack.c.b16 %v1964, %v1961
      %v2004 = vpack.c.b16 %v1965, %v1962
      %v2005 = vpack.c.b16 %v1969, %v1966
      %v2006 = vpack.c.b16 %v1970, %v1967
      %v2007 = vpack.c.b16 %v1971, %v1968
      %v2008 = vpack.c.b16 %v1975, %v1972
      %v2009 = vpack.c.b16 %v1976, %v1973
      %v2010 = vpack.c.b16 %v1977, %v1974
      %v2011 = vpack.c.b16 %v1981, %v1978
      %v2012 = vpack.c.b16 %v1982, %v1979
      %v2013 = vpack.c.b16 %v1983, %v1980
      %v2014 = vpack.c.b16 %v1987, %v1984
      %v2015 = vpack.c.b16 %v1988, %v1985
      %v2016 = vpack.c.b16 %v1989, %v1986
      %v2017 = vpack.c.b16 %v1993, %v1990
      %v2018 = vpack.c.b16 %v1994, %v1991
      %v2019 = vpack.c.b16 %v1995, %v1992
      %2044 = vmatprep.subr.bf16.mxu0 %v1997
      %2045 = vmatpush1.bf16.msra.mxu0 %v1996
      %2046 = vmatprep.subr.bf16.mxu0 %v2000
      %2047 = vmatpush1.bf16.msra.mxu0 %v1999
      %2048 = vmatprep.subr.bf16.mxu0 %v2003
      %2049 = vmatpush1.bf16.msra.mxu0 %v2002
      %2050 = vmatprep.subr.bf16.mxu0 %v2006
      %2051 = vmatpush1.bf16.msra.mxu0 %v2005
      %2052 = vmatprep.subr.bf16.mxu0 %v2009
      %2053 = vmatpush1.bf16.msra.mxu0 %v2008
      %2054 = vmatprep.subr.bf16.mxu0 %v2012
      %2055 = vmatpush1.bf16.msra.mxu0 %v2011
      %2056 = vmatprep.subr.bf16.mxu0 %v2015
      %2057 = vmatpush1.bf16.msra.mxu0 %v2014
      %2058 = vmatprep.subr.bf16.mxu0 %v2018
      %2059 = vmatpush1.bf16.msra.mxu0 %v2017
      %2060 = vmatprep.subr.bf16.mxu0 0
      %2061 = vmatpush1.bf16.msra.mxu0 0
      %2062 = vmatprep.subr.bf16.mxu0 0
      %2063 = vmatpush1.bf16.msra.mxu0 0
      %2064 = vmatprep.subr.bf16.mxu0 0
      %2065 = vmatpush1.bf16.msra.mxu0 0
      %2066 = vmatprep.subr.bf16.mxu0 0
      %2067 = vmatpush1.bf16.msra.mxu0 0
      %2068 = vmatprep.subr.bf16.mxu0 0
      %2069 = vmatpush1.bf16.msra.mxu0 0
      %2070 = vmatprep.subr.bf16.mxu0 0
      %2071 = vmatpush1.bf16.msra.mxu0 0
      %2072 = vmatprep.subr.bf16.mxu0 0
      %2073 = vmatpush1.bf16.msra.mxu0 0
      %2074 = vmatprep.subr.bf16.mxu0 0
      %2075 = vmatpush1.bf16.msra.mxu0 0
      %2076 = vmatprep.mubr.bf16.mxu0 0
      %2077 = vmatmul.mubr.bf16.gmra.mrb[0].mxu0 %v1477
      %v2078 = vpop.f32.mrb[0].mxu0
      %v2079 = vadd.f32 0.0, %v2078
      %v2080 = vpop.f32.mrb[0].mxu0
      %v2081 = vadd.f32 0.0, %v2080
      %v2082 = vpop.f32.mrb[0].mxu0
      %v2083 = vpop.f32.mrb[0].mxu0
      %2084 = vdwg.mxu0
      %2085 = vmatprep.subr.bf16.mxu0 0
      %2086 = vmatpush1.bf16.msra.mxu0 %v1998
      %2087 = vmatprep.subr.bf16.mxu0 0
      %2088 = vmatpush1.bf16.msra.mxu0 %v2001
      %2089 = vmatprep.subr.bf16.mxu0 0
      %2090 = vmatpush1.bf16.msra.mxu0 %v2004
      %2091 = vmatprep.subr.bf16.mxu0 0
      %2092 = vmatpush1.bf16.msra.mxu0 %v2007
      %2093 = vmatprep.subr.bf16.mxu0 0
      %2094 = vmatpush1.bf16.msra.mxu0 %v2010
      %2095 = vmatprep.subr.bf16.mxu0 0
      %2096 = vmatpush1.bf16.msra.mxu0 %v2013
      %2097 = vmatprep.subr.bf16.mxu0 0
      %2098 = vmatpush1.bf16.msra.mxu0 %v2016
      %2099 = vmatprep.subr.bf16.mxu0 0
      %2100 = vmatpush1.bf16.msra.mxu0 %v2019
      %2101 = vmatprep.subr.bf16.mxu0 0
      %2102 = vmatpush1.bf16.msra.mxu0 0
      %2103 = vmatprep.subr.bf16.mxu0 0
      %2104 = vmatpush1.bf16.msra.mxu0 0
      %2105 = vmatprep.subr.bf16.mxu0 0
      %2106 = vmatpush1.bf16.msra.mxu0 0
      %2107 = vmatprep.subr.bf16.mxu0 0
      %2108 = vmatpush1.bf16.msra.mxu0 0
      %2109 = vmatprep.subr.bf16.mxu0 0
      %2110 = vmatpush1.bf16.msra.mxu0 0
      %2111 = vmatprep.subr.bf16.mxu0 0
      %2112 = vmatpush1.bf16.msra.mxu0 0
      %2113 = vmatprep.subr.bf16.mxu0 0
      %2114 = vmatpush1.bf16.msra.mxu0 0
      %2115 = vmatprep.subr.bf16.mxu0 0
      %2116 = vmatpush1.bf16.msra.mxu0 0
      %2117 = vmatprep.mubr.bf16.mxu0 0
      %2118 = vmatmul.mubr.bf16.gmra.mrb[0].mxu0 %v1477
      %v2119 = vpop.f32.mrb[0].mxu0
      %v2120 = vadd.f32 0.0, %v2119
      %v2121 = vpop.f32.mrb[0].mxu0
      %v2122 = vpop.f32.mrb[0].mxu0
      %v2123 = vpop.f32.mrb[0].mxu0
      %2124 = vdwg.mxu0
      %v2125 = vadd.f32 %v1881, %v2079
      %v2126 = vxor.u32 %v2125, 2147483648
      %v2127 = vmul.f32 %v2126, 1.442695
      %v2128 = vpow.pop %v2127
      %v2129 = vadd.f32 %v2128, 1.0
      %v2130 = vrcp.pop %v2129
      %v2131 = vmul.f32 1.0, %v2130
      %v2132 = vadd.f32 %v1882, %v2081
      %v2133 = vxor.u32 %v2132, 2147483648
      %v2134 = vmul.f32 %v2133, 1.442695
      %v2135 = vpow.pop %v2134
      %v2136 = vadd.f32 %v2135, 1.0
      %v2137 = vrcp.pop %v2136
      %v2138 = vmul.f32 1.0, %v2137
      %v2139 = vld [vmem:[%s8] sm:$0x1]
      %v2141 = vlaneseq
      %v2142 = vshrl.u32 %v2141, 7
      %v2143 = vsub.s32 0, %v2142
      %v2144 = vrot.slane %v2139, %v2143
      %v2146 = vadd.f32 %v2120, %v2144
      %v2147 = vmul.f32 %v2131, %v2146
      %v2148 = vadd.f32 %v1883, %v2147
      %v2149 = vtanh.pop %v2148
      %v2150 = vsub.f32 1.0, %v2138
      %v2151 = vmul.f32 %v2150, %v2149
      %v2152 = vmul.f32 %v2138, %v1476
      %v2153 = vadd.f32 %v2151, %v2152
      %2154 = vst [vmem:[#allocation2] sm:$0xff] %v2153
      %v2155 = vpack.c.bf16 %v2153, %v2153
      %s2156 = scalar_lea.vmem [#allocation2], 8
      %v2157 = vld [vmem:[%s2156] sm:$0xff]
      %v2158 = vpack.c.bf16 %v2157, %v2157
      %v2159 = vld [vmem:[%s9] sm:$0xff]
      %v2160 = vld [vmem:[%s9 + $0x8] sm:$0xf]
      %v2161 = vld [vmem:[%s9 + $0xc] sm:$0xff]
      %v2162 = vld [vmem:[%s9 + $0x14] sm:$0xf]
      %v2163 = vld [vmem:[%s9 + $0x18] sm:$0xff]
      %v2164 = vld [vmem:[%s9 + $0x20] sm:$0xf]
      %v2165 = vld [vmem:[%s9 + $0x24] sm:$0xff]
      %v2166 = vld [vmem:[%s9 + $0x2c] sm:$0xf]
      %v2167 = vld [vmem:[%s9 + $0x30] sm:$0xff]
      %v2168 = vld [vmem:[%s9 + $0x38] sm:$0xf]
      %v2169 = vld [vmem:[%s9 + $0x3c] sm:$0xff]
      %v2170 = vld [vmem:[%s9 + $0x44] sm:$0xf]
      %v2171 = vld [vmem:[%s9 + $0x48] sm:$0xff]
      %v2172 = vld [vmem:[%s9 + $0x50] sm:$0xf]
      %v2173 = vld [vmem:[%s9 + $0x54] sm:$0xff]
      %v2174 = vld [vmem:[%s9 + $0x5c] sm:$0xf]
      %v2175 = vld [vmem:[%s9 + $0x60] sm:$0xff]
      %v2176 = vld [vmem:[%s9 + $0x68] sm:$0xf]
      %v2177 = vld [vmem:[%s9 + $0x6c] sm:$0xff]
      %v2178 = vld [vmem:[%s9 + $0x74] sm:$0xf]
      %v2179 = vld [vmem:[%s9 + $0x78] sm:$0xff]
      %v2180 = vld [vmem:[%s9 + $0x80] sm:$0xf]
      %v2181 = vld [vmem:[%s9 + $0x84] sm:$0xff]
      %v2182 = vld [vmem:[%s9 + $0x8c] sm:$0xf]
      %v2183 = vld [vmem:[%s9 + $0x90] sm:$0xff]
      %v2184 = vld [vmem:[%s9 + $0x98] sm:$0xf]
      %v2185 = vld [vmem:[%s9 + $0x9c] sm:$0xff]
      %v2186 = vld [vmem:[%s9 + $0xa4] sm:$0xf]
      %v2187 = vld [vmem:[%s9 + $0xa8] sm:$0xff]
      %v2188 = vld [vmem:[%s9 + $0xb0] sm:$0xf]
      %v2189 = vld [vmem:[%s9 + $0xb4] sm:$0xff]
      %v2190 = vld [vmem:[%s9 + $0xbc] sm:$0xf]
      %v2191 = vld [vmem:[%s11] sm:$0x7]
      %v2193 = vlaneseq
      %v2194 = vshrl.u32 %v2193, 7
      %v2195 = vsub.s32 0, %v2194
      %v2196 = vrot.slane %v2191, %v2195
      %v2197 = vlaneseq
      %v2198 = vshrl.u32 %v2197, 7
      %v2199 = vsub.s32 1, %v2198
      %v2200 = vrot.slane %v2191, %v2199
      %v2201 = vlaneseq
      %v2202 = vshrl.u32 %v2201, 7
      %v2203 = vsub.s32 2, %v2202
      %v2204 = vrot.slane %v2191, %v2203
      %v2240 = vunpack.c.l.b16 %v2159
      %v2241 = vunpack.c.h.b16 %v2159
      %v2242 = vunpack.c.l.b16 %v2160
      %v2243 = vunpack.c.l.b16 %v2161
      %v2244 = vunpack.c.h.b16 %v2161
      %v2245 = vunpack.c.l.b16 %v2162
      %v2246 = vunpack.c.l.b16 %v2163
      %v2247 = vunpack.c.h.b16 %v2163
      %v2248 = vunpack.c.l.b16 %v2164
      %v2249 = vunpack.c.l.b16 %v2165
      %v2250 = vunpack.c.h.b16 %v2165
      %v2251 = vunpack.c.l.b16 %v2166
      %v2252 = vunpack.c.l.b16 %v2167
      %v2253 = vunpack.c.h.b16 %v2167
      %v2254 = vunpack.c.l.b16 %v2168
      %v2255 = vunpack.c.l.b16 %v2169
      %v2256 = vunpack.c.h.b16 %v2169
      %v2257 = vunpack.c.l.b16 %v2170
      %v2258 = vunpack.c.l.b16 %v2171
      %v2259 = vunpack.c.h.b16 %v2171
      %v2260 = vunpack.c.l.b16 %v2172
      %v2261 = vunpack.c.l.b16 %v2173
      %v2262 = vunpack.c.h.b16 %v2173
      %v2263 = vunpack.c.l.b16 %v2174
      %v2264 = vunpack.c.l.b16 %v2175
      %v2265 = vunpack.c.h.b16 %v2175
      %v2266 = vunpack.c.l.b16 %v2176
      %v2267 = vunpack.c.l.b16 %v2177
      %v2268 = vunpack.c.h.b16 %v2177
      %v2269 = vunpack.c.l.b16 %v2178
      %v2270 = vunpack.c.l.b16 %v2179
      %v2271 = vunpack.c.h.b16 %v2179
      %v2272 = vunpack.c.l.b16 %v2180
      %v2273 = vunpack.c.l.b16 %v2181
      %v2274 = vunpack.c.h.b16 %v2181
      %v2275 = vunpack.c.l.b16 %v2182
      %v2276 = vunpack.c.l.b16 %v2183
      %v2277 = vunpack.c.h.b16 %v2183
      %v2278 = vunpack.c.l.b16 %v2184
      %v2279 = vunpack.c.l.b16 %v2185
      %v2280 = vunpack.c.h.b16 %v2185
      %v2281 = vunpack.c.l.b16 %v2186
      %v2282 = vunpack.c.l.b16 %v2187
      %v2283 = vunpack.c.h.b16 %v2187
      %v2284 = vunpack.c.l.b16 %v2188
      %v2285 = vunpack.c.l.b16 %v2189
      %v2286 = vunpack.c.h.b16 %v2189
      %v2287 = vunpack.c.l.b16 %v2190
      %v2288 = vpack.c.b16 %v2243, %v2240
      %v2289 = vpack.c.b16 %v2244, %v2241
      %v2290 = vpack.c.b16 %v2245, %v2242
      %v2291 = vpack.c.b16 %v2249, %v2246
      %v2292 = vpack.c.b16 %v2250, %v2247
      %v2293 = vpack.c.b16 %v2251, %v2248
      %v2294 = vpack.c.b16 %v2255, %v2252
      %v2295 = vpack.c.b16 %v2256, %v2253
      %v2296 = vpack.c.b16 %v2257, %v2254
      %v2297 = vpack.c.b16 %v2261, %v2258
      %v2298 = vpack.c.b16 %v2262, %v2259
      %v2299 = vpack.c.b16 %v2263, %v2260
      %v2300 = vpack.c.b16 %v2267, %v2264
      %v2301 = vpack.c.b16 %v2268, %v2265
      %v2302 = vpack.c.b16 %v2269, %v2266
      %v2303 = vpack.c.b16 %v2273, %v2270
      %v2304 = vpack.c.b16 %v2274, %v2271
      %v2305 = vpack.c.b16 %v2275, %v2272
      %v2306 = vpack.c.b16 %v2279, %v2276
      %v2307 = vpack.c.b16 %v2280, %v2277
      %v2308 = vpack.c.b16 %v2281, %v2278
      %v2309 = vpack.c.b16 %v2285, %v2282
      %v2310 = vpack.c.b16 %v2286, %v2283
      %v2311 = vpack.c.b16 %v2287, %v2284
      %2336 = vmatprep.subr.bf16.mxu0 %v2289
      %2337 = vmatpush1.bf16.msra.mxu0 %v2288
      %2338 = vmatprep.subr.bf16.mxu0 %v2292
      %2339 = vmatpush1.bf16.msra.mxu0 %v2291
      %2340 = vmatprep.subr.bf16.mxu0 %v2295
      %2341 = vmatpush1.bf16.msra.mxu0 %v2294
      %2342 = vmatprep.subr.bf16.mxu0 %v2298
      %2343 = vmatpush1.bf16.msra.mxu0 %v2297
      %2344 = vmatprep.subr.bf16.mxu0 %v2301
      %2345 = vmatpush1.bf16.msra.mxu0 %v2300
      %2346 = vmatprep.subr.bf16.mxu0 %v2304
      %2347 = vmatpush1.bf16.msra.mxu0 %v2303
      %2348 = vmatprep.subr.bf16.mxu0 %v2307
      %2349 = vmatpush1.bf16.msra.mxu0 %v2306
      %2350 = vmatprep.subr.bf16.mxu0 %v2310
      %2351 = vmatpush1.bf16.msra.mxu0 %v2309
      %2352 = vmatprep.subr.bf16.mxu0 0
      %2353 = vmatpush1.bf16.msra.mxu0 0
      %2354 = vmatprep.subr.bf16.mxu0 0
      %2355 = vmatpush1.bf16.msra.mxu0 0
      %2356 = vmatprep.subr.bf16.mxu0 0
      %2357 = vmatpush1.bf16.msra.mxu0 0
      %2358 = vmatprep.subr.bf16.mxu0 0
      %2359 = vmatpush1.bf16.msra.mxu0 0
      %2360 = vmatprep.subr.bf16.mxu0 0
      %2361 = vmatpush1.bf16.msra.mxu0 0
      %2362 = vmatprep.subr.bf16.mxu0 0
      %2363 = vmatpush1.bf16.msra.mxu0 0
      %2364 = vmatprep.subr.bf16.mxu0 0
      %2365 = vmatpush1.bf16.msra.mxu0 0
      %2366 = vmatprep.subr.bf16.mxu0 0
      %2367 = vmatpush1.bf16.msra.mxu0 0
      %2368 = vmatprep.mubr.bf16.mxu0 0
      %2369 = vmatmul.mubr.bf16.gmra.mrb[0].mxu0 %v2155
      %v2370 = vpop.f32.mrb[0].mxu0
      %v2371 = vadd.f32 %v2196, %v2370
      %v2372 = vpop.f32.mrb[0].mxu0
      %v2373 = vadd.f32 %v2200, %v2372
      %v2374 = vpop.f32.mrb[0].mxu0
      %v2375 = vpop.f32.mrb[0].mxu0
      %2376 = vdwg.mxu0
      %2377 = vmatprep.subr.bf16.mxu0 0
      %2378 = vmatpush1.bf16.msra.mxu0 %v2290
      %2379 = vmatprep.subr.bf16.mxu0 0
      %2380 = vmatpush1.bf16.msra.mxu0 %v2293
      %2381 = vmatprep.subr.bf16.mxu0 0
      %2382 = vmatpush1.bf16.msra.mxu0 %v2296
      %2383 = vmatprep.subr.bf16.mxu0 0
      %2384 = vmatpush1.bf16.msra.mxu0 %v2299
      %2385 = vmatprep.subr.bf16.mxu0 0
      %2386 = vmatpush1.bf16.msra.mxu0 %v2302
      %2387 = vmatprep.subr.bf16.mxu0 0
      %2388 = vmatpush1.bf16.msra.mxu0 %v2305
      %2389 = vmatprep.subr.bf16.mxu0 0
      %2390 = vmatpush1.bf16.msra.mxu0 %v2308
      %2391 = vmatprep.subr.bf16.mxu0 0
      %2392 = vmatpush1.bf16.msra.mxu0 %v2311
      %2393 = vmatprep.subr.bf16.mxu0 0
      %2394 = vmatpush1.bf16.msra.mxu0 0
      %2395 = vmatprep.subr.bf16.mxu0 0
      %2396 = vmatpush1.bf16.msra.mxu0 0
      %2397 = vmatprep.subr.bf16.mxu0 0
      %2398 = vmatpush1.bf16.msra.mxu0 0
      %2399 = vmatprep.subr.bf16.mxu0 0
      %2400 = vmatpush1.bf16.msra.mxu0 0
      %2401 = vmatprep.subr.bf16.mxu0 0
      %2402 = vmatpush1.bf16.msra.mxu0 0
      %2403 = vmatprep.subr.bf16.mxu0 0
      %2404 = vmatpush1.bf16.msra.mxu0 0
      %2405 = vmatprep.subr.bf16.mxu0 0
      %2406 = vmatpush1.bf16.msra.mxu0 0
      %2407 = vmatprep.subr.bf16.mxu0 0
      %2408 = vmatpush1.bf16.msra.mxu0 0
      %2409 = vmatprep.mubr.bf16.mxu0 0
      %2410 = vmatmul.mubr.bf16.gmra.mrb[0].mxu0 %v2155
      %v2411 = vpop.f32.mrb[0].mxu0
      %v2412 = vadd.f32 %v2204, %v2411
      %v2413 = vpop.f32.mrb[0].mxu0
      %v2414 = vpop.f32.mrb[0].mxu0
      %v2415 = vpop.f32.mrb[0].mxu0
      %2416 = vdwg.mxu0
      %v2417 = vld [vmem:[%s10] sm:$0xff]
      %v2418 = vld [vmem:[%s10 + $0x8] sm:$0xf]
      %v2419 = vld [vmem:[%s10 + $0xc] sm:$0xff]
      %v2420 = vld [vmem:[%s10 + $0x14] sm:$0xf]
      %v2421 = vld [vmem:[%s10 + $0x18] sm:$0xff]
      %v2422 = vld [vmem:[%s10 + $0x20] sm:$0xf]
      %v2423 = vld [vmem:[%s10 + $0x24] sm:$0xff]
      %v2424 = vld [vmem:[%s10 + $0x2c] sm:$0xf]
      %v2425 = vld [vmem:[%s10 + $0x30] sm:$0xff]
      %v2426 = vld [vmem:[%s10 + $0x38] sm:$0xf]
      %v2427 = vld [vmem:[%s10 + $0x3c] sm:$0xff]
      %v2428 = vld [vmem:[%s10 + $0x44] sm:$0xf]
      %v2429 = vld [vmem:[%s10 + $0x48] sm:$0xff]
      %v2430 = vld [vmem:[%s10 + $0x50] sm:$0xf]
      %v2431 = vld [vmem:[%s10 + $0x54] sm:$0xff]
      %v2432 = vld [vmem:[%s10 + $0x5c] sm:$0xf]
      %v2433 = vld [vmem:[%s10 + $0x60] sm:$0xff]
      %v2434 = vld [vmem:[%s10 + $0x68] sm:$0xf]
      %v2435 = vld [vmem:[%s10 + $0x6c] sm:$0xff]
      %v2436 = vld [vmem:[%s10 + $0x74] sm:$0xf]
      %v2437 = vld [vmem:[%s10 + $0x78] sm:$0xff]
      %v2438 = vld [vmem:[%s10 + $0x80] sm:$0xf]
      %v2439 = vld [vmem:[%s10 + $0x84] sm:$0xff]
      %v2440 = vld [vmem:[%s10 + $0x8c] sm:$0xf]
      %v2441 = vld [vmem:[%s10 + $0x90] sm:$0xff]
      %v2442 = vld [vmem:[%s10 + $0x98] sm:$0xf]
      %v2443 = vld [vmem:[%s10 + $0x9c] sm:$0xff]
      %v2444 = vld [vmem:[%s10 + $0xa4] sm:$0xf]
      %v2445 = vld [vmem:[%s10 + $0xa8] sm:$0xff]
      %v2446 = vld [vmem:[%s10 + $0xb0] sm:$0xf]
      %v2447 = vld [vmem:[%s10 + $0xb4] sm:$0xff]
      %v2448 = vld [vmem:[%s10 + $0xbc] sm:$0xf]
      %v2481 = vunpack.c.l.b16 %v2417
      %v2482 = vunpack.c.h.b16 %v2417
      %v2483 = vunpack.c.l.b16 %v2418
      %v2484 = vunpack.c.l.b16 %v2419
      %v2485 = vunpack.c.h.b16 %v2419
      %v2486 = vunpack.c.l.b16 %v2420
      %v2487 = vunpack.c.l.b16 %v2421
      %v2488 = vunpack.c.h.b16 %v2421
      %v2489 = vunpack.c.l.b16 %v2422
      %v2490 = vunpack.c.l.b16 %v2423
      %v2491 = vunpack.c.h.b16 %v2423
      %v2492 = vunpack.c.l.b16 %v2424
      %v2493 = vunpack.c.l.b16 %v2425
      %v2494 = vunpack.c.h.b16 %v2425
      %v2495 = vunpack.c.l.b16 %v2426
      %v2496 = vunpack.c.l.b16 %v2427
      %v2497 = vunpack.c.h.b16 %v2427
      %v2498 = vunpack.c.l.b16 %v2428
      %v2499 = vunpack.c.l.b16 %v2429
      %v2500 = vunpack.c.h.b16 %v2429
      %v2501 = vunpack.c.l.b16 %v2430
      %v2502 = vunpack.c.l.b16 %v2431
      %v2503 = vunpack.c.h.b16 %v2431
      %v2504 = vunpack.c.l.b16 %v2432
      %v2505 = vunpack.c.l.b16 %v2433
      %v2506 = vunpack.c.h.b16 %v2433
      %v2507 = vunpack.c.l.b16 %v2434
      %v2508 = vunpack.c.l.b16 %v2435
      %v2509 = vunpack.c.h.b16 %v2435
      %v2510 = vunpack.c.l.b16 %v2436
      %v2511 = vunpack.c.l.b16 %v2437
      %v2512 = vunpack.c.h.b16 %v2437
      %v2513 = vunpack.c.l.b16 %v2438
      %v2514 = vunpack.c.l.b16 %v2439
      %v2515 = vunpack.c.h.b16 %v2439
      %v2516 = vunpack.c.l.b16 %v2440
      %v2517 = vunpack.c.l.b16 %v2441
      %v2518 = vunpack.c.h.b16 %v2441
      %v2519 = vunpack.c.l.b16 %v2442
      %v2520 = vunpack.c.l.b16 %v2443
      %v2521 = vunpack.c.h.b16 %v2443
      %v2522 = vunpack.c.l.b16 %v2444
      %v2523 = vunpack.c.l.b16 %v2445
      %v2524 = vunpack.c.h.b16 %v2445
      %v2525 = vunpack.c.l.b16 %v2446
      %v2526 = vunpack.c.l.b16 %v2447
      %v2527 = vunpack.c.h.b16 %v2447
      %v2528 = vunpack.c.l.b16 %v2448
      %v2529 = vpack.c.b16 %v2484, %v2481
      %v2530 = vpack.c.b16 %v2485, %v2482
      %v2531 = vpack.c.b16 %v2486, %v2483
      %v2532 = vpack.c.b16 %v2490, %v2487
      %v2533 = vpack.c.b16 %v2491, %v2488
      %v2534 = vpack.c.b16 %v2492, %v2489
      %v2535 = vpack.c.b16 %v2496, %v2493
      %v2536 = vpack.c.b16 %v2497, %v2494
      %v2537 = vpack.c.b16 %v2498, %v2495
      %v2538 = vpack.c.b16 %v2502, %v2499
      %v2539 = vpack.c.b16 %v2503, %v2500
      %v2540 = vpack.c.b16 %v2504, %v2501
      %v2541 = vpack.c.b16 %v2508, %v2505
      %v2542 = vpack.c.b16 %v2509, %v2506
      %v2543 = vpack.c.b16 %v2510, %v2507
      %v2544 = vpack.c.b16 %v2514, %v2511
      %v2545 = vpack.c.b16 %v2515, %v2512
      %v2546 = vpack.c.b16 %v2516, %v2513
      %v2547 = vpack.c.b16 %v2520, %v2517
      %v2548 = vpack.c.b16 %v2521, %v2518
      %v2549 = vpack.c.b16 %v2522, %v2519
      %v2550 = vpack.c.b16 %v2526, %v2523
      %v2551 = vpack.c.b16 %v2527, %v2524
      %v2552 = vpack.c.b16 %v2528, %v2525
      %2577 = vmatprep.subr.bf16.mxu0 %v2530
      %2578 = vmatpush1.bf16.msra.mxu0 %v2529
      %2579 = vmatprep.subr.bf16.mxu0 %v2533
      %2580 = vmatpush1.bf16.msra.mxu0 %v2532
      %2581 = vmatprep.subr.bf16.mxu0 %v2536
      %2582 = vmatpush1.bf16.msra.mxu0 %v2535
      %2583 = vmatprep.subr.bf16.mxu0 %v2539
      %2584 = vmatpush1.bf16.msra.mxu0 %v2538
      %2585 = vmatprep.subr.bf16.mxu0 %v2542
      %2586 = vmatpush1.bf16.msra.mxu0 %v2541
      %2587 = vmatprep.subr.bf16.mxu0 %v2545
      %2588 = vmatpush1.bf16.msra.mxu0 %v2544
      %2589 = vmatprep.subr.bf16.mxu0 %v2548
      %2590 = vmatpush1.bf16.msra.mxu0 %v2547
      %2591 = vmatprep.subr.bf16.mxu0 %v2551
      %2592 = vmatpush1.bf16.msra.mxu0 %v2550
      %2593 = vmatprep.subr.bf16.mxu0 0
      %2594 = vmatpush1.bf16.msra.mxu0 0
      %2595 = vmatprep.subr.bf16.mxu0 0
      %2596 = vmatpush1.bf16.msra.mxu0 0
      %2597 = vmatprep.subr.bf16.mxu0 0
      %2598 = vmatpush1.bf16.msra.mxu0 0
      %2599 = vmatprep.subr.bf16.mxu0 0
      %2600 = vmatpush1.bf16.msra.mxu0 0
      %2601 = vmatprep.subr.bf16.mxu0 0
      %2602 = vmatpush1.bf16.msra.mxu0 0
      %2603 = vmatprep.subr.bf16.mxu0 0
      %2604 = vmatpush1.bf16.msra.mxu0 0
      %2605 = vmatprep.subr.bf16.mxu0 0
      %2606 = vmatpush1.bf16.msra.mxu0 0
      %2607 = vmatprep.subr.bf16.mxu0 0
      %2608 = vmatpush1.bf16.msra.mxu0 0
      %2609 = vmatprep.mubr.bf16.mxu0 0
      %2610 = vmatmul.mubr.bf16.gmra.mrb[0].mxu0 %v2158
      %v2611 = vpop.f32.mrb[0].mxu0
      %v2612 = vadd.f32 0.0, %v2611
      %v2613 = vpop.f32.mrb[0].mxu0
      %v2614 = vadd.f32 0.0, %v2613
      %v2615 = vpop.f32.mrb[0].mxu0
      %v2616 = vpop.f32.mrb[0].mxu0
      %2617 = vdwg.mxu0
      %2618 = vmatprep.subr.bf16.mxu0 0
      %2619 = vmatpush1.bf16.msra.mxu0 %v2531
      %2620 = vmatprep.subr.bf16.mxu0 0
      %2621 = vmatpush1.bf16.msra.mxu0 %v2534
      %2622 = vmatprep.subr.bf16.mxu0 0
      %2623 = vmatpush1.bf16.msra.mxu0 %v2537
      %2624 = vmatprep.subr.bf16.mxu0 0
      %2625 = vmatpush1.bf16.msra.mxu0 %v2540
      %2626 = vmatprep.subr.bf16.mxu0 0
      %2627 = vmatpush1.bf16.msra.mxu0 %v2543
      %2628 = vmatprep.subr.bf16.mxu0 0
      %2629 = vmatpush1.bf16.msra.mxu0 %v2546
      %2630 = vmatprep.subr.bf16.mxu0 0
      %2631 = vmatpush1.bf16.msra.mxu0 %v2549
      %2632 = vmatprep.subr.bf16.mxu0 0
      %2633 = vmatpush1.bf16.msra.mxu0 %v2552
      %2634 = vmatprep.subr.bf16.mxu0 0
      %2635 = vmatpush1.bf16.msra.mxu0 0
      %2636 = vmatprep.subr.bf16.mxu0 0
      %2637 = vmatpush1.bf16.msra.mxu0 0
      %2638 = vmatprep.subr.bf16.mxu0 0
      %2639 = vmatpush1.bf16.msra.mxu0 0
      %2640 = vmatprep.subr.bf16.mxu0 0
      %2641 = vmatpush1.bf16.msra.mxu0 0
      %2642 = vmatprep.subr.bf16.mxu0 0
      %2643 = vmatpush1.bf16.msra.mxu0 0
      %2644 = vmatprep.subr.bf16.mxu0 0
      %2645 = vmatpush1.bf16.msra.mxu0 0
      %2646 = vmatprep.subr.bf16.mxu0 0
      %2647 = vmatpush1.bf16.msra.mxu0 0
      %2648 = vmatprep.subr.bf16.mxu0 0
      %2649 = vmatpush1.bf16.msra.mxu0 0
      %2650 = vmatprep.mubr.bf16.mxu0 0
      %2651 = vmatmul.mubr.bf16.gmra.mrb[0].mxu0 %v2158
      %v2652 = vpop.f32.mrb[0].mxu0
      %v2653 = vadd.f32 0.0, %v2652
      %v2654 = vpop.f32.mrb[0].mxu0
      %v2655 = vpop.f32.mrb[0].mxu0
      %v2656 = vpop.f32.mrb[0].mxu0
      %2657 = vdwg.mxu0
      %v2658 = vadd.f32 %v2371, %v2612
      %v2659 = vxor.u32 %v2658, 2147483648
      %v2660 = vmul.f32 %v2659, 1.442695
      %v2661 = vpow.pop %v2660
      %v2662 = vadd.f32 %v2661, 1.0
      %v2663 = vrcp.pop %v2662
      %v2664 = vmul.f32 1.0, %v2663
      %v2665 = vadd.f32 %v2373, %v2614
      %v2666 = vxor.u32 %v2665, 2147483648
      %v2667 = vmul.f32 %v2666, 1.442695
      %v2668 = vpow.pop %v2667
      %v2669 = vadd.f32 %v2668, 1.0
      %v2670 = vrcp.pop %v2669
      %v2671 = vmul.f32 1.0, %v2670
      %v2672 = vld [vmem:[%s12] sm:$0x1]
      %v2674 = vlaneseq
      %v2675 = vshrl.u32 %v2674, 7
      %v2676 = vsub.s32 0, %v2675
      %v2677 = vrot.slane %v2672, %v2676
      %v2679 = vadd.f32 %v2653, %v2677
      %v2680 = vmul.f32 %v2664, %v2679
      %v2681 = vadd.f32 %v2412, %v2680
      %v2682 = vtanh.pop %v2681
      %v2683 = vsub.f32 1.0, %v2671
      %v2684 = vmul.f32 %v2683, %v2682
      %v2685 = vmul.f32 %v2671, %v2157
      %v2686 = vadd.f32 %v2684, %v2685
      %2687 = vst [vmem:[%s2156] sm:$0xff] %v2686
      %v2688 = vpack.c.bf16 %v2686, %v2686
      %v2689 = vld [vmem:[%s15] sm:$0xff]
      %v2690 = vld [vmem:[%s15 + $0x8] sm:$0xff]
      %v2691 = vld [vmem:[%s15 + $0x10] sm:$0xff]
      %v2692 = vld [vmem:[%s15 + $0x18] sm:$0xff]
      %v2693 = vld [vmem:[%s15 + $0x20] sm:$0xff]
      %v2694 = vld [vmem:[%s15 + $0x28] sm:$0xff]
      %v2695 = vld [vmem:[%s15 + $0x30] sm:$0xff]
      %v2696 = vld [vmem:[%s15 + $0x38] sm:$0xff]
      %v2697 = vld [vmem:[%s15 + $0x40] sm:$0xff]
      %v2698 = vld [vmem:[%s15 + $0x48] sm:$0xff]
      %v2699 = vld [vmem:[%s15 + $0x50] sm:$0xff]
      %v2700 = vld [vmem:[%s15 + $0x58] sm:$0xff]
      %v2701 = vld [vmem:[%s15 + $0x60] sm:$0xff]
      %v2702 = vld [vmem:[%s15 + $0x68] sm:$0xff]
      %v2703 = vld [vmem:[%s15 + $0x70] sm:$0xff]
      %v2704 = vld [vmem:[%s15 + $0x78] sm:$0xff]
      %v2721 = vunpack.c.l.b16 %v2689
      %v2722 = vunpack.c.h.b16 %v2689
      %v2723 = vunpack.c.l.b16 %v2690
      %v2724 = vunpack.c.h.b16 %v2690
      %v2725 = vunpack.c.l.b16 %v2691
      %v2726 = vunpack.c.h.b16 %v2691
      %v2727 = vunpack.c.l.b16 %v2692
      %v2728 = vunpack.c.h.b16 %v2692
      %v2729 = vunpack.c.l.b16 %v2693
      %v2730 = vunpack.c.h.b16 %v2693
      %v2731 = vunpack.c.l.b16 %v2694
      %v2732 = vunpack.c.h.b16 %v2694
      %v2733 = vunpack.c.l.b16 %v2695
      %v2734 = vunpack.c.h.b16 %v2695
      %v2735 = vunpack.c.l.b16 %v2696
      %v2736 = vunpack.c.h.b16 %v2696
      %v2737 = vunpack.c.l.b16 %v2697
      %v2738 = vunpack.c.h.b16 %v2697
      %v2739 = vunpack.c.l.b16 %v2698
      %v2740 = vunpack.c.h.b16 %v2698
      %v2741 = vunpack.c.l.b16 %v2699
      %v2742 = vunpack.c.h.b16 %v2699
      %v2743 = vunpack.c.l.b16 %v2700
      %v2744 = vunpack.c.h.b16 %v2700
      %v2745 = vunpack.c.l.b16 %v2701
      %v2746 = vunpack.c.h.b16 %v2701
      %v2747 = vunpack.c.l.b16 %v2702
      %v2748 = vunpack.c.h.b16 %v2702
      %v2749 = vunpack.c.l.b16 %v2703
      %v2750 = vunpack.c.h.b16 %v2703
      %v2751 = vunpack.c.l.b16 %v2704
      %v2752 = vunpack.c.h.b16 %v2704
      %v2753 = vpack.c.b16 %v2723, %v2721
      %v2754 = vpack.c.b16 %v2724, %v2722
      %v2755 = vpack.c.b16 %v2727, %v2725
      %v2756 = vpack.c.b16 %v2728, %v2726
      %v2757 = vpack.c.b16 %v2731, %v2729
      %v2758 = vpack.c.b16 %v2732, %v2730
      %v2759 = vpack.c.b16 %v2735, %v2733
      %v2760 = vpack.c.b16 %v2736, %v2734
      %v2761 = vpack.c.b16 %v2739, %v2737
      %v2762 = vpack.c.b16 %v2740, %v2738
      %v2763 = vpack.c.b16 %v2743, %v2741
      %v2764 = vpack.c.b16 %v2744, %v2742
      %v2765 = vpack.c.b16 %v2747, %v2745
      %v2766 = vpack.c.b16 %v2748, %v2746
      %v2767 = vpack.c.b16 %v2751, %v2749
      %v2768 = vpack.c.b16 %v2752, %v2750
      %2785 = vmatprep.subr.bf16.mxu0 %v2754
      %2786 = vmatpush1.bf16.msra.mxu0 %v2753
      %2787 = vmatprep.subr.bf16.mxu0 %v2756
      %2788 = vmatpush1.bf16.msra.mxu0 %v2755
      %2789 = vmatprep.subr.bf16.mxu0 %v2758
      %2790 = vmatpush1.bf16.msra.mxu0 %v2757
      %2791 = vmatprep.subr.bf16.mxu0 %v2760
      %2792 = vmatpush1.bf16.msra.mxu0 %v2759
      %2793 = vmatprep.subr.bf16.mxu0 %v2762
      %2794 = vmatpush1.bf16.msra.mxu0 %v2761
      %2795 = vmatprep.subr.bf16.mxu0 %v2764
      %2796 = vmatpush1.bf16.msra.mxu0 %v2763
      %2797 = vmatprep.subr.bf16.mxu0 %v2766
      %2798 = vmatpush1.bf16.msra.mxu0 %v2765
      %2799 = vmatprep.subr.bf16.mxu0 %v2768
      %2800 = vmatpush1.bf16.msra.mxu0 %v2767
      %2801 = vmatprep.subr.bf16.mxu0 0
      %2802 = vmatpush1.bf16.msra.mxu0 0
      %2803 = vmatprep.subr.bf16.mxu0 0
      %2804 = vmatpush1.bf16.msra.mxu0 0
      %2805 = vmatprep.subr.bf16.mxu0 0
      %2806 = vmatpush1.bf16.msra.mxu0 0
      %2807 = vmatprep.subr.bf16.mxu0 0
      %2808 = vmatpush1.bf16.msra.mxu0 0
      %2809 = vmatprep.subr.bf16.mxu0 0
      %2810 = vmatpush1.bf16.msra.mxu0 0
      %2811 = vmatprep.subr.bf16.mxu0 0
      %2812 = vmatpush1.bf16.msra.mxu0 0
      %2813 = vmatprep.subr.bf16.mxu0 0
      %2814 = vmatpush1.bf16.msra.mxu0 0
      %2815 = vmatprep.subr.bf16.mxu0 0
      %2816 = vmatpush1.bf16.msra.mxu0 0
      %2817 = vmatprep.mubr.bf16.mxu0 0
      %2818 = vmatmul.mubr.bf16.gmra.mrb[0].mxu0 %v2688
      %v2819 = vpop.f32.mrb[0].mxu0
      %v2820 = vadd.f32 0.0, %v2819
      %v2821 = vpop.f32.mrb[0].mxu0
      %v2822 = vadd.f32 0.0, %v2821
      %v2823 = vpop.f32.mrb[0].mxu0
      %v2824 = vpop.f32.mrb[0].mxu0
      %2825 = vdwg.mxu0
      %v2826 = vld [vmem:[#allocation5] sm:$0xff]
      %v2827 = vld [vmem:[#allocation5 + $0x8] sm:$0xff]
      %v2828 = vld [vmem:[#allocation5 + $0x10] sm:$0xff]
      %v2829 = vld [vmem:[#allocation5 + $0x18] sm:$0xff]
      %v2830 = vld [vmem:[#allocation5 + $0x20] sm:$0xff]
      %v2831 = vld [vmem:[#allocation5 + $0x28] sm:$0xff]
      %v2832 = vld [vmem:[#allocation5 + $0x30] sm:$0xff]
      %v2833 = vld [vmem:[#allocation5 + $0x38] sm:$0xff]
      %v2834 = vld [vmem:[#allocation5 + $0x40] sm:$0xff]
      %v2835 = vld [vmem:[#allocation5 + $0x48] sm:$0xff]
      %v2836 = vld [vmem:[#allocation5 + $0x50] sm:$0xff]
      %v2837 = vld [vmem:[#allocation5 + $0x58] sm:$0xff]
      %v2838 = vld [vmem:[#allocation5 + $0x60] sm:$0xff]
      %v2839 = vld [vmem:[#allocation5 + $0x68] sm:$0xff]
      %v2840 = vld [vmem:[#allocation5 + $0x70] sm:$0xff]
      %v2841 = vld [vmem:[#allocation5 + $0x78] sm:$0xff]
      %v2842 = vld [vmem:[#allocation5 + $0x80] sm:$0xff]
      %v2843 = vld [vmem:[#allocation5 + $0x88] sm:$0xff]
      %v2844 = vld [vmem:[#allocation5 + $0x90] sm:$0xff]
      %v2845 = vld [vmem:[#allocation5 + $0x98] sm:$0xff]
      %v2846 = vld [vmem:[#allocation5 + $0xa0] sm:$0xff]
      %v2847 = vld [vmem:[#allocation5 + $0xa8] sm:$0xff]
      %v2848 = vld [vmem:[#allocation5 + $0xb0] sm:$0xff]
      %v2849 = vld [vmem:[#allocation5 + $0xb8] sm:$0xff]
      %v2850 = vld [vmem:[#allocation5 + $0xc0] sm:$0xff]
      %v2851 = vld [vmem:[#allocation5 + $0xc8] sm:$0xff]
      %v2852 = vld [vmem:[#allocation5 + $0xd0] sm:$0xff]
      %v2853 = vld [vmem:[#allocation5 + $0xd8] sm:$0xff]
      %v2854 = vld [vmem:[#allocation5 + $0xe0] sm:$0xff]
      %v2855 = vld [vmem:[#allocation5 + $0xe8] sm:$0xff]
      %v2856 = vld [vmem:[#allocation5 + $0xf0] sm:$0xff]
      %v2857 = vld [vmem:[#allocation5 + $0xf8] sm:$0xff]
      %v2858 = vld [vmem:[#allocation5 + $0x100] sm:$0xff]
      %v2859 = vld [vmem:[#allocation5 + $0x108] sm:$0xff]
      %v2860 = vld [vmem:[#allocation5 + $0x110] sm:$0xff]
      %v2861 = vld [vmem:[#allocation5 + $0x118] sm:$0xff]
      %v2862 = vld [vmem:[#allocation5 + $0x120] sm:$0xff]
      %v2863 = vld [vmem:[#allocation5 + $0x128] sm:$0xff]
      %v2864 = vld [vmem:[#allocation5 + $0x130] sm:$0xff]
      %v2865 = vld [vmem:[#allocation5 + $0x138] sm:$0xff]
      %v2866 = vld [vmem:[#allocation5 + $0x140] sm:$0xff]
      %v2867 = vld [vmem:[#allocation5 + $0x148] sm:$0xff]
      %v2868 = vld [vmem:[#allocation5 + $0x150] sm:$0xff]
      %v2869 = vld [vmem:[#allocation5 + $0x158] sm:$0xff]
      %v2870 = vld [vmem:[#allocation5 + $0x160] sm:$0xff]
      %v2871 = vld [vmem:[#allocation5 + $0x168] sm:$0xff]
      %v2872 = vld [vmem:[#allocation5 + $0x170] sm:$0xff]
      %v2873 = vld [vmem:[#allocation5 + $0x178] sm:$0xff]
      %v2874 = vld [vmem:[#allocation5 + $0x180] sm:$0xff]
      %v2875 = vld [vmem:[#allocation5 + $0x188] sm:$0xff]
      %v2876 = vld [vmem:[#allocation5 + $0x190] sm:$0xff]
      %v2877 = vld [vmem:[#allocation5 + $0x198] sm:$0xff]
      %v2878 = vld [vmem:[#allocation5 + $0x1a0] sm:$0xff]
      %v2879 = vld [vmem:[#allocation5 + $0x1a8] sm:$0xff]
      %v2880 = vld [vmem:[#allocation5 + $0x1b0] sm:$0xff]
      %v2881 = vld [vmem:[#allocation5 + $0x1b8] sm:$0xff]
      %v2882 = vld [vmem:[#allocation5 + $0x1c0] sm:$0xff]
      %v2883 = vld [vmem:[#allocation5 + $0x1c8] sm:$0xff]
      %v2884 = vld [vmem:[#allocation5 + $0x1d0] sm:$0xff]
      %v2885 = vld [vmem:[#allocation5 + $0x1d8] sm:$0xff]
      %v2886 = vld [vmem:[#allocation5 + $0x1e0] sm:$0xff]
      %v2887 = vld [vmem:[#allocation5 + $0x1e8] sm:$0xff]
      %v2888 = vld [vmem:[#allocation5 + $0x1f0] sm:$0xff]
      %v2889 = vld [vmem:[#allocation5 + $0x1f8] sm:$0xff]
      %v2890 = vld [vmem:[#allocation5 + $0x200] sm:$0xff]
      %v2891 = vld [vmem:[#allocation5 + $0x208] sm:$0xff]
      %v2892 = vld [vmem:[#allocation5 + $0x210] sm:$0xff]
      %v2893 = vld [vmem:[#allocation5 + $0x218] sm:$0xff]
      %v2894 = vld [vmem:[#allocation5 + $0x220] sm:$0xff]
      %v2895 = vld [vmem:[#allocation5 + $0x228] sm:$0xff]
      %v2896 = vld [vmem:[#allocation5 + $0x230] sm:$0xff]
      %v2897 = vld [vmem:[#allocation5 + $0x238] sm:$0xff]
      %v2898 = vld [vmem:[#allocation5 + $0x240] sm:$0xff]
      %v2899 = vld [vmem:[#allocation5 + $0x248] sm:$0xff]
      %v2900 = vld [vmem:[#allocation5 + $0x250] sm:$0xff]
      %v2901 = vld [vmem:[#allocation5 + $0x258] sm:$0xff]
      %v2902 = vld [vmem:[#allocation5 + $0x260] sm:$0xff]
      %v2903 = vld [vmem:[#allocation5 + $0x268] sm:$0xff]
      %v2904 = vld [vmem:[#allocation5 + $0x270] sm:$0xff]
      %v2905 = vld [vmem:[#allocation5 + $0x278] sm:$0xff]
      %v2906 = vld [vmem:[#allocation5 + $0x280] sm:$0xff]
      %v2907 = vld [vmem:[#allocation5 + $0x288] sm:$0xff]
      %v2908 = vld [vmem:[#allocation5 + $0x290] sm:$0xff]
      %v2909 = vld [vmem:[#allocation5 + $0x298] sm:$0xff]
      %v2910 = vld [vmem:[#allocation5 + $0x2a0] sm:$0xff]
      %v2911 = vld [vmem:[#allocation5 + $0x2a8] sm:$0xff]
      %v2912 = vld [vmem:[#allocation5 + $0x2b0] sm:$0xff]
      %v2913 = vld [vmem:[#allocation5 + $0x2b8] sm:$0xff]
      %v2914 = vld [vmem:[#allocation5 + $0x2c0] sm:$0xff]
      %v2915 = vld [vmem:[#allocation5 + $0x2c8] sm:$0xff]
      %v2916 = vld [vmem:[#allocation5 + $0x2d0] sm:$0xff]
      %v2917 = vld [vmem:[#allocation5 + $0x2d8] sm:$0xff]
      %v2918 = vld [vmem:[#allocation5 + $0x2e0] sm:$0xff]
      %v2919 = vld [vmem:[#allocation5 + $0x2e8] sm:$0xff]
      %v2920 = vld [vmem:[#allocation5 + $0x2f0] sm:$0xff]
      %v2921 = vld [vmem:[#allocation5 + $0x2f8] sm:$0xff]
      %v2922 = vld [vmem:[#allocation5 + $0x300] sm:$0xff]
      %v2923 = vld [vmem:[#allocation5 + $0x308] sm:$0xff]
      %v2924 = vld [vmem:[#allocation5 + $0x310] sm:$0xff]
      %v2925 = vld [vmem:[#allocation5 + $0x318] sm:$0xff]
      %v2926 = vld [vmem:[#allocation5 + $0x320] sm:$0xff]
      %v2927 = vld [vmem:[#allocation5 + $0x328] sm:$0xff]
      %v2928 = vld [vmem:[#allocation5 + $0x330] sm:$0xff]
      %v2929 = vld [vmem:[#allocation5 + $0x338] sm:$0xff]
      %v2930 = vld [vmem:[#allocation5 + $0x340] sm:$0xff]
      %v2931 = vld [vmem:[#allocation5 + $0x348] sm:$0xff]
      %v2932 = vld [vmem:[#allocation5 + $0x350] sm:$0xff]
      %v2933 = vld [vmem:[#allocation5 + $0x358] sm:$0xff]
      %v2934 = vld [vmem:[#allocation5 + $0x360] sm:$0xff]
      %v2935 = vld [vmem:[#allocation5 + $0x368] sm:$0xff]
      %v2936 = vld [vmem:[#allocation5 + $0x370] sm:$0xff]
      %v2937 = vld [vmem:[#allocation5 + $0x378] sm:$0xff]
      %v2938 = vld [vmem:[#allocation5 + $0x380] sm:$0xff]
      %v2939 = vld [vmem:[#allocation5 + $0x388] sm:$0xff]
      %v2940 = vld [vmem:[#allocation5 + $0x390] sm:$0xff]
      %v2941 = vld [vmem:[#allocation5 + $0x398] sm:$0xff]
      %v2942 = vld [vmem:[#allocation5 + $0x3a0] sm:$0xff]
      %v2943 = vld [vmem:[#allocation5 + $0x3a8] sm:$0xff]
      %v2944 = vld [vmem:[#allocation5 + $0x3b0] sm:$0xff]
      %v2945 = vld [vmem:[#allocation5 + $0x3b8] sm:$0xff]
      %v2946 = vld [vmem:[#allocation5 + $0x3c0] sm:$0xff]
      %v2947 = vld [vmem:[#allocation5 + $0x3c8] sm:$0xff]
      %v2948 = vld [vmem:[#allocation5 + $0x3d0] sm:$0xff]
      %v2949 = vld [vmem:[#allocation5 + $0x3d8] sm:$0xff]
      %v2950 = vld [vmem:[#allocation5 + $0x3e0] sm:$0xff]
      %v2951 = vld [vmem:[#allocation5 + $0x3e8] sm:$0xff]
      %v2952 = vld [vmem:[#allocation5 + $0x3f0] sm:$0xff]
      %v2953 = vld [vmem:[#allocation5 + $0x3f8] sm:$0xff]
      %v2954 = vunpack.c.l.bf16 %v2826
      %v2955 = vunpack.c.h.bf16 %v2826
      %v2956 = vunpack.c.l.bf16 %v2828
      %v2957 = vunpack.c.h.bf16 %v2828
      %v2958 = vunpack.c.l.bf16 %v2830
      %v2959 = vunpack.c.h.bf16 %v2830
      %v2960 = vunpack.c.l.bf16 %v2832
      %v2961 = vunpack.c.h.bf16 %v2832
      %v2962 = vunpack.c.l.bf16 %v2834
      %v2963 = vunpack.c.h.bf16 %v2834
      %v2964 = vunpack.c.l.bf16 %v2836
      %v2965 = vunpack.c.h.bf16 %v2836
      %v2966 = vunpack.c.l.bf16 %v2838
      %v2967 = vunpack.c.h.bf16 %v2838
      %v2968 = vunpack.c.l.bf16 %v2840
      %v2969 = vunpack.c.h.bf16 %v2840
      %v2970 = vunpack.c.l.bf16 %v2842
      %v2971 = vunpack.c.h.bf16 %v2842
      %v2972 = vunpack.c.l.bf16 %v2844
      %v2973 = vunpack.c.h.bf16 %v2844
      %v2974 = vunpack.c.l.bf16 %v2846
      %v2975 = vunpack.c.h.bf16 %v2846
      %v2976 = vunpack.c.l.bf16 %v2848
      %v2977 = vunpack.c.h.bf16 %v2848
      %v2978 = vunpack.c.l.bf16 %v2850
      %v2979 = vunpack.c.h.bf16 %v2850
      %v2980 = vunpack.c.l.bf16 %v2852
      %v2981 = vunpack.c.h.bf16 %v2852
      %v2982 = vunpack.c.l.bf16 %v2854
      %v2983 = vunpack.c.h.bf16 %v2854
      %v2984 = vunpack.c.l.bf16 %v2856
      %v2985 = vunpack.c.h.bf16 %v2856
      %v2986 = vunpack.c.l.bf16 %v2858
      %v2987 = vunpack.c.h.bf16 %v2858
      %v2988 = vunpack.c.l.bf16 %v2860
      %v2989 = vunpack.c.h.bf16 %v2860
      %v2990 = vunpack.c.l.bf16 %v2862
      %v2991 = vunpack.c.h.bf16 %v2862
      %v2992 = vunpack.c.l.bf16 %v2864
      %v2993 = vunpack.c.h.bf16 %v2864
      %v2994 = vunpack.c.l.bf16 %v2866
      %v2995 = vunpack.c.h.bf16 %v2866
      %v2996 = vunpack.c.l.bf16 %v2868
      %v2997 = vunpack.c.h.bf16 %v2868
      %v2998 = vunpack.c.l.bf16 %v2870
      %v2999 = vunpack.c.h.bf16 %v2870
      %v3000 = vunpack.c.l.bf16 %v2872
      %v3001 = vunpack.c.h.bf16 %v2872
      %v3002 = vunpack.c.l.bf16 %v2874
      %v3003 = vunpack.c.h.bf16 %v2874
      %v3004 = vunpack.c.l.bf16 %v2876
      %v3005 = vunpack.c.h.bf16 %v2876
      %v3006 = vunpack.c.l.bf16 %v2878
      %v3007 = vunpack.c.h.bf16 %v2878
      %v3008 = vunpack.c.l.bf16 %v2880
      %v3009 = vunpack.c.h.bf16 %v2880
      %v3010 = vunpack.c.l.bf16 %v2882
      %v3011 = vunpack.c.h.bf16 %v2882
      %v3012 = vunpack.c.l.bf16 %v2884
      %v3013 = vunpack.c.h.bf16 %v2884
      %v3014 = vunpack.c.l.bf16 %v2886
      %v3015 = vunpack.c.h.bf16 %v2886
      %v3016 = vunpack.c.l.bf16 %v2888
      %v3017 = vunpack.c.h.bf16 %v2888
      %v3018 = vunpack.c.l.bf16 %v2890
      %v3019 = vunpack.c.h.bf16 %v2890
      %v3020 = vunpack.c.l.bf16 %v2892
      %v3021 = vunpack.c.h.bf16 %v2892
      %v3022 = vunpack.c.l.bf16 %v2894
      %v3023 = vunpack.c.h.bf16 %v2894
      %v3024 = vunpack.c.l.bf16 %v2896
      %v3025 = vunpack.c.h.bf16 %v2896
      %v3026 = vunpack.c.l.bf16 %v2898
      %v3027 = vunpack.c.h.bf16 %v2898
      %v3028 = vunpack.c.l.bf16 %v2900
      %v3029 = vunpack.c.h.bf16 %v2900
      %v3030 = vunpack.c.l.bf16 %v2902
      %v3031 = vunpack.c.h.bf16 %v2902
      %v3032 = vunpack.c.l.bf16 %v2904
      %v3033 = vunpack.c.h.bf16 %v2904
      %v3034 = vunpack.c.l.bf16 %v2906
      %v3035 = vunpack.c.h.bf16 %v2906
      %v3036 = vunpack.c.l.bf16 %v2908
      %v3037 = vunpack.c.h.bf16 %v2908
      %v3038 = vunpack.c.l.bf16 %v2910
      %v3039 = vunpack.c.h.bf16 %v2910
      %v3040 = vunpack.c.l.bf16 %v2912
      %v3041 = vunpack.c.h.bf16 %v2912
      %v3042 = vunpack.c.l.bf16 %v2914
      %v3043 = vunpack.c.h.bf16 %v2914
      %v3044 = vunpack.c.l.bf16 %v2916
      %v3045 = vunpack.c.h.bf16 %v2916
      %v3046 = vunpack.c.l.bf16 %v2918
      %v3047 = vunpack.c.h.bf16 %v2918
      %v3048 = vunpack.c.l.bf16 %v2920
      %v3049 = vunpack.c.h.bf16 %v2920
      %v3050 = vunpack.c.l.bf16 %v2922
      %v3051 = vunpack.c.h.bf16 %v2922
      %v3052 = vunpack.c.l.bf16 %v2924
      %v3053 = vunpack.c.h.bf16 %v2924
      %v3054 = vunpack.c.l.bf16 %v2926
      %v3055 = vunpack.c.h.bf16 %v2926
      %v3056 = vunpack.c.l.bf16 %v2928
      %v3057 = vunpack.c.h.bf16 %v2928
      %v3058 = vunpack.c.l.bf16 %v2930
      %v3059 = vunpack.c.h.bf16 %v2930
      %v3060 = vunpack.c.l.bf16 %v2932
      %v3061 = vunpack.c.h.bf16 %v2932
      %v3062 = vunpack.c.l.bf16 %v2934
      %v3063 = vunpack.c.h.bf16 %v2934
      %v3064 = vunpack.c.l.bf16 %v2936
      %v3065 = vunpack.c.h.bf16 %v2936
      %v3066 = vunpack.c.l.bf16 %v2938
      %v3067 = vunpack.c.h.bf16 %v2938
      %v3068 = vunpack.c.l.bf16 %v2940
      %v3069 = vunpack.c.h.bf16 %v2940
      %v3070 = vunpack.c.l.bf16 %v2942
      %v3071 = vunpack.c.h.bf16 %v2942
      %v3072 = vunpack.c.l.bf16 %v2944
      %v3073 = vunpack.c.h.bf16 %v2944
      %v3074 = vunpack.c.l.bf16 %v2946
      %v3075 = vunpack.c.h.bf16 %v2946
      %v3076 = vunpack.c.l.bf16 %v2948
      %v3077 = vunpack.c.h.bf16 %v2948
      %v3078 = vunpack.c.l.bf16 %v2950
      %v3079 = vunpack.c.h.bf16 %v2950
      %v3080 = vunpack.c.l.bf16 %v2952
      %v3081 = vunpack.c.h.bf16 %v2952
      %v3083 = vcombine.high %v2820, %v2820
      %v3085 = vunpack.c.l.s4 1966171168
      %v3086 = vunpack.c.0.s8 %v3085
      %v3087 = vlaneseq
      %v3088 = vshrl.u32 %v3087, 7
      %v3089 = vsub.s32 %v3086, %v3088
      %v3090 = vrot.slane %v2820, %v3089
      %v3092 = vunpack.c.l.s4 1966171168
      %v3093 = vunpack.c.0.s8 %v3092
      %v3094 = vlaneseq
      %v3095 = vshrl.u32 %v3094, 7
      %v3096 = vsub.s32 %v3093, %v3095
      %v3097 = vrot.slane %v3083, %v3096
      %v3098 = vcombine.high %v3090, %v3090
      %v3099 = vcombine.high %v3097, %v3097
      %v3101 = vunpack.c.l.s4 1966171168
      %v3102 = vunpack.c.0.s8 %v3101
      %v3103 = vlaneseq
      %v3104 = vshrl.u32 %v3103, 7
      %v3105 = vsub.s32 %v3102, %v3104
      %v3106 = vrot.slane %v3090, %v3105
      %v3108 = vunpack.c.l.s4 1966171168
      %v3109 = vunpack.c.0.s8 %v3108
      %v3110 = vlaneseq
      %v3111 = vshrl.u32 %v3110, 7
      %v3112 = vsub.s32 %v3109, %v3111
      %v3113 = vrot.slane %v3097, %v3112
      %v3115 = vunpack.c.l.s4 1966171168
      %v3116 = vunpack.c.0.s8 %v3115
      %v3117 = vlaneseq
      %v3118 = vshrl.u32 %v3117, 7
      %v3119 = vsub.s32 %v3116, %v3118
      %v3120 = vrot.slane %v3098, %v3119
      %v3122 = vunpack.c.l.s4 1966171168
      %v3123 = vunpack.c.0.s8 %v3122
      %v3124 = vlaneseq
      %v3125 = vshrl.u32 %v3124, 7
      %v3126 = vsub.s32 %v3123, %v3125
      %v3127 = vrot.slane %v3099, %v3126
      %v3128 = vcombine.high %v3106, %v3106
      %v3129 = vcombine.high %v3113, %v3113
      %v3130 = vcombine.high %v3120, %v3120
      %v3131 = vcombine.high %v3127, %v3127
      %v3132 = vlaneseq
      %v3133 = vshrl.u32 %v3132, 7
      %v3134 = vsub.s32 0, %v3133
      %v3135 = vrot.slane %v3106, %v3134
      %v3136 = vlaneseq
      %v3137 = vshrl.u32 %v3136, 7
      %v3138 = vsub.s32 0, %v3137
      %v3139 = vrot.slane %v3120, %v3138
      %v3140 = vlaneseq
      %v3141 = vshrl.u32 %v3140, 7
      %v3142 = vsub.s32 0, %v3141
      %v3143 = vrot.slane %v3128, %v3142
      %v3144 = vlaneseq
      %v3145 = vshrl.u32 %v3144, 7
      %v3146 = vsub.s32 0, %v3145
      %v3147 = vrot.slane %v3130, %v3146
      %v3148 = vlaneseq
      %v3149 = vshrl.u32 %v3148, 7
      %v3150 = vsub.s32 0, %v3149
      %v3151 = vrot.slane %v3113, %v3150
      %v3152 = vlaneseq
      %v3153 = vshrl.u32 %v3152, 7
      %v3154 = vsub.s32 0, %v3153
      %v3155 = vrot.slane %v3127, %v3154
      %v3156 = vlaneseq
      %v3157 = vshrl.u32 %v3156, 7
      %v3158 = vsub.s32 0, %v3157
      %v3159 = vrot.slane %v3129, %v3158
      %v3160 = vlaneseq
      %v3161 = vshrl.u32 %v3160, 7
      %v3162 = vsub.s32 0, %v3161
      %v3163 = vrot.slane %v3131, %v3162
      %v3172 = vadd.f32 %v2954, %v3135
      %v3173 = vadd.f32 %v2955, %v3135
      %v3174 = vadd.f32 %v2956, %v3135
      %v3175 = vadd.f32 %v2957, %v3135
      %v3176 = vadd.f32 %v2958, %v3135
      %v3177 = vadd.f32 %v2959, %v3135
      %v3178 = vadd.f32 %v2960, %v3135
      %v3179 = vadd.f32 %v2961, %v3135
      %v3180 = vadd.f32 %v2962, %v3135
      %v3181 = vadd.f32 %v2963, %v3135
      %v3182 = vadd.f32 %v2964, %v3135
      %v3183 = vadd.f32 %v2965, %v3135
      %v3184 = vadd.f32 %v2966, %v3135
      %v3185 = vadd.f32 %v2967, %v3135
      %v3186 = vadd.f32 %v2968, %v3135
      %v3187 = vadd.f32 %v2969, %v3135
      %v3188 = vadd.f32 %v2970, %v3139
      %v3189 = vadd.f32 %v2971, %v3139
      %v3190 = vadd.f32 %v2972, %v3139
      %v3191 = vadd.f32 %v2973, %v3139
      %v3192 = vadd.f32 %v2974, %v3139
      %v3193 = vadd.f32 %v2975, %v3139
      %v3194 = vadd.f32 %v2976, %v3139
      %v3195 = vadd.f32 %v2977, %v3139
      %v3196 = vadd.f32 %v2978, %v3139
      %v3197 = vadd.f32 %v2979, %v3139
      %v3198 = vadd.f32 %v2980, %v3139
      %v3199 = vadd.f32 %v2981, %v3139
      %v3200 = vadd.f32 %v2982, %v3139
      %v3201 = vadd.f32 %v2983, %v3139
      %v3202 = vadd.f32 %v2984, %v3139
      %v3203 = vadd.f32 %v2985, %v3139
      %v3204 = vadd.f32 %v2986, %v3143
      %v3205 = vadd.f32 %v2987, %v3143
      %v3206 = vadd.f32 %v2988, %v3143
      %v3207 = vadd.f32 %v2989, %v3143
      %v3208 = vadd.f32 %v2990, %v3143
      %v3209 = vadd.f32 %v2991, %v3143
      %v3210 = vadd.f32 %v2992, %v3143
      %v3211 = vadd.f32 %v2993, %v3143
      %v3212 = vadd.f32 %v2994, %v3143
      %v3213 = vadd.f32 %v2995, %v3143
      %v3214 = vadd.f32 %v2996, %v3143
      %v3215 = vadd.f32 %v2997, %v3143
      %v3216 = vadd.f32 %v2998, %v3143
      %v3217 = vadd.f32 %v2999, %v3143
      %v3218 = vadd.f32 %v3000, %v3143
      %v3219 = vadd.f32 %v3001, %v3143
      %v3220 = vadd.f32 %v3002, %v3147
      %v3221 = vadd.f32 %v3003, %v3147
      %v3222 = vadd.f32 %v3004, %v3147
      %v3223 = vadd.f32 %v3005, %v3147
      %v3224 = vadd.f32 %v3006, %v3147
      %v3225 = vadd.f32 %v3007, %v3147
      %v3226 = vadd.f32 %v3008, %v3147
      %v3227 = vadd.f32 %v3009, %v3147
      %v3228 = vadd.f32 %v3010, %v3147
      %v3229 = vadd.f32 %v3011, %v3147
      %v3230 = vadd.f32 %v3012, %v3147
      %v3231 = vadd.f32 %v3013, %v3147
      %v3232 = vadd.f32 %v3014, %v3147
      %v3233 = vadd.f32 %v3015, %v3147
      %v3234 = vadd.f32 %v3016, %v3147
      %v3235 = vadd.f32 %v3017, %v3147
      %v3236 = vadd.f32 %v3018, %v3151
      %v3237 = vadd.f32 %v3019, %v3151
      %v3238 = vadd.f32 %v3020, %v3151
      %v3239 = vadd.f32 %v3021, %v3151
      %v3240 = vadd.f32 %v3022, %v3151
      %v3241 = vadd.f32 %v3023, %v3151
      %v3242 = vadd.f32 %v3024, %v3151
      %v3243 = vadd.f32 %v3025, %v3151
      %v3244 = vadd.f32 %v3026, %v3151
      %v3245 = vadd.f32 %v3027, %v3151
      %v3246 = vadd.f32 %v3028, %v3151
      %v3247 = vadd.f32 %v3029, %v3151
      %v3248 = vadd.f32 %v3030, %v3151
      %v3249 = vadd.f32 %v3031, %v3151
      %v3250 = vadd.f32 %v3032, %v3151
      %v3251 = vadd.f32 %v3033, %v3151
      %v3252 = vadd.f32 %v3034, %v3155
      %v3253 = vadd.f32 %v3035, %v3155
      %v3254 = vadd.f32 %v3036, %v3155
      %v3255 = vadd.f32 %v3037, %v3155
      %v3256 = vadd.f32 %v3038, %v3155
      %v3257 = vadd.f32 %v3039, %v3155
      %v3258 = vadd.f32 %v3040, %v3155
      %v3259 = vadd.f32 %v3041, %v3155
      %v3260 = vadd.f32 %v3042, %v3155
      %v3261 = vadd.f32 %v3043, %v3155
      %v3262 = vadd.f32 %v3044, %v3155
      %v3263 = vadd.f32 %v3045, %v3155
      %v3264 = vadd.f32 %v3046, %v3155
      %v3265 = vadd.f32 %v3047, %v3155
      %v3266 = vadd.f32 %v3048, %v3155
      %v3267 = vadd.f32 %v3049, %v3155
      %v3268 = vadd.f32 %v3050, %v3159
      %v3269 = vadd.f32 %v3051, %v3159
      %v3270 = vadd.f32 %v3052, %v3159
      %v3271 = vadd.f32 %v3053, %v3159
      %v3272 = vadd.f32 %v3054, %v3159
      %v3273 = vadd.f32 %v3055, %v3159
      %v3274 = vadd.f32 %v3056, %v3159
      %v3275 = vadd.f32 %v3057, %v3159
      %v3276 = vadd.f32 %v3058, %v3159
      %v3277 = vadd.f32 %v3059, %v3159
      %v3278 = vadd.f32 %v3060, %v3159
      %v3279 = vadd.f32 %v3061, %v3159
      %v3280 = vadd.f32 %v3062, %v3159
      %v3281 = vadd.f32 %v3063, %v3159
      %v3282 = vadd.f32 %v3064, %v3159
      %v3283 = vadd.f32 %v3065, %v3159
      %v3284 = vadd.f32 %v3066, %v3163
      %v3285 = vadd.f32 %v3067, %v3163
      %v3286 = vadd.f32 %v3068, %v3163
      %v3287 = vadd.f32 %v3069, %v3163
      %v3288 = vadd.f32 %v3070, %v3163
      %v3289 = vadd.f32 %v3071, %v3163
      %v3290 = vadd.f32 %v3072, %v3163
      %v3291 = vadd.f32 %v3073, %v3163
      %v3292 = vadd.f32 %v3074, %v3163
      %v3293 = vadd.f32 %v3075, %v3163
      %v3294 = vadd.f32 %v3076, %v3163
      %v3295 = vadd.f32 %v3077, %v3163
      %v3296 = vadd.f32 %v3078, %v3163
      %v3297 = vadd.f32 %v3079, %v3163
      %v3298 = vadd.f32 %v3080, %v3163
      %v3299 = vadd.f32 %v3081, %v3163
      %v3300 = vmax.f32 %v3172, 0.0
      %v3301 = vmax.f32 %v3173, 0.0
      %v3302 = vmax.f32 %v3174, 0.0
      %v3303 = vmax.f32 %v3175, 0.0
      %v3304 = vmax.f32 %v3176, 0.0
      %v3305 = vmax.f32 %v3177, 0.0
      %v3306 = vmax.f32 %v3178, 0.0
      %v3307 = vmax.f32 %v3179, 0.0
      %v3308 = vmax.f32 %v3180, 0.0
      %v3309 = vmax.f32 %v3181, 0.0
      %v3310 = vmax.f32 %v3182, 0.0
      %v3311 = vmax.f32 %v3183, 0.0
      %v3312 = vmax.f32 %v3184, 0.0
      %v3313 = vmax.f32 %v3185, 0.0
      %v3314 = vmax.f32 %v3186, 0.0
      %v3315 = vmax.f32 %v3187, 0.0
      %v3316 = vmax.f32 %v3188, 0.0
      %v3317 = vmax.f32 %v3189, 0.0
      %v3318 = vmax.f32 %v3190, 0.0
      %v3319 = vmax.f32 %v3191, 0.0
      %v3320 = vmax.f32 %v3192, 0.0
      %v3321 = vmax.f32 %v3193, 0.0
      %v3322 = vmax.f32 %v3194, 0.0
      %v3323 = vmax.f32 %v3195, 0.0
      %v3324 = vmax.f32 %v3196, 0.0
      %v3325 = vmax.f32 %v3197, 0.0
      %v3326 = vmax.f32 %v3198, 0.0
      %v3327 = vmax.f32 %v3199, 0.0
      %v3328 = vmax.f32 %v3200, 0.0
      %v3329 = vmax.f32 %v3201, 0.0
      %v3330 = vmax.f32 %v3202, 0.0
      %v3331 = vmax.f32 %v3203, 0.0
      %v3332 = vmax.f32 %v3204, 0.0
      %v3333 = vmax.f32 %v3205, 0.0
      %v3334 = vmax.f32 %v3206, 0.0
      %v3335 = vmax.f32 %v3207, 0.0
      %v3336 = vmax.f32 %v3208, 0.0
      %v3337 = vmax.f32 %v3209, 0.0
      %v3338 = vmax.f32 %v3210, 0.0
      %v3339 = vmax.f32 %v3211, 0.0
      %v3340 = vmax.f32 %v3212, 0.0
      %v3341 = vmax.f32 %v3213, 0.0
      %v3342 = vmax.f32 %v3214, 0.0
      %v3343 = vmax.f32 %v3215, 0.0
      %v3344 = vmax.f32 %v3216, 0.0
      %v3345 = vmax.f32 %v3217, 0.0
      %v3346 = vmax.f32 %v3218, 0.0
      %v3347 = vmax.f32 %v3219, 0.0
      %v3348 = vmax.f32 %v3220, 0.0
      %v3349 = vmax.f32 %v3221, 0.0
      %v3350 = vmax.f32 %v3222, 0.0
      %v3351 = vmax.f32 %v3223, 0.0
      %v3352 = vmax.f32 %v3224, 0.0
      %v3353 = vmax.f32 %v3225, 0.0
      %v3354 = vmax.f32 %v3226, 0.0
      %v3355 = vmax.f32 %v3227, 0.0
      %v3356 = vmax.f32 %v3228, 0.0
      %v3357 = vmax.f32 %v3229, 0.0
      %v3358 = vmax.f32 %v3230, 0.0
      %v3359 = vmax.f32 %v3231, 0.0
      %v3360 = vmax.f32 %v3232, 0.0
      %v3361 = vmax.f32 %v3233, 0.0
      %v3362 = vmax.f32 %v3234, 0.0
      %v3363 = vmax.f32 %v3235, 0.0
      %v3364 = vmax.f32 %v3236, 0.0
      %v3365 = vmax.f32 %v3237, 0.0
      %v3366 = vmax.f32 %v3238, 0.0
      %v3367 = vmax.f32 %v3239, 0.0
      %v3368 = vmax.f32 %v3240, 0.0
      %v3369 = vmax.f32 %v3241, 0.0
      %v3370 = vmax.f32 %v3242, 0.0
      %v3371 = vmax.f32 %v3243, 0.0
      %v3372 = vmax.f32 %v3244, 0.0
      %v3373 = vmax.f32 %v3245, 0.0
      %v3374 = vmax.f32 %v3246, 0.0
      %v3375 = vmax.f32 %v3247, 0.0
      %v3376 = vmax.f32 %v3248, 0.0
      %v3377 = vmax.f32 %v3249, 0.0
      %v3378 = vmax.f32 %v3250, 0.0
      %v3379 = vmax.f32 %v3251, 0.0
      %v3380 = vmax.f32 %v3252, 0.0
      %v3381 = vmax.f32 %v3253, 0.0
      %v3382 = vmax.f32 %v3254, 0.0
      %v3383 = vmax.f32 %v3255, 0.0
      %v3384 = vmax.f32 %v3256, 0.0
      %v3385 = vmax.f32 %v3257, 0.0
      %v3386 = vmax.f32 %v3258, 0.0
      %v3387 = vmax.f32 %v3259, 0.0
      %v3388 = vmax.f32 %v3260, 0.0
      %v3389 = vmax.f32 %v3261, 0.0
      %v3390 = vmax.f32 %v3262, 0.0
      %v3391 = vmax.f32 %v3263, 0.0
      %v3392 = vmax.f32 %v3264, 0.0
      %v3393 = vmax.f32 %v3265, 0.0
      %v3394 = vmax.f32 %v3266, 0.0
      %v3395 = vmax.f32 %v3267, 0.0
      %v3396 = vmax.f32 %v3268, 0.0
      %v3397 = vmax.f32 %v3269, 0.0
      %v3398 = vmax.f32 %v3270, 0.0
      %v3399 = vmax.f32 %v3271, 0.0
      %v3400 = vmax.f32 %v3272, 0.0
      %v3401 = vmax.f32 %v3273, 0.0
      %v3402 = vmax.f32 %v3274, 0.0
      %v3403 = vmax.f32 %v3275, 0.0
      %v3404 = vmax.f32 %v3276, 0.0
      %v3405 = vmax.f32 %v3277, 0.0
      %v3406 = vmax.f32 %v3278, 0.0
      %v3407 = vmax.f32 %v3279, 0.0
      %v3408 = vmax.f32 %v3280, 0.0
      %v3409 = vmax.f32 %v3281, 0.0
      %v3410 = vmax.f32 %v3282, 0.0
      %v3411 = vmax.f32 %v3283, 0.0
      %v3412 = vmax.f32 %v3284, 0.0
      %v3413 = vmax.f32 %v3285, 0.0
      %v3414 = vmax.f32 %v3286, 0.0
      %v3415 = vmax.f32 %v3287, 0.0
      %v3416 = vmax.f32 %v3288, 0.0
      %v3417 = vmax.f32 %v3289, 0.0
      %v3418 = vmax.f32 %v3290, 0.0
      %v3419 = vmax.f32 %v3291, 0.0
      %v3420 = vmax.f32 %v3292, 0.0
      %v3421 = vmax.f32 %v3293, 0.0
      %v3422 = vmax.f32 %v3294, 0.0
      %v3423 = vmax.f32 %v3295, 0.0
      %v3424 = vmax.f32 %v3296, 0.0
      %v3425 = vmax.f32 %v3297, 0.0
      %v3426 = vmax.f32 %v3298, 0.0
      %v3427 = vmax.f32 %v3299, 0.0
      %v3428 = vld [vmem:[%s16] sm:$0x1]
      %v3430 = vlaneseq
      %v3431 = vshrl.u32 %v3430, 7
      %v3432 = vsub.s32 0, %v3431
      %v3433 = vrot.slane %v3428, %v3432
      %v3435 = vmul.f32 %v3300, %v3433
      %v3436 = vmul.f32 %v3301, %v3433
      %v3437 = vmul.f32 %v3302, %v3433
      %v3438 = vmul.f32 %v3303, %v3433
      %v3439 = vmul.f32 %v3304, %v3433
      %v3440 = vmul.f32 %v3305, %v3433
      %v3441 = vmul.f32 %v3306, %v3433
      %v3442 = vmul.f32 %v3307, %v3433
      %v3443 = vmul.f32 %v3308, %v3433
      %v3444 = vmul.f32 %v3309, %v3433
      %v3445 = vmul.f32 %v3310, %v3433
      %v3446 = vmul.f32 %v3311, %v3433
      %v3447 = vmul.f32 %v3312, %v3433
      %v3448 = vmul.f32 %v3313, %v3433
      %v3449 = vmul.f32 %v3314, %v3433
      %v3450 = vmul.f32 %v3315, %v3433
      %v3451 = vmul.f32 %v3316, %v3433
      %v3452 = vmul.f32 %v3317, %v3433
      %v3453 = vmul.f32 %v3318, %v3433
      %v3454 = vmul.f32 %v3319, %v3433
      %v3455 = vmul.f32 %v3320, %v3433
      %v3456 = vmul.f32 %v3321, %v3433
      %v3457 = vmul.f32 %v3322, %v3433
      %v3458 = vmul.f32 %v3323, %v3433
      %v3459 = vmul.f32 %v3324, %v3433
      %v3460 = vmul.f32 %v3325, %v3433
      %v3461 = vmul.f32 %v3326, %v3433
      %v3462 = vmul.f32 %v3327, %v3433
      %v3463 = vmul.f32 %v3328, %v3433
      %v3464 = vmul.f32 %v3329, %v3433
      %v3465 = vmul.f32 %v3330, %v3433
      %v3466 = vmul.f32 %v3331, %v3433
      %v3467 = vmul.f32 %v3332, %v3433
      %v3468 = vmul.f32 %v3333, %v3433
      %v3469 = vmul.f32 %v3334, %v3433
      %v3470 = vmul.f32 %v3335, %v3433
      %v3471 = vmul.f32 %v3336, %v3433
      %v3472 = vmul.f32 %v3337, %v3433
      %v3473 = vmul.f32 %v3338, %v3433
      %v3474 = vmul.f32 %v3339, %v3433
      %v3475 = vmul.f32 %v3340, %v3433
      %v3476 = vmul.f32 %v3341, %v3433
      %v3477 = vmul.f32 %v3342, %v3433
      %v3478 = vmul.f32 %v3343, %v3433
      %v3479 = vmul.f32 %v3344, %v3433
      %v3480 = vmul.f32 %v3345, %v3433
      %v3481 = vmul.f32 %v3346, %v3433
      %v3482 = vmul.f32 %v3347, %v3433
      %v3483 = vmul.f32 %v3348, %v3433
      %v3484 = vmul.f32 %v3349, %v3433
      %v3485 = vmul.f32 %v3350, %v3433
      %v3486 = vmul.f32 %v3351, %v3433
      %v3487 = vmul.f32 %v3352, %v3433
      %v3488 = vmul.f32 %v3353, %v3433
      %v3489 = vmul.f32 %v3354, %v3433
      %v3490 = vmul.f32 %v3355, %v3433
      %v3491 = vmul.f32 %v3356, %v3433
      %v3492 = vmul.f32 %v3357, %v3433
      %v3493 = vmul.f32 %v3358, %v3433
      %v3494 = vmul.f32 %v3359, %v3433
      %v3495 = vmul.f32 %v3360, %v3433
      %v3496 = vmul.f32 %v3361, %v3433
      %v3497 = vmul.f32 %v3362, %v3433
      %v3498 = vmul.f32 %v3363, %v3433
      %v3499 = vmul.f32 %v3364, %v3433
      %v3500 = vmul.f32 %v3365, %v3433
      %v3501 = vmul.f32 %v3366, %v3433
      %v3502 = vmul.f32 %v3367, %v3433
      %v3503 = vmul.f32 %v3368, %v3433
      %v3504 = vmul.f32 %v3369, %v3433
      %v3505 = vmul.f32 %v3370, %v3433
      %v3506 = vmul.f32 %v3371, %v3433
      %v3507 = vmul.f32 %v3372, %v3433
      %v3508 = vmul.f32 %v3373, %v3433
      %v3509 = vmul.f32 %v3374, %v3433
      %v3510 = vmul.f32 %v3375, %v3433
      %v3511 = vmul.f32 %v3376, %v3433
      %v3512 = vmul.f32 %v3377, %v3433
      %v3513 = vmul.f32 %v3378, %v3433
      %v3514 = vmul.f32 %v3379, %v3433
      %v3515 = vmul.f32 %v3380, %v3433
      %v3516 = vmul.f32 %v3381, %v3433
      %v3517 = vmul.f32 %v3382, %v3433
      %v3518 = vmul.f32 %v3383, %v3433
      %v3519 = vmul.f32 %v3384, %v3433
      %v3520 = vmul.f32 %v3385, %v3433
      %v3521 = vmul.f32 %v3386, %v3433
      %v3522 = vmul.f32 %v3387, %v3433
      %v3523 = vmul.f32 %v3388, %v3433
      %v3524 = vmul.f32 %v3389, %v3433
      %v3525 = vmul.f32 %v3390, %v3433
      %v3526 = vmul.f32 %v3391, %v3433
      %v3527 = vmul.f32 %v3392, %v3433
      %v3528 = vmul.f32 %v3393, %v3433
      %v3529 = vmul.f32 %v3394, %v3433
      %v3530 = vmul.f32 %v3395, %v3433
      %v3531 = vmul.f32 %v3396, %v3433
      %v3532 = vmul.f32 %v3397, %v3433
      %v3533 = vmul.f32 %v3398, %v3433
      %v3534 = vmul.f32 %v3399, %v3433
      %v3535 = vmul.f32 %v3400, %v3433
      %v3536 = vmul.f32 %v3401, %v3433
      %v3537 = vmul.f32 %v3402, %v3433
      %v3538 = vmul.f32 %v3403, %v3433
      %v3539 = vmul.f32 %v3404, %v3433
      %v3540 = vmul.f32 %v3405, %v3433
      %v3541 = vmul.f32 %v3406, %v3433
      %v3542 = vmul.f32 %v3407, %v3433
      %v3543 = vmul.f32 %v3408, %v3433
      %v3544 = vmul.f32 %v3409, %v3433
      %v3545 = vmul.f32 %v3410, %v3433
      %v3546 = vmul.f32 %v3411, %v3433
      %v3547 = vmul.f32 %v3412, %v3433
      %v3548 = vmul.f32 %v3413, %v3433
      %v3549 = vmul.f32 %v3414, %v3433
      %v3550 = vmul.f32 %v3415, %v3433
      %v3551 = vmul.f32 %v3416, %v3433
      %v3552 = vmul.f32 %v3417, %v3433
      %v3553 = vmul.f32 %v3418, %v3433
      %v3554 = vmul.f32 %v3419, %v3433
      %v3555 = vmul.f32 %v3420, %v3433
      %v3556 = vmul.f32 %v3421, %v3433
      %v3557 = vmul.f32 %v3422, %v3433
      %v3558 = vmul.f32 %v3423, %v3433
      %v3559 = vmul.f32 %v3424, %v3433
      %v3560 = vmul.f32 %v3425, %v3433
      %v3561 = vmul.f32 %v3426, %v3433
      %v3562 = vmul.f32 %v3427, %v3433
      %3563 = vadd.xlane.f32.xlu0 %v3435
      %v3564 = vpop.xlane.xlu0 %3563
      %3565 = vadd.xlane.f32.xlu0 %v3436
      %v3566 = vpop.xlane.xlu0 %3565
      %3567 = vadd.xlane.f32.xlu0 %v3437
      %v3568 = vpop.xlane.xlu0 %3567
      %3569 = vadd.xlane.f32.xlu0 %v3438
      %v3570 = vpop.xlane.xlu0 %3569
      %3571 = vadd.xlane.f32.xlu0 %v3439
      %v3572 = vpop.xlane.xlu0 %3571
      %3573 = vadd.xlane.f32.xlu0 %v3440
      %v3574 = vpop.xlane.xlu0 %3573
      %3575 = vadd.xlane.f32.xlu0 %v3441
      %v3576 = vpop.xlane.xlu0 %3575
      %3577 = vadd.xlane.f32.xlu0 %v3442
      %v3578 = vpop.xlane.xlu0 %3577
      %3579 = vadd.xlane.f32.xlu0 %v3443
      %v3580 = vpop.xlane.xlu0 %3579
      %3581 = vadd.xlane.f32.xlu0 %v3444
      %v3582 = vpop.xlane.xlu0 %3581
      %3583 = vadd.xlane.f32.xlu0 %v3445
      %v3584 = vpop.xlane.xlu0 %3583
      %3585 = vadd.xlane.f32.xlu0 %v3446
      %v3586 = vpop.xlane.xlu0 %3585
      %3587 = vadd.xlane.f32.xlu0 %v3447
      %v3588 = vpop.xlane.xlu0 %3587
      %3589 = vadd.xlane.f32.xlu0 %v3448
      %v3590 = vpop.xlane.xlu0 %3589
      %3591 = vadd.xlane.f32.xlu0 %v3449
      %v3592 = vpop.xlane.xlu0 %3591
      %3593 = vadd.xlane.f32.xlu0 %v3450
      %v3594 = vpop.xlane.xlu0 %3593
      %3595 = vadd.xlane.f32.xlu0 %v3451
      %v3596 = vpop.xlane.xlu0 %3595
      %3597 = vadd.xlane.f32.xlu0 %v3452
      %v3598 = vpop.xlane.xlu0 %3597
      %3599 = vadd.xlane.f32.xlu0 %v3453
      %v3600 = vpop.xlane.xlu0 %3599
      %3601 = vadd.xlane.f32.xlu0 %v3454
      %v3602 = vpop.xlane.xlu0 %3601
      %3603 = vadd.xlane.f32.xlu0 %v3455
      %v3604 = vpop.xlane.xlu0 %3603
      %3605 = vadd.xlane.f32.xlu0 %v3456
      %v3606 = vpop.xlane.xlu0 %3605
      %3607 = vadd.xlane.f32.xlu0 %v3457
      %v3608 = vpop.xlane.xlu0 %3607
      %3609 = vadd.xlane.f32.xlu0 %v3458
      %v3610 = vpop.xlane.xlu0 %3609
      %3611 = vadd.xlane.f32.xlu0 %v3459
      %v3612 = vpop.xlane.xlu0 %3611
      %3613 = vadd.xlane.f32.xlu0 %v3460
      %v3614 = vpop.xlane.xlu0 %3613
      %3615 = vadd.xlane.f32.xlu0 %v3461
      %v3616 = vpop.xlane.xlu0 %3615
      %3617 = vadd.xlane.f32.xlu0 %v3462
      %v3618 = vpop.xlane.xlu0 %3617
      %3619 = vadd.xlane.f32.xlu0 %v3463
      %v3620 = vpop.xlane.xlu0 %3619
      %3621 = vadd.xlane.f32.xlu0 %v3464
      %v3622 = vpop.xlane.xlu0 %3621
      %3623 = vadd.xlane.f32.xlu0 %v3465
      %v3624 = vpop.xlane.xlu0 %3623
      %3625 = vadd.xlane.f32.xlu0 %v3466
      %v3626 = vpop.xlane.xlu0 %3625
      %3627 = vadd.xlane.f32.xlu0 %v3467
      %v3628 = vpop.xlane.xlu0 %3627
      %3629 = vadd.xlane.f32.xlu0 %v3468
      %v3630 = vpop.xlane.xlu0 %3629
      %3631 = vadd.xlane.f32.xlu0 %v3469
      %v3632 = vpop.xlane.xlu0 %3631
      %3633 = vadd.xlane.f32.xlu0 %v3470
      %v3634 = vpop.xlane.xlu0 %3633
      %3635 = vadd.xlane.f32.xlu0 %v3471
      %v3636 = vpop.xlane.xlu0 %3635
      %3637 = vadd.xlane.f32.xlu0 %v3472
      %v3638 = vpop.xlane.xlu0 %3637
      %3639 = vadd.xlane.f32.xlu0 %v3473
      %v3640 = vpop.xlane.xlu0 %3639
      %3641 = vadd.xlane.f32.xlu0 %v3474
      %v3642 = vpop.xlane.xlu0 %3641
      %3643 = vadd.xlane.f32.xlu0 %v3475
      %v3644 = vpop.xlane.xlu0 %3643
      %3645 = vadd.xlane.f32.xlu0 %v3476
      %v3646 = vpop.xlane.xlu0 %3645
      %3647 = vadd.xlane.f32.xlu0 %v3477
      %v3648 = vpop.xlane.xlu0 %3647
      %3649 = vadd.xlane.f32.xlu0 %v3478
      %v3650 = vpop.xlane.xlu0 %3649
      %3651 = vadd.xlane.f32.xlu0 %v3479
      %v3652 = vpop.xlane.xlu0 %3651
      %3653 = vadd.xlane.f32.xlu0 %v3480
      %v3654 = vpop.xlane.xlu0 %3653
      %3655 = vadd.xlane.f32.xlu0 %v3481
      %v3656 = vpop.xlane.xlu0 %3655
      %3657 = vadd.xlane.f32.xlu0 %v3482
      %v3658 = vpop.xlane.xlu0 %3657
      %3659 = vadd.xlane.f32.xlu0 %v3483
      %v3660 = vpop.xlane.xlu0 %3659
      %3661 = vadd.xlane.f32.xlu0 %v3484
      %v3662 = vpop.xlane.xlu0 %3661
      %3663 = vadd.xlane.f32.xlu0 %v3485
      %v3664 = vpop.xlane.xlu0 %3663
      %3665 = vadd.xlane.f32.xlu0 %v3486
      %v3666 = vpop.xlane.xlu0 %3665
      %3667 = vadd.xlane.f32.xlu0 %v3487
      %v3668 = vpop.xlane.xlu0 %3667
      %3669 = vadd.xlane.f32.xlu0 %v3488
      %v3670 = vpop.xlane.xlu0 %3669
      %3671 = vadd.xlane.f32.xlu0 %v3489
      %v3672 = vpop.xlane.xlu0 %3671
      %3673 = vadd.xlane.f32.xlu0 %v3490
      %v3674 = vpop.xlane.xlu0 %3673
      %3675 = vadd.xlane.f32.xlu0 %v3491
      %v3676 = vpop.xlane.xlu0 %3675
      %3677 = vadd.xlane.f32.xlu0 %v3492
      %v3678 = vpop.xlane.xlu0 %3677
      %3679 = vadd.xlane.f32.xlu0 %v3493
      %v3680 = vpop.xlane.xlu0 %3679
      %3681 = vadd.xlane.f32.xlu0 %v3494
      %v3682 = vpop.xlane.xlu0 %3681
      %3683 = vadd.xlane.f32.xlu0 %v3495
      %v3684 = vpop.xlane.xlu0 %3683
      %3685 = vadd.xlane.f32.xlu0 %v3496
      %v3686 = vpop.xlane.xlu0 %3685
      %3687 = vadd.xlane.f32.xlu0 %v3497
      %v3688 = vpop.xlane.xlu0 %3687
      %3689 = vadd.xlane.f32.xlu0 %v3498
      %v3690 = vpop.xlane.xlu0 %3689
      %3691 = vadd.xlane.f32.xlu0 %v3499
      %v3692 = vpop.xlane.xlu0 %3691
      %3693 = vadd.xlane.f32.xlu0 %v3500
      %v3694 = vpop.xlane.xlu0 %3693
      %3695 = vadd.xlane.f32.xlu0 %v3501
      %v3696 = vpop.xlane.xlu0 %3695
      %3697 = vadd.xlane.f32.xlu0 %v3502
      %v3698 = vpop.xlane.xlu0 %3697
      %3699 = vadd.xlane.f32.xlu0 %v3503
      %v3700 = vpop.xlane.xlu0 %3699
      %3701 = vadd.xlane.f32.xlu0 %v3504
      %v3702 = vpop.xlane.xlu0 %3701
      %3703 = vadd.xlane.f32.xlu0 %v3505
      %v3704 = vpop.xlane.xlu0 %3703
      %3705 = vadd.xlane.f32.xlu0 %v3506
      %v3706 = vpop.xlane.xlu0 %3705
      %3707 = vadd.xlane.f32.xlu0 %v3507
      %v3708 = vpop.xlane.xlu0 %3707
      %3709 = vadd.xlane.f32.xlu0 %v3508
      %v3710 = vpop.xlane.xlu0 %3709
      %3711 = vadd.xlane.f32.xlu0 %v3509
      %v3712 = vpop.xlane.xlu0 %3711
      %3713 = vadd.xlane.f32.xlu0 %v3510
      %v3714 = vpop.xlane.xlu0 %3713
      %3715 = vadd.xlane.f32.xlu0 %v3511
      %v3716 = vpop.xlane.xlu0 %3715
      %3717 = vadd.xlane.f32.xlu0 %v3512
      %v3718 = vpop.xlane.xlu0 %3717
      %3719 = vadd.xlane.f32.xlu0 %v3513
      %v3720 = vpop.xlane.xlu0 %3719
      %3721 = vadd.xlane.f32.xlu0 %v3514
      %v3722 = vpop.xlane.xlu0 %3721
      %3723 = vadd.xlane.f32.xlu0 %v3515
      %v3724 = vpop.xlane.xlu0 %3723
      %3725 = vadd.xlane.f32.xlu0 %v3516
      %v3726 = vpop.xlane.xlu0 %3725
      %3727 = vadd.xlane.f32.xlu0 %v3517
      %v3728 = vpop.xlane.xlu0 %3727
      %3729 = vadd.xlane.f32.xlu0 %v3518
      %v3730 = vpop.xlane.xlu0 %3729
      %3731 = vadd.xlane.f32.xlu0 %v3519
      %v3732 = vpop.xlane.xlu0 %3731
      %3733 = vadd.xlane.f32.xlu0 %v3520
      %v3734 = vpop.xlane.xlu0 %3733
      %3735 = vadd.xlane.f32.xlu0 %v3521
      %v3736 = vpop.xlane.xlu0 %3735
      %3737 = vadd.xlane.f32.xlu0 %v3522
      %v3738 = vpop.xlane.xlu0 %3737
      %3739 = vadd.xlane.f32.xlu0 %v3523
      %v3740 = vpop.xlane.xlu0 %3739
      %3741 = vadd.xlane.f32.xlu0 %v3524
      %v3742 = vpop.xlane.xlu0 %3741
      %3743 = vadd.xlane.f32.xlu0 %v3525
      %v3744 = vpop.xlane.xlu0 %3743
      %3745 = vadd.xlane.f32.xlu0 %v3526
      %v3746 = vpop.xlane.xlu0 %3745
      %3747 = vadd.xlane.f32.xlu0 %v3527
      %v3748 = vpop.xlane.xlu0 %3747
      %3749 = vadd.xlane.f32.xlu0 %v3528
      %v3750 = vpop.xlane.xlu0 %3749
      %3751 = vadd.xlane.f32.xlu0 %v3529
      %v3752 = vpop.xlane.xlu0 %3751
      %3753 = vadd.xlane.f32.xlu0 %v3530
      %v3754 = vpop.xlane.xlu0 %3753
      %3755 = vadd.xlane.f32.xlu0 %v3531
      %v3756 = vpop.xlane.xlu0 %3755
      %3757 = vadd.xlane.f32.xlu0 %v3532
      %v3758 = vpop.xlane.xlu0 %3757
      %3759 = vadd.xlane.f32.xlu0 %v3533
      %v3760 = vpop.xlane.xlu0 %3759
      %3761 = vadd.xlane.f32.xlu0 %v3534
      %v3762 = vpop.xlane.xlu0 %3761
      %3763 = vadd.xlane.f32.xlu0 %v3535
      %v3764 = vpop.xlane.xlu0 %3763
      %3765 = vadd.xlane.f32.xlu0 %v3536
      %v3766 = vpop.xlane.xlu0 %3765
      %3767 = vadd.xlane.f32.xlu0 %v3537
      %v3768 = vpop.xlane.xlu0 %3767
      %3769 = vadd.xlane.f32.xlu0 %v3538
      %v3770 = vpop.xlane.xlu0 %3769
      %3771 = vadd.xlane.f32.xlu0 %v3539
      %v3772 = vpop.xlane.xlu0 %3771
      %3773 = vadd.xlane.f32.xlu0 %v3540
      %v3774 = vpop.xlane.xlu0 %3773
      %3775 = vadd.xlane.f32.xlu0 %v3541
      %v3776 = vpop.xlane.xlu0 %3775
      %3777 = vadd.xlane.f32.xlu0 %v3542
      %v3778 = vpop.xlane.xlu0 %3777
      %3779 = vadd.xlane.f32.xlu0 %v3543
      %v3780 = vpop.xlane.xlu0 %3779
      %3781 = vadd.xlane.f32.xlu0 %v3544
      %v3782 = vpop.xlane.xlu0 %3781
      %3783 = vadd.xlane.f32.xlu0 %v3545
      %v3784 = vpop.xlane.xlu0 %3783
      %3785 = vadd.xlane.f32.xlu0 %v3546
      %v3786 = vpop.xlane.xlu0 %3785
      %3787 = vadd.xlane.f32.xlu0 %v3547
      %v3788 = vpop.xlane.xlu0 %3787
      %3789 = vadd.xlane.f32.xlu0 %v3548
      %v3790 = vpop.xlane.xlu0 %3789
      %3791 = vadd.xlane.f32.xlu0 %v3549
      %v3792 = vpop.xlane.xlu0 %3791
      %3793 = vadd.xlane.f32.xlu0 %v3550
      %v3794 = vpop.xlane.xlu0 %3793
      %3795 = vadd.xlane.f32.xlu0 %v3551
      %v3796 = vpop.xlane.xlu0 %3795
      %3797 = vadd.xlane.f32.xlu0 %v3552
      %v3798 = vpop.xlane.xlu0 %3797
      %3799 = vadd.xlane.f32.xlu0 %v3553
      %v3800 = vpop.xlane.xlu0 %3799
      %3801 = vadd.xlane.f32.xlu0 %v3554
      %v3802 = vpop.xlane.xlu0 %3801
      %3803 = vadd.xlane.f32.xlu0 %v3555
      %v3804 = vpop.xlane.xlu0 %3803
      %3805 = vadd.xlane.f32.xlu0 %v3556
      %v3806 = vpop.xlane.xlu0 %3805
      %3807 = vadd.xlane.f32.xlu0 %v3557
      %v3808 = vpop.xlane.xlu0 %3807
      %3809 = vadd.xlane.f32.xlu0 %v3558
      %v3810 = vpop.xlane.xlu0 %3809
      %3811 = vadd.xlane.f32.xlu0 %v3559
      %v3812 = vpop.xlane.xlu0 %3811
      %3813 = vadd.xlane.f32.xlu0 %v3560
      %v3814 = vpop.xlane.xlu0 %3813
      %3815 = vadd.xlane.f32.xlu0 %v3561
      %v3816 = vpop.xlane.xlu0 %3815
      %3817 = vadd.xlane.f32.xlu0 %v3562
      %v3818 = vpop.xlane.xlu0 %3817
      %v3819 = vld [vmem:[%s1] sm:$0xff]
      %3820 = vset.pattern.permute.xlu0 0
      %3821 = vperm.xlu0 %3820, %v3819
      %v3822 = vpop.permute.xlu0 %3821
      %vm3823 = vcmp.ge.s32.totalorder %v1460, %v3822
      %v3952 = vlaneseq
      %v3953 = vshrl.u32 %v3952, 7
      %v3954 = vsub.s32 %v1460, %v3953
      %v3955 = vrot.slane %v3564, %v3954
      %v3956 = vadd.s32 %v1460, 4294967288
      %v3957 = vlaneseq
      %v3958 = vshrl.u32 %v3957, 7
      %v3959 = vsub.s32 %v3956, %v3958
      %v3960 = vrot.slane %v3566, %v3959
      %vm3961 = vcmask 130112
      %v3962 = vsel %vm3961, %v3960, %v3955
      %v3963 = vadd.s32 %v1460, 4294967280
      %v3964 = vlaneseq
      %v3965 = vshrl.u32 %v3964, 7
      %v3966 = vsub.s32 %v3963, %v3965
      %v3967 = vrot.slane %v3568, %v3966
      %vm3968 = vcmask 195712
      %v3969 = vsel %vm3968, %v3967, %v3962
      %v3970 = vadd.s32 %v1460, 4294967272
      %v3971 = vlaneseq
      %v3972 = vshrl.u32 %v3971, 7
      %v3973 = vsub.s32 %v3970, %v3972
      %v3974 = vrot.slane %v3570, %v3973
      %vm3975 = vcmask 261312
      %v3976 = vsel %vm3975, %v3974, %v3969
      %v3977 = vadd.s32 %v1460, 4294967264
      %v3978 = vlaneseq
      %v3979 = vshrl.u32 %v3978, 7
      %v3980 = vsub.s32 %v3977, %v3979
      %v3981 = vrot.slane %v3572, %v3980
      %vm3982 = vcmask 326912
      %v3983 = vsel %vm3982, %v3981, %v3976
      %v3984 = vadd.s32 %v1460, 4294967256
      %v3985 = vlaneseq
      %v3986 = vshrl.u32 %v3985, 7
      %v3987 = vsub.s32 %v3984, %v3986
      %v3988 = vrot.slane %v3574, %v3987
      %vm3989 = vcmask 392512
      %v3990 = vsel %vm3989, %v3988, %v3983
      %v3991 = vadd.s32 %v1460, 4294967248
      %v3992 = vlaneseq
      %v3993 = vshrl.u32 %v3992, 7
      %v3994 = vsub.s32 %v3991, %v3993
      %v3995 = vrot.slane %v3576, %v3994
      %vm3996 = vcmask 458112
      %v3997 = vsel %vm3996, %v3995, %v3990
      %v3998 = vadd.s32 %v1460, 4294967240
      %v3999 = vlaneseq
      %v4000 = vshrl.u32 %v3999, 7
      %v4001 = vsub.s32 %v3998, %v4000
      %v4002 = vrot.slane %v3578, %v4001
      %vm4003 = vcmask 523712
      %v4004 = vsel %vm4003, %v4002, %v3997
      %v4005 = vadd.s32 %v1460, 4294967232
      %v4006 = vlaneseq
      %v4007 = vshrl.u32 %v4006, 7
      %v4008 = vsub.s32 %v4005, %v4007
      %v4009 = vrot.slane %v3580, %v4008
      %vm4010 = vcmask 589312
      %v4011 = vsel %vm4010, %v4009, %v4004
      %v4012 = vadd.s32 %v1460, 4294967224
      %v4013 = vlaneseq
      %v4014 = vshrl.u32 %v4013, 7
      %v4015 = vsub.s32 %v4012, %v4014
      %v4016 = vrot.slane %v3582, %v4015
      %vm4017 = vcmask 654912
      %v4018 = vsel %vm4017, %v4016, %v4011
      %v4019 = vadd.s32 %v1460, 4294967216
      %v4020 = vlaneseq
      %v4021 = vshrl.u32 %v4020, 7
      %v4022 = vsub.s32 %v4019, %v4021
      %v4023 = vrot.slane %v3584, %v4022
      %vm4024 = vcmask 720512
      %v4025 = vsel %vm4024, %v4023, %v4018
      %v4026 = vadd.s32 %v1460, 4294967208
      %v4027 = vlaneseq
      %v4028 = vshrl.u32 %v4027, 7
      %v4029 = vsub.s32 %v4026, %v4028
      %v4030 = vrot.slane %v3586, %v4029
      %vm4031 = vcmask 786112
      %v4032 = vsel %vm4031, %v4030, %v4025
      %v4033 = vadd.s32 %v1460, 4294967200
      %v4034 = vlaneseq
      %v4035 = vshrl.u32 %v4034, 7
      %v4036 = vsub.s32 %v4033, %v4035
      %v4037 = vrot.slane %v3588, %v4036
      %vm4038 = vcmask 851712
      %v4039 = vsel %vm4038, %v4037, %v4032
      %v4040 = vadd.s32 %v1460, 4294967192
      %v4041 = vlaneseq
      %v4042 = vshrl.u32 %v4041, 7
      %v4043 = vsub.s32 %v4040, %v4042
      %v4044 = vrot.slane %v3590, %v4043
      %vm4045 = vcmask 917312
      %v4046 = vsel %vm4045, %v4044, %v4039
      %v4047 = vadd.s32 %v1460, 4294967184
      %v4048 = vlaneseq
      %v4049 = vshrl.u32 %v4048, 7
      %v4050 = vsub.s32 %v4047, %v4049
      %v4051 = vrot.slane %v3592, %v4050
      %vm4052 = vcmask 982912
      %v4053 = vsel %vm4052, %v4051, %v4046
      %v4054 = vadd.s32 %v1460, 4294967176
      %v4055 = vlaneseq
      %v4056 = vshrl.u32 %v4055, 7
      %v4057 = vsub.s32 %v4054, %v4056
      %v4058 = vrot.slane %v3594, %v4057
      %vm4059 = vcmask 1048512
      %v4060 = vsel %vm4059, %v4058, %v4053
      %v4061 = vlaneseq
      %v4062 = vshrl.u32 %v4061, 7
      %v4063 = vsub.s32 %v1460, %v4062
      %v4064 = vrot.slane %v3596, %v4063
      %v4065 = vlaneseq
      %v4066 = vshrl.u32 %v4065, 7
      %v4067 = vsub.s32 %v3956, %v4066
      %v4068 = vrot.slane %v3598, %v4067
      %v4069 = vsel %vm3961, %v4068, %v4064
      %v4070 = vlaneseq
      %v4071 = vshrl.u32 %v4070, 7
      %v4072 = vsub.s32 %v3963, %v4071
      %v4073 = vrot.slane %v3600, %v4072
      %v4074 = vsel %vm3968, %v4073, %v4069
      %v4075 = vlaneseq
      %v4076 = vshrl.u32 %v4075, 7
      %v4077 = vsub.s32 %v3970, %v4076
      %v4078 = vrot.slane %v3602, %v4077
      %v4079 = vsel %vm3975, %v4078, %v4074
      %v4080 = vlaneseq
      %v4081 = vshrl.u32 %v4080, 7
      %v4082 = vsub.s32 %v3977, %v4081
      %v4083 = vrot.slane %v3604, %v4082
      %v4084 = vsel %vm3982, %v4083, %v4079
      %v4085 = vlaneseq
      %v4086 = vshrl.u32 %v4085, 7
      %v4087 = vsub.s32 %v3984, %v4086
      %v4088 = vrot.slane %v3606, %v4087
      %v4089 = vsel %vm3989, %v4088, %v4084
      %v4090 = vlaneseq
      %v4091 = vshrl.u32 %v4090, 7
      %v4092 = vsub.s32 %v3991, %v4091
      %v4093 = vrot.slane %v3608, %v4092
      %v4094 = vsel %vm3996, %v4093, %v4089
      %v4095 = vlaneseq
      %v4096 = vshrl.u32 %v4095, 7
      %v4097 = vsub.s32 %v3998, %v4096
      %v4098 = vrot.slane %v3610, %v4097
      %v4099 = vsel %vm4003, %v4098, %v4094
      %v4100 = vlaneseq
      %v4101 = vshrl.u32 %v4100, 7
      %v4102 = vsub.s32 %v4005, %v4101
      %v4103 = vrot.slane %v3612, %v4102
      %v4104 = vsel %vm4010, %v4103, %v4099
      %v4105 = vlaneseq
      %v4106 = vshrl.u32 %v4105, 7
      %v4107 = vsub.s32 %v4012, %v4106
      %v4108 = vrot.slane %v3614, %v4107
      %v4109 = vsel %vm4017, %v4108, %v4104
      %v4110 = vlaneseq
      %v4111 = vshrl.u32 %v4110, 7
      %v4112 = vsub.s32 %v4019, %v4111
      %v4113 = vrot.slane %v3616, %v4112
      %v4114 = vsel %vm4024, %v4113, %v4109
      %v4115 = vlaneseq
      %v4116 = vshrl.u32 %v4115, 7
      %v4117 = vsub.s32 %v4026, %v4116
      %v4118 = vrot.slane %v3618, %v4117
      %v4119 = vsel %vm4031, %v4118, %v4114
      %v4120 = vlaneseq
      %v4121 = vshrl.u32 %v4120, 7
      %v4122 = vsub.s32 %v4033, %v4121
      %v4123 = vrot.slane %v3620, %v4122
      %v4124 = vsel %vm4038, %v4123, %v4119
      %v4125 = vlaneseq
      %v4126 = vshrl.u32 %v4125, 7
      %v4127 = vsub.s32 %v4040, %v4126
      %v4128 = vrot.slane %v3622, %v4127
      %v4129 = vsel %vm4045, %v4128, %v4124
      %v4130 = vlaneseq
      %v4131 = vshrl.u32 %v4130, 7
      %v4132 = vsub.s32 %v4047, %v4131
      %v4133 = vrot.slane %v3624, %v4132
      %v4134 = vsel %vm4052, %v4133, %v4129
      %v4135 = vlaneseq
      %v4136 = vshrl.u32 %v4135, 7
      %v4137 = vsub.s32 %v4054, %v4136
      %v4138 = vrot.slane %v3626, %v4137
      %v4139 = vsel %vm4059, %v4138, %v4134
      %v4140 = vlaneseq
      %v4141 = vshrl.u32 %v4140, 7
      %v4142 = vsub.s32 %v1460, %v4141
      %v4143 = vrot.slane %v3628, %v4142
      %v4144 = vlaneseq
      %v4145 = vshrl.u32 %v4144, 7
      %v4146 = vsub.s32 %v3956, %v4145
      %v4147 = vrot.slane %v3630, %v4146
      %v4148 = vsel %vm3961, %v4147, %v4143
      %v4149 = vlaneseq
      %v4150 = vshrl.u32 %v4149, 7
      %v4151 = vsub.s32 %v3963, %v4150
      %v4152 = vrot.slane %v3632, %v4151
      %v4153 = vsel %vm3968, %v4152, %v4148
      %v4154 = vlaneseq
      %v4155 = vshrl.u32 %v4154, 7
      %v4156 = vsub.s32 %v3970, %v4155
      %v4157 = vrot.slane %v3634, %v4156
      %v4158 = vsel %vm3975, %v4157, %v4153
      %v4159 = vlaneseq
      %v4160 = vshrl.u32 %v4159, 7
      %v4161 = vsub.s32 %v3977, %v4160
      %v4162 = vrot.slane %v3636, %v4161
      %v4163 = vsel %vm3982, %v4162, %v4158
      %v4164 = vlaneseq
      %v4165 = vshrl.u32 %v4164, 7
      %v4166 = vsub.s32 %v3984, %v4165
      %v4167 = vrot.slane %v3638, %v4166
      %v4168 = vsel %vm3989, %v4167, %v4163
      %v4169 = vlaneseq
      %v4170 = vshrl.u32 %v4169, 7
      %v4171 = vsub.s32 %v3991, %v4170
      %v4172 = vrot.slane %v3640, %v4171
      %v4173 = vsel %vm3996, %v4172, %v4168
      %v4174 = vlaneseq
      %v4175 = vshrl.u32 %v4174, 7
      %v4176 = vsub.s32 %v3998, %v4175
      %v4177 = vrot.slane %v3642, %v4176
      %v4178 = vsel %vm4003, %v4177, %v4173
      %v4179 = vlaneseq
      %v4180 = vshrl.u32 %v4179, 7
      %v4181 = vsub.s32 %v4005, %v4180
      %v4182 = vrot.slane %v3644, %v4181
      %v4183 = vsel %vm4010, %v4182, %v4178
      %v4184 = vlaneseq
      %v4185 = vshrl.u32 %v4184, 7
      %v4186 = vsub.s32 %v4012, %v4185
      %v4187 = vrot.slane %v3646, %v4186
      %v4188 = vsel %vm4017, %v4187, %v4183
      %v4189 = vlaneseq
      %v4190 = vshrl.u32 %v4189, 7
      %v4191 = vsub.s32 %v4019, %v4190
      %v4192 = vrot.slane %v3648, %v4191
      %v4193 = vsel %vm4024, %v4192, %v4188
      %v4194 = vlaneseq
      %v4195 = vshrl.u32 %v4194, 7
      %v4196 = vsub.s32 %v4026, %v4195
      %v4197 = vrot.slane %v3650, %v4196
      %v4198 = vsel %vm4031, %v4197, %v4193
      %v4199 = vlaneseq
      %v4200 = vshrl.u32 %v4199, 7
      %v4201 = vsub.s32 %v4033, %v4200
      %v4202 = vrot.slane %v3652, %v4201
      %v4203 = vsel %vm4038, %v4202, %v4198
      %v4204 = vlaneseq
      %v4205 = vshrl.u32 %v4204, 7
      %v4206 = vsub.s32 %v4040, %v4205
      %v4207 = vrot.slane %v3654, %v4206
      %v4208 = vsel %vm4045, %v4207, %v4203
      %v4209 = vlaneseq
      %v4210 = vshrl.u32 %v4209, 7
      %v4211 = vsub.s32 %v4047, %v4210
      %v4212 = vrot.slane %v3656, %v4211
      %v4213 = vsel %vm4052, %v4212, %v4208
      %v4214 = vlaneseq
      %v4215 = vshrl.u32 %v4214, 7
      %v4216 = vsub.s32 %v4054, %v4215
      %v4217 = vrot.slane %v3658, %v4216
      %v4218 = vsel %vm4059, %v4217, %v4213
      %v4219 = vlaneseq
      %v4220 = vshrl.u32 %v4219, 7
      %v4221 = vsub.s32 %v1460, %v4220
      %v4222 = vrot.slane %v3660, %v4221
      %v4223 = vlaneseq
      %v4224 = vshrl.u32 %v4223, 7
      %v4225 = vsub.s32 %v3956, %v4224
      %v4226 = vrot.slane %v3662, %v4225
      %v4227 = vsel %vm3961, %v4226, %v4222
      %v4228 = vlaneseq
      %v4229 = vshrl.u32 %v4228, 7
      %v4230 = vsub.s32 %v3963, %v4229
      %v4231 = vrot.slane %v3664, %v4230
      %v4232 = vsel %vm3968, %v4231, %v4227
      %v4233 = vlaneseq
      %v4234 = vshrl.u32 %v4233, 7
      %v4235 = vsub.s32 %v3970, %v4234
      %v4236 = vrot.slane %v3666, %v4235
      %v4237 = vsel %vm3975, %v4236, %v4232
      %v4238 = vlaneseq
      %v4239 = vshrl.u32 %v4238, 7
      %v4240 = vsub.s32 %v3977, %v4239
      %v4241 = vrot.slane %v3668, %v4240
      %v4242 = vsel %vm3982, %v4241, %v4237
      %v4243 = vlaneseq
      %v4244 = vshrl.u32 %v4243, 7
      %v4245 = vsub.s32 %v3984, %v4244
      %v4246 = vrot.slane %v3670, %v4245
      %v4247 = vsel %vm3989, %v4246, %v4242
      %v4248 = vlaneseq
      %v4249 = vshrl.u32 %v4248, 7
      %v4250 = vsub.s32 %v3991, %v4249
      %v4251 = vrot.slane %v3672, %v4250
      %v4252 = vsel %vm3996, %v4251, %v4247
      %v4253 = vlaneseq
      %v4254 = vshrl.u32 %v4253, 7
      %v4255 = vsub.s32 %v3998, %v4254
      %v4256 = vrot.slane %v3674, %v4255
      %v4257 = vsel %vm4003, %v4256, %v4252
      %v4258 = vlaneseq
      %v4259 = vshrl.u32 %v4258, 7
      %v4260 = vsub.s32 %v4005, %v4259
      %v4261 = vrot.slane %v3676, %v4260
      %v4262 = vsel %vm4010, %v4261, %v4257
      %v4263 = vlaneseq
      %v4264 = vshrl.u32 %v4263, 7
      %v4265 = vsub.s32 %v4012, %v4264
      %v4266 = vrot.slane %v3678, %v4265
      %v4267 = vsel %vm4017, %v4266, %v4262
      %v4268 = vlaneseq
      %v4269 = vshrl.u32 %v4268, 7
      %v4270 = vsub.s32 %v4019, %v4269
      %v4271 = vrot.slane %v3680, %v4270
      %v4272 = vsel %vm4024, %v4271, %v4267
      %v4273 = vlaneseq
      %v4274 = vshrl.u32 %v4273, 7
      %v4275 = vsub.s32 %v4026, %v4274
      %v4276 = vrot.slane %v3682, %v4275
      %v4277 = vsel %vm4031, %v4276, %v4272
      %v4278 = vlaneseq
      %v4279 = vshrl.u32 %v4278, 7
      %v4280 = vsub.s32 %v4033, %v4279
      %v4281 = vrot.slane %v3684, %v4280
      %v4282 = vsel %vm4038, %v4281, %v4277
      %v4283 = vlaneseq
      %v4284 = vshrl.u32 %v4283, 7
      %v4285 = vsub.s32 %v4040, %v4284
      %v4286 = vrot.slane %v3686, %v4285
      %v4287 = vsel %vm4045, %v4286, %v4282
      %v4288 = vlaneseq
      %v4289 = vshrl.u32 %v4288, 7
      %v4290 = vsub.s32 %v4047, %v4289
      %v4291 = vrot.slane %v3688, %v4290
      %v4292 = vsel %vm4052, %v4291, %v4287
      %v4293 = vlaneseq
      %v4294 = vshrl.u32 %v4293, 7
      %v4295 = vsub.s32 %v4054, %v4294
      %v4296 = vrot.slane %v3690, %v4295
      %v4297 = vsel %vm4059, %v4296, %v4292
      %v4298 = vlaneseq
      %v4299 = vshrl.u32 %v4298, 7
      %v4300 = vsub.s32 %v1460, %v4299
      %v4301 = vrot.slane %v3692, %v4300
      %v4302 = vlaneseq
      %v4303 = vshrl.u32 %v4302, 7
      %v4304 = vsub.s32 %v3956, %v4303
      %v4305 = vrot.slane %v3694, %v4304
      %v4306 = vsel %vm3961, %v4305, %v4301
      %v4307 = vlaneseq
      %v4308 = vshrl.u32 %v4307, 7
      %v4309 = vsub.s32 %v3963, %v4308
      %v4310 = vrot.slane %v3696, %v4309
      %v4311 = vsel %vm3968, %v4310, %v4306
      %v4312 = vlaneseq
      %v4313 = vshrl.u32 %v4312, 7
      %v4314 = vsub.s32 %v3970, %v4313
      %v4315 = vrot.slane %v3698, %v4314
      %v4316 = vsel %vm3975, %v4315, %v4311
      %v4317 = vlaneseq
      %v4318 = vshrl.u32 %v4317, 7
      %v4319 = vsub.s32 %v3977, %v4318
      %v4320 = vrot.slane %v3700, %v4319
      %v4321 = vsel %vm3982, %v4320, %v4316
      %v4322 = vlaneseq
      %v4323 = vshrl.u32 %v4322, 7
      %v4324 = vsub.s32 %v3984, %v4323
      %v4325 = vrot.slane %v3702, %v4324
      %v4326 = vsel %vm3989, %v4325, %v4321
      %v4327 = vlaneseq
      %v4328 = vshrl.u32 %v4327, 7
      %v4329 = vsub.s32 %v3991, %v4328
      %v4330 = vrot.slane %v3704, %v4329
      %v4331 = vsel %vm3996, %v4330, %v4326
      %v4332 = vlaneseq
      %v4333 = vshrl.u32 %v4332, 7
      %v4334 = vsub.s32 %v3998, %v4333
      %v4335 = vrot.slane %v3706, %v4334
      %v4336 = vsel %vm4003, %v4335, %v4331
      %v4337 = vlaneseq
      %v4338 = vshrl.u32 %v4337, 7
      %v4339 = vsub.s32 %v4005, %v4338
      %v4340 = vrot.slane %v3708, %v4339
      %v4341 = vsel %vm4010, %v4340, %v4336
      %v4342 = vlaneseq
      %v4343 = vshrl.u32 %v4342, 7
      %v4344 = vsub.s32 %v4012, %v4343
      %v4345 = vrot.slane %v3710, %v4344
      %v4346 = vsel %vm4017, %v4345, %v4341
      %v4347 = vlaneseq
      %v4348 = vshrl.u32 %v4347, 7
      %v4349 = vsub.s32 %v4019, %v4348
      %v4350 = vrot.slane %v3712, %v4349
      %v4351 = vsel %vm4024, %v4350, %v4346
      %v4352 = vlaneseq
      %v4353 = vshrl.u32 %v4352, 7
      %v4354 = vsub.s32 %v4026, %v4353
      %v4355 = vrot.slane %v3714, %v4354
      %v4356 = vsel %vm4031, %v4355, %v4351
      %v4357 = vlaneseq
      %v4358 = vshrl.u32 %v4357, 7
      %v4359 = vsub.s32 %v4033, %v4358
      %v4360 = vrot.slane %v3716, %v4359
      %v4361 = vsel %vm4038, %v4360, %v4356
      %v4362 = vlaneseq
      %v4363 = vshrl.u32 %v4362, 7
      %v4364 = vsub.s32 %v4040, %v4363
      %v4365 = vrot.slane %v3718, %v4364
      %v4366 = vsel %vm4045, %v4365, %v4361
      %v4367 = vlaneseq
      %v4368 = vshrl.u32 %v4367, 7
      %v4369 = vsub.s32 %v4047, %v4368
      %v4370 = vrot.slane %v3720, %v4369
      %v4371 = vsel %vm4052, %v4370, %v4366
      %v4372 = vlaneseq
      %v4373 = vshrl.u32 %v4372, 7
      %v4374 = vsub.s32 %v4054, %v4373
      %v4375 = vrot.slane %v3722, %v4374
      %v4376 = vsel %vm4059, %v4375, %v4371
      %v4377 = vlaneseq
      %v4378 = vshrl.u32 %v4377, 7
      %v4379 = vsub.s32 %v1460, %v4378
      %v4380 = vrot.slane %v3724, %v4379
      %v4381 = vlaneseq
      %v4382 = vshrl.u32 %v4381, 7
      %v4383 = vsub.s32 %v3956, %v4382
      %v4384 = vrot.slane %v3726, %v4383
      %v4385 = vsel %vm3961, %v4384, %v4380
      %v4386 = vlaneseq
      %v4387 = vshrl.u32 %v4386, 7
      %v4388 = vsub.s32 %v3963, %v4387
      %v4389 = vrot.slane %v3728, %v4388
      %v4390 = vsel %vm3968, %v4389, %v4385
      %v4391 = vlaneseq
      %v4392 = vshrl.u32 %v4391, 7
      %v4393 = vsub.s32 %v3970, %v4392
      %v4394 = vrot.slane %v3730, %v4393
      %v4395 = vsel %vm3975, %v4394, %v4390
      %v4396 = vlaneseq
      %v4397 = vshrl.u32 %v4396, 7
      %v4398 = vsub.s32 %v3977, %v4397
      %v4399 = vrot.slane %v3732, %v4398
      %v4400 = vsel %vm3982, %v4399, %v4395
      %v4401 = vlaneseq
      %v4402 = vshrl.u32 %v4401, 7
      %v4403 = vsub.s32 %v3984, %v4402
      %v4404 = vrot.slane %v3734, %v4403
      %v4405 = vsel %vm3989, %v4404, %v4400
      %v4406 = vlaneseq
      %v4407 = vshrl.u32 %v4406, 7
      %v4408 = vsub.s32 %v3991, %v4407
      %v4409 = vrot.slane %v3736, %v4408
      %v4410 = vsel %vm3996, %v4409, %v4405
      %v4411 = vlaneseq
      %v4412 = vshrl.u32 %v4411, 7
      %v4413 = vsub.s32 %v3998, %v4412
      %v4414 = vrot.slane %v3738, %v4413
      %v4415 = vsel %vm4003, %v4414, %v4410
      %v4416 = vlaneseq
      %v4417 = vshrl.u32 %v4416, 7
      %v4418 = vsub.s32 %v4005, %v4417
      %v4419 = vrot.slane %v3740, %v4418
      %v4420 = vsel %vm4010, %v4419, %v4415
      %v4421 = vlaneseq
      %v4422 = vshrl.u32 %v4421, 7
      %v4423 = vsub.s32 %v4012, %v4422
      %v4424 = vrot.slane %v3742, %v4423
      %v4425 = vsel %vm4017, %v4424, %v4420
      %v4426 = vlaneseq
      %v4427 = vshrl.u32 %v4426, 7
      %v4428 = vsub.s32 %v4019, %v4427
      %v4429 = vrot.slane %v3744, %v4428
      %v4430 = vsel %vm4024, %v4429, %v4425
      %v4431 = vlaneseq
      %v4432 = vshrl.u32 %v4431, 7
      %v4433 = vsub.s32 %v4026, %v4432
      %v4434 = vrot.slane %v3746, %v4433
      %v4435 = vsel %vm4031, %v4434, %v4430
      %v4436 = vlaneseq
      %v4437 = vshrl.u32 %v4436, 7
      %v4438 = vsub.s32 %v4033, %v4437
      %v4439 = vrot.slane %v3748, %v4438
      %v4440 = vsel %vm4038, %v4439, %v4435
      %v4441 = vlaneseq
      %v4442 = vshrl.u32 %v4441, 7
      %v4443 = vsub.s32 %v4040, %v4442
      %v4444 = vrot.slane %v3750, %v4443
      %v4445 = vsel %vm4045, %v4444, %v4440
      %v4446 = vlaneseq
      %v4447 = vshrl.u32 %v4446, 7
      %v4448 = vsub.s32 %v4047, %v4447
      %v4449 = vrot.slane %v3752, %v4448
      %v4450 = vsel %vm4052, %v4449, %v4445
      %v4451 = vlaneseq
      %v4452 = vshrl.u32 %v4451, 7
      %v4453 = vsub.s32 %v4054, %v4452
      %v4454 = vrot.slane %v3754, %v4453
      %v4455 = vsel %vm4059, %v4454, %v4450
      %v4456 = vlaneseq
      %v4457 = vshrl.u32 %v4456, 7
      %v4458 = vsub.s32 %v1460, %v4457
      %v4459 = vrot.slane %v3756, %v4458
      %v4460 = vlaneseq
      %v4461 = vshrl.u32 %v4460, 7
      %v4462 = vsub.s32 %v3956, %v4461
      %v4463 = vrot.slane %v3758, %v4462
      %v4464 = vsel %vm3961, %v4463, %v4459
      %v4465 = vlaneseq
      %v4466 = vshrl.u32 %v4465, 7
      %v4467 = vsub.s32 %v3963, %v4466
      %v4468 = vrot.slane %v3760, %v4467
      %v4469 = vsel %vm3968, %v4468, %v4464
      %v4470 = vlaneseq
      %v4471 = vshrl.u32 %v4470, 7
      %v4472 = vsub.s32 %v3970, %v4471
      %v4473 = vrot.slane %v3762, %v4472
      %v4474 = vsel %vm3975, %v4473, %v4469
      %v4475 = vlaneseq
      %v4476 = vshrl.u32 %v4475, 7
      %v4477 = vsub.s32 %v3977, %v4476
      %v4478 = vrot.slane %v3764, %v4477
      %v4479 = vsel %vm3982, %v4478, %v4474
      %v4480 = vlaneseq
      %v4481 = vshrl.u32 %v4480, 7
      %v4482 = vsub.s32 %v3984, %v4481
      %v4483 = vrot.slane %v3766, %v4482
      %v4484 = vsel %vm3989, %v4483, %v4479
      %v4485 = vlaneseq
      %v4486 = vshrl.u32 %v4485, 7
      %v4487 = vsub.s32 %v3991, %v4486
      %v4488 = vrot.slane %v3768, %v4487
      %v4489 = vsel %vm3996, %v4488, %v4484
      %v4490 = vlaneseq
      %v4491 = vshrl.u32 %v4490, 7
      %v4492 = vsub.s32 %v3998, %v4491
      %v4493 = vrot.slane %v3770, %v4492
      %v4494 = vsel %vm4003, %v4493, %v4489
      %v4495 = vlaneseq
      %v4496 = vshrl.u32 %v4495, 7
      %v4497 = vsub.s32 %v4005, %v4496
      %v4498 = vrot.slane %v3772, %v4497
      %v4499 = vsel %vm4010, %v4498, %v4494
      %v4500 = vlaneseq
      %v4501 = vshrl.u32 %v4500, 7
      %v4502 = vsub.s32 %v4012, %v4501
      %v4503 = vrot.slane %v3774, %v4502
      %v4504 = vsel %vm4017, %v4503, %v4499
      %v4505 = vlaneseq
      %v4506 = vshrl.u32 %v4505, 7
      %v4507 = vsub.s32 %v4019, %v4506
      %v4508 = vrot.slane %v3776, %v4507
      %v4509 = vsel %vm4024, %v4508, %v4504
      %v4510 = vlaneseq
      %v4511 = vshrl.u32 %v4510, 7
      %v4512 = vsub.s32 %v4026, %v4511
      %v4513 = vrot.slane %v3778, %v4512
      %v4514 = vsel %vm4031, %v4513, %v4509
      %v4515 = vlaneseq
      %v4516 = vshrl.u32 %v4515, 7
      %v4517 = vsub.s32 %v4033, %v4516
      %v4518 = vrot.slane %v3780, %v4517
      %v4519 = vsel %vm4038, %v4518, %v4514
      %v4520 = vlaneseq
      %v4521 = vshrl.u32 %v4520, 7
      %v4522 = vsub.s32 %v4040, %v4521
      %v4523 = vrot.slane %v3782, %v4522
      %v4524 = vsel %vm4045, %v4523, %v4519
      %v4525 = vlaneseq
      %v4526 = vshrl.u32 %v4525, 7
      %v4527 = vsub.s32 %v4047, %v4526
      %v4528 = vrot.slane %v3784, %v4527
      %v4529 = vsel %vm4052, %v4528, %v4524
      %v4530 = vlaneseq
      %v4531 = vshrl.u32 %v4530, 7
      %v4532 = vsub.s32 %v4054, %v4531
      %v4533 = vrot.slane %v3786, %v4532
      %v4534 = vsel %vm4059, %v4533, %v4529
      %v4535 = vlaneseq
      %v4536 = vshrl.u32 %v4535, 7
      %v4537 = vsub.s32 %v1460, %v4536
      %v4538 = vrot.slane %v3788, %v4537
      %v4539 = vlaneseq
      %v4540 = vshrl.u32 %v4539, 7
      %v4541 = vsub.s32 %v3956, %v4540
      %v4542 = vrot.slane %v3790, %v4541
      %v4543 = vsel %vm3961, %v4542, %v4538
      %v4544 = vlaneseq
      %v4545 = vshrl.u32 %v4544, 7
      %v4546 = vsub.s32 %v3963, %v4545
      %v4547 = vrot.slane %v3792, %v4546
      %v4548 = vsel %vm3968, %v4547, %v4543
      %v4549 = vlaneseq
      %v4550 = vshrl.u32 %v4549, 7
      %v4551 = vsub.s32 %v3970, %v4550
      %v4552 = vrot.slane %v3794, %v4551
      %v4553 = vsel %vm3975, %v4552, %v4548
      %v4554 = vlaneseq
      %v4555 = vshrl.u32 %v4554, 7
      %v4556 = vsub.s32 %v3977, %v4555
      %v4557 = vrot.slane %v3796, %v4556
      %v4558 = vsel %vm3982, %v4557, %v4553
      %v4559 = vlaneseq
      %v4560 = vshrl.u32 %v4559, 7
      %v4561 = vsub.s32 %v3984, %v4560
      %v4562 = vrot.slane %v3798, %v4561
      %v4563 = vsel %vm3989, %v4562, %v4558
      %v4564 = vlaneseq
      %v4565 = vshrl.u32 %v4564, 7
      %v4566 = vsub.s32 %v3991, %v4565
      %v4567 = vrot.slane %v3800, %v4566
      %v4568 = vsel %vm3996, %v4567, %v4563
      %v4569 = vlaneseq
      %v4570 = vshrl.u32 %v4569, 7
      %v4571 = vsub.s32 %v3998, %v4570
      %v4572 = vrot.slane %v3802, %v4571
      %v4573 = vsel %vm4003, %v4572, %v4568
      %v4574 = vlaneseq
      %v4575 = vshrl.u32 %v4574, 7
      %v4576 = vsub.s32 %v4005, %v4575
      %v4577 = vrot.slane %v3804, %v4576
      %v4578 = vsel %vm4010, %v4577, %v4573
      %v4579 = vlaneseq
      %v4580 = vshrl.u32 %v4579, 7
      %v4581 = vsub.s32 %v4012, %v4580
      %v4582 = vrot.slane %v3806, %v4581
      %v4583 = vsel %vm4017, %v4582, %v4578
      %v4584 = vlaneseq
      %v4585 = vshrl.u32 %v4584, 7
      %v4586 = vsub.s32 %v4019, %v4585
      %v4587 = vrot.slane %v3808, %v4586
      %v4588 = vsel %vm4024, %v4587, %v4583
      %v4589 = vlaneseq
      %v4590 = vshrl.u32 %v4589, 7
      %v4591 = vsub.s32 %v4026, %v4590
      %v4592 = vrot.slane %v3810, %v4591
      %v4593 = vsel %vm4031, %v4592, %v4588
      %v4594 = vlaneseq
      %v4595 = vshrl.u32 %v4594, 7
      %v4596 = vsub.s32 %v4033, %v4595
      %v4597 = vrot.slane %v3812, %v4596
      %v4598 = vsel %vm4038, %v4597, %v4593
      %v4599 = vlaneseq
      %v4600 = vshrl.u32 %v4599, 7
      %v4601 = vsub.s32 %v4040, %v4600
      %v4602 = vrot.slane %v3814, %v4601
      %v4603 = vsel %vm4045, %v4602, %v4598
      %v4604 = vlaneseq
      %v4605 = vshrl.u32 %v4604, 7
      %v4606 = vsub.s32 %v4047, %v4605
      %v4607 = vrot.slane %v3816, %v4606
      %v4608 = vsel %vm4052, %v4607, %v4603
      %v4609 = vlaneseq
      %v4610 = vshrl.u32 %v4609, 7
      %v4611 = vsub.s32 %v4054, %v4610
      %v4612 = vrot.slane %v3818, %v4611
      %v4613 = vsel %vm4059, %v4612, %v4608
      %vm4614 = vcmask 1041409
      %v4615 = vsel %vm4614, %v4139, %v4060
      %vm4616 = vcmask 1042434
      %v4617 = vsel %vm4616, %v4218, %v4615
      %vm4618 = vcmask 1043459
      %v4619 = vsel %vm4618, %v4297, %v4617
      %vm4620 = vcmask 1044484
      %v4621 = vsel %vm4620, %v4376, %v4619
      %vm4622 = vcmask 1045509
      %v4623 = vsel %vm4622, %v4455, %v4621
      %vm4624 = vcmask 1046534
      %v4625 = vsel %vm4624, %v4534, %v4623
      %vm4626 = vcmask 1047559
      %v4627 = vsel %vm4626, %v4613, %v4625
      %v4629 = vsel %vm3823, -inf, %v4627
      %4630 = vmax.xlane.f32.xlu0 %v4629
      %v4631 = vpop.xlane.xlu0 %4630
      %v4632 = vsub.f32 %v4629, %v4631
      %v4633 = vmul.f32 %v4632, 1.442695
      %v4634 = vpow.pop %v4633
      %4635 = vadd.xlane.f32.xlu0 %v4634
      %v4636 = vpop.xlane.xlu0 %4635
      %v4637 = vrcp.pop %v4636
      %v4638 = vmul.f32 %v4634, %v4637
      %s4639 = smul.u32 %s1454, 8
      %s4640 = scalar_lea.vmem [#allocation7], %s4639
      %4641 = vst [vmem:[%s4640] sm:$0xff] %v4638
      %v4642 = vunpack.c.l.bf16 %v2827
      %v4643 = vunpack.c.h.bf16 %v2827
      %v4644 = vunpack.c.l.bf16 %v2829
      %v4645 = vunpack.c.h.bf16 %v2829
      %v4646 = vunpack.c.l.bf16 %v2831
      %v4647 = vunpack.c.h.bf16 %v2831
      %v4648 = vunpack.c.l.bf16 %v2833
      %v4649 = vunpack.c.h.bf16 %v2833
      %v4650 = vunpack.c.l.bf16 %v2835
      %v4651 = vunpack.c.h.bf16 %v2835
      %v4652 = vunpack.c.l.bf16 %v2837
      %v4653 = vunpack.c.h.bf16 %v2837
      %v4654 = vunpack.c.l.bf16 %v2839
      %v4655 = vunpack.c.h.bf16 %v2839
      %v4656 = vunpack.c.l.bf16 %v2841
      %v4657 = vunpack.c.h.bf16 %v2841
      %v4658 = vunpack.c.l.bf16 %v2843
      %v4659 = vunpack.c.h.bf16 %v2843
      %v4660 = vunpack.c.l.bf16 %v2845
      %v4661 = vunpack.c.h.bf16 %v2845
      %v4662 = vunpack.c.l.bf16 %v2847
      %v4663 = vunpack.c.h.bf16 %v2847
      %v4664 = vunpack.c.l.bf16 %v2849
      %v4665 = vunpack.c.h.bf16 %v2849
      %v4666 = vunpack.c.l.bf16 %v2851
      %v4667 = vunpack.c.h.bf16 %v2851
      %v4668 = vunpack.c.l.bf16 %v2853
      %v4669 = vunpack.c.h.bf16 %v2853
      %v4670 = vunpack.c.l.bf16 %v2855
      %v4671 = vunpack.c.h.bf16 %v2855
      %v4672 = vunpack.c.l.bf16 %v2857
      %v4673 = vunpack.c.h.bf16 %v2857
      %v4674 = vunpack.c.l.bf16 %v2859
      %v4675 = vunpack.c.h.bf16 %v2859
      %v4676 = vunpack.c.l.bf16 %v2861
      %v4677 = vunpack.c.h.bf16 %v2861
      %v4678 = vunpack.c.l.bf16 %v2863
      %v4679 = vunpack.c.h.bf16 %v2863
      %v4680 = vunpack.c.l.bf16 %v2865
      %v4681 = vunpack.c.h.bf16 %v2865
      %v4682 = vunpack.c.l.bf16 %v2867
      %v4683 = vunpack.c.h.bf16 %v2867
      %v4684 = vunpack.c.l.bf16 %v2869
      %v4685 = vunpack.c.h.bf16 %v2869
      %v4686 = vunpack.c.l.bf16 %v2871
      %v4687 = vunpack.c.h.bf16 %v2871
      %v4688 = vunpack.c.l.bf16 %v2873
      %v4689 = vunpack.c.h.bf16 %v2873
      %v4690 = vunpack.c.l.bf16 %v2875
      %v4691 = vunpack.c.h.bf16 %v2875
      %v4692 = vunpack.c.l.bf16 %v2877
      %v4693 = vunpack.c.h.bf16 %v2877
      %v4694 = vunpack.c.l.bf16 %v2879
      %v4695 = vunpack.c.h.bf16 %v2879
      %v4696 = vunpack.c.l.bf16 %v2881
      %v4697 = vunpack.c.h.bf16 %v2881
      %v4698 = vunpack.c.l.bf16 %v2883
      %v4699 = vunpack.c.h.bf16 %v2883
      %v4700 = vunpack.c.l.bf16 %v2885
      %v4701 = vunpack.c.h.bf16 %v2885
      %v4702 = vunpack.c.l.bf16 %v2887
      %v4703 = vunpack.c.h.bf16 %v2887
      %v4704 = vunpack.c.l.bf16 %v2889
      %v4705 = vunpack.c.h.bf16 %v2889
      %v4706 = vunpack.c.l.bf16 %v2891
      %v4707 = vunpack.c.h.bf16 %v2891
      %v4708 = vunpack.c.l.bf16 %v2893
      %v4709 = vunpack.c.h.bf16 %v2893
      %v4710 = vunpack.c.l.bf16 %v2895
      %v4711 = vunpack.c.h.bf16 %v2895
      %v4712 = vunpack.c.l.bf16 %v2897
      %v4713 = vunpack.c.h.bf16 %v2897
      %v4714 = vunpack.c.l.bf16 %v2899
      %v4715 = vunpack.c.h.bf16 %v2899
      %v4716 = vunpack.c.l.bf16 %v2901
      %v4717 = vunpack.c.h.bf16 %v2901
      %v4718 = vunpack.c.l.bf16 %v2903
      %v4719 = vunpack.c.h.bf16 %v2903
      %v4720 = vunpack.c.l.bf16 %v2905
      %v4721 = vunpack.c.h.bf16 %v2905
      %v4722 = vunpack.c.l.bf16 %v2907
      %v4723 = vunpack.c.h.bf16 %v2907
      %v4724 = vunpack.c.l.bf16 %v2909
      %v4725 = vunpack.c.h.bf16 %v2909
      %v4726 = vunpack.c.l.bf16 %v2911
      %v4727 = vunpack.c.h.bf16 %v2911
      %v4728 = vunpack.c.l.bf16 %v2913
      %v4729 = vunpack.c.h.bf16 %v2913
      %v4730 = vunpack.c.l.bf16 %v2915
      %v4731 = vunpack.c.h.bf16 %v2915
      %v4732 = vunpack.c.l.bf16 %v2917
      %v4733 = vunpack.c.h.bf16 %v2917
      %v4734 = vunpack.c.l.bf16 %v2919
      %v4735 = vunpack.c.h.bf16 %v2919
      %v4736 = vunpack.c.l.bf16 %v2921
      %v4737 = vunpack.c.h.bf16 %v2921
      %v4738 = vunpack.c.l.bf16 %v2923
      %v4739 = vunpack.c.h.bf16 %v2923
      %v4740 = vunpack.c.l.bf16 %v2925
      %v4741 = vunpack.c.h.bf16 %v2925
      %v4742 = vunpack.c.l.bf16 %v2927
      %v4743 = vunpack.c.h.bf16 %v2927
      %v4744 = vunpack.c.l.bf16 %v2929
      %v4745 = vunpack.c.h.bf16 %v2929
      %v4746 = vunpack.c.l.bf16 %v2931
      %v4747 = vunpack.c.h.bf16 %v2931
      %v4748 = vunpack.c.l.bf16 %v2933
      %v4749 = vunpack.c.h.bf16 %v2933
      %v4750 = vunpack.c.l.bf16 %v2935
      %v4751 = vunpack.c.h.bf16 %v2935
      %v4752 = vunpack.c.l.bf16 %v2937
      %v4753 = vunpack.c.h.bf16 %v2937
      %v4754 = vunpack.c.l.bf16 %v2939
      %v4755 = vunpack.c.h.bf16 %v2939
      %v4756 = vunpack.c.l.bf16 %v2941
      %v4757 = vunpack.c.h.bf16 %v2941
      %v4758 = vunpack.c.l.bf16 %v2943
      %v4759 = vunpack.c.h.bf16 %v2943
      %v4760 = vunpack.c.l.bf16 %v2945
      %v4761 = vunpack.c.h.bf16 %v2945
      %v4762 = vunpack.c.l.bf16 %v2947
      %v4763 = vunpack.c.h.bf16 %v2947
      %v4764 = vunpack.c.l.bf16 %v2949
      %v4765 = vunpack.c.h.bf16 %v2949
      %v4766 = vunpack.c.l.bf16 %v2951
      %v4767 = vunpack.c.h.bf16 %v2951
      %v4768 = vunpack.c.l.bf16 %v2953
      %v4769 = vunpack.c.h.bf16 %v2953
      %v4770 = vlaneseq
      %v4771 = vshrl.u32 %v4770, 7
      %v4772 = vsub.s32 0, %v4771
      %v4773 = vrot.slane %v4638, %v4772
      %4775 = vbcast.lane.b32.xlu0 %v4773, 256
      %v4776 = vpop.permute.xlu0 %4775
      %s4778 = sor.u32 256, 8
      %4779 = vbcast.lane.b32.xlu0 %v4773, %s4778
      %v4780 = vpop.permute.xlu0 %4779
      %s4782 = sor.u32 256, 16
      %4783 = vbcast.lane.b32.xlu0 %v4773, %s4782
      %v4784 = vpop.permute.xlu0 %4783
      %s4786 = sor.u32 256, 24
      %4787 = vbcast.lane.b32.xlu0 %v4773, %s4786
      %v4788 = vpop.permute.xlu0 %4787
      %s4790 = sor.u32 256, 32
      %4791 = vbcast.lane.b32.xlu0 %v4773, %s4790
      %v4792 = vpop.permute.xlu0 %4791
      %s4794 = sor.u32 256, 40
      %4795 = vbcast.lane.b32.xlu0 %v4773, %s4794
      %v4796 = vpop.permute.xlu0 %4795
      %s4798 = sor.u32 256, 48
      %4799 = vbcast.lane.b32.xlu0 %v4773, %s4798
      %v4800 = vpop.permute.xlu0 %4799
      %s4802 = sor.u32 256, 56
      %4803 = vbcast.lane.b32.xlu0 %v4773, %s4802
      %v4804 = vpop.permute.xlu0 %4803
      %s4806 = sor.u32 256, 64
      %4807 = vbcast.lane.b32.xlu0 %v4773, %s4806
      %v4808 = vpop.permute.xlu0 %4807
      %s4810 = sor.u32 256, 72
      %4811 = vbcast.lane.b32.xlu0 %v4773, %s4810
      %v4812 = vpop.permute.xlu0 %4811
      %s4814 = sor.u32 256, 80
      %4815 = vbcast.lane.b32.xlu0 %v4773, %s4814
      %v4816 = vpop.permute.xlu0 %4815
      %s4818 = sor.u32 256, 88
      %4819 = vbcast.lane.b32.xlu0 %v4773, %s4818
      %v4820 = vpop.permute.xlu0 %4819
      %s4822 = sor.u32 256, 96
      %4823 = vbcast.lane.b32.xlu0 %v4773, %s4822
      %v4824 = vpop.permute.xlu0 %4823
      %s4826 = sor.u32 256, 104
      %4827 = vbcast.lane.b32.xlu0 %v4773, %s4826
      %v4828 = vpop.permute.xlu0 %4827
      %s4830 = sor.u32 256, 112
      %4831 = vbcast.lane.b32.xlu0 %v4773, %s4830
      %v4832 = vpop.permute.xlu0 %4831
      %s4834 = sor.u32 256, 120
      %4835 = vbcast.lane.b32.xlu0 %v4773, %s4834
      %v4836 = vpop.permute.xlu0 %4835
      %v4837 = vlaneseq
      %v4838 = vshrl.u32 %v4837, 7
      %v4839 = vsub.s32 1, %v4838
      %v4840 = vrot.slane %v4638, %v4839
      %4842 = vbcast.lane.b32.xlu0 %v4840, 256
      %v4843 = vpop.permute.xlu0 %4842
      %s4845 = sor.u32 256, 8
      %4846 = vbcast.lane.b32.xlu0 %v4840, %s4845
      %v4847 = vpop.permute.xlu0 %4846
      %s4849 = sor.u32 256, 16
      %4850 = vbcast.lane.b32.xlu0 %v4840, %s4849
      %v4851 = vpop.permute.xlu0 %4850
      %s4853 = sor.u32 256, 24
      %4854 = vbcast.lane.b32.xlu0 %v4840, %s4853
      %v4855 = vpop.permute.xlu0 %4854
      %s4857 = sor.u32 256, 32
      %4858 = vbcast.lane.b32.xlu0 %v4840, %s4857
      %v4859 = vpop.permute.xlu0 %4858
      %s4861 = sor.u32 256, 40
      %4862 = vbcast.lane.b32.xlu0 %v4840, %s4861
      %v4863 = vpop.permute.xlu0 %4862
      %s4865 = sor.u32 256, 48
      %4866 = vbcast.lane.b32.xlu0 %v4840, %s4865
      %v4867 = vpop.permute.xlu0 %4866
      %s4869 = sor.u32 256, 56
      %4870 = vbcast.lane.b32.xlu0 %v4840, %s4869
      %v4871 = vpop.permute.xlu0 %4870
      %s4873 = sor.u32 256, 64
      %4874 = vbcast.lane.b32.xlu0 %v4840, %s4873
      %v4875 = vpop.permute.xlu0 %4874
      %s4877 = sor.u32 256, 72
      %4878 = vbcast.lane.b32.xlu0 %v4840, %s4877
      %v4879 = vpop.permute.xlu0 %4878
      %s4881 = sor.u32 256, 80
      %4882 = vbcast.lane.b32.xlu0 %v4840, %s4881
      %v4883 = vpop.permute.xlu0 %4882
      %s4885 = sor.u32 256, 88
      %4886 = vbcast.lane.b32.xlu0 %v4840, %s4885
      %v4887 = vpop.permute.xlu0 %4886
      %s4889 = sor.u32 256, 96
      %4890 = vbcast.lane.b32.xlu0 %v4840, %s4889
      %v4891 = vpop.permute.xlu0 %4890
      %s4893 = sor.u32 256, 104
      %4894 = vbcast.lane.b32.xlu0 %v4840, %s4893
      %v4895 = vpop.permute.xlu0 %4894
      %s4897 = sor.u32 256, 112
      %4898 = vbcast.lane.b32.xlu0 %v4840, %s4897
      %v4899 = vpop.permute.xlu0 %4898
      %s4901 = sor.u32 256, 120
      %4902 = vbcast.lane.b32.xlu0 %v4840, %s4901
      %v4903 = vpop.permute.xlu0 %4902
      %v4904 = vlaneseq
      %v4905 = vshrl.u32 %v4904, 7
      %v4906 = vsub.s32 2, %v4905
      %v4907 = vrot.slane %v4638, %v4906
      %4909 = vbcast.lane.b32.xlu0 %v4907, 256
      %v4910 = vpop.permute.xlu0 %4909
      %s4912 = sor.u32 256, 8
      %4913 = vbcast.lane.b32.xlu0 %v4907, %s4912
      %v4914 = vpop.permute.xlu0 %4913
      %s4916 = sor.u32 256, 16
      %4917 = vbcast.lane.b32.xlu0 %v4907, %s4916
      %v4918 = vpop.permute.xlu0 %4917
      %s4920 = sor.u32 256, 24
      %4921 = vbcast.lane.b32.xlu0 %v4907, %s4920
      %v4922 = vpop.permute.xlu0 %4921
      %s4924 = sor.u32 256, 32
      %4925 = vbcast.lane.b32.xlu0 %v4907, %s4924
      %v4926 = vpop.permute.xlu0 %4925
      %s4928 = sor.u32 256, 40
      %4929 = vbcast.lane.b32.xlu0 %v4907, %s4928
      %v4930 = vpop.permute.xlu0 %4929
      %s4932 = sor.u32 256, 48
      %4933 = vbcast.lane.b32.xlu0 %v4907, %s4932
      %v4934 = vpop.permute.xlu0 %4933
      %s4936 = sor.u32 256, 56
      %4937 = vbcast.lane.b32.xlu0 %v4907, %s4936
      %v4938 = vpop.permute.xlu0 %4937
      %s4940 = sor.u32 256, 64
      %4941 = vbcast.lane.b32.xlu0 %v4907, %s4940
      %v4942 = vpop.permute.xlu0 %4941
      %s4944 = sor.u32 256, 72
      %4945 = vbcast.lane.b32.xlu0 %v4907, %s4944
      %v4946 = vpop.permute.xlu0 %4945
      %s4948 = sor.u32 256, 80
      %4949 = vbcast.lane.b32.xlu0 %v4907, %s4948
      %v4950 = vpop.permute.xlu0 %4949
      %s4952 = sor.u32 256, 88
      %4953 = vbcast.lane.b32.xlu0 %v4907, %s4952
      %v4954 = vpop.permute.xlu0 %4953
      %s4956 = sor.u32 256, 96
      %4957 = vbcast.lane.b32.xlu0 %v4907, %s4956
      %v4958 = vpop.permute.xlu0 %4957
      %s4960 = sor.u32 256, 104
      %4961 = vbcast.lane.b32.xlu0 %v4907, %s4960
      %v4962 = vpop.permute.xlu0 %4961
      %s4964 = sor.u32 256, 112
      %4965 = vbcast.lane.b32.xlu0 %v4907, %s4964
      %v4966 = vpop.permute.xlu0 %4965
      %s4968 = sor.u32 256, 120
      %4969 = vbcast.lane.b32.xlu0 %v4907, %s4968
      %v4970 = vpop.permute.xlu0 %4969
      %v4971 = vlaneseq
      %v4972 = vshrl.u32 %v4971, 7
      %v4973 = vsub.s32 3, %v4972
      %v4974 = vrot.slane %v4638, %v4973
      %4976 = vbcast.lane.b32.xlu0 %v4974, 256
      %v4977 = vpop.permute.xlu0 %4976
      %s4979 = sor.u32 256, 8
      %4980 = vbcast.lane.b32.xlu0 %v4974, %s4979
      %v4981 = vpop.permute.xlu0 %4980
      %s4983 = sor.u32 256, 16
      %4984 = vbcast.lane.b32.xlu0 %v4974, %s4983
      %v4985 = vpop.permute.xlu0 %4984
      %s4987 = sor.u32 256, 24
      %4988 = vbcast.lane.b32.xlu0 %v4974, %s4987
      %v4989 = vpop.permute.xlu0 %4988
      %s4991 = sor.u32 256, 32
      %4992 = vbcast.lane.b32.xlu0 %v4974, %s4991
      %v4993 = vpop.permute.xlu0 %4992
      %s4995 = sor.u32 256, 40
      %4996 = vbcast.lane.b32.xlu0 %v4974, %s4995
      %v4997 = vpop.permute.xlu0 %4996
      %s4999 = sor.u32 256, 48
      %5000 = vbcast.lane.b32.xlu0 %v4974, %s4999
      %v5001 = vpop.permute.xlu0 %5000
      %s5003 = sor.u32 256, 56
      %5004 = vbcast.lane.b32.xlu0 %v4974, %s5003
      %v5005 = vpop.permute.xlu0 %5004
      %s5007 = sor.u32 256, 64
      %5008 = vbcast.lane.b32.xlu0 %v4974, %s5007
      %v5009 = vpop.permute.xlu0 %5008
      %s5011 = sor.u32 256, 72
      %5012 = vbcast.lane.b32.xlu0 %v4974, %s5011
      %v5013 = vpop.permute.xlu0 %5012
      %s5015 = sor.u32 256, 80
      %5016 = vbcast.lane.b32.xlu0 %v4974, %s5015
      %v5017 = vpop.permute.xlu0 %5016
      %s5019 = sor.u32 256, 88
      %5020 = vbcast.lane.b32.xlu0 %v4974, %s5019
      %v5021 = vpop.permute.xlu0 %5020
      %s5023 = sor.u32 256, 96
      %5024 = vbcast.lane.b32.xlu0 %v4974, %s5023
      %v5025 = vpop.permute.xlu0 %5024
      %s5027 = sor.u32 256, 104
      %5028 = vbcast.lane.b32.xlu0 %v4974, %s5027
      %v5029 = vpop.permute.xlu0 %5028
      %s5031 = sor.u32 256, 112
      %5032 = vbcast.lane.b32.xlu0 %v4974, %s5031
      %v5033 = vpop.permute.xlu0 %5032
      %s5035 = sor.u32 256, 120
      %5036 = vbcast.lane.b32.xlu0 %v4974, %s5035
      %v5037 = vpop.permute.xlu0 %5036
      %v5038 = vlaneseq
      %v5039 = vshrl.u32 %v5038, 7
      %v5040 = vsub.s32 4, %v5039
      %v5041 = vrot.slane %v4638, %v5040
      %5043 = vbcast.lane.b32.xlu0 %v5041, 256
      %v5044 = vpop.permute.xlu0 %5043
      %s5046 = sor.u32 256, 8
      %5047 = vbcast.lane.b32.xlu0 %v5041, %s5046
      %v5048 = vpop.permute.xlu0 %5047
      %s5050 = sor.u32 256, 16
      %5051 = vbcast.lane.b32.xlu0 %v5041, %s5050
      %v5052 = vpop.permute.xlu0 %5051
      %s5054 = sor.u32 256, 24
      %5055 = vbcast.lane.b32.xlu0 %v5041, %s5054
      %v5056 = vpop.permute.xlu0 %5055
      %s5058 = sor.u32 256, 32
      %5059 = vbcast.lane.b32.xlu0 %v5041, %s5058
      %v5060 = vpop.permute.xlu0 %5059
      %s5062 = sor.u32 256, 40
      %5063 = vbcast.lane.b32.xlu0 %v5041, %s5062
      %v5064 = vpop.permute.xlu0 %5063
      %s5066 = sor.u32 256, 48
      %5067 = vbcast.lane.b32.xlu0 %v5041, %s5066
      %v5068 = vpop.permute.xlu0 %5067
      %s5070 = sor.u32 256, 56
      %5071 = vbcast.lane.b32.xlu0 %v5041, %s5070
      %v5072 = vpop.permute.xlu0 %5071
      %s5074 = sor.u32 256, 64
      %5075 = vbcast.lane.b32.xlu0 %v5041, %s5074
      %v5076 = vpop.permute.xlu0 %5075
      %s5078 = sor.u32 256, 72
      %5079 = vbcast.lane.b32.xlu0 %v5041, %s5078
      %v5080 = vpop.permute.xlu0 %5079
      %s5082 = sor.u32 256, 80
      %5083 = vbcast.lane.b32.xlu0 %v5041, %s5082
      %v5084 = vpop.permute.xlu0 %5083
      %s5086 = sor.u32 256, 88
      %5087 = vbcast.lane.b32.xlu0 %v5041, %s5086
      %v5088 = vpop.permute.xlu0 %5087
      %s5090 = sor.u32 256, 96
      %5091 = vbcast.lane.b32.xlu0 %v5041, %s5090
      %v5092 = vpop.permute.xlu0 %5091
      %s5094 = sor.u32 256, 104
      %5095 = vbcast.lane.b32.xlu0 %v5041, %s5094
      %v5096 = vpop.permute.xlu0 %5095
      %s5098 = sor.u32 256, 112
      %5099 = vbcast.lane.b32.xlu0 %v5041, %s5098
      %v5100 = vpop.permute.xlu0 %5099
      %s5102 = sor.u32 256, 120
      %5103 = vbcast.lane.b32.xlu0 %v5041, %s5102
      %v5104 = vpop.permute.xlu0 %5103
      %v5105 = vlaneseq
      %v5106 = vshrl.u32 %v5105, 7
      %v5107 = vsub.s32 5, %v5106
      %v5108 = vrot.slane %v4638, %v5107
      %5110 = vbcast.lane.b32.xlu0 %v5108, 256
      %v5111 = vpop.permute.xlu0 %5110
      %s5113 = sor.u32 256, 8
      %5114 = vbcast.lane.b32.xlu0 %v5108, %s5113
      %v5115 = vpop.permute.xlu0 %5114
      %s5117 = sor.u32 256, 16
      %5118 = vbcast.lane.b32.xlu0 %v5108, %s5117
      %v5119 = vpop.permute.xlu0 %5118
      %s5121 = sor.u32 256, 24
      %5122 = vbcast.lane.b32.xlu0 %v5108, %s5121
      %v5123 = vpop.permute.xlu0 %5122
      %s5125 = sor.u32 256, 32
      %5126 = vbcast.lane.b32.xlu0 %v5108, %s5125
      %v5127 = vpop.permute.xlu0 %5126
      %s5129 = sor.u32 256, 40
      %5130 = vbcast.lane.b32.xlu0 %v5108, %s5129
      %v5131 = vpop.permute.xlu0 %5130
      %s5133 = sor.u32 256, 48
      %5134 = vbcast.lane.b32.xlu0 %v5108, %s5133
      %v5135 = vpop.permute.xlu0 %5134
      %s5137 = sor.u32 256, 56
      %5138 = vbcast.lane.b32.xlu0 %v5108, %s5137
      %v5139 = vpop.permute.xlu0 %5138
      %s5141 = sor.u32 256, 64
      %5142 = vbcast.lane.b32.xlu0 %v5108, %s5141
      %v5143 = vpop.permute.xlu0 %5142
      %s5145 = sor.u32 256, 72
      %5146 = vbcast.lane.b32.xlu0 %v5108, %s5145
      %v5147 = vpop.permute.xlu0 %5146
      %s5149 = sor.u32 256, 80
      %5150 = vbcast.lane.b32.xlu0 %v5108, %s5149
      %v5151 = vpop.permute.xlu0 %5150
      %s5153 = sor.u32 256, 88
      %5154 = vbcast.lane.b32.xlu0 %v5108, %s5153
      %v5155 = vpop.permute.xlu0 %5154
      %s5157 = sor.u32 256, 96
      %5158 = vbcast.lane.b32.xlu0 %v5108, %s5157
      %v5159 = vpop.permute.xlu0 %5158
      %s5161 = sor.u32 256, 104
      %5162 = vbcast.lane.b32.xlu0 %v5108, %s5161
      %v5163 = vpop.permute.xlu0 %5162
      %s5165 = sor.u32 256, 112
      %5166 = vbcast.lane.b32.xlu0 %v5108, %s5165
      %v5167 = vpop.permute.xlu0 %5166
      %s5169 = sor.u32 256, 120
      %5170 = vbcast.lane.b32.xlu0 %v5108, %s5169
      %v5171 = vpop.permute.xlu0 %5170
      %v5172 = vlaneseq
      %v5173 = vshrl.u32 %v5172, 7
      %v5174 = vsub.s32 6, %v5173
      %v5175 = vrot.slane %v4638, %v5174
      %5177 = vbcast.lane.b32.xlu0 %v5175, 256
      %v5178 = vpop.permute.xlu0 %5177
      %s5180 = sor.u32 256, 8
      %5181 = vbcast.lane.b32.xlu0 %v5175, %s5180
      %v5182 = vpop.permute.xlu0 %5181
      %s5184 = sor.u32 256, 16
      %5185 = vbcast.lane.b32.xlu0 %v5175, %s5184
      %v5186 = vpop.permute.xlu0 %5185
      %s5188 = sor.u32 256, 24
      %5189 = vbcast.lane.b32.xlu0 %v5175, %s5188
      %v5190 = vpop.permute.xlu0 %5189
      %s5192 = sor.u32 256, 32
      %5193 = vbcast.lane.b32.xlu0 %v5175, %s5192
      %v5194 = vpop.permute.xlu0 %5193
      %s5196 = sor.u32 256, 40
      %5197 = vbcast.lane.b32.xlu0 %v5175, %s5196
      %v5198 = vpop.permute.xlu0 %5197
      %s5200 = sor.u32 256, 48
      %5201 = vbcast.lane.b32.xlu0 %v5175, %s5200
      %v5202 = vpop.permute.xlu0 %5201
      %s5204 = sor.u32 256, 56
      %5205 = vbcast.lane.b32.xlu0 %v5175, %s5204
      %v5206 = vpop.permute.xlu0 %5205
      %s5208 = sor.u32 256, 64
      %5209 = vbcast.lane.b32.xlu0 %v5175, %s5208
      %v5210 = vpop.permute.xlu0 %5209
      %s5212 = sor.u32 256, 72
      %5213 = vbcast.lane.b32.xlu0 %v5175, %s5212
      %v5214 = vpop.permute.xlu0 %5213
      %s5216 = sor.u32 256, 80
      %5217 = vbcast.lane.b32.xlu0 %v5175, %s5216
      %v5218 = vpop.permute.xlu0 %5217
      %s5220 = sor.u32 256, 88
      %5221 = vbcast.lane.b32.xlu0 %v5175, %s5220
      %v5222 = vpop.permute.xlu0 %5221
      %s5224 = sor.u32 256, 96
      %5225 = vbcast.lane.b32.xlu0 %v5175, %s5224
      %v5226 = vpop.permute.xlu0 %5225
      %s5228 = sor.u32 256, 104
      %5229 = vbcast.lane.b32.xlu0 %v5175, %s5228
      %v5230 = vpop.permute.xlu0 %5229
      %s5232 = sor.u32 256, 112
      %5233 = vbcast.lane.b32.xlu0 %v5175, %s5232
      %v5234 = vpop.permute.xlu0 %5233
      %s5236 = sor.u32 256, 120
      %5237 = vbcast.lane.b32.xlu0 %v5175, %s5236
      %v5238 = vpop.permute.xlu0 %5237
      %v5239 = vlaneseq
      %v5240 = vshrl.u32 %v5239, 7
      %v5241 = vsub.s32 7, %v5240
      %v5242 = vrot.slane %v4638, %v5241
      %5244 = vbcast.lane.b32.xlu0 %v5242, 256
      %v5245 = vpop.permute.xlu0 %5244
      %s5247 = sor.u32 256, 8
      %5248 = vbcast.lane.b32.xlu0 %v5242, %s5247
      %v5249 = vpop.permute.xlu0 %5248
      %s5251 = sor.u32 256, 16
      %5252 = vbcast.lane.b32.xlu0 %v5242, %s5251
      %v5253 = vpop.permute.xlu0 %5252
      %s5255 = sor.u32 256, 24
      %5256 = vbcast.lane.b32.xlu0 %v5242, %s5255
      %v5257 = vpop.permute.xlu0 %5256
      %s5259 = sor.u32 256, 32
      %5260 = vbcast.lane.b32.xlu0 %v5242, %s5259
      %v5261 = vpop.permute.xlu0 %5260
      %s5263 = sor.u32 256, 40
      %5264 = vbcast.lane.b32.xlu0 %v5242, %s5263
      %v5265 = vpop.permute.xlu0 %5264
      %s5267 = sor.u32 256, 48
      %5268 = vbcast.lane.b32.xlu0 %v5242, %s5267
      %v5269 = vpop.permute.xlu0 %5268
      %s5271 = sor.u32 256, 56
      %5272 = vbcast.lane.b32.xlu0 %v5242, %s5271
      %v5273 = vpop.permute.xlu0 %5272
      %s5275 = sor.u32 256, 64
      %5276 = vbcast.lane.b32.xlu0 %v5242, %s5275
      %v5277 = vpop.permute.xlu0 %5276
      %s5279 = sor.u32 256, 72
      %5280 = vbcast.lane.b32.xlu0 %v5242, %s5279
      %v5281 = vpop.permute.xlu0 %5280
      %s5283 = sor.u32 256, 80
      %5284 = vbcast.lane.b32.xlu0 %v5242, %s5283
      %v5285 = vpop.permute.xlu0 %5284
      %s5287 = sor.u32 256, 88
      %5288 = vbcast.lane.b32.xlu0 %v5242, %s5287
      %v5289 = vpop.permute.xlu0 %5288
      %s5291 = sor.u32 256, 96
      %5292 = vbcast.lane.b32.xlu0 %v5242, %s5291
      %v5293 = vpop.permute.xlu0 %5292
      %s5295 = sor.u32 256, 104
      %5296 = vbcast.lane.b32.xlu0 %v5242, %s5295
      %v5297 = vpop.permute.xlu0 %5296
      %s5299 = sor.u32 256, 112
      %5300 = vbcast.lane.b32.xlu0 %v5242, %s5299
      %v5301 = vpop.permute.xlu0 %5300
      %s5303 = sor.u32 256, 120
      %5304 = vbcast.lane.b32.xlu0 %v5242, %s5303
      %v5305 = vpop.permute.xlu0 %5304
      %v5306 = vmul.f32 %v4642, %v4776
      %v5307 = vmul.f32 %v4643, %v4780
      %v5308 = vmul.f32 %v4644, %v4784
      %v5309 = vmul.f32 %v4645, %v4788
      %v5310 = vmul.f32 %v4646, %v4792
      %v5311 = vmul.f32 %v4647, %v4796
      %v5312 = vmul.f32 %v4648, %v4800
      %v5313 = vmul.f32 %v4649, %v4804
      %v5314 = vmul.f32 %v4650, %v4808
      %v5315 = vmul.f32 %v4651, %v4812
      %v5316 = vmul.f32 %v4652, %v4816
      %v5317 = vmul.f32 %v4653, %v4820
      %v5318 = vmul.f32 %v4654, %v4824
      %v5319 = vmul.f32 %v4655, %v4828
      %v5320 = vmul.f32 %v4656, %v4832
      %v5321 = vmul.f32 %v4657, %v4836
      %v5322 = vmul.f32 %v4658, %v4843
      %v5323 = vmul.f32 %v4659, %v4847
      %v5324 = vmul.f32 %v4660, %v4851
      %v5325 = vmul.f32 %v4661, %v4855
      %v5326 = vmul.f32 %v4662, %v4859
      %v5327 = vmul.f32 %v4663, %v4863
      %v5328 = vmul.f32 %v4664, %v4867
      %v5329 = vmul.f32 %v4665, %v4871
      %v5330 = vmul.f32 %v4666, %v4875
      %v5331 = vmul.f32 %v4667, %v4879
      %v5332 = vmul.f32 %v4668, %v4883
      %v5333 = vmul.f32 %v4669, %v4887
      %v5334 = vmul.f32 %v4670, %v4891
      %v5335 = vmul.f32 %v4671, %v4895
      %v5336 = vmul.f32 %v4672, %v4899
      %v5337 = vmul.f32 %v4673, %v4903
      %v5338 = vmul.f32 %v4674, %v4910
      %v5339 = vmul.f32 %v4675, %v4914
      %v5340 = vmul.f32 %v4676, %v4918
      %v5341 = vmul.f32 %v4677, %v4922
      %v5342 = vmul.f32 %v4678, %v4926
      %v5343 = vmul.f32 %v4679, %v4930
      %v5344 = vmul.f32 %v4680, %v4934
      %v5345 = vmul.f32 %v4681, %v4938
      %v5346 = vmul.f32 %v4682, %v4942
      %v5347 = vmul.f32 %v4683, %v4946
      %v5348 = vmul.f32 %v4684, %v4950
      %v5349 = vmul.f32 %v4685, %v4954
      %v5350 = vmul.f32 %v4686, %v4958
      %v5351 = vmul.f32 %v4687, %v4962
      %v5352 = vmul.f32 %v4688, %v4966
      %v5353 = vmul.f32 %v4689, %v4970
      %v5354 = vmul.f32 %v4690, %v4977
      %v5355 = vmul.f32 %v4691, %v4981
      %v5356 = vmul.f32 %v4692, %v4985
      %v5357 = vmul.f32 %v4693, %v4989
      %v5358 = vmul.f32 %v4694, %v4993
      %v5359 = vmul.f32 %v4695, %v4997
      %v5360 = vmul.f32 %v4696, %v5001
      %v5361 = vmul.f32 %v4697, %v5005
      %v5362 = vmul.f32 %v4698, %v5009
      %v5363 = vmul.f32 %v4699, %v5013
      %v5364 = vmul.f32 %v4700, %v5017
      %v5365 = vmul.f32 %v4701, %v5021
      %v5366 = vmul.f32 %v4702, %v5025
      %v5367 = vmul.f32 %v4703, %v5029
      %v5368 = vmul.f32 %v4704, %v5033
      %v5369 = vmul.f32 %v4705, %v5037
      %v5370 = vmul.f32 %v4706, %v5044
      %v5371 = vmul.f32 %v4707, %v5048
      %v5372 = vmul.f32 %v4708, %v5052
      %v5373 = vmul.f32 %v4709, %v5056
      %v5374 = vmul.f32 %v4710, %v5060
      %v5375 = vmul.f32 %v4711, %v5064
      %v5376 = vmul.f32 %v4712, %v5068
      %v5377 = vmul.f32 %v4713, %v5072
      %v5378 = vmul.f32 %v4714, %v5076
      %v5379 = vmul.f32 %v4715, %v5080
      %v5380 = vmul.f32 %v4716, %v5084
      %v5381 = vmul.f32 %v4717, %v5088
      %v5382 = vmul.f32 %v4718, %v5092
      %v5383 = vmul.f32 %v4719, %v5096
      %v5384 = vmul.f32 %v4720, %v5100
      %v5385 = vmul.f32 %v4721, %v5104
      %v5386 = vmul.f32 %v4722, %v5111
      %v5387 = vmul.f32 %v4723, %v5115
      %v5388 = vmul.f32 %v4724, %v5119
      %v5389 = vmul.f32 %v4725, %v5123
      %v5390 = vmul.f32 %v4726, %v5127
      %v5391 = vmul.f32 %v4727, %v5131
      %v5392 = vmul.f32 %v4728, %v5135
      %v5393 = vmul.f32 %v4729, %v5139
      %v5394 = vmul.f32 %v4730, %v5143
      %v5395 = vmul.f32 %v4731, %v5147
      %v5396 = vmul.f32 %v4732, %v5151
      %v5397 = vmul.f32 %v4733, %v5155
      %v5398 = vmul.f32 %v4734, %v5159
      %v5399 = vmul.f32 %v4735, %v5163
      %v5400 = vmul.f32 %v4736, %v5167
      %v5401 = vmul.f32 %v4737, %v5171
      %v5402 = vmul.f32 %v4738, %v5178
      %v5403 = vmul.f32 %v4739, %v5182
      %v5404 = vmul.f32 %v4740, %v5186
      %v5405 = vmul.f32 %v4741, %v5190
      %v5406 = vmul.f32 %v4742, %v5194
      %v5407 = vmul.f32 %v4743, %v5198
      %v5408 = vmul.f32 %v4744, %v5202
      %v5409 = vmul.f32 %v4745, %v5206
      %v5410 = vmul.f32 %v4746, %v5210
      %v5411 = vmul.f32 %v4747, %v5214
      %v5412 = vmul.f32 %v4748, %v5218
      %v5413 = vmul.f32 %v4749, %v5222
      %v5414 = vmul.f32 %v4750, %v5226
      %v5415 = vmul.f32 %v4751, %v5230
      %v5416 = vmul.f32 %v4752, %v5234
      %v5417 = vmul.f32 %v4753, %v5238
      %v5418 = vmul.f32 %v4754, %v5245
      %v5419 = vmul.f32 %v4755, %v5249
      %v5420 = vmul.f32 %v4756, %v5253
      %v5421 = vmul.f32 %v4757, %v5257
      %v5422 = vmul.f32 %v4758, %v5261
      %v5423 = vmul.f32 %v4759, %v5265
      %v5424 = vmul.f32 %v4760, %v5269
      %v5425 = vmul.f32 %v4761, %v5273
      %v5426 = vmul.f32 %v4762, %v5277
      %v5427 = vmul.f32 %v4763, %v5281
      %v5428 = vmul.f32 %v4764, %v5285
      %v5429 = vmul.f32 %v4765, %v5289
      %v5430 = vmul.f32 %v4766, %v5293
      %v5431 = vmul.f32 %v4767, %v5297
      %v5432 = vmul.f32 %v4768, %v5301
      %v5433 = vmul.f32 %v4769, %v5305
      %v5434 = vadd.f32 %v5306, %v5307
      %v5435 = vadd.f32 %v5434, %v5308
      %v5436 = vadd.f32 %v5435, %v5309
      %v5437 = vadd.f32 %v5436, %v5310
      %v5438 = vadd.f32 %v5437, %v5311
      %v5439 = vadd.f32 %v5438, %v5312
      %v5440 = vadd.f32 %v5439, %v5313
      %v5441 = vadd.f32 %v5440, %v5314
      %v5442 = vadd.f32 %v5441, %v5315
      %v5443 = vadd.f32 %v5442, %v5316
      %v5444 = vadd.f32 %v5443, %v5317
      %v5445 = vadd.f32 %v5444, %v5318
      %v5446 = vadd.f32 %v5445, %v5319
      %v5447 = vadd.f32 %v5446, %v5320
      %v5448 = vadd.f32 %v5447, %v5321
      %v5449 = vrot.slane %v5448, 4
      %v5450 = vadd.f32 %v5448, %v5449
      %v5451 = vrot.slane %v5450, 2
      %v5452 = vadd.f32 %v5450, %v5451
      %v5453 = vrot.slane %v5452, 1
      %v5454 = vadd.f32 %v5452, %v5453
      %v5455 = vadd.f32 %v5322, %v5323
      %v5456 = vadd.f32 %v5455, %v5324
      %v5457 = vadd.f32 %v5456, %v5325
      %v5458 = vadd.f32 %v5457, %v5326
      %v5459 = vadd.f32 %v5458, %v5327
      %v5460 = vadd.f32 %v5459, %v5328
      %v5461 = vadd.f32 %v5460, %v5329
      %v5462 = vadd.f32 %v5461, %v5330
      %v5463 = vadd.f32 %v5462, %v5331
      %v5464 = vadd.f32 %v5463, %v5332
      %v5465 = vadd.f32 %v5464, %v5333
      %v5466 = vadd.f32 %v5465, %v5334
      %v5467 = vadd.f32 %v5466, %v5335
      %v5468 = vadd.f32 %v5467, %v5336
      %v5469 = vadd.f32 %v5468, %v5337
      %v5470 = vrot.slane %v5469, 4
      %v5471 = vadd.f32 %v5469, %v5470
      %v5472 = vrot.slane %v5471, 2
      %v5473 = vadd.f32 %v5471, %v5472
      %v5474 = vrot.slane %v5473, 1
      %v5475 = vadd.f32 %v5473, %v5474
      %v5476 = vadd.f32 %v5338, %v5339
      %v5477 = vadd.f32 %v5476, %v5340
      %v5478 = vadd.f32 %v5477, %v5341
      %v5479 = vadd.f32 %v5478, %v5342
      %v5480 = vadd.f32 %v5479, %v5343
      %v5481 = vadd.f32 %v5480, %v5344
      %v5482 = vadd.f32 %v5481, %v5345
      %v5483 = vadd.f32 %v5482, %v5346
      %v5484 = vadd.f32 %v5483, %v5347
      %v5485 = vadd.f32 %v5484, %v5348
      %v5486 = vadd.f32 %v5485, %v5349
      %v5487 = vadd.f32 %v5486, %v5350
      %v5488 = vadd.f32 %v5487, %v5351
      %v5489 = vadd.f32 %v5488, %v5352
      %v5490 = vadd.f32 %v5489, %v5353
      %v5491 = vrot.slane %v5490, 4
      %v5492 = vadd.f32 %v5490, %v5491
      %v5493 = vrot.slane %v5492, 2
      %v5494 = vadd.f32 %v5492, %v5493
      %v5495 = vrot.slane %v5494, 1
      %v5496 = vadd.f32 %v5494, %v5495
      %v5497 = vadd.f32 %v5354, %v5355
      %v5498 = vadd.f32 %v5497, %v5356
      %v5499 = vadd.f32 %v5498, %v5357
      %v5500 = vadd.f32 %v5499, %v5358
      %v5501 = vadd.f32 %v5500, %v5359
      %v5502 = vadd.f32 %v5501, %v5360
      %v5503 = vadd.f32 %v5502, %v5361
      %v5504 = vadd.f32 %v5503, %v5362
      %v5505 = vadd.f32 %v5504, %v5363
      %v5506 = vadd.f32 %v5505, %v5364
      %v5507 = vadd.f32 %v5506, %v5365
      %v5508 = vadd.f32 %v5507, %v5366
      %v5509 = vadd.f32 %v5508, %v5367
      %v5510 = vadd.f32 %v5509, %v5368
      %v5511 = vadd.f32 %v5510, %v5369
      %v5512 = vrot.slane %v5511, 4
      %v5513 = vadd.f32 %v5511, %v5512
      %v5514 = vrot.slane %v5513, 2
      %v5515 = vadd.f32 %v5513, %v5514
      %v5516 = vrot.slane %v5515, 1
      %v5517 = vadd.f32 %v5515, %v5516
      %v5518 = vadd.f32 %v5370, %v5371
      %v5519 = vadd.f32 %v5518, %v5372
      %v5520 = vadd.f32 %v5519, %v5373
      %v5521 = vadd.f32 %v5520, %v5374
      %v5522 = vadd.f32 %v5521, %v5375
      %v5523 = vadd.f32 %v5522, %v5376
      %v5524 = vadd.f32 %v5523, %v5377
      %v5525 = vadd.f32 %v5524, %v5378
      %v5526 = vadd.f32 %v5525, %v5379
      %v5527 = vadd.f32 %v5526, %v5380
      %v5528 = vadd.f32 %v5527, %v5381
      %v5529 = vadd.f32 %v5528, %v5382
      %v5530 = vadd.f32 %v5529, %v5383
      %v5531 = vadd.f32 %v5530, %v5384
      %v5532 = vadd.f32 %v5531, %v5385
      %v5533 = vrot.slane %v5532, 4
      %v5534 = vadd.f32 %v5532, %v5533
      %v5535 = vrot.slane %v5534, 2
      %v5536 = vadd.f32 %v5534, %v5535
      %v5537 = vrot.slane %v5536, 1
      %v5538 = vadd.f32 %v5536, %v5537
      %v5539 = vadd.f32 %v5386, %v5387
      %v5540 = vadd.f32 %v5539, %v5388
      %v5541 = vadd.f32 %v5540, %v5389
      %v5542 = vadd.f32 %v5541, %v5390
      %v5543 = vadd.f32 %v5542, %v5391
      %v5544 = vadd.f32 %v5543, %v5392
      %v5545 = vadd.f32 %v5544, %v5393
      %v5546 = vadd.f32 %v5545, %v5394
      %v5547 = vadd.f32 %v5546, %v5395
      %v5548 = vadd.f32 %v5547, %v5396
      %v5549 = vadd.f32 %v5548, %v5397
      %v5550 = vadd.f32 %v5549, %v5398
      %v5551 = vadd.f32 %v5550, %v5399
      %v5552 = vadd.f32 %v5551, %v5400
      %v5553 = vadd.f32 %v5552, %v5401
      %v5554 = vrot.slane %v5553, 4
      %v5555 = vadd.f32 %v5553, %v5554
      %v5556 = vrot.slane %v5555, 2
      %v5557 = vadd.f32 %v5555, %v5556
      %v5558 = vrot.slane %v5557, 1
      %v5559 = vadd.f32 %v5557, %v5558
      %v5560 = vadd.f32 %v5402, %v5403
      %v5561 = vadd.f32 %v5560, %v5404
      %v5562 = vadd.f32 %v5561, %v5405
      %v5563 = vadd.f32 %v5562, %v5406
      %v5564 = vadd.f32 %v5563, %v5407
      %v5565 = vadd.f32 %v5564, %v5408
      %v5566 = vadd.f32 %v5565, %v5409
      %v5567 = vadd.f32 %v5566, %v5410
      %v5568 = vadd.f32 %v5567, %v5411
      %v5569 = vadd.f32 %v5568, %v5412
      %v5570 = vadd.f32 %v5569, %v5413
      %v5571 = vadd.f32 %v5570, %v5414
      %v5572 = vadd.f32 %v5571, %v5415
      %v5573 = vadd.f32 %v5572, %v5416
      %v5574 = vadd.f32 %v5573, %v5417
      %v5575 = vrot.slane %v5574, 4
      %v5576 = vadd.f32 %v5574, %v5575
      %v5577 = vrot.slane %v5576, 2
      %v5578 = vadd.f32 %v5576, %v5577
      %v5579 = vrot.slane %v5578, 1
      %v5580 = vadd.f32 %v5578, %v5579
      %v5581 = vadd.f32 %v5418, %v5419
      %v5582 = vadd.f32 %v5581, %v5420
      %v5583 = vadd.f32 %v5582, %v5421
      %v5584 = vadd.f32 %v5583, %v5422
      %v5585 = vadd.f32 %v5584, %v5423
      %v5586 = vadd.f32 %v5585, %v5424
      %v5587 = vadd.f32 %v5586, %v5425
      %v5588 = vadd.f32 %v5587, %v5426
      %v5589 = vadd.f32 %v5588, %v5427
      %v5590 = vadd.f32 %v5589, %v5428
      %v5591 = vadd.f32 %v5590, %v5429
      %v5592 = vadd.f32 %v5591, %v5430
      %v5593 = vadd.f32 %v5592, %v5431
      %v5594 = vadd.f32 %v5593, %v5432
      %v5595 = vadd.f32 %v5594, %v5433
      %v5596 = vrot.slane %v5595, 4
      %v5597 = vadd.f32 %v5595, %v5596
      %v5598 = vrot.slane %v5597, 2
      %v5599 = vadd.f32 %v5597, %v5598
      %v5600 = vrot.slane %v5599, 1
      %v5601 = vadd.f32 %v5599, %v5600
      %v5603 = vrot.slane %v2822, 1
      %v5604 = vrot.slane %v2822, 2
      %v5605 = vrot.slane %v2822, 3
      %v5606 = vrot.slane %v2822, 4
      %v5607 = vrot.slane %v2822, 5
      %v5608 = vrot.slane %v2822, 6
      %v5609 = vrot.slane %v2822, 7
      %v5618 = vadd.f32 %v5454, %v2822
      %v5619 = vadd.f32 %v5475, %v5603
      %v5620 = vadd.f32 %v5496, %v5604
      %v5621 = vadd.f32 %v5517, %v5605
      %v5622 = vadd.f32 %v5538, %v5606
      %v5623 = vadd.f32 %v5559, %v5607
      %v5624 = vadd.f32 %v5580, %v5608
      %v5625 = vadd.f32 %v5601, %v5609
      %v5626 = vld [vmem:[%s17] sm:$0x1]
      %v5628 = vlaneseq
      %v5629 = vshrl.u32 %v5628, 7
      %v5630 = vsub.s32 0, %v5629
      %v5631 = vrot.slane %v5626, %v5630
      %v5633 = vadd.f32 %v5618, %v5631
      %v5634 = vadd.f32 %v5619, %v5631
      %v5635 = vadd.f32 %v5620, %v5631
      %v5636 = vadd.f32 %v5621, %v5631
      %v5637 = vadd.f32 %v5622, %v5631
      %v5638 = vadd.f32 %v5623, %v5631
      %v5639 = vadd.f32 %v5624, %v5631
      %v5640 = vadd.f32 %v5625, %v5631
      %v5641 = vmax.f32 %v5633, 0.0
      %v5642 = vmax.f32 %v5634, 0.0
      %v5643 = vmax.f32 %v5635, 0.0
      %v5644 = vmax.f32 %v5636, 0.0
      %v5645 = vmax.f32 %v5637, 0.0
      %v5646 = vmax.f32 %v5638, 0.0
      %v5647 = vmax.f32 %v5639, 0.0
      %v5648 = vmax.f32 %v5640, 0.0
      %v5657 = vrot.slane %v5642, 7
      %v5658 = vsel %vm4614, %v5657, %v5641
      %v5659 = vrot.slane %v5643, 6
      %v5660 = vsel %vm4616, %v5659, %v5658
      %v5661 = vrot.slane %v5644, 5
      %v5662 = vsel %vm4618, %v5661, %v5660
      %v5663 = vrot.slane %v5645, 4
      %v5664 = vsel %vm4620, %v5663, %v5662
      %v5665 = vrot.slane %v5646, 3
      %v5666 = vsel %vm4622, %v5665, %v5664
      %v5667 = vrot.slane %v5647, 2
      %v5668 = vsel %vm4624, %v5667, %v5666
      %v5669 = vrot.slane %v5648, 1
      %v5670 = vsel %vm4626, %v5669, %v5668
      %5672 = vst [vmem:[#allocation3] sm:$0xff] %v5670
      %v5673 = vpack.c.bf16 %v5641, %v5641
      %v5674 = vpack.c.bf16 %v5642, %v5642
      %v5675 = vpack.c.bf16 %v5643, %v5643
      %v5676 = vpack.c.bf16 %v5644, %v5644
      %v5677 = vpack.c.bf16 %v5645, %v5645
      %v5678 = vpack.c.bf16 %v5646, %v5646
      %v5679 = vpack.c.bf16 %v5647, %v5647
      %v5680 = vpack.c.bf16 %v5648, %v5648
      %v5681 = vld [vmem:[%s18] sm:$0xf]
      %v5682 = vld [vmem:[%s18 + $0x4] sm:$0xf]
      %v5683 = vld [vmem:[%s18 + $0x8] sm:$0xf]
      %v5684 = vld [vmem:[%s18 + $0xc] sm:$0xf]
      %v5685 = vld [vmem:[%s18 + $0x10] sm:$0xf]
      %v5686 = vld [vmem:[%s18 + $0x14] sm:$0xf]
      %v5687 = vld [vmem:[%s18 + $0x18] sm:$0xf]
      %v5688 = vld [vmem:[%s18 + $0x1c] sm:$0xf]
      %v5689 = vld [vmem:[%s18 + $0x20] sm:$0xf]
      %v5690 = vld [vmem:[%s18 + $0x24] sm:$0xf]
      %v5691 = vld [vmem:[%s18 + $0x28] sm:$0xf]
      %v5692 = vld [vmem:[%s18 + $0x2c] sm:$0xf]
      %v5693 = vld [vmem:[%s18 + $0x30] sm:$0xf]
      %v5694 = vld [vmem:[%s18 + $0x34] sm:$0xf]
      %v5695 = vld [vmem:[%s18 + $0x38] sm:$0xf]
      %v5696 = vld [vmem:[%s18 + $0x3c] sm:$0xf]
      %v5697 = vld [vmem:[%s19] sm:$0x1]
      %v5699 = vlaneseq
      %v5700 = vshrl.u32 %v5699, 7
      %v5701 = vsub.s32 0, %v5700
      %v5702 = vrot.slane %v5697, %v5701
      %v5712 = vunpack.c.l.b16 %v5673
      %v5713 = vunpack.c.l.b16 %v5674
      %v5714 = vunpack.c.l.b16 %v5675
      %v5715 = vunpack.c.l.b16 %v5676
      %v5716 = vunpack.c.l.b16 %v5677
      %v5717 = vunpack.c.l.b16 %v5678
      %v5718 = vunpack.c.l.b16 %v5679
      %v5719 = vunpack.c.l.b16 %v5680
      %v5720 = vrot.slane %v5713, 7
      %v5721 = vsel %vm4614, %v5720, %v5712
      %v5722 = vrot.slane %v5714, 6
      %v5723 = vsel %vm4616, %v5722, %v5721
      %v5724 = vrot.slane %v5715, 5
      %v5725 = vsel %vm4618, %v5724, %v5723
      %v5726 = vrot.slane %v5716, 4
      %v5727 = vsel %vm4620, %v5726, %v5725
      %v5728 = vrot.slane %v5717, 3
      %v5729 = vsel %vm4622, %v5728, %v5727
      %v5730 = vrot.slane %v5718, 2
      %v5731 = vsel %vm4624, %v5730, %v5729
      %v5732 = vrot.slane %v5719, 1
      %v5733 = vsel %vm4626, %v5732, %v5731
      %v5734 = vpack.c.b16 %v5733, %v5733
      %v5752 = vunpack.c.l.b16 %v5681
      %v5753 = vunpack.c.l.b16 %v5682
      %v5754 = vunpack.c.l.b16 %v5683
      %v5755 = vunpack.c.l.b16 %v5684
      %v5756 = vunpack.c.l.b16 %v5685
      %v5757 = vunpack.c.l.b16 %v5686
      %v5758 = vunpack.c.l.b16 %v5687
      %v5759 = vunpack.c.l.b16 %v5688
      %v5760 = vunpack.c.l.b16 %v5689
      %v5761 = vunpack.c.l.b16 %v5690
      %v5762 = vunpack.c.l.b16 %v5691
      %v5763 = vunpack.c.l.b16 %v5692
      %v5764 = vunpack.c.l.b16 %v5693
      %v5765 = vunpack.c.l.b16 %v5694
      %v5766 = vunpack.c.l.b16 %v5695
      %v5767 = vunpack.c.l.b16 %v5696
      %v5768 = vpack.c.b16 %v5753, %v5752
      %v5769 = vpack.c.b16 %v5755, %v5754
      %v5770 = vpack.c.b16 %v5757, %v5756
      %v5771 = vpack.c.b16 %v5759, %v5758
      %v5772 = vpack.c.b16 %v5761, %v5760
      %v5773 = vpack.c.b16 %v5763, %v5762
      %v5774 = vpack.c.b16 %v5765, %v5764
      %v5775 = vpack.c.b16 %v5767, %v5766
      %5784 = vmatprep.subr.bf16.mxu0 0
      %5785 = vmatpush1.bf16.msra.mxu0 %v5768
      %5786 = vmatprep.subr.bf16.mxu0 0
      %5787 = vmatpush1.bf16.msra.mxu0 %v5769
      %5788 = vmatprep.subr.bf16.mxu0 0
      %5789 = vmatpush1.bf16.msra.mxu0 %v5770
      %5790 = vmatprep.subr.bf16.mxu0 0
      %5791 = vmatpush1.bf16.msra.mxu0 %v5771
      %5792 = vmatprep.subr.bf16.mxu0 0
      %5793 = vmatpush1.bf16.msra.mxu0 %v5772
      %5794 = vmatprep.subr.bf16.mxu0 0
      %5795 = vmatpush1.bf16.msra.mxu0 %v5773
      %5796 = vmatprep.subr.bf16.mxu0 0
      %5797 = vmatpush1.bf16.msra.mxu0 %v5774
      %5798 = vmatprep.subr.bf16.mxu0 0
      %5799 = vmatpush1.bf16.msra.mxu0 %v5775
      %5800 = vmatprep.subr.bf16.mxu0 0
      %5801 = vmatpush1.bf16.msra.mxu0 0
      %5802 = vmatprep.subr.bf16.mxu0 0
      %5803 = vmatpush1.bf16.msra.mxu0 0
      %5804 = vmatprep.subr.bf16.mxu0 0
      %5805 = vmatpush1.bf16.msra.mxu0 0
      %5806 = vmatprep.subr.bf16.mxu0 0
      %5807 = vmatpush1.bf16.msra.mxu0 0
      %5808 = vmatprep.subr.bf16.mxu0 0
      %5809 = vmatpush1.bf16.msra.mxu0 0
      %5810 = vmatprep.subr.bf16.mxu0 0
      %5811 = vmatpush1.bf16.msra.mxu0 0
      %5812 = vmatprep.subr.bf16.mxu0 0
      %5813 = vmatpush1.bf16.msra.mxu0 0
      %5814 = vmatprep.subr.bf16.mxu0 0
      %5815 = vmatpush1.bf16.msra.mxu0 0
      %5816 = vmatprep.mubr.bf16.mxu0 0
      %5817 = vmatmul.mubr.bf16.gmra.mrb[0].mxu0 %v5734
      %v5818 = vpop.f32.mrb[0].mxu0
      %v5819 = vadd.f32 %v5702, %v5818
      %v5820 = vpop.f32.mrb[0].mxu0
      %v5821 = vpop.f32.mrb[0].mxu0
      %v5822 = vpop.f32.mrb[0].mxu0
      %5823 = vdwg.mxu0
      %v5824 = vsel %vm1719, %v5819, -inf
      %5825 = vmax.xlane.f32.xlu0 %v5824
      %v5826 = vpop.xlane.xlu0 %5825
      %vm5827 = vcmp.eq.f32.partialorder %v5819, %v5826
      %v5828 = vsel %vm5827, %v1460, 16
      %v5829 = vsel %vm1719, %v5828, 2147483647
      %v5830 = vand.u32 %v5829, 65535
      %v5831 = vshra.s32 %v5829, 16
      %v5832 = vcvt.s32.f32 %v5830
      %v5833 = vcvt.s32.f32 %v5831
      %5834 = vmin.xlane.f32.xlu0 %v5833
      %v5835 = vpop.xlane.xlu0 %5834
      %vm5836 = vcmp.eq.f32.partialorder %v5833, %v5835
      %v5837 = vsel %vm5836, %v5832, inf
      %5838 = vmin.xlane.f32.xlu0 %v5837
      %v5839 = vpop.xlane.xlu0 %5838
      %v5840 = vcvt.f32.s32 %v5839
      %v5841 = vcvt.f32.s32 %v5835
      %v5842 = vshll.u32 %v5841, 16
      %v5843 = vadd.s32 %v5842, %v5840
      %vm5844 = vcmp.lt.s32.totalorder %v5843, 15
      %v5845 = vsel %vm5844, %v5843, 15
      %s5846 = sadd.s32 %s1454, 1
      %v5847 = vlaneseq
      %v5848 = vshrl.u32 %v5847, 7
      %v5849 = vsub.s32 %v1460, %v5848
      %v5850 = vrot.slane %v5845, %v5849
      %s5851 = scalar_lea.vmem %s20, %s5846
      %5852 = vst.msk [vmem:[%s5851] sm:$0x1] %vm75, %v5850
      %5853 = vst.msk [vmem:[#allocation4] sm:$0xff] %vm77, %v5845
    $region86: #{tpu_custom_call.1} parent=1 // loop_footer
      %s1458 = sadd.s32 1, %s1454
    $region87: #{tpu_custom_call.1} parent=1 // loop_footer_branch
      %1453 = sbr.rel target = $region83
    $region88: #{tpu_custom_call.1} parent=1 // loop_exit
      _
    // Predicated region
    $region89: #{tpu_custom_call.1} parent=1 // pred_check
      _
    $region90: #{tpu_custom_call.1} parent=1 // pred_check_branch
      %5855 = sbr.rel (0) target = $region92
    $region91: #{tpu_custom_call.1} parent=1 // pred_region
      _
    $region92: #{tpu_custom_call.1} parent=1 // pred_fallthru
      _
    // Predicated region
    $region93: #{tpu_custom_call.1} parent=1 // pred_check
      _
    $region94: #{tpu_custom_call.1} parent=1 // pred_check_branch
      %5857 = sbr.rel (0) target = $region96
    $region95: #{tpu_custom_call.1} parent=1 // pred_region
      %s5859 = ssub.s32 12800, 12800
      %5860 = vsyncadd [#allocation8], %s5859
      %s5861 = sshll.u32 [#allocation7], 4
      %s5862 = int_to_ptr.vmem [resolvable:$true] %s5861
      %5867 = dma.vmem_to_hbm [thread:$0]  %s5862, 12800, %s21, [#allocation8], 128, 128, 8
    $region96: #{tpu_custom_call.1} parent=1 // pred_fallthru
      _
    // Predicated region
    $region97: #{tpu_custom_call.1} parent=1 // pred_check
      _
    $region98: #{tpu_custom_call.1} parent=1 // pred_check_branch
      %5869 = sbr.rel (0) target = $region100
    $region99: #{tpu_custom_call.1} parent=1 // pred_region
      _
    $region100: #{tpu_custom_call.1} parent=1 // pred_fallthru
      _
    // Predicated region
    $region101: #{tpu_custom_call.1} parent=1 // pred_check
      _
    $region102: #{tpu_custom_call.1} parent=1 // pred_check_branch
      %5871 = sbr.rel (0) target = $region104
    $region103: #{tpu_custom_call.1} parent=1 // pred_region
      %5872 = dma.done [#allocation8], 12800
    $region104: #{tpu_custom_call.1} parent=1 // pred_fallthru
      _
    %5873 = vsyncpa [#allocation8], 1

</llo_original>
